<compile_context>
chip_gen: v7x
topology: tpu7x:2x2x1
jax: 0.10.0
libtpu: 0.0.40
codegen_flags: <defaults>
</compile_context>

<pallas_src>
import math

import jax
import jax.numpy as jnp
from jax.experimental import pallas as pl
from jax.experimental.pallas import tpu as pltpu  # noqa: F401  (TPU backend)

# ----------------------------- hyper parameters -----------------------------
INPUT_DIM = 16
IN_LEN = 8          # T
OUTPUT_DIM = 8
D_MODEL = 32
D_FF = 64
NHEADS = 4
N_LAYERS = 2
N_EXPERTS = 2       # routing below is specialized to top-1 over 2 experts
CAPACITY_FACTOR = 1.0
BATCH = 2
LN_EPS = 1e-5


# --------------------------- in-kernel helper math ---------------------------
def _layernorm(x, g, b):
    mu = jnp.mean(x, axis=-1, keepdims=True)
    var = jnp.mean((x - mu) ** 2, axis=-1, keepdims=True)
    return (x - mu) * jax.lax.rsqrt(var + LN_EPS) * g + b


def _softmax_last(x):
    m = jnp.max(x, axis=-1, keepdims=True)
    e = jnp.exp(x - m)
    return e / jnp.sum(e, axis=-1, keepdims=True)


def _attention_core(q, k, v, tq, tk, batch, nheads, dk):
    """Scaled-dot-product attention on batch-major flat activations.

    q: (batch*tq, H*dk), k/v: (batch*tk, H*dk) -> (batch*tq, H*dk).
    Heads are contiguous dk-lane slices; batches are contiguous row slices.
    """
    if tq == 1 and tk == 1:
        # softmax over a single key is identically 1 -> per-head output == v
        return v
    scale = 1.0 / math.sqrt(dk)
    rows = []
    for b in range(batch):                       # static, fully unrolled
        qb = q[b * tq:(b + 1) * tq]
        kb = k[b * tk:(b + 1) * tk]
        vb = v[b * tk:(b + 1) * tk]
        heads = []
        for h in range(nheads):
            qh = qb[:, h * dk:(h + 1) * dk]
            kh = kb[:, h * dk:(h + 1) * dk]
            vh = vb[:, h * dk:(h + 1) * dk]
            s = jax.lax.dot_general(qh, kh, (((1,), (1,)), ((), ())),
                                    preferred_element_type=jnp.float32) * scale
            p = _softmax_last(s)
            heads.append(jnp.dot(p, vh, preferred_element_type=jnp.float32))
        rows.append(jnp.concatenate(heads, axis=1))
    return jnp.concatenate(rows, axis=0)


def _self_attention(z, wqkv, bqkv, wo, bo, t, batch, nheads, d):
    """Fused QKV projection (one (D, 3D) matmul) + attention + output proj."""
    qkv = jnp.dot(z, wqkv, preferred_element_type=jnp.float32) + bqkv
    q, k, v = qkv[:, 0:d], qkv[:, d:2 * d], qkv[:, 2 * d:3 * d]
    o = _attention_core(q, k, v, t, t, batch, nheads, d // nheads)
    return jnp.dot(o, wo, preferred_element_type=jnp.float32) + bo


def _cross_attention(z, mem, wq, bq, wkv, bkv, wo, bo, tq, tk, batch, nheads, d):
    """Query from z, fused KV projection (one (D, 2D) matmul) from memory."""
    q = jnp.dot(z, wq, preferred_element_type=jnp.float32) + bq
    kv = jnp.dot(mem, wkv, preferred_element_type=jnp.float32) + bkv
    k, v = kv[:, 0:d], kv[:, d:2 * d]
    o = _attention_core(q, k, v, tq, tk, batch, nheads, d // nheads)
    return jnp.dot(o, wo, preferred_element_type=jnp.float32) + bo


def _switch_ffn(z, wr, br, w1, b1, w2, b2, n_tokens, d):
    """Top-1 routed mixture of 2 expert FFNs, fully in-kernel.

    Both experts run in two lane-dense MXU passes: w1 is the experts' first
    layers concatenated to (D, E*D_FF); w2 is block-diagonal (E*D_FF, E*D).
    Routing / capacity handled with float masks (no gather / argmax / cumsum).
    """
    # router (E = 2)
    logits = jnp.dot(z, wr, preferred_element_type=jnp.float32) + br      # (N, 2)
    probs = _softmax_last(logits)
    p0, p1 = probs[:, 0:1], probs[:, 1:2]
    to_e1 = (p1 > p0).astype(jnp.float32)                                 # (N, 1)
    route_prob_max = jnp.maximum(p0, p1)                                  # (N, 1)

    # both experts at once
    h = jnp.maximum(jnp.dot(z, w1, preferred_element_type=jnp.float32) + b1, 0.0)
    out_all = jnp.dot(h, w2, preferred_element_type=jnp.float32) + b2     # (N, E*D)
    e0, e1 = out_all[:, 0:d], out_all[:, d:2 * d]
    sel = to_e1 * e1 + (1.0 - to_e1) * e0

    # capacity: 1-indexed position of each token within its expert, computed as
    # an inclusive prefix sum via a lower-triangular matmul (no cumsum needed).
    capacity = int(CAPACITY_FACTOR * n_tokens / N_EXPERTS)
    onehot = jnp.concatenate([1.0 - to_e1, to_e1], axis=1)                # (N, 2)
    row = jax.lax.broadcasted_iota(jnp.int32, (n_tokens, n_tokens), 0)
    col = jax.lax.broadcasted_iota(jnp.int32, (n_tokens, n_tokens), 1)
    tri = (row >= col).astype(jnp.float32)
    cum = jnp.dot(tri, onehot, preferred_element_type=jnp.float32)        # (N, 2)
    pos_in_expert = jnp.sum(cum * onehot, axis=-1, keepdims=True)         # (N, 1)
    keep = (pos_in_expert <= float(capacity)).astype(jnp.float32)

    # dropped tokens pass through z; everything scaled by the route prob
    # (matches labml is_scale_prob=True behaviour, as in the previous version)
    y = keep * sel + (1.0 - keep) * z
    return y * route_prob_max


def _encoder_layer(x, ln_g, ln_b, wqkv, bqkv, wo, bo, wr, br, w1, b1, w2, b2,
                   t, batch, nheads, d):
    z = _layernorm(x, ln_g[0:1], ln_b[0:1])
    x = x + _self_attention(z, wqkv, bqkv, wo, bo, t, batch, nheads, d)
    z = _layernorm(x, ln_g[1:2], ln_b[1:2])
    x = x + _switch_ffn(z, wr, br, w1, b1, w2, b2, t * batch, d)
    return x


def _decoder_layer(x, mem, ln_g, ln_b,
                   sa_wqkv, sa_bqkv, sa_wo, sa_bo,
                   ca_wq, ca_bq, ca_wkv, ca_bkv, ca_wo, ca_bo,
                   wr, br, w1, b1, w2, b2, t_mem, batch, nheads, d):
    z = _layernorm(x, ln_g[0:1], ln_b[0:1])
    x = x + _self_attention(z, sa_wqkv, sa_bqkv, sa_wo, sa_bo, 1, batch, nheads, d)
    z = _layernorm(x, ln_g[1:2], ln_b[1:2])
    x = x + _cross_attention(z, mem, ca_wq, ca_bq, ca_wkv, ca_bkv, ca_wo, ca_bo,
                             1, t_mem, batch, nheads, d)
    z = _layernorm(x, ln_g[2:3], ln_b[2:3])
    x = x + _switch_ffn(z, wr, br, w1, b1, w2, b2, batch, d)
    return x


# ------------------------------ the fused kernel ------------------------------
def _switch_transformer_kernel(
        x_ref, pos_ref, pre_w_ref, pre_b_ref,
        e_ln_g_ref, e_ln_b_ref, e_wqkv_ref, e_bqkv_ref, e_wo_ref, e_bo_ref,
        e_wr_ref, e_br_ref, e_w1_ref, e_b1_ref, e_w2_ref, e_b2_ref,
        dec_seed_ref,
        d_ln_g_ref, d_ln_b_ref,
        d_sa_wqkv_ref, d_sa_bqkv_ref, d_sa_wo_ref, d_sa_bo_ref,
        d_ca_wq_ref, d_ca_bq_ref, d_ca_wkv_ref, d_ca_bkv_ref,
        d_ca_wo_ref, d_ca_bo_ref,
        d_wr_ref, d_br_ref, d_w1_ref, d_b1_ref, d_w2_ref, d_b2_ref,
        final_w_ref, final_b_ref,
        o_ref):
    t, batch, d, nheads = IN_LEN, BATCH, D_MODEL, NHEADS

    # preprocess linear + positional embedding (batch-major flat tokens)
    h = jnp.dot(x_ref[...], pre_w_ref[...], preferred_element_type=jnp.float32)
    h = h + pre_b_ref[...] + pos_ref[...]                       # (N, D)

    # encoder stack; keep per-layer outputs for the decoder's cross attention
    encs = []
    for l in range(N_LAYERS):
        h = _encoder_layer(h, e_ln_g_ref[l], e_ln_b_ref[l],
                           e_wqkv_ref[l], e_bqkv_ref[l], e_wo_ref[l], e_bo_ref[l],
                           e_wr_ref[l], e_br_ref[l],
                           e_w1_ref[l], e_b1_ref[l], e_w2_ref[l], e_b2_ref[l],
                           t, batch, nheads, d)
        encs.append(h)

    # decoder (length-1 sequence seeded from decoder_fluff)
    y = dec_seed_ref[...]                                        # (B, D)
    for l in range(N_LAYERS):
        y = _decoder_layer(y, encs[l], d_ln_g_ref[l], d_ln_b_ref[l],
                           d_sa_wqkv_ref[l], d_sa_bqkv_ref[l],
                           d_sa_wo_ref[l], d_sa_bo_ref[l],
                           d_ca_wq_ref[l], d_ca_bq_ref[l],
                           d_ca_wkv_ref[l], d_ca_bkv_ref[l],
                           d_ca_wo_ref[l], d_ca_bo_ref[l],
                           d_wr_ref[l], d_br_ref[l], d_w1_ref[l], d_b1_ref[l],
                           d_w2_ref[l], d_b2_ref[l],
                           t, batch, nheads, d)

    # final projection: (B, D) -> (B, OUTPUT_DIM); the only HBM write
    o_ref[...] = (jnp.dot(y, final_w_ref[...], preferred_element_type=jnp.float32)
                  + final_b_ref[...])


# ------------------------------- jitted wrapper -------------------------------
@jax.jit
def switch_transformer_forward(packed, x):
    """x: (B, T, input_dim) -> (B, output_dim); one fused Pallas kernel."""
    b, t, i = x.shape
    xf = x.reshape(b * t, i)          # batch-major token flattening: n = b*T + t
    return pl.pallas_call(
        _switch_transformer_kernel,
        out_shape=jax.ShapeDtypeStruct((b, OUTPUT_DIM), jnp.float32),
    )(
        xf, packed["pos"], packed["pre_w"], packed["pre_b"],
        packed["e_ln_g"], packed["e_ln_b"], packed["e_wqkv"], packed["e_bqkv"],
        packed["e_wo"], packed["e_bo"], packed["e_wr"], packed["e_br"],
        packed["e_w1"], packed["e_b1"], packed["e_w2"], packed["e_b2"],
        packed["dec_seed"],
        packed["d_ln_g"], packed["d_ln_b"],
        packed["d_sa_wqkv"], packed["d_sa_bqkv"], packed["d_sa_wo"], packed["d_sa_bo"],
        packed["d_ca_wq"], packed["d_ca_bq"], packed["d_ca_wkv"], packed["d_ca_bkv"],
        packed["d_ca_wo"], packed["d_ca_bo"],
        packed["d_wr"], packed["d_br"], packed["d_w1"], packed["d_b1"],
        packed["d_w2"], packed["d_b2"],
        packed["final_w"], packed["final_b"],
    )


# --------------------------- parameter init & packing --------------------------
def init_params(key):
    keys = iter(jax.random.split(key, 512))

    def nrm(shape, scale=0.02):
        return jax.random.normal(next(keys), shape, jnp.float32) * scale

    def mha_params():
        D = D_MODEL
        return {
            "wq": nrm((D, D)), "bq": jnp.zeros((D,), jnp.float32),
            "wk": nrm((D, D)), "bk": jnp.zeros((D,), jnp.float32),
            "wv": nrm((D, D)), "bv": jnp.zeros((D,), jnp.float32),
            "wo": nrm((D, D)), "bo": jnp.zeros((D,), jnp.float32),
        }

    def switch_params():
        return {
            "w_router": nrm((D_MODEL, N_EXPERTS)),
            "b_router": jnp.zeros((N_EXPERTS,), jnp.float32),
            "experts": [
                {
                    "w1": nrm((D_MODEL, D_FF)),
                    "b1": jnp.zeros((D_FF,), jnp.float32),
                    "w2": nrm((D_FF, D_MODEL)),
                    "b2": jnp.zeros((D_MODEL,), jnp.float32),
                }
                for _ in range(N_EXPERTS)
            ],
        }

    def enc_layer():
        return {
            "ln1_g": jnp.ones((D_MODEL,), jnp.float32),
            "ln1_b": jnp.zeros((D_MODEL,), jnp.float32),
            "ln2_g": jnp.ones((D_MODEL,), jnp.float32),
            "ln2_b": jnp.zeros((D_MODEL,), jnp.float32),
            "self_attn": mha_params(),
            "switch": switch_params(),
        }

    def dec_layer():
        return {
            "ln1_g": jnp.ones((D_MODEL,), jnp.float32),
            "ln1_b": jnp.zeros((D_MODEL,), jnp.float32),
            "ln2_g": jnp.ones((D_MODEL,), jnp.float32),
            "ln2_b": jnp.zeros((D_MODEL,), jnp.float32),
            "ln3_g": jnp.ones((D_MODEL,), jnp.float32),
            "ln3_b": jnp.zeros((D_MODEL,), jnp.float32),
            "self_attn": mha_params(),
            "cross_attn": mha_params(),
            "switch": switch_params(),
        }

    return {
        "pre_w": nrm((INPUT_DIM, D_MODEL)),
        "pre_b": jnp.zeros((D_MODEL,), jnp.float32),
        "pos_embed": jax.random.normal(next(keys), (IN_LEN, 1, D_MODEL), jnp.float32),
        "encoder": [enc_layer() for _ in range(N_LAYERS)],
        "decoder": [dec_layer() for _ in range(N_LAYERS)],
        "decoder_fluff": jax.random.normal(next(keys), (1, 1, D_MODEL), jnp.float32),
        # final_output: weight ~ U(-0.1, 0.1), bias = 0  (matches _init_weights)
        "final_w": jax.random.uniform(
            next(keys), (D_MODEL, OUTPUT_DIM), jnp.float32, minval=-0.1, maxval=0.1
        ),
        "final_b": jnp.zeros((OUTPUT_DIM,), jnp.float32),
    }


def pack_params(params):
    """One-time packing: concat QKV weights, concat/block-diag expert weights,
    stack per-layer params along a leading layer dim, broadcast pos/seed."""
    D, F, E = D_MODEL, D_FF, N_EXPERTS

    def pack_mha(p):
        wqkv = jnp.concatenate([p["wq"], p["wk"], p["wv"]], axis=1)            # (D, 3D)
        bqkv = jnp.concatenate([p["bq"], p["bk"], p["bv"]], axis=0)[None, :]   # (1, 3D)
        return wqkv, bqkv, p["wo"], p["bo"][None, :]

    def pack_switch(p):
        wr = p["w_router"]                                                     # (D, E)
        br = p["b_router"][None, :]                                            # (1, E)
        w1 = jnp.concatenate([e["w1"] for e in p["experts"]], axis=1)          # (D, E*F)
        b1 = jnp.concatenate([e["b1"] for e in p["experts"]], axis=0)[None, :]
        w2 = jnp.zeros((E * F, E * D), jnp.float32)                            # block-diag
        for i, e in enumerate(p["experts"]):
            w2 = w2.at[i * F:(i + 1) * F, i * D:(i + 1) * D].set(e["w2"])
        b2 = jnp.concatenate([e["b2"] for e in p["experts"]], axis=0)[None, :]
        return wr, br, w1, b1, w2, b2

    enc, dec = params["encoder"], params["decoder"]
    e_mha = [pack_mha(lp["self_attn"]) for lp in enc]
    e_sw = [pack_switch(lp["switch"]) for lp in enc]
    d_sa = [pack_mha(lp["self_attn"]) for lp in dec]
    d_sw = [pack_switch(lp["switch"]) for lp in dec]

    def stack(i, items):
        return jnp.stack([it[i] for it in items], axis=0)

    return {
        "pre_w": params["pre_w"],
        "pre_b": params["pre_b"][None, :],
        # positional embedding broadcast over batch in batch-major token order
        "pos": jnp.broadcast_to(
            params["pos_embed"].reshape(1, IN_LEN, D), (BATCH, IN_LEN, D)
        ).reshape(BATCH * IN_LEN, D),
        "dec_seed": jnp.broadcast_to(params["decoder_fluff"].reshape(1, D), (BATCH, D)),
        "final_w": params["final_w"],
        "final_b": params["final_b"][None, :],
        # encoder (stacked over layers)
        "e_ln_g": jnp.stack([jnp.stack([lp["ln1_g"], lp["ln2_g"]]) for lp in enc]),
        "e_ln_b": jnp.stack([jnp.stack([lp["ln1_b"], lp["ln2_b"]]) for lp in enc]),
        "e_wqkv": stack(0, e_mha), "e_bqkv": stack(1, e_mha),
        "e_wo": stack(2, e_mha), "e_bo": stack(3, e_mha),
        "e_wr": stack(0, e_sw), "e_br": stack(1, e_sw),
        "e_w1": stack(2, e_sw), "e_b1": stack(3, e_sw),
        "e_w2": stack(4, e_sw), "e_b2": stack(5, e_sw),
        # decoder (stacked over layers)
        "d_ln_g": jnp.stack([jnp.stack([lp["ln1_g"], lp["ln2_g"], lp["ln3_g"]]) for lp in dec]),
        "d_ln_b": jnp.stack([jnp.stack([lp["ln1_b"], lp["ln2_b"], lp["ln3_b"]]) for lp in dec]),
        "d_sa_wqkv": stack(0, d_sa), "d_sa_bqkv": stack(1, d_sa),
        "d_sa_wo": stack(2, d_sa), "d_sa_bo": stack(3, d_sa),
        "d_ca_wq": jnp.stack([lp["cross_attn"]["wq"] for lp in dec]),
        "d_ca_bq": jnp.stack([lp["cross_attn"]["bq"][None, :] for lp in dec]),
        "d_ca_wkv": jnp.stack([
            jnp.concatenate([lp["cross_attn"]["wk"], lp["cross_attn"]["wv"]], axis=1)
            for lp in dec]),
        "d_ca_bkv": jnp.stack([
            jnp.concatenate([lp["cross_attn"]["bk"], lp["cross_attn"]["bv"]], axis=0)[None, :]
            for lp in dec]),
        "d_ca_wo": jnp.stack([lp["cross_attn"]["wo"] for lp in dec]),
        "d_ca_bo": jnp.stack([lp["cross_attn"]["bo"][None, :] for lp in dec]),
        "d_wr": stack(0, d_sw), "d_br": stack(1, d_sw),
        "d_w1": stack(2, d_sw), "d_b1": stack(3, d_sw),
        "d_w2": stack(4, d_sw), "d_b2": stack(5, d_sw),
    }


# ----------------------------------- main ------------------------------------
if __name__ == "__main__":
    key = jax.random.PRNGKey(0)
    pkey, xkey = jax.random.split(key)
    params = init_params(pkey)
    packed = pack_params(params)

    x = jax.random.normal(xkey, (BATCH, IN_LEN, INPUT_DIM), jnp.float32)

    out = switch_transformer_forward(packed, x)
    out = jax.block_until_ready(out)

    assert out.shape == (BATCH, OUTPUT_DIM), out.shape
    assert bool(jnp.all(jnp.isfinite(out)))
    print("KERNEL_OK")
</pallas_src>

<mosaic_0001>
module attributes {stable_mosaic.version = 11 : i64} {
  func.func @_switch_transformer_kernel(%arg0: memref<16x16xf32, #tpu.memory_space<vmem>>, %arg1: memref<16x32xf32, #tpu.memory_space<vmem>>, %arg2: memref<16x32xf32, #tpu.memory_space<vmem>>, %arg3: memref<1x32xf32, #tpu.memory_space<vmem>>, %arg4: memref<2x2x32xf32, #tpu.memory_space<vmem>>, %arg5: memref<2x2x32xf32, #tpu.memory_space<vmem>>, %arg6: memref<2x32x96xf32, #tpu.memory_space<vmem>>, %arg7: memref<2x1x96xf32, #tpu.memory_space<vmem>>, %arg8: memref<2x32x32xf32, #tpu.memory_space<vmem>>, %arg9: memref<2x1x32xf32, #tpu.memory_space<vmem>>, %arg10: memref<2x32x2xf32, #tpu.memory_space<vmem>>, %arg11: memref<2x1x2xf32, #tpu.memory_space<vmem>>, %arg12: memref<2x32x128xf32, #tpu.memory_space<vmem>>, %arg13: memref<2x1x128xf32, #tpu.memory_space<vmem>>, %arg14: memref<2x128x64xf32, #tpu.memory_space<vmem>>, %arg15: memref<2x1x64xf32, #tpu.memory_space<vmem>>, %arg16: memref<2x32xf32, #tpu.memory_space<vmem>>, %arg17: memref<2x3x32xf32, #tpu.memory_space<vmem>>, %arg18: memref<2x3x32xf32, #tpu.memory_space<vmem>>, %arg19: memref<2x32x96xf32, #tpu.memory_space<vmem>>, %arg20: memref<2x1x96xf32, #tpu.memory_space<vmem>>, %arg21: memref<2x32x32xf32, #tpu.memory_space<vmem>>, %arg22: memref<2x1x32xf32, #tpu.memory_space<vmem>>, %arg23: memref<2x32x32xf32, #tpu.memory_space<vmem>>, %arg24: memref<2x1x32xf32, #tpu.memory_space<vmem>>, %arg25: memref<2x32x64xf32, #tpu.memory_space<vmem>>, %arg26: memref<2x1x64xf32, #tpu.memory_space<vmem>>, %arg27: memref<2x32x32xf32, #tpu.memory_space<vmem>>, %arg28: memref<2x1x32xf32, #tpu.memory_space<vmem>>, %arg29: memref<2x32x2xf32, #tpu.memory_space<vmem>>, %arg30: memref<2x1x2xf32, #tpu.memory_space<vmem>>, %arg31: memref<2x32x128xf32, #tpu.memory_space<vmem>>, %arg32: memref<2x1x128xf32, #tpu.memory_space<vmem>>, %arg33: memref<2x128x64xf32, #tpu.memory_space<vmem>>, %arg34: memref<2x1x64xf32, #tpu.memory_space<vmem>>, %arg35: memref<32x8xf32, #tpu.memory_space<vmem>>, %arg36: memref<1x8xf32, #tpu.memory_space<vmem>>, %arg37: memref<2x8xf32, #tpu.memory_space<vmem>>) attributes {dimension_semantics = [], scalar_prefetch = 0 : i64, scratch_operands = 0 : i64, tpu.core_type = #tpu.core_type<tc>} {
    %c0 = arith.constant 0 : index
    %c0_0 = arith.constant 0 : index
    %0 = vector.load %arg0[%c0, %c0_0] : memref<16x16xf32, #tpu.memory_space<vmem>>, vector<16x16xf32>
    %c0_1 = arith.constant 0 : index
    %c0_2 = arith.constant 0 : index
    %1 = vector.load %arg2[%c0_1, %c0_2] : memref<16x32xf32, #tpu.memory_space<vmem>>, vector<16x32xf32>
    %cst = arith.constant dense<0.000000e+00> : vector<16x32xf32>
    %2 = tpu.matmul %0, %1, %cst {dimension_numbers = #tpu.dot_dimension_numbers<[1], [0], [0], [1], [0, 0, 1, 1], [], []>} : vector<16x16xf32>, vector<16x32xf32>, vector<16x32xf32> -> vector<16x32xf32>
    %c0_3 = arith.constant 0 : index
    %c0_4 = arith.constant 0 : index
    %3 = vector.load %arg3[%c0_3, %c0_4] : memref<1x32xf32, #tpu.memory_space<vmem>>, vector<1x32xf32>
    %4 = vector.broadcast %3 : vector<1x32xf32> to vector<16x32xf32>
    %5 = arith.addf %2, %4 : vector<16x32xf32>
    %c0_5 = arith.constant 0 : index
    %c0_6 = arith.constant 0 : index
    %6 = vector.load %arg1[%c0_5, %c0_6] : memref<16x32xf32, #tpu.memory_space<vmem>>, vector<16x32xf32>
    %7 = arith.addf %5, %6 : vector<16x32xf32>
    %c0_7 = arith.constant 0 : index
    %c0_8 = arith.constant 0 : index
    %c0_9 = arith.constant 0 : index
    %8 = vector.load %arg4[%c0_7, %c0_8, %c0_9] : memref<2x2x32xf32, #tpu.memory_space<vmem>>, vector<1x2x32xf32>
    %9 = vector.shape_cast %8 : vector<1x2x32xf32> to vector<2x32xf32>
    %c0_10 = arith.constant 0 : index
    %c0_11 = arith.constant 0 : index
    %c0_12 = arith.constant 0 : index
    %10 = vector.load %arg5[%c0_10, %c0_11, %c0_12] : memref<2x2x32xf32, #tpu.memory_space<vmem>>, vector<1x2x32xf32>
    %11 = vector.shape_cast %10 : vector<1x2x32xf32> to vector<2x32xf32>
    %c0_13 = arith.constant 0 : index
    %c0_14 = arith.constant 0 : index
    %c0_15 = arith.constant 0 : index
    %12 = vector.load %arg6[%c0_13, %c0_14, %c0_15] : memref<2x32x96xf32, #tpu.memory_space<vmem>>, vector<1x32x96xf32>
    %13 = vector.shape_cast %12 : vector<1x32x96xf32> to vector<32x96xf32>
    %c0_16 = arith.constant 0 : index
    %c0_17 = arith.constant 0 : index
    %c0_18 = arith.constant 0 : index
    %14 = vector.load %arg7[%c0_16, %c0_17, %c0_18] : memref<2x1x96xf32, #tpu.memory_space<vmem>>, vector<1x1x96xf32>
    %15 = vector.shape_cast %14 : vector<1x1x96xf32> to vector<1x96xf32>
    %c0_19 = arith.constant 0 : index
    %c0_20 = arith.constant 0 : index
    %c0_21 = arith.constant 0 : index
    %16 = vector.load %arg8[%c0_19, %c0_20, %c0_21] : memref<2x32x32xf32, #tpu.memory_space<vmem>>, vector<1x32x32xf32>
    %17 = vector.shape_cast %16 : vector<1x32x32xf32> to vector<32x32xf32>
    %c0_22 = arith.constant 0 : index
    %c0_23 = arith.constant 0 : index
    %c0_24 = arith.constant 0 : index
    %18 = vector.load %arg9[%c0_22, %c0_23, %c0_24] : memref<2x1x32xf32, #tpu.memory_space<vmem>>, vector<1x1x32xf32>
    %19 = vector.shape_cast %18 : vector<1x1x32xf32> to vector<1x32xf32>
    %c0_25 = arith.constant 0 : index
    %c0_26 = arith.constant 0 : index
    %c0_27 = arith.constant 0 : index
    %20 = vector.load %arg10[%c0_25, %c0_26, %c0_27] : memref<2x32x2xf32, #tpu.memory_space<vmem>>, vector<1x32x2xf32>
    %21 = vector.shape_cast %20 : vector<1x32x2xf32> to vector<32x2xf32>
    %c0_28 = arith.constant 0 : index
    %c0_29 = arith.constant 0 : index
    %c0_30 = arith.constant 0 : index
    %22 = vector.load %arg11[%c0_28, %c0_29, %c0_30] : memref<2x1x2xf32, #tpu.memory_space<vmem>>, vector<1x1x2xf32>
    %23 = vector.shape_cast %22 : vector<1x1x2xf32> to vector<1x2xf32>
    %c0_31 = arith.constant 0 : index
    %c0_32 = arith.constant 0 : index
    %c0_33 = arith.constant 0 : index
    %24 = vector.load %arg12[%c0_31, %c0_32, %c0_33] : memref<2x32x128xf32, #tpu.memory_space<vmem>>, vector<1x32x128xf32>
    %25 = vector.shape_cast %24 : vector<1x32x128xf32> to vector<32x128xf32>
    %c0_34 = arith.constant 0 : index
    %c0_35 = arith.constant 0 : index
    %c0_36 = arith.constant 0 : index
    %26 = vector.load %arg13[%c0_34, %c0_35, %c0_36] : memref<2x1x128xf32, #tpu.memory_space<vmem>>, vector<1x1x128xf32>
    %27 = vector.shape_cast %26 : vector<1x1x128xf32> to vector<1x128xf32>
    %c0_37 = arith.constant 0 : index
    %c0_38 = arith.constant 0 : index
    %c0_39 = arith.constant 0 : index
    %28 = vector.load %arg14[%c0_37, %c0_38, %c0_39] : memref<2x128x64xf32, #tpu.memory_space<vmem>>, vector<1x128x64xf32>
    %29 = vector.shape_cast %28 : vector<1x128x64xf32> to vector<128x64xf32>
    %c0_40 = arith.constant 0 : index
    %c0_41 = arith.constant 0 : index
    %c0_42 = arith.constant 0 : index
    %30 = vector.load %arg15[%c0_40, %c0_41, %c0_42] : memref<2x1x64xf32, #tpu.memory_space<vmem>>, vector<1x1x64xf32>
    %31 = vector.shape_cast %30 : vector<1x1x64xf32> to vector<1x64xf32>
    %32 = vector.extract_strided_slice %9 {offsets = [0, 0], sizes = [1, 32], strides = [1, 1]} : vector<2x32xf32> to vector<1x32xf32>
    %33 = vector.extract_strided_slice %11 {offsets = [0, 0], sizes = [1, 32], strides = [1, 1]} : vector<2x32xf32> to vector<1x32xf32>
    %cst_43 = arith.constant dense<0.000000e+00> : vector<16xf32>
    %34 = vector.multi_reduction <add>, %7, %cst_43 [1] : vector<16x32xf32> to vector<16xf32>
    %35 = vector.shape_cast %34 : vector<16xf32> to vector<16x1xf32>
    %cst_44 = arith.constant 3.200000e+01 : f32
    %36 = vector.broadcast %cst_44 : f32 to vector<16x1xf32>
    %37 = arith.divf %35, %36 : vector<16x1xf32>
    %38 = vector.broadcast %37 : vector<16x1xf32> to vector<16x32xf32>
    %39 = arith.subf %7, %38 : vector<16x32xf32>
    %40 = arith.mulf %39, %39 : vector<16x32xf32>
    %cst_45 = arith.constant dense<0.000000e+00> : vector<16xf32>
    %41 = vector.multi_reduction <add>, %40, %cst_45 [1] : vector<16x32xf32> to vector<16xf32>
    %42 = vector.shape_cast %41 : vector<16xf32> to vector<16x1xf32>
    %cst_46 = arith.constant 3.200000e+01 : f32
    %43 = vector.broadcast %cst_46 : f32 to vector<16x1xf32>
    %44 = arith.divf %42, %43 : vector<16x1xf32>
    %45 = vector.broadcast %37 : vector<16x1xf32> to vector<16x32xf32>
    %46 = arith.subf %7, %45 : vector<16x32xf32>
    %cst_47 = arith.constant 9.99999974E-6 : f32
    %47 = vector.broadcast %cst_47 : f32 to vector<16x1xf32>
    %48 = arith.addf %44, %47 : vector<16x1xf32>
    %49 = math.rsqrt %48 : vector<16x1xf32>
    %50 = vector.broadcast %49 : vector<16x1xf32> to vector<16x32xf32>
    %51 = arith.mulf %46, %50 : vector<16x32xf32>
    %52 = vector.broadcast %32 : vector<1x32xf32> to vector<16x32xf32>
    %53 = arith.mulf %51, %52 : vector<16x32xf32>
    %54 = vector.broadcast %33 : vector<1x32xf32> to vector<16x32xf32>
    %55 = arith.addf %53, %54 : vector<16x32xf32>
    %cst_48 = arith.constant dense<0.000000e+00> : vector<16x96xf32>
    %56 = tpu.matmul %55, %13, %cst_48 {dimension_numbers = #tpu.dot_dimension_numbers<[1], [0], [0], [1], [0, 0, 1, 1], [], []>} : vector<16x32xf32>, vector<32x96xf32>, vector<16x96xf32> -> vector<16x96xf32>
    %57 = vector.broadcast %15 : vector<1x96xf32> to vector<16x96xf32>
    %58 = arith.addf %56, %57 : vector<16x96xf32>
    %59 = vector.extract_strided_slice %58 {offsets = [0, 0], sizes = [16, 32], strides = [1, 1]} : vector<16x96xf32> to vector<16x32xf32>
    %60 = vector.extract_strided_slice %58 {offsets = [0, 32], sizes = [16, 32], strides = [1, 1]} : vector<16x96xf32> to vector<16x32xf32>
    %61 = vector.extract_strided_slice %58 {offsets = [0, 64], sizes = [16, 32], strides = [1, 1]} : vector<16x96xf32> to vector<16x32xf32>
    %62 = vector.extract_strided_slice %59 {offsets = [0, 0], sizes = [8, 32], strides = [1, 1]} : vector<16x32xf32> to vector<8x32xf32>
    %63 = vector.extract_strided_slice %60 {offsets = [0, 0], sizes = [8, 32], strides = [1, 1]} : vector<16x32xf32> to vector<8x32xf32>
    %64 = vector.extract_strided_slice %61 {offsets = [0, 0], sizes = [8, 32], strides = [1, 1]} : vector<16x32xf32> to vector<8x32xf32>
    %65 = vector.extract_strided_slice %62 {offsets = [0, 0], sizes = [8, 8], strides = [1, 1]} : vector<8x32xf32> to vector<8x8xf32>
    %66 = vector.extract_strided_slice %63 {offsets = [0, 0], sizes = [8, 8], strides = [1, 1]} : vector<8x32xf32> to vector<8x8xf32>
    %67 = vector.extract_strided_slice %64 {offsets = [0, 0], sizes = [8, 8], strides = [1, 1]} : vector<8x32xf32> to vector<8x8xf32>
    %cst_49 = arith.constant dense<0.000000e+00> : vector<8x8xf32>
    %68 = tpu.matmul %65, %66, %cst_49 {dimension_numbers = #tpu.dot_dimension_numbers<[1], [1], [0], [0], [0, 0, 1, 0], [], []>} : vector<8x8xf32>, vector<8x8xf32>, vector<8x8xf32> -> vector<8x8xf32>
    %cst_50 = arith.constant 0.353553385 : f32
    %69 = vector.broadcast %cst_50 : f32 to vector<8x8xf32>
    %70 = arith.mulf %68, %69 : vector<8x8xf32>
    %cst_51 = arith.constant dense<0xFF800000> : vector<8xf32>
    %71 = vector.multi_reduction <maximumf>, %70, %cst_51 [1] : vector<8x8xf32> to vector<8xf32>
    %72 = vector.shape_cast %71 : vector<8xf32> to vector<8x1xf32>
    %73 = vector.broadcast %72 : vector<8x1xf32> to vector<8x8xf32>
    %74 = arith.subf %70, %73 : vector<8x8xf32>
    %75 = math.exp %74 : vector<8x8xf32>
    %cst_52 = arith.constant dense<0.000000e+00> : vector<8xf32>
    %76 = vector.multi_reduction <add>, %75, %cst_52 [1] : vector<8x8xf32> to vector<8xf32>
    %77 = vector.shape_cast %76 : vector<8xf32> to vector<8x1xf32>
    %78 = vector.broadcast %77 : vector<8x1xf32> to vector<8x8xf32>
    %79 = arith.divf %75, %78 : vector<8x8xf32>
    %cst_53 = arith.constant dense<0.000000e+00> : vector<8x8xf32>
    %80 = tpu.matmul %79, %67, %cst_53 {dimension_numbers = #tpu.dot_dimension_numbers<[1], [0], [0], [1], [0, 0, 1, 1], [], []>} : vector<8x8xf32>, vector<8x8xf32>, vector<8x8xf32> -> vector<8x8xf32>
    %81 = vector.extract_strided_slice %62 {offsets = [0, 8], sizes = [8, 8], strides = [1, 1]} : vector<8x32xf32> to vector<8x8xf32>
    %82 = vector.extract_strided_slice %63 {offsets = [0, 8], sizes = [8, 8], strides = [1, 1]} : vector<8x32xf32> to vector<8x8xf32>
    %83 = vector.extract_strided_slice %64 {offsets = [0, 8], sizes = [8, 8], strides = [1, 1]} : vector<8x32xf32> to vector<8x8xf32>
    %cst_54 = arith.constant dense<0.000000e+00> : vector<8x8xf32>
    %84 = tpu.matmul %81, %82, %cst_54 {dimension_numbers = #tpu.dot_dimension_numbers<[1], [1], [0], [0], [0, 0, 1, 0], [], []>} : vector<8x8xf32>, vector<8x8xf32>, vector<8x8xf32> -> vector<8x8xf32>
    %cst_55 = arith.constant 0.353553385 : f32
    %85 = vector.broadcast %cst_55 : f32 to vector<8x8xf32>
    %86 = arith.mulf %84, %85 : vector<8x8xf32>
    %cst_56 = arith.constant dense<0xFF800000> : vector<8xf32>
    %87 = vector.multi_reduction <maximumf>, %86, %cst_56 [1] : vector<8x8xf32> to vector<8xf32>
    %88 = vector.shape_cast %87 : vector<8xf32> to vector<8x1xf32>
    %89 = vector.broadcast %88 : vector<8x1xf32> to vector<8x8xf32>
    %90 = arith.subf %86, %89 : vector<8x8xf32>
    %91 = math.exp %90 : vector<8x8xf32>
    %cst_57 = arith.constant dense<0.000000e+00> : vector<8xf32>
    %92 = vector.multi_reduction <add>, %91, %cst_57 [1] : vector<8x8xf32> to vector<8xf32>
    %93 = vector.shape_cast %92 : vector<8xf32> to vector<8x1xf32>
    %94 = vector.broadcast %93 : vector<8x1xf32> to vector<8x8xf32>
    %95 = arith.divf %91, %94 : vector<8x8xf32>
    %cst_58 = arith.constant dense<0.000000e+00> : vector<8x8xf32>
    %96 = tpu.matmul %95, %83, %cst_58 {dimension_numbers = #tpu.dot_dimension_numbers<[1], [0], [0], [1], [0, 0, 1, 1], [], []>} : vector<8x8xf32>, vector<8x8xf32>, vector<8x8xf32> -> vector<8x8xf32>
    %97 = vector.extract_strided_slice %62 {offsets = [0, 16], sizes = [8, 8], strides = [1, 1]} : vector<8x32xf32> to vector<8x8xf32>
    %98 = vector.extract_strided_slice %63 {offsets = [0, 16], sizes = [8, 8], strides = [1, 1]} : vector<8x32xf32> to vector<8x8xf32>
    %99 = vector.extract_strided_slice %64 {offsets = [0, 16], sizes = [8, 8], strides = [1, 1]} : vector<8x32xf32> to vector<8x8xf32>
    %cst_59 = arith.constant dense<0.000000e+00> : vector<8x8xf32>
    %100 = tpu.matmul %97, %98, %cst_59 {dimension_numbers = #tpu.dot_dimension_numbers<[1], [1], [0], [0], [0, 0, 1, 0], [], []>} : vector<8x8xf32>, vector<8x8xf32>, vector<8x8xf32> -> vector<8x8xf32>
    %cst_60 = arith.constant 0.353553385 : f32
    %101 = vector.broadcast %cst_60 : f32 to vector<8x8xf32>
    %102 = arith.mulf %100, %101 : vector<8x8xf32>
    %cst_61 = arith.constant dense<0xFF800000> : vector<8xf32>
    %103 = vector.multi_reduction <maximumf>, %102, %cst_61 [1] : vector<8x8xf32> to vector<8xf32>
    %104 = vector.shape_cast %103 : vector<8xf32> to vector<8x1xf32>
    %105 = vector.broadcast %104 : vector<8x1xf32> to vector<8x8xf32>
    %106 = arith.subf %102, %105 : vector<8x8xf32>
    %107 = math.exp %106 : vector<8x8xf32>
    %cst_62 = arith.constant dense<0.000000e+00> : vector<8xf32>
    %108 = vector.multi_reduction <add>, %107, %cst_62 [1] : vector<8x8xf32> to vector<8xf32>
    %109 = vector.shape_cast %108 : vector<8xf32> to vector<8x1xf32>
    %110 = vector.broadcast %109 : vector<8x1xf32> to vector<8x8xf32>
    %111 = arith.divf %107, %110 : vector<8x8xf32>
    %cst_63 = arith.constant dense<0.000000e+00> : vector<8x8xf32>
    %112 = tpu.matmul %111, %99, %cst_63 {dimension_numbers = #tpu.dot_dimension_numbers<[1], [0], [0], [1], [0, 0, 1, 1], [], []>} : vector<8x8xf32>, vector<8x8xf32>, vector<8x8xf32> -> vector<8x8xf32>
    %113 = vector.extract_strided_slice %62 {offsets = [0, 24], sizes = [8, 8], strides = [1, 1]} : vector<8x32xf32> to vector<8x8xf32>
    %114 = vector.extract_strided_slice %63 {offsets = [0, 24], sizes = [8, 8], strides = [1, 1]} : vector<8x32xf32> to vector<8x8xf32>
    %115 = vector.extract_strided_slice %64 {offsets = [0, 24], sizes = [8, 8], strides = [1, 1]} : vector<8x32xf32> to vector<8x8xf32>
    %cst_64 = arith.constant dense<0.000000e+00> : vector<8x8xf32>
    %116 = tpu.matmul %113, %114, %cst_64 {dimension_numbers = #tpu.dot_dimension_numbers<[1], [1], [0], [0], [0, 0, 1, 0], [], []>} : vector<8x8xf32>, vector<8x8xf32>, vector<8x8xf32> -> vector<8x8xf32>
    %cst_65 = arith.constant 0.353553385 : f32
    %117 = vector.broadcast %cst_65 : f32 to vector<8x8xf32>
    %118 = arith.mulf %116, %117 : vector<8x8xf32>
    %cst_66 = arith.constant dense<0xFF800000> : vector<8xf32>
    %119 = vector.multi_reduction <maximumf>, %118, %cst_66 [1] : vector<8x8xf32> to vector<8xf32>
    %120 = vector.shape_cast %119 : vector<8xf32> to vector<8x1xf32>
    %121 = vector.broadcast %120 : vector<8x1xf32> to vector<8x8xf32>
    %122 = arith.subf %118, %121 : vector<8x8xf32>
    %123 = math.exp %122 : vector<8x8xf32>
    %cst_67 = arith.constant dense<0.000000e+00> : vector<8xf32>
    %124 = vector.multi_reduction <add>, %123, %cst_67 [1] : vector<8x8xf32> to vector<8xf32>
    %125 = vector.shape_cast %124 : vector<8xf32> to vector<8x1xf32>
    %126 = vector.broadcast %125 : vector<8x1xf32> to vector<8x8xf32>
    %127 = arith.divf %123, %126 : vector<8x8xf32>
    %cst_68 = arith.constant dense<0.000000e+00> : vector<8x8xf32>
    %128 = tpu.matmul %127, %115, %cst_68 {dimension_numbers = #tpu.dot_dimension_numbers<[1], [0], [0], [1], [0, 0, 1, 1], [], []>} : vector<8x8xf32>, vector<8x8xf32>, vector<8x8xf32> -> vector<8x8xf32>
    %129 = tpu.concatenate %80, %96, %112, %128 in 1 : vector<8x8xf32>, vector<8x8xf32>, vector<8x8xf32>, vector<8x8xf32> -> vector<8x32xf32>
    %130 = vector.extract_strided_slice %59 {offsets = [8, 0], sizes = [8, 32], strides = [1, 1]} : vector<16x32xf32> to vector<8x32xf32>
    %131 = vector.extract_strided_slice %60 {offsets = [8, 0], sizes = [8, 32], strides = [1, 1]} : vector<16x32xf32> to vector<8x32xf32>
    %132 = vector.extract_strided_slice %61 {offsets = [8, 0], sizes = [8, 32], strides = [1, 1]} : vector<16x32xf32> to vector<8x32xf32>
    %133 = vector.extract_strided_slice %130 {offsets = [0, 0], sizes = [8, 8], strides = [1, 1]} : vector<8x32xf32> to vector<8x8xf32>
    %134 = vector.extract_strided_slice %131 {offsets = [0, 0], sizes = [8, 8], strides = [1, 1]} : vector<8x32xf32> to vector<8x8xf32>
    %135 = vector.extract_strided_slice %132 {offsets = [0, 0], sizes = [8, 8], strides = [1, 1]} : vector<8x32xf32> to vector<8x8xf32>
    %cst_69 = arith.constant dense<0.000000e+00> : vector<8x8xf32>
    %136 = tpu.matmul %133, %134, %cst_69 {dimension_numbers = #tpu.dot_dimension_numbers<[1], [1], [0], [0], [0, 0, 1, 0], [], []>} : vector<8x8xf32>, vector<8x8xf32>, vector<8x8xf32> -> vector<8x8xf32>
    %cst_70 = arith.constant 0.353553385 : f32
    %137 = vector.broadcast %cst_70 : f32 to vector<8x8xf32>
    %138 = arith.mulf %136, %137 : vector<8x8xf32>
    %cst_71 = arith.constant dense<0xFF800000> : vector<8xf32>
    %139 = vector.multi_reduction <maximumf>, %138, %cst_71 [1] : vector<8x8xf32> to vector<8xf32>
    %140 = vector.shape_cast %139 : vector<8xf32> to vector<8x1xf32>
    %141 = vector.broadcast %140 : vector<8x1xf32> to vector<8x8xf32>
    %142 = arith.subf %138, %141 : vector<8x8xf32>
    %143 = math.exp %142 : vector<8x8xf32>
    %cst_72 = arith.constant dense<0.000000e+00> : vector<8xf32>
    %144 = vector.multi_reduction <add>, %143, %cst_72 [1] : vector<8x8xf32> to vector<8xf32>
    %145 = vector.shape_cast %144 : vector<8xf32> to vector<8x1xf32>
    %146 = vector.broadcast %145 : vector<8x1xf32> to vector<8x8xf32>
    %147 = arith.divf %143, %146 : vector<8x8xf32>
    %cst_73 = arith.constant dense<0.000000e+00> : vector<8x8xf32>
    %148 = tpu.matmul %147, %135, %cst_73 {dimension_numbers = #tpu.dot_dimension_numbers<[1], [0], [0], [1], [0, 0, 1, 1], [], []>} : vector<8x8xf32>, vector<8x8xf32>, vector<8x8xf32> -> vector<8x8xf32>
    %149 = vector.extract_strided_slice %130 {offsets = [0, 8], sizes = [8, 8], strides = [1, 1]} : vector<8x32xf32> to vector<8x8xf32>
    %150 = vector.extract_strided_slice %131 {offsets = [0, 8], sizes = [8, 8], strides = [1, 1]} : vector<8x32xf32> to vector<8x8xf32>
    %151 = vector.extract_strided_slice %132 {offsets = [0, 8], sizes = [8, 8], strides = [1, 1]} : vector<8x32xf32> to vector<8x8xf32>
    %cst_74 = arith.constant dense<0.000000e+00> : vector<8x8xf32>
    %152 = tpu.matmul %149, %150, %cst_74 {dimension_numbers = #tpu.dot_dimension_numbers<[1], [1], [0], [0], [0, 0, 1, 0], [], []>} : vector<8x8xf32>, vector<8x8xf32>, vector<8x8xf32> -> vector<8x8xf32>
    %cst_75 = arith.constant 0.353553385 : f32
    %153 = vector.broadcast %cst_75 : f32 to vector<8x8xf32>
    %154 = arith.mulf %152, %153 : vector<8x8xf32>
    %cst_76 = arith.constant dense<0xFF800000> : vector<8xf32>
    %155 = vector.multi_reduction <maximumf>, %154, %cst_76 [1] : vector<8x8xf32> to vector<8xf32>
    %156 = vector.shape_cast %155 : vector<8xf32> to vector<8x1xf32>
    %157 = vector.broadcast %156 : vector<8x1xf32> to vector<8x8xf32>
    %158 = arith.subf %154, %157 : vector<8x8xf32>
    %159 = math.exp %158 : vector<8x8xf32>
    %cst_77 = arith.constant dense<0.000000e+00> : vector<8xf32>
    %160 = vector.multi_reduction <add>, %159, %cst_77 [1] : vector<8x8xf32> to vector<8xf32>
    %161 = vector.shape_cast %160 : vector<8xf32> to vector<8x1xf32>
    %162 = vector.broadcast %161 : vector<8x1xf32> to vector<8x8xf32>
    %163 = arith.divf %159, %162 : vector<8x8xf32>
    %cst_78 = arith.constant dense<0.000000e+00> : vector<8x8xf32>
    %164 = tpu.matmul %163, %151, %cst_78 {dimension_numbers = #tpu.dot_dimension_numbers<[1], [0], [0], [1], [0, 0, 1, 1], [], []>} : vector<8x8xf32>, vector<8x8xf32>, vector<8x8xf32> -> vector<8x8xf32>
    %165 = vector.extract_strided_slice %130 {offsets = [0, 16], sizes = [8, 8], strides = [1, 1]} : vector<8x32xf32> to vector<8x8xf32>
    %166 = vector.extract_strided_slice %131 {offsets = [0, 16], sizes = [8, 8], strides = [1, 1]} : vector<8x32xf32> to vector<8x8xf32>
    %167 = vector.extract_strided_slice %132 {offsets = [0, 16], sizes = [8, 8], strides = [1, 1]} : vector<8x32xf32> to vector<8x8xf32>
    %cst_79 = arith.constant dense<0.000000e+00> : vector<8x8xf32>
    %168 = tpu.matmul %165, %166, %cst_79 {dimension_numbers = #tpu.dot_dimension_numbers<[1], [1], [0], [0], [0, 0, 1, 0], [], []>} : vector<8x8xf32>, vector<8x8xf32>, vector<8x8xf32> -> vector<8x8xf32>
    %cst_80 = arith.constant 0.353553385 : f32
    %169 = vector.broadcast %cst_80 : f32 to vector<8x8xf32>
    %170 = arith.mulf %168, %169 : vector<8x8xf32>
    %cst_81 = arith.constant dense<0xFF800000> : vector<8xf32>
    %171 = vector.multi_reduction <maximumf>, %170, %cst_81 [1] : vector<8x8xf32> to vector<8xf32>
    %172 = vector.shape_cast %171 : vector<8xf32> to vector<8x1xf32>
    %173 = vector.broadcast %172 : vector<8x1xf32> to vector<8x8xf32>
    %174 = arith.subf %170, %173 : vector<8x8xf32>
    %175 = math.exp %174 : vector<8x8xf32>
    %cst_82 = arith.constant dense<0.000000e+00> : vector<8xf32>
    %176 = vector.multi_reduction <add>, %175, %cst_82 [1] : vector<8x8xf32> to vector<8xf32>
    %177 = vector.shape_cast %176 : vector<8xf32> to vector<8x1xf32>
    %178 = vector.broadcast %177 : vector<8x1xf32> to vector<8x8xf32>
    %179 = arith.divf %175, %178 : vector<8x8xf32>
    %cst_83 = arith.constant dense<0.000000e+00> : vector<8x8xf32>
    %180 = tpu.matmul %179, %167, %cst_83 {dimension_numbers = #tpu.dot_dimension_numbers<[1], [0], [0], [1], [0, 0, 1, 1], [], []>} : vector<8x8xf32>, vector<8x8xf32>, vector<8x8xf32> -> vector<8x8xf32>
    %181 = vector.extract_strided_slice %130 {offsets = [0, 24], sizes = [8, 8], strides = [1, 1]} : vector<8x32xf32> to vector<8x8xf32>
    %182 = vector.extract_strided_slice %131 {offsets = [0, 24], sizes = [8, 8], strides = [1, 1]} : vector<8x32xf32> to vector<8x8xf32>
    %183 = vector.extract_strided_slice %132 {offsets = [0, 24], sizes = [8, 8], strides = [1, 1]} : vector<8x32xf32> to vector<8x8xf32>
    %cst_84 = arith.constant dense<0.000000e+00> : vector<8x8xf32>
    %184 = tpu.matmul %181, %182, %cst_84 {dimension_numbers = #tpu.dot_dimension_numbers<[1], [1], [0], [0], [0, 0, 1, 0], [], []>} : vector<8x8xf32>, vector<8x8xf32>, vector<8x8xf32> -> vector<8x8xf32>
    %cst_85 = arith.constant 0.353553385 : f32
    %185 = vector.broadcast %cst_85 : f32 to vector<8x8xf32>
    %186 = arith.mulf %184, %185 : vector<8x8xf32>
    %cst_86 = arith.constant dense<0xFF800000> : vector<8xf32>
    %187 = vector.multi_reduction <maximumf>, %186, %cst_86 [1] : vector<8x8xf32> to vector<8xf32>
    %188 = vector.shape_cast %187 : vector<8xf32> to vector<8x1xf32>
    %189 = vector.broadcast %188 : vector<8x1xf32> to vector<8x8xf32>
    %190 = arith.subf %186, %189 : vector<8x8xf32>
    %191 = math.exp %190 : vector<8x8xf32>
    %cst_87 = arith.constant dense<0.000000e+00> : vector<8xf32>
    %192 = vector.multi_reduction <add>, %191, %cst_87 [1] : vector<8x8xf32> to vector<8xf32>
    %193 = vector.shape_cast %192 : vector<8xf32> to vector<8x1xf32>
    %194 = vector.broadcast %193 : vector<8x1xf32> to vector<8x8xf32>
    %195 = arith.divf %191, %194 : vector<8x8xf32>
    %cst_88 = arith.constant dense<0.000000e+00> : vector<8x8xf32>
    %196 = tpu.matmul %195, %183, %cst_88 {dimension_numbers = #tpu.dot_dimension_numbers<[1], [0], [0], [1], [0, 0, 1, 1], [], []>} : vector<8x8xf32>, vector<8x8xf32>, vector<8x8xf32> -> vector<8x8xf32>
    %197 = tpu.concatenate %148, %164, %180, %196 in 1 : vector<8x8xf32>, vector<8x8xf32>, vector<8x8xf32>, vector<8x8xf32> -> vector<8x32xf32>
    %198 = tpu.concatenate %129, %197 in 0 : vector<8x32xf32>, vector<8x32xf32> -> vector<16x32xf32>
    %cst_89 = arith.constant dense<0.000000e+00> : vector<16x32xf32>
    %199 = tpu.matmul %198, %17, %cst_89 {dimension_numbers = #tpu.dot_dimension_numbers<[1], [0], [0], [1], [0, 0, 1, 1], [], []>} : vector<16x32xf32>, vector<32x32xf32>, vector<16x32xf32> -> vector<16x32xf32>
    %200 = vector.broadcast %19 : vector<1x32xf32> to vector<16x32xf32>
    %201 = arith.addf %199, %200 : vector<16x32xf32>
    %202 = arith.addf %7, %201 : vector<16x32xf32>
    %203 = vector.extract_strided_slice %9 {offsets = [1, 0], sizes = [1, 32], strides = [1, 1]} : vector<2x32xf32> to vector<1x32xf32>
    %204 = vector.extract_strided_slice %11 {offsets = [1, 0], sizes = [1, 32], strides = [1, 1]} : vector<2x32xf32> to vector<1x32xf32>
    %cst_90 = arith.constant dense<0.000000e+00> : vector<16xf32>
    %205 = vector.multi_reduction <add>, %202, %cst_90 [1] : vector<16x32xf32> to vector<16xf32>
    %206 = vector.shape_cast %205 : vector<16xf32> to vector<16x1xf32>
    %cst_91 = arith.constant 3.200000e+01 : f32
    %207 = vector.broadcast %cst_91 : f32 to vector<16x1xf32>
    %208 = arith.divf %206, %207 : vector<16x1xf32>
    %209 = vector.broadcast %208 : vector<16x1xf32> to vector<16x32xf32>
    %210 = arith.subf %202, %209 : vector<16x32xf32>
    %211 = arith.mulf %210, %210 : vector<16x32xf32>
    %cst_92 = arith.constant dense<0.000000e+00> : vector<16xf32>
    %212 = vector.multi_reduction <add>, %211, %cst_92 [1] : vector<16x32xf32> to vector<16xf32>
    %213 = vector.shape_cast %212 : vector<16xf32> to vector<16x1xf32>
    %cst_93 = arith.constant 3.200000e+01 : f32
    %214 = vector.broadcast %cst_93 : f32 to vector<16x1xf32>
    %215 = arith.divf %213, %214 : vector<16x1xf32>
    %216 = vector.broadcast %208 : vector<16x1xf32> to vector<16x32xf32>
    %217 = arith.subf %202, %216 : vector<16x32xf32>
    %cst_94 = arith.constant 9.99999974E-6 : f32
    %218 = vector.broadcast %cst_94 : f32 to vector<16x1xf32>
    %219 = arith.addf %215, %218 : vector<16x1xf32>
    %220 = math.rsqrt %219 : vector<16x1xf32>
    %221 = vector.broadcast %220 : vector<16x1xf32> to vector<16x32xf32>
    %222 = arith.mulf %217, %221 : vector<16x32xf32>
    %223 = vector.broadcast %203 : vector<1x32xf32> to vector<16x32xf32>
    %224 = arith.mulf %222, %223 : vector<16x32xf32>
    %225 = vector.broadcast %204 : vector<1x32xf32> to vector<16x32xf32>
    %226 = arith.addf %224, %225 : vector<16x32xf32>
    %cst_95 = arith.constant dense<0.000000e+00> : vector<16x2xf32>
    %227 = tpu.matmul %226, %21, %cst_95 {dimension_numbers = #tpu.dot_dimension_numbers<[1], [0], [0], [1], [0, 0, 1, 1], [], []>} : vector<16x32xf32>, vector<32x2xf32>, vector<16x2xf32> -> vector<16x2xf32>
    %228 = vector.broadcast %23 : vector<1x2xf32> to vector<16x2xf32>
    %229 = arith.addf %227, %228 : vector<16x2xf32>
    %cst_96 = arith.constant dense<0xFF800000> : vector<16xf32>
    %230 = vector.multi_reduction <maximumf>, %229, %cst_96 [1] : vector<16x2xf32> to vector<16xf32>
    %231 = vector.shape_cast %230 : vector<16xf32> to vector<16x1xf32>
    %232 = vector.broadcast %231 : vector<16x1xf32> to vector<16x2xf32>
    %233 = arith.subf %229, %232 : vector<16x2xf32>
    %234 = math.exp %233 : vector<16x2xf32>
    %cst_97 = arith.constant dense<0.000000e+00> : vector<16xf32>
    %235 = vector.multi_reduction <add>, %234, %cst_97 [1] : vector<16x2xf32> to vector<16xf32>
    %236 = vector.shape_cast %235 : vector<16xf32> to vector<16x1xf32>
    %237 = vector.broadcast %236 : vector<16x1xf32> to vector<16x2xf32>
    %238 = arith.divf %234, %237 : vector<16x2xf32>
    %239 = vector.extract_strided_slice %238 {offsets = [0, 0], sizes = [16, 1], strides = [1, 1]} : vector<16x2xf32> to vector<16x1xf32>
    %240 = vector.extract_strided_slice %238 {offsets = [0, 1], sizes = [16, 1], strides = [1, 1]} : vector<16x2xf32> to vector<16x1xf32>
    %241 = arith.cmpf ogt, %240, %239 : vector<16x1xf32>
    %242 = arith.extui %241 : vector<16x1xi1> to vector<16x1xi32>
    %243 = arith.sitofp %242 : vector<16x1xi32> to vector<16x1xf32>
    %244 = arith.maximumf %239, %240 : vector<16x1xf32>
    %cst_98 = arith.constant dense<0.000000e+00> : vector<16x128xf32>
    %245 = tpu.matmul %226, %25, %cst_98 {dimension_numbers = #tpu.dot_dimension_numbers<[1], [0], [0], [1], [0, 0, 1, 1], [], []>} : vector<16x32xf32>, vector<32x128xf32>, vector<16x128xf32> -> vector<16x128xf32>
    %246 = vector.broadcast %27 : vector<1x128xf32> to vector<16x128xf32>
    %247 = arith.addf %245, %246 : vector<16x128xf32>
    %cst_99 = arith.constant 0.000000e+00 : f32
    %248 = vector.broadcast %cst_99 : f32 to vector<16x128xf32>
    %249 = arith.maximumf %247, %248 : vector<16x128xf32>
    %cst_100 = arith.constant dense<0.000000e+00> : vector<16x64xf32>
    %250 = tpu.matmul %249, %29, %cst_100 {dimension_numbers = #tpu.dot_dimension_numbers<[1], [0], [0], [1], [0, 0, 1, 1], [], []>} : vector<16x128xf32>, vector<128x64xf32>, vector<16x64xf32> -> vector<16x64xf32>
    %251 = vector.broadcast %31 : vector<1x64xf32> to vector<16x64xf32>
    %252 = arith.addf %250, %251 : vector<16x64xf32>
    %253 = vector.extract_strided_slice %252 {offsets = [0, 0], sizes = [16, 32], strides = [1, 1]} : vector<16x64xf32> to vector<16x32xf32>
    %254 = vector.extract_strided_slice %252 {offsets = [0, 32], sizes = [16, 32], strides = [1, 1]} : vector<16x64xf32> to vector<16x32xf32>
    %255 = vector.broadcast %243 : vector<16x1xf32> to vector<16x32xf32>
    %256 = arith.mulf %255, %254 : vector<16x32xf32>
    %cst_101 = arith.constant 1.000000e+00 : f32
    %257 = vector.broadcast %cst_101 : f32 to vector<16x1xf32>
    %258 = arith.subf %257, %243 : vector<16x1xf32>
    %259 = vector.broadcast %258 : vector<16x1xf32> to vector<16x32xf32>
    %260 = arith.mulf %259, %253 : vector<16x32xf32>
    %261 = arith.addf %256, %260 : vector<16x32xf32>
    %cst_102 = arith.constant 1.000000e+00 : f32
    %262 = vector.broadcast %cst_102 : f32 to vector<16x1xf32>
    %263 = arith.subf %262, %243 : vector<16x1xf32>
    %264 = tpu.concatenate %263, %243 in 1 : vector<16x1xf32>, vector<16x1xf32> -> vector<16x2xf32>
    %265 = tpu.iota {dimensions = array<i32: 0>} : vector<16x16xi32>
    %266 = tpu.iota {dimensions = array<i32: 1>} : vector<16x16xi32>
    %267 = arith.cmpi sge, %265, %266 : vector<16x16xi32>
    %268 = arith.extui %267 : vector<16x16xi1> to vector<16x16xi32>
    %269 = arith.sitofp %268 : vector<16x16xi32> to vector<16x16xf32>
    %cst_103 = arith.constant dense<0.000000e+00> : vector<16x2xf32>
    %270 = tpu.matmul %269, %264, %cst_103 {dimension_numbers = #tpu.dot_dimension_numbers<[1], [0], [0], [1], [0, 0, 1, 1], [], []>} : vector<16x16xf32>, vector<16x2xf32>, vector<16x2xf32> -> vector<16x2xf32>
    %271 = arith.mulf %270, %264 : vector<16x2xf32>
    %cst_104 = arith.constant dense<0.000000e+00> : vector<16xf32>
    %272 = vector.multi_reduction <add>, %271, %cst_104 [1] : vector<16x2xf32> to vector<16xf32>
    %273 = vector.shape_cast %272 : vector<16xf32> to vector<16x1xf32>
    %cst_105 = arith.constant 8.000000e+00 : f32
    %274 = vector.broadcast %cst_105 : f32 to vector<16x1xf32>
    %275 = arith.cmpf ole, %273, %274 : vector<16x1xf32>
    %276 = arith.extui %275 : vector<16x1xi1> to vector<16x1xi32>
    %277 = arith.sitofp %276 : vector<16x1xi32> to vector<16x1xf32>
    %278 = vector.broadcast %277 : vector<16x1xf32> to vector<16x32xf32>
    %279 = arith.mulf %278, %261 : vector<16x32xf32>
    %cst_106 = arith.constant 1.000000e+00 : f32
    %280 = vector.broadcast %cst_106 : f32 to vector<16x1xf32>
    %281 = arith.subf %280, %277 : vector<16x1xf32>
    %282 = vector.broadcast %281 : vector<16x1xf32> to vector<16x32xf32>
    %283 = arith.mulf %282, %226 : vector<16x32xf32>
    %284 = arith.addf %279, %283 : vector<16x32xf32>
    %285 = vector.broadcast %244 : vector<16x1xf32> to vector<16x32xf32>
    %286 = arith.mulf %284, %285 : vector<16x32xf32>
    %287 = arith.addf %202, %286 : vector<16x32xf32>
    %c1 = arith.constant 1 : index
    %c0_107 = arith.constant 0 : index
    %c0_108 = arith.constant 0 : index
    %288 = vector.load %arg4[%c1, %c0_107, %c0_108] : memref<2x2x32xf32, #tpu.memory_space<vmem>>, vector<1x2x32xf32>
    %289 = vector.shape_cast %288 : vector<1x2x32xf32> to vector<2x32xf32>
    %c1_109 = arith.constant 1 : index
    %c0_110 = arith.constant 0 : index
    %c0_111 = arith.constant 0 : index
    %290 = vector.load %arg5[%c1_109, %c0_110, %c0_111] : memref<2x2x32xf32, #tpu.memory_space<vmem>>, vector<1x2x32xf32>
    %291 = vector.shape_cast %290 : vector<1x2x32xf32> to vector<2x32xf32>
    %c1_112 = arith.constant 1 : index
    %c0_113 = arith.constant 0 : index
    %c0_114 = arith.constant 0 : index
    %292 = vector.load %arg6[%c1_112, %c0_113, %c0_114] : memref<2x32x96xf32, #tpu.memory_space<vmem>>, vector<1x32x96xf32>
    %293 = vector.shape_cast %292 : vector<1x32x96xf32> to vector<32x96xf32>
    %c1_115 = arith.constant 1 : index
    %c0_116 = arith.constant 0 : index
    %c0_117 = arith.constant 0 : index
    %294 = vector.load %arg7[%c1_115, %c0_116, %c0_117] : memref<2x1x96xf32, #tpu.memory_space<vmem>>, vector<1x1x96xf32>
    %295 = vector.shape_cast %294 : vector<1x1x96xf32> to vector<1x96xf32>
    %c1_118 = arith.constant 1 : index
    %c0_119 = arith.constant 0 : index
    %c0_120 = arith.constant 0 : index
    %296 = vector.load %arg8[%c1_118, %c0_119, %c0_120] : memref<2x32x32xf32, #tpu.memory_space<vmem>>, vector<1x32x32xf32>
    %297 = vector.shape_cast %296 : vector<1x32x32xf32> to vector<32x32xf32>
    %c1_121 = arith.constant 1 : index
    %c0_122 = arith.constant 0 : index
    %c0_123 = arith.constant 0 : index
    %298 = vector.load %arg9[%c1_121, %c0_122, %c0_123] : memref<2x1x32xf32, #tpu.memory_space<vmem>>, vector<1x1x32xf32>
    %299 = vector.shape_cast %298 : vector<1x1x32xf32> to vector<1x32xf32>
    %c1_124 = arith.constant 1 : index
    %c0_125 = arith.constant 0 : index
    %c0_126 = arith.constant 0 : index
    %300 = vector.load %arg10[%c1_124, %c0_125, %c0_126] : memref<2x32x2xf32, #tpu.memory_space<vmem>>, vector<1x32x2xf32>
    %301 = vector.shape_cast %300 : vector<1x32x2xf32> to vector<32x2xf32>
    %c1_127 = arith.constant 1 : index
    %c0_128 = arith.constant 0 : index
    %c0_129 = arith.constant 0 : index
    %302 = vector.load %arg11[%c1_127, %c0_128, %c0_129] : memref<2x1x2xf32, #tpu.memory_space<vmem>>, vector<1x1x2xf32>
    %303 = vector.shape_cast %302 : vector<1x1x2xf32> to vector<1x2xf32>
    %c1_130 = arith.constant 1 : index
    %c0_131 = arith.constant 0 : index
    %c0_132 = arith.constant 0 : index
    %304 = vector.load %arg12[%c1_130, %c0_131, %c0_132] : memref<2x32x128xf32, #tpu.memory_space<vmem>>, vector<1x32x128xf32>
    %305 = vector.shape_cast %304 : vector<1x32x128xf32> to vector<32x128xf32>
    %c1_133 = arith.constant 1 : index
    %c0_134 = arith.constant 0 : index
    %c0_135 = arith.constant 0 : index
    %306 = vector.load %arg13[%c1_133, %c0_134, %c0_135] : memref<2x1x128xf32, #tpu.memory_space<vmem>>, vector<1x1x128xf32>
    %307 = vector.shape_cast %306 : vector<1x1x128xf32> to vector<1x128xf32>
    %c1_136 = arith.constant 1 : index
    %c0_137 = arith.constant 0 : index
    %c0_138 = arith.constant 0 : index
    %308 = vector.load %arg14[%c1_136, %c0_137, %c0_138] : memref<2x128x64xf32, #tpu.memory_space<vmem>>, vector<1x128x64xf32>
    %309 = vector.shape_cast %308 : vector<1x128x64xf32> to vector<128x64xf32>
    %c1_139 = arith.constant 1 : index
    %c0_140 = arith.constant 0 : index
    %c0_141 = arith.constant 0 : index
    %310 = vector.load %arg15[%c1_139, %c0_140, %c0_141] : memref<2x1x64xf32, #tpu.memory_space<vmem>>, vector<1x1x64xf32>
    %311 = vector.shape_cast %310 : vector<1x1x64xf32> to vector<1x64xf32>
    %312 = vector.extract_strided_slice %289 {offsets = [0, 0], sizes = [1, 32], strides = [1, 1]} : vector<2x32xf32> to vector<1x32xf32>
    %313 = vector.extract_strided_slice %291 {offsets = [0, 0], sizes = [1, 32], strides = [1, 1]} : vector<2x32xf32> to vector<1x32xf32>
    %cst_142 = arith.constant dense<0.000000e+00> : vector<16xf32>
    %314 = vector.multi_reduction <add>, %287, %cst_142 [1] : vector<16x32xf32> to vector<16xf32>
    %315 = vector.shape_cast %314 : vector<16xf32> to vector<16x1xf32>
    %cst_143 = arith.constant 3.200000e+01 : f32
    %316 = vector.broadcast %cst_143 : f32 to vector<16x1xf32>
    %317 = arith.divf %315, %316 : vector<16x1xf32>
    %318 = vector.broadcast %317 : vector<16x1xf32> to vector<16x32xf32>
    %319 = arith.subf %287, %318 : vector<16x32xf32>
    %320 = arith.mulf %319, %319 : vector<16x32xf32>
    %cst_144 = arith.constant dense<0.000000e+00> : vector<16xf32>
    %321 = vector.multi_reduction <add>, %320, %cst_144 [1] : vector<16x32xf32> to vector<16xf32>
    %322 = vector.shape_cast %321 : vector<16xf32> to vector<16x1xf32>
    %cst_145 = arith.constant 3.200000e+01 : f32
    %323 = vector.broadcast %cst_145 : f32 to vector<16x1xf32>
    %324 = arith.divf %322, %323 : vector<16x1xf32>
    %325 = vector.broadcast %317 : vector<16x1xf32> to vector<16x32xf32>
    %326 = arith.subf %287, %325 : vector<16x32xf32>
    %cst_146 = arith.constant 9.99999974E-6 : f32
    %327 = vector.broadcast %cst_146 : f32 to vector<16x1xf32>
    %328 = arith.addf %324, %327 : vector<16x1xf32>
    %329 = math.rsqrt %328 : vector<16x1xf32>
    %330 = vector.broadcast %329 : vector<16x1xf32> to vector<16x32xf32>
    %331 = arith.mulf %326, %330 : vector<16x32xf32>
    %332 = vector.broadcast %312 : vector<1x32xf32> to vector<16x32xf32>
    %333 = arith.mulf %331, %332 : vector<16x32xf32>
    %334 = vector.broadcast %313 : vector<1x32xf32> to vector<16x32xf32>
    %335 = arith.addf %333, %334 : vector<16x32xf32>
    %cst_147 = arith.constant dense<0.000000e+00> : vector<16x96xf32>
    %336 = tpu.matmul %335, %293, %cst_147 {dimension_numbers = #tpu.dot_dimension_numbers<[1], [0], [0], [1], [0, 0, 1, 1], [], []>} : vector<16x32xf32>, vector<32x96xf32>, vector<16x96xf32> -> vector<16x96xf32>
    %337 = vector.broadcast %295 : vector<1x96xf32> to vector<16x96xf32>
    %338 = arith.addf %336, %337 : vector<16x96xf32>
    %339 = vector.extract_strided_slice %338 {offsets = [0, 0], sizes = [16, 32], strides = [1, 1]} : vector<16x96xf32> to vector<16x32xf32>
    %340 = vector.extract_strided_slice %338 {offsets = [0, 32], sizes = [16, 32], strides = [1, 1]} : vector<16x96xf32> to vector<16x32xf32>
    %341 = vector.extract_strided_slice %338 {offsets = [0, 64], sizes = [16, 32], strides = [1, 1]} : vector<16x96xf32> to vector<16x32xf32>
    %342 = vector.extract_strided_slice %339 {offsets = [0, 0], sizes = [8, 32], strides = [1, 1]} : vector<16x32xf32> to vector<8x32xf32>
    %343 = vector.extract_strided_slice %340 {offsets = [0, 0], sizes = [8, 32], strides = [1, 1]} : vector<16x32xf32> to vector<8x32xf32>
    %344 = vector.extract_strided_slice %341 {offsets = [0, 0], sizes = [8, 32], strides = [1, 1]} : vector<16x32xf32> to vector<8x32xf32>
    %345 = vector.extract_strided_slice %342 {offsets = [0, 0], sizes = [8, 8], strides = [1, 1]} : vector<8x32xf32> to vector<8x8xf32>
    %346 = vector.extract_strided_slice %343 {offsets = [0, 0], sizes = [8, 8], strides = [1, 1]} : vector<8x32xf32> to vector<8x8xf32>
    %347 = vector.extract_strided_slice %344 {offsets = [0, 0], sizes = [8, 8], strides = [1, 1]} : vector<8x32xf32> to vector<8x8xf32>
    %cst_148 = arith.constant dense<0.000000e+00> : vector<8x8xf32>
    %348 = tpu.matmul %345, %346, %cst_148 {dimension_numbers = #tpu.dot_dimension_numbers<[1], [1], [0], [0], [0, 0, 1, 0], [], []>} : vector<8x8xf32>, vector<8x8xf32>, vector<8x8xf32> -> vector<8x8xf32>
    %cst_149 = arith.constant 0.353553385 : f32
    %349 = vector.broadcast %cst_149 : f32 to vector<8x8xf32>
    %350 = arith.mulf %348, %349 : vector<8x8xf32>
    %cst_150 = arith.constant dense<0xFF800000> : vector<8xf32>
    %351 = vector.multi_reduction <maximumf>, %350, %cst_150 [1] : vector<8x8xf32> to vector<8xf32>
    %352 = vector.shape_cast %351 : vector<8xf32> to vector<8x1xf32>
    %353 = vector.broadcast %352 : vector<8x1xf32> to vector<8x8xf32>
    %354 = arith.subf %350, %353 : vector<8x8xf32>
    %355 = math.exp %354 : vector<8x8xf32>
    %cst_151 = arith.constant dense<0.000000e+00> : vector<8xf32>
    %356 = vector.multi_reduction <add>, %355, %cst_151 [1] : vector<8x8xf32> to vector<8xf32>
    %357 = vector.shape_cast %356 : vector<8xf32> to vector<8x1xf32>
    %358 = vector.broadcast %357 : vector<8x1xf32> to vector<8x8xf32>
    %359 = arith.divf %355, %358 : vector<8x8xf32>
    %cst_152 = arith.constant dense<0.000000e+00> : vector<8x8xf32>
    %360 = tpu.matmul %359, %347, %cst_152 {dimension_numbers = #tpu.dot_dimension_numbers<[1], [0], [0], [1], [0, 0, 1, 1], [], []>} : vector<8x8xf32>, vector<8x8xf32>, vector<8x8xf32> -> vector<8x8xf32>
    %361 = vector.extract_strided_slice %342 {offsets = [0, 8], sizes = [8, 8], strides = [1, 1]} : vector<8x32xf32> to vector<8x8xf32>
    %362 = vector.extract_strided_slice %343 {offsets = [0, 8], sizes = [8, 8], strides = [1, 1]} : vector<8x32xf32> to vector<8x8xf32>
    %363 = vector.extract_strided_slice %344 {offsets = [0, 8], sizes = [8, 8], strides = [1, 1]} : vector<8x32xf32> to vector<8x8xf32>
    %cst_153 = arith.constant dense<0.000000e+00> : vector<8x8xf32>
    %364 = tpu.matmul %361, %362, %cst_153 {dimension_numbers = #tpu.dot_dimension_numbers<[1], [1], [0], [0], [0, 0, 1, 0], [], []>} : vector<8x8xf32>, vector<8x8xf32>, vector<8x8xf32> -> vector<8x8xf32>
    %cst_154 = arith.constant 0.353553385 : f32
    %365 = vector.broadcast %cst_154 : f32 to vector<8x8xf32>
    %366 = arith.mulf %364, %365 : vector<8x8xf32>
    %cst_155 = arith.constant dense<0xFF800000> : vector<8xf32>
    %367 = vector.multi_reduction <maximumf>, %366, %cst_155 [1] : vector<8x8xf32> to vector<8xf32>
    %368 = vector.shape_cast %367 : vector<8xf32> to vector<8x1xf32>
    %369 = vector.broadcast %368 : vector<8x1xf32> to vector<8x8xf32>
    %370 = arith.subf %366, %369 : vector<8x8xf32>
    %371 = math.exp %370 : vector<8x8xf32>
    %cst_156 = arith.constant dense<0.000000e+00> : vector<8xf32>
    %372 = vector.multi_reduction <add>, %371, %cst_156 [1] : vector<8x8xf32> to vector<8xf32>
    %373 = vector.shape_cast %372 : vector<8xf32> to vector<8x1xf32>
    %374 = vector.broadcast %373 : vector<8x1xf32> to vector<8x8xf32>
    %375 = arith.divf %371, %374 : vector<8x8xf32>
    %cst_157 = arith.constant dense<0.000000e+00> : vector<8x8xf32>
    %376 = tpu.matmul %375, %363, %cst_157 {dimension_numbers = #tpu.dot_dimension_numbers<[1], [0], [0], [1], [0, 0, 1, 1], [], []>} : vector<8x8xf32>, vector<8x8xf32>, vector<8x8xf32> -> vector<8x8xf32>
    %377 = vector.extract_strided_slice %342 {offsets = [0, 16], sizes = [8, 8], strides = [1, 1]} : vector<8x32xf32> to vector<8x8xf32>
    %378 = vector.extract_strided_slice %343 {offsets = [0, 16], sizes = [8, 8], strides = [1, 1]} : vector<8x32xf32> to vector<8x8xf32>
    %379 = vector.extract_strided_slice %344 {offsets = [0, 16], sizes = [8, 8], strides = [1, 1]} : vector<8x32xf32> to vector<8x8xf32>
    %cst_158 = arith.constant dense<0.000000e+00> : vector<8x8xf32>
    %380 = tpu.matmul %377, %378, %cst_158 {dimension_numbers = #tpu.dot_dimension_numbers<[1], [1], [0], [0], [0, 0, 1, 0], [], []>} : vector<8x8xf32>, vector<8x8xf32>, vector<8x8xf32> -> vector<8x8xf32>
    %cst_159 = arith.constant 0.353553385 : f32
    %381 = vector.broadcast %cst_159 : f32 to vector<8x8xf32>
    %382 = arith.mulf %380, %381 : vector<8x8xf32>
    %cst_160 = arith.constant dense<0xFF800000> : vector<8xf32>
    %383 = vector.multi_reduction <maximumf>, %382, %cst_160 [1] : vector<8x8xf32> to vector<8xf32>
    %384 = vector.shape_cast %383 : vector<8xf32> to vector<8x1xf32>
    %385 = vector.broadcast %384 : vector<8x1xf32> to vector<8x8xf32>
    %386 = arith.subf %382, %385 : vector<8x8xf32>
    %387 = math.exp %386 : vector<8x8xf32>
    %cst_161 = arith.constant dense<0.000000e+00> : vector<8xf32>
    %388 = vector.multi_reduction <add>, %387, %cst_161 [1] : vector<8x8xf32> to vector<8xf32>
    %389 = vector.shape_cast %388 : vector<8xf32> to vector<8x1xf32>
    %390 = vector.broadcast %389 : vector<8x1xf32> to vector<8x8xf32>
    %391 = arith.divf %387, %390 : vector<8x8xf32>
    %cst_162 = arith.constant dense<0.000000e+00> : vector<8x8xf32>
    %392 = tpu.matmul %391, %379, %cst_162 {dimension_numbers = #tpu.dot_dimension_numbers<[1], [0], [0], [1], [0, 0, 1, 1], [], []>} : vector<8x8xf32>, vector<8x8xf32>, vector<8x8xf32> -> vector<8x8xf32>
    %393 = vector.extract_strided_slice %342 {offsets = [0, 24], sizes = [8, 8], strides = [1, 1]} : vector<8x32xf32> to vector<8x8xf32>
    %394 = vector.extract_strided_slice %343 {offsets = [0, 24], sizes = [8, 8], strides = [1, 1]} : vector<8x32xf32> to vector<8x8xf32>
    %395 = vector.extract_strided_slice %344 {offsets = [0, 24], sizes = [8, 8], strides = [1, 1]} : vector<8x32xf32> to vector<8x8xf32>
    %cst_163 = arith.constant dense<0.000000e+00> : vector<8x8xf32>
    %396 = tpu.matmul %393, %394, %cst_163 {dimension_numbers = #tpu.dot_dimension_numbers<[1], [1], [0], [0], [0, 0, 1, 0], [], []>} : vector<8x8xf32>, vector<8x8xf32>, vector<8x8xf32> -> vector<8x8xf32>
    %cst_164 = arith.constant 0.353553385 : f32
    %397 = vector.broadcast %cst_164 : f32 to vector<8x8xf32>
    %398 = arith.mulf %396, %397 : vector<8x8xf32>
    %cst_165 = arith.constant dense<0xFF800000> : vector<8xf32>
    %399 = vector.multi_reduction <maximumf>, %398, %cst_165 [1] : vector<8x8xf32> to vector<8xf32>
    %400 = vector.shape_cast %399 : vector<8xf32> to vector<8x1xf32>
    %401 = vector.broadcast %400 : vector<8x1xf32> to vector<8x8xf32>
    %402 = arith.subf %398, %401 : vector<8x8xf32>
    %403 = math.exp %402 : vector<8x8xf32>
    %cst_166 = arith.constant dense<0.000000e+00> : vector<8xf32>
    %404 = vector.multi_reduction <add>, %403, %cst_166 [1] : vector<8x8xf32> to vector<8xf32>
    %405 = vector.shape_cast %404 : vector<8xf32> to vector<8x1xf32>
    %406 = vector.broadcast %405 : vector<8x1xf32> to vector<8x8xf32>
    %407 = arith.divf %403, %406 : vector<8x8xf32>
    %cst_167 = arith.constant dense<0.000000e+00> : vector<8x8xf32>
    %408 = tpu.matmul %407, %395, %cst_167 {dimension_numbers = #tpu.dot_dimension_numbers<[1], [0], [0], [1], [0, 0, 1, 1], [], []>} : vector<8x8xf32>, vector<8x8xf32>, vector<8x8xf32> -> vector<8x8xf32>
    %409 = tpu.concatenate %360, %376, %392, %408 in 1 : vector<8x8xf32>, vector<8x8xf32>, vector<8x8xf32>, vector<8x8xf32> -> vector<8x32xf32>
    %410 = vector.extract_strided_slice %339 {offsets = [8, 0], sizes = [8, 32], strides = [1, 1]} : vector<16x32xf32> to vector<8x32xf32>
    %411 = vector.extract_strided_slice %340 {offsets = [8, 0], sizes = [8, 32], strides = [1, 1]} : vector<16x32xf32> to vector<8x32xf32>
    %412 = vector.extract_strided_slice %341 {offsets = [8, 0], sizes = [8, 32], strides = [1, 1]} : vector<16x32xf32> to vector<8x32xf32>
    %413 = vector.extract_strided_slice %410 {offsets = [0, 0], sizes = [8, 8], strides = [1, 1]} : vector<8x32xf32> to vector<8x8xf32>
    %414 = vector.extract_strided_slice %411 {offsets = [0, 0], sizes = [8, 8], strides = [1, 1]} : vector<8x32xf32> to vector<8x8xf32>
    %415 = vector.extract_strided_slice %412 {offsets = [0, 0], sizes = [8, 8], strides = [1, 1]} : vector<8x32xf32> to vector<8x8xf32>
    %cst_168 = arith.constant dense<0.000000e+00> : vector<8x8xf32>
    %416 = tpu.matmul %413, %414, %cst_168 {dimension_numbers = #tpu.dot_dimension_numbers<[1], [1], [0], [0], [0, 0, 1, 0], [], []>} : vector<8x8xf32>, vector<8x8xf32>, vector<8x8xf32> -> vector<8x8xf32>
    %cst_169 = arith.constant 0.353553385 : f32
    %417 = vector.broadcast %cst_169 : f32 to vector<8x8xf32>
    %418 = arith.mulf %416, %417 : vector<8x8xf32>
    %cst_170 = arith.constant dense<0xFF800000> : vector<8xf32>
    %419 = vector.multi_reduction <maximumf>, %418, %cst_170 [1] : vector<8x8xf32> to vector<8xf32>
    %420 = vector.shape_cast %419 : vector<8xf32> to vector<8x1xf32>
    %421 = vector.broadcast %420 : vector<8x1xf32> to vector<8x8xf32>
    %422 = arith.subf %418, %421 : vector<8x8xf32>
    %423 = math.exp %422 : vector<8x8xf32>
    %cst_171 = arith.constant dense<0.000000e+00> : vector<8xf32>
    %424 = vector.multi_reduction <add>, %423, %cst_171 [1] : vector<8x8xf32> to vector<8xf32>
    %425 = vector.shape_cast %424 : vector<8xf32> to vector<8x1xf32>
    %426 = vector.broadcast %425 : vector<8x1xf32> to vector<8x8xf32>
    %427 = arith.divf %423, %426 : vector<8x8xf32>
    %cst_172 = arith.constant dense<0.000000e+00> : vector<8x8xf32>
    %428 = tpu.matmul %427, %415, %cst_172 {dimension_numbers = #tpu.dot_dimension_numbers<[1], [0], [0], [1], [0, 0, 1, 1], [], []>} : vector<8x8xf32>, vector<8x8xf32>, vector<8x8xf32> -> vector<8x8xf32>
    %429 = vector.extract_strided_slice %410 {offsets = [0, 8], sizes = [8, 8], strides = [1, 1]} : vector<8x32xf32> to vector<8x8xf32>
    %430 = vector.extract_strided_slice %411 {offsets = [0, 8], sizes = [8, 8], strides = [1, 1]} : vector<8x32xf32> to vector<8x8xf32>
    %431 = vector.extract_strided_slice %412 {offsets = [0, 8], sizes = [8, 8], strides = [1, 1]} : vector<8x32xf32> to vector<8x8xf32>
    %cst_173 = arith.constant dense<0.000000e+00> : vector<8x8xf32>
    %432 = tpu.matmul %429, %430, %cst_173 {dimension_numbers = #tpu.dot_dimension_numbers<[1], [1], [0], [0], [0, 0, 1, 0], [], []>} : vector<8x8xf32>, vector<8x8xf32>, vector<8x8xf32> -> vector<8x8xf32>
    %cst_174 = arith.constant 0.353553385 : f32
    %433 = vector.broadcast %cst_174 : f32 to vector<8x8xf32>
    %434 = arith.mulf %432, %433 : vector<8x8xf32>
    %cst_175 = arith.constant dense<0xFF800000> : vector<8xf32>
    %435 = vector.multi_reduction <maximumf>, %434, %cst_175 [1] : vector<8x8xf32> to vector<8xf32>
    %436 = vector.shape_cast %435 : vector<8xf32> to vector<8x1xf32>
    %437 = vector.broadcast %436 : vector<8x1xf32> to vector<8x8xf32>
    %438 = arith.subf %434, %437 : vector<8x8xf32>
    %439 = math.exp %438 : vector<8x8xf32>
    %cst_176 = arith.constant dense<0.000000e+00> : vector<8xf32>
    %440 = vector.multi_reduction <add>, %439, %cst_176 [1] : vector<8x8xf32> to vector<8xf32>
    %441 = vector.shape_cast %440 : vector<8xf32> to vector<8x1xf32>
    %442 = vector.broadcast %441 : vector<8x1xf32> to vector<8x8xf32>
    %443 = arith.divf %439, %442 : vector<8x8xf32>
    %cst_177 = arith.constant dense<0.000000e+00> : vector<8x8xf32>
    %444 = tpu.matmul %443, %431, %cst_177 {dimension_numbers = #tpu.dot_dimension_numbers<[1], [0], [0], [1], [0, 0, 1, 1], [], []>} : vector<8x8xf32>, vector<8x8xf32>, vector<8x8xf32> -> vector<8x8xf32>
    %445 = vector.extract_strided_slice %410 {offsets = [0, 16], sizes = [8, 8], strides = [1, 1]} : vector<8x32xf32> to vector<8x8xf32>
    %446 = vector.extract_strided_slice %411 {offsets = [0, 16], sizes = [8, 8], strides = [1, 1]} : vector<8x32xf32> to vector<8x8xf32>
    %447 = vector.extract_strided_slice %412 {offsets = [0, 16], sizes = [8, 8], strides = [1, 1]} : vector<8x32xf32> to vector<8x8xf32>
    %cst_178 = arith.constant dense<0.000000e+00> : vector<8x8xf32>
    %448 = tpu.matmul %445, %446, %cst_178 {dimension_numbers = #tpu.dot_dimension_numbers<[1], [1], [0], [0], [0, 0, 1, 0], [], []>} : vector<8x8xf32>, vector<8x8xf32>, vector<8x8xf32> -> vector<8x8xf32>
    %cst_179 = arith.constant 0.353553385 : f32
    %449 = vector.broadcast %cst_179 : f32 to vector<8x8xf32>
    %450 = arith.mulf %448, %449 : vector<8x8xf32>
    %cst_180 = arith.constant dense<0xFF800000> : vector<8xf32>
    %451 = vector.multi_reduction <maximumf>, %450, %cst_180 [1] : vector<8x8xf32> to vector<8xf32>
    %452 = vector.shape_cast %451 : vector<8xf32> to vector<8x1xf32>
    %453 = vector.broadcast %452 : vector<8x1xf32> to vector<8x8xf32>
    %454 = arith.subf %450, %453 : vector<8x8xf32>
    %455 = math.exp %454 : vector<8x8xf32>
    %cst_181 = arith.constant dense<0.000000e+00> : vector<8xf32>
    %456 = vector.multi_reduction <add>, %455, %cst_181 [1] : vector<8x8xf32> to vector<8xf32>
    %457 = vector.shape_cast %456 : vector<8xf32> to vector<8x1xf32>
    %458 = vector.broadcast %457 : vector<8x1xf32> to vector<8x8xf32>
    %459 = arith.divf %455, %458 : vector<8x8xf32>
    %cst_182 = arith.constant dense<0.000000e+00> : vector<8x8xf32>
    %460 = tpu.matmul %459, %447, %cst_182 {dimension_numbers = #tpu.dot_dimension_numbers<[1], [0], [0], [1], [0, 0, 1, 1], [], []>} : vector<8x8xf32>, vector<8x8xf32>, vector<8x8xf32> -> vector<8x8xf32>
    %461 = vector.extract_strided_slice %410 {offsets = [0, 24], sizes = [8, 8], strides = [1, 1]} : vector<8x32xf32> to vector<8x8xf32>
    %462 = vector.extract_strided_slice %411 {offsets = [0, 24], sizes = [8, 8], strides = [1, 1]} : vector<8x32xf32> to vector<8x8xf32>
    %463 = vector.extract_strided_slice %412 {offsets = [0, 24], sizes = [8, 8], strides = [1, 1]} : vector<8x32xf32> to vector<8x8xf32>
    %cst_183 = arith.constant dense<0.000000e+00> : vector<8x8xf32>
    %464 = tpu.matmul %461, %462, %cst_183 {dimension_numbers = #tpu.dot_dimension_numbers<[1], [1], [0], [0], [0, 0, 1, 0], [], []>} : vector<8x8xf32>, vector<8x8xf32>, vector<8x8xf32> -> vector<8x8xf32>
    %cst_184 = arith.constant 0.353553385 : f32
    %465 = vector.broadcast %cst_184 : f32 to vector<8x8xf32>
    %466 = arith.mulf %464, %465 : vector<8x8xf32>
    %cst_185 = arith.constant dense<0xFF800000> : vector<8xf32>
    %467 = vector.multi_reduction <maximumf>, %466, %cst_185 [1] : vector<8x8xf32> to vector<8xf32>
    %468 = vector.shape_cast %467 : vector<8xf32> to vector<8x1xf32>
    %469 = vector.broadcast %468 : vector<8x1xf32> to vector<8x8xf32>
    %470 = arith.subf %466, %469 : vector<8x8xf32>
    %471 = math.exp %470 : vector<8x8xf32>
    %cst_186 = arith.constant dense<0.000000e+00> : vector<8xf32>
    %472 = vector.multi_reduction <add>, %471, %cst_186 [1] : vector<8x8xf32> to vector<8xf32>
    %473 = vector.shape_cast %472 : vector<8xf32> to vector<8x1xf32>
    %474 = vector.broadcast %473 : vector<8x1xf32> to vector<8x8xf32>
    %475 = arith.divf %471, %474 : vector<8x8xf32>
    %cst_187 = arith.constant dense<0.000000e+00> : vector<8x8xf32>
    %476 = tpu.matmul %475, %463, %cst_187 {dimension_numbers = #tpu.dot_dimension_numbers<[1], [0], [0], [1], [0, 0, 1, 1], [], []>} : vector<8x8xf32>, vector<8x8xf32>, vector<8x8xf32> -> vector<8x8xf32>
    %477 = tpu.concatenate %428, %444, %460, %476 in 1 : vector<8x8xf32>, vector<8x8xf32>, vector<8x8xf32>, vector<8x8xf32> -> vector<8x32xf32>
    %478 = tpu.concatenate %409, %477 in 0 : vector<8x32xf32>, vector<8x32xf32> -> vector<16x32xf32>
    %cst_188 = arith.constant dense<0.000000e+00> : vector<16x32xf32>
    %479 = tpu.matmul %478, %297, %cst_188 {dimension_numbers = #tpu.dot_dimension_numbers<[1], [0], [0], [1], [0, 0, 1, 1], [], []>} : vector<16x32xf32>, vector<32x32xf32>, vector<16x32xf32> -> vector<16x32xf32>
    %480 = vector.broadcast %299 : vector<1x32xf32> to vector<16x32xf32>
    %481 = arith.addf %479, %480 : vector<16x32xf32>
    %482 = arith.addf %287, %481 : vector<16x32xf32>
    %483 = vector.extract_strided_slice %289 {offsets = [1, 0], sizes = [1, 32], strides = [1, 1]} : vector<2x32xf32> to vector<1x32xf32>
    %484 = vector.extract_strided_slice %291 {offsets = [1, 0], sizes = [1, 32], strides = [1, 1]} : vector<2x32xf32> to vector<1x32xf32>
    %cst_189 = arith.constant dense<0.000000e+00> : vector<16xf32>
    %485 = vector.multi_reduction <add>, %482, %cst_189 [1] : vector<16x32xf32> to vector<16xf32>
    %486 = vector.shape_cast %485 : vector<16xf32> to vector<16x1xf32>
    %cst_190 = arith.constant 3.200000e+01 : f32
    %487 = vector.broadcast %cst_190 : f32 to vector<16x1xf32>
    %488 = arith.divf %486, %487 : vector<16x1xf32>
    %489 = vector.broadcast %488 : vector<16x1xf32> to vector<16x32xf32>
    %490 = arith.subf %482, %489 : vector<16x32xf32>
    %491 = arith.mulf %490, %490 : vector<16x32xf32>
    %cst_191 = arith.constant dense<0.000000e+00> : vector<16xf32>
    %492 = vector.multi_reduction <add>, %491, %cst_191 [1] : vector<16x32xf32> to vector<16xf32>
    %493 = vector.shape_cast %492 : vector<16xf32> to vector<16x1xf32>
    %cst_192 = arith.constant 3.200000e+01 : f32
    %494 = vector.broadcast %cst_192 : f32 to vector<16x1xf32>
    %495 = arith.divf %493, %494 : vector<16x1xf32>
    %496 = vector.broadcast %488 : vector<16x1xf32> to vector<16x32xf32>
    %497 = arith.subf %482, %496 : vector<16x32xf32>
    %cst_193 = arith.constant 9.99999974E-6 : f32
    %498 = vector.broadcast %cst_193 : f32 to vector<16x1xf32>
    %499 = arith.addf %495, %498 : vector<16x1xf32>
    %500 = math.rsqrt %499 : vector<16x1xf32>
    %501 = vector.broadcast %500 : vector<16x1xf32> to vector<16x32xf32>
    %502 = arith.mulf %497, %501 : vector<16x32xf32>
    %503 = vector.broadcast %483 : vector<1x32xf32> to vector<16x32xf32>
    %504 = arith.mulf %502, %503 : vector<16x32xf32>
    %505 = vector.broadcast %484 : vector<1x32xf32> to vector<16x32xf32>
    %506 = arith.addf %504, %505 : vector<16x32xf32>
    %cst_194 = arith.constant dense<0.000000e+00> : vector<16x2xf32>
    %507 = tpu.matmul %506, %301, %cst_194 {dimension_numbers = #tpu.dot_dimension_numbers<[1], [0], [0], [1], [0, 0, 1, 1], [], []>} : vector<16x32xf32>, vector<32x2xf32>, vector<16x2xf32> -> vector<16x2xf32>
    %508 = vector.broadcast %303 : vector<1x2xf32> to vector<16x2xf32>
    %509 = arith.addf %507, %508 : vector<16x2xf32>
    %cst_195 = arith.constant dense<0xFF800000> : vector<16xf32>
    %510 = vector.multi_reduction <maximumf>, %509, %cst_195 [1] : vector<16x2xf32> to vector<16xf32>
    %511 = vector.shape_cast %510 : vector<16xf32> to vector<16x1xf32>
    %512 = vector.broadcast %511 : vector<16x1xf32> to vector<16x2xf32>
    %513 = arith.subf %509, %512 : vector<16x2xf32>
    %514 = math.exp %513 : vector<16x2xf32>
    %cst_196 = arith.constant dense<0.000000e+00> : vector<16xf32>
    %515 = vector.multi_reduction <add>, %514, %cst_196 [1] : vector<16x2xf32> to vector<16xf32>
    %516 = vector.shape_cast %515 : vector<16xf32> to vector<16x1xf32>
    %517 = vector.broadcast %516 : vector<16x1xf32> to vector<16x2xf32>
    %518 = arith.divf %514, %517 : vector<16x2xf32>
    %519 = vector.extract_strided_slice %518 {offsets = [0, 0], sizes = [16, 1], strides = [1, 1]} : vector<16x2xf32> to vector<16x1xf32>
    %520 = vector.extract_strided_slice %518 {offsets = [0, 1], sizes = [16, 1], strides = [1, 1]} : vector<16x2xf32> to vector<16x1xf32>
    %521 = arith.cmpf ogt, %520, %519 : vector<16x1xf32>
    %522 = arith.extui %521 : vector<16x1xi1> to vector<16x1xi32>
    %523 = arith.sitofp %522 : vector<16x1xi32> to vector<16x1xf32>
    %524 = arith.maximumf %519, %520 : vector<16x1xf32>
    %cst_197 = arith.constant dense<0.000000e+00> : vector<16x128xf32>
    %525 = tpu.matmul %506, %305, %cst_197 {dimension_numbers = #tpu.dot_dimension_numbers<[1], [0], [0], [1], [0, 0, 1, 1], [], []>} : vector<16x32xf32>, vector<32x128xf32>, vector<16x128xf32> -> vector<16x128xf32>
    %526 = vector.broadcast %307 : vector<1x128xf32> to vector<16x128xf32>
    %527 = arith.addf %525, %526 : vector<16x128xf32>
    %cst_198 = arith.constant 0.000000e+00 : f32
    %528 = vector.broadcast %cst_198 : f32 to vector<16x128xf32>
    %529 = arith.maximumf %527, %528 : vector<16x128xf32>
    %cst_199 = arith.constant dense<0.000000e+00> : vector<16x64xf32>
    %530 = tpu.matmul %529, %309, %cst_199 {dimension_numbers = #tpu.dot_dimension_numbers<[1], [0], [0], [1], [0, 0, 1, 1], [], []>} : vector<16x128xf32>, vector<128x64xf32>, vector<16x64xf32> -> vector<16x64xf32>
    %531 = vector.broadcast %311 : vector<1x64xf32> to vector<16x64xf32>
    %532 = arith.addf %530, %531 : vector<16x64xf32>
    %533 = vector.extract_strided_slice %532 {offsets = [0, 0], sizes = [16, 32], strides = [1, 1]} : vector<16x64xf32> to vector<16x32xf32>
    %534 = vector.extract_strided_slice %532 {offsets = [0, 32], sizes = [16, 32], strides = [1, 1]} : vector<16x64xf32> to vector<16x32xf32>
    %535 = vector.broadcast %523 : vector<16x1xf32> to vector<16x32xf32>
    %536 = arith.mulf %535, %534 : vector<16x32xf32>
    %cst_200 = arith.constant 1.000000e+00 : f32
    %537 = vector.broadcast %cst_200 : f32 to vector<16x1xf32>
    %538 = arith.subf %537, %523 : vector<16x1xf32>
    %539 = vector.broadcast %538 : vector<16x1xf32> to vector<16x32xf32>
    %540 = arith.mulf %539, %533 : vector<16x32xf32>
    %541 = arith.addf %536, %540 : vector<16x32xf32>
    %cst_201 = arith.constant 1.000000e+00 : f32
    %542 = vector.broadcast %cst_201 : f32 to vector<16x1xf32>
    %543 = arith.subf %542, %523 : vector<16x1xf32>
    %544 = tpu.concatenate %543, %523 in 1 : vector<16x1xf32>, vector<16x1xf32> -> vector<16x2xf32>
    %545 = tpu.iota {dimensions = array<i32: 0>} : vector<16x16xi32>
    %546 = tpu.iota {dimensions = array<i32: 1>} : vector<16x16xi32>
    %547 = arith.cmpi sge, %545, %546 : vector<16x16xi32>
    %548 = arith.extui %547 : vector<16x16xi1> to vector<16x16xi32>
    %549 = arith.sitofp %548 : vector<16x16xi32> to vector<16x16xf32>
    %cst_202 = arith.constant dense<0.000000e+00> : vector<16x2xf32>
    %550 = tpu.matmul %549, %544, %cst_202 {dimension_numbers = #tpu.dot_dimension_numbers<[1], [0], [0], [1], [0, 0, 1, 1], [], []>} : vector<16x16xf32>, vector<16x2xf32>, vector<16x2xf32> -> vector<16x2xf32>
    %551 = arith.mulf %550, %544 : vector<16x2xf32>
    %cst_203 = arith.constant dense<0.000000e+00> : vector<16xf32>
    %552 = vector.multi_reduction <add>, %551, %cst_203 [1] : vector<16x2xf32> to vector<16xf32>
    %553 = vector.shape_cast %552 : vector<16xf32> to vector<16x1xf32>
    %cst_204 = arith.constant 8.000000e+00 : f32
    %554 = vector.broadcast %cst_204 : f32 to vector<16x1xf32>
    %555 = arith.cmpf ole, %553, %554 : vector<16x1xf32>
    %556 = arith.extui %555 : vector<16x1xi1> to vector<16x1xi32>
    %557 = arith.sitofp %556 : vector<16x1xi32> to vector<16x1xf32>
    %558 = vector.broadcast %557 : vector<16x1xf32> to vector<16x32xf32>
    %559 = arith.mulf %558, %541 : vector<16x32xf32>
    %cst_205 = arith.constant 1.000000e+00 : f32
    %560 = vector.broadcast %cst_205 : f32 to vector<16x1xf32>
    %561 = arith.subf %560, %557 : vector<16x1xf32>
    %562 = vector.broadcast %561 : vector<16x1xf32> to vector<16x32xf32>
    %563 = arith.mulf %562, %506 : vector<16x32xf32>
    %564 = arith.addf %559, %563 : vector<16x32xf32>
    %565 = vector.broadcast %524 : vector<16x1xf32> to vector<16x32xf32>
    %566 = arith.mulf %564, %565 : vector<16x32xf32>
    %567 = arith.addf %482, %566 : vector<16x32xf32>
    %c0_206 = arith.constant 0 : index
    %c0_207 = arith.constant 0 : index
    %568 = vector.load %arg16[%c0_206, %c0_207] : memref<2x32xf32, #tpu.memory_space<vmem>>, vector<2x32xf32>
    %c0_208 = arith.constant 0 : index
    %c0_209 = arith.constant 0 : index
    %c0_210 = arith.constant 0 : index
    %569 = vector.load %arg17[%c0_208, %c0_209, %c0_210] : memref<2x3x32xf32, #tpu.memory_space<vmem>>, vector<1x3x32xf32>
    %570 = vector.shape_cast %569 : vector<1x3x32xf32> to vector<3x32xf32>
    %c0_211 = arith.constant 0 : index
    %c0_212 = arith.constant 0 : index
    %c0_213 = arith.constant 0 : index
    %571 = vector.load %arg18[%c0_211, %c0_212, %c0_213] : memref<2x3x32xf32, #tpu.memory_space<vmem>>, vector<1x3x32xf32>
    %572 = vector.shape_cast %571 : vector<1x3x32xf32> to vector<3x32xf32>
    %c0_214 = arith.constant 0 : index
    %c0_215 = arith.constant 0 : index
    %c0_216 = arith.constant 0 : index
    %573 = vector.load %arg19[%c0_214, %c0_215, %c0_216] : memref<2x32x96xf32, #tpu.memory_space<vmem>>, vector<1x32x96xf32>
    %574 = vector.shape_cast %573 : vector<1x32x96xf32> to vector<32x96xf32>
    %c0_217 = arith.constant 0 : index
    %c0_218 = arith.constant 0 : index
    %c0_219 = arith.constant 0 : index
    %575 = vector.load %arg20[%c0_217, %c0_218, %c0_219] : memref<2x1x96xf32, #tpu.memory_space<vmem>>, vector<1x1x96xf32>
    %576 = vector.shape_cast %575 : vector<1x1x96xf32> to vector<1x96xf32>
    %c0_220 = arith.constant 0 : index
    %c0_221 = arith.constant 0 : index
    %c0_222 = arith.constant 0 : index
    %577 = vector.load %arg21[%c0_220, %c0_221, %c0_222] : memref<2x32x32xf32, #tpu.memory_space<vmem>>, vector<1x32x32xf32>
    %578 = vector.shape_cast %577 : vector<1x32x32xf32> to vector<32x32xf32>
    %c0_223 = arith.constant 0 : index
    %c0_224 = arith.constant 0 : index
    %c0_225 = arith.constant 0 : index
    %579 = vector.load %arg22[%c0_223, %c0_224, %c0_225] : memref<2x1x32xf32, #tpu.memory_space<vmem>>, vector<1x1x32xf32>
    %580 = vector.shape_cast %579 : vector<1x1x32xf32> to vector<1x32xf32>
    %c0_226 = arith.constant 0 : index
    %c0_227 = arith.constant 0 : index
    %c0_228 = arith.constant 0 : index
    %581 = vector.load %arg23[%c0_226, %c0_227, %c0_228] : memref<2x32x32xf32, #tpu.memory_space<vmem>>, vector<1x32x32xf32>
    %582 = vector.shape_cast %581 : vector<1x32x32xf32> to vector<32x32xf32>
    %c0_229 = arith.constant 0 : index
    %c0_230 = arith.constant 0 : index
    %c0_231 = arith.constant 0 : index
    %583 = vector.load %arg24[%c0_229, %c0_230, %c0_231] : memref<2x1x32xf32, #tpu.memory_space<vmem>>, vector<1x1x32xf32>
    %584 = vector.shape_cast %583 : vector<1x1x32xf32> to vector<1x32xf32>
    %c0_232 = arith.constant 0 : index
    %c0_233 = arith.constant 0 : index
    %c0_234 = arith.constant 0 : index
    %585 = vector.load %arg25[%c0_232, %c0_233, %c0_234] : memref<2x32x64xf32, #tpu.memory_space<vmem>>, vector<1x32x64xf32>
    %586 = vector.shape_cast %585 : vector<1x32x64xf32> to vector<32x64xf32>
    %c0_235 = arith.constant 0 : index
    %c0_236 = arith.constant 0 : index
    %c0_237 = arith.constant 0 : index
    %587 = vector.load %arg26[%c0_235, %c0_236, %c0_237] : memref<2x1x64xf32, #tpu.memory_space<vmem>>, vector<1x1x64xf32>
    %588 = vector.shape_cast %587 : vector<1x1x64xf32> to vector<1x64xf32>
    %c0_238 = arith.constant 0 : index
    %c0_239 = arith.constant 0 : index
    %c0_240 = arith.constant 0 : index
    %589 = vector.load %arg27[%c0_238, %c0_239, %c0_240] : memref<2x32x32xf32, #tpu.memory_space<vmem>>, vector<1x32x32xf32>
    %590 = vector.shape_cast %589 : vector<1x32x32xf32> to vector<32x32xf32>
    %c0_241 = arith.constant 0 : index
    %c0_242 = arith.constant 0 : index
    %c0_243 = arith.constant 0 : index
    %591 = vector.load %arg28[%c0_241, %c0_242, %c0_243] : memref<2x1x32xf32, #tpu.memory_space<vmem>>, vector<1x1x32xf32>
    %592 = vector.shape_cast %591 : vector<1x1x32xf32> to vector<1x32xf32>
    %c0_244 = arith.constant 0 : index
    %c0_245 = arith.constant 0 : index
    %c0_246 = arith.constant 0 : index
    %593 = vector.load %arg29[%c0_244, %c0_245, %c0_246] : memref<2x32x2xf32, #tpu.memory_space<vmem>>, vector<1x32x2xf32>
    %594 = vector.shape_cast %593 : vector<1x32x2xf32> to vector<32x2xf32>
    %c0_247 = arith.constant 0 : index
    %c0_248 = arith.constant 0 : index
    %c0_249 = arith.constant 0 : index
    %595 = vector.load %arg30[%c0_247, %c0_248, %c0_249] : memref<2x1x2xf32, #tpu.memory_space<vmem>>, vector<1x1x2xf32>
    %596 = vector.shape_cast %595 : vector<1x1x2xf32> to vector<1x2xf32>
    %c0_250 = arith.constant 0 : index
    %c0_251 = arith.constant 0 : index
    %c0_252 = arith.constant 0 : index
    %597 = vector.load %arg31[%c0_250, %c0_251, %c0_252] : memref<2x32x128xf32, #tpu.memory_space<vmem>>, vector<1x32x128xf32>
    %598 = vector.shape_cast %597 : vector<1x32x128xf32> to vector<32x128xf32>
    %c0_253 = arith.constant 0 : index
    %c0_254 = arith.constant 0 : index
    %c0_255 = arith.constant 0 : index
    %599 = vector.load %arg32[%c0_253, %c0_254, %c0_255] : memref<2x1x128xf32, #tpu.memory_space<vmem>>, vector<1x1x128xf32>
    %600 = vector.shape_cast %599 : vector<1x1x128xf32> to vector<1x128xf32>
    %c0_256 = arith.constant 0 : index
    %c0_257 = arith.constant 0 : index
    %c0_258 = arith.constant 0 : index
    %601 = vector.load %arg33[%c0_256, %c0_257, %c0_258] : memref<2x128x64xf32, #tpu.memory_space<vmem>>, vector<1x128x64xf32>
    %602 = vector.shape_cast %601 : vector<1x128x64xf32> to vector<128x64xf32>
    %c0_259 = arith.constant 0 : index
    %c0_260 = arith.constant 0 : index
    %c0_261 = arith.constant 0 : index
    %603 = vector.load %arg34[%c0_259, %c0_260, %c0_261] : memref<2x1x64xf32, #tpu.memory_space<vmem>>, vector<1x1x64xf32>
    %604 = vector.shape_cast %603 : vector<1x1x64xf32> to vector<1x64xf32>
    %605 = vector.extract_strided_slice %570 {offsets = [0, 0], sizes = [1, 32], strides = [1, 1]} : vector<3x32xf32> to vector<1x32xf32>
    %606 = vector.extract_strided_slice %572 {offsets = [0, 0], sizes = [1, 32], strides = [1, 1]} : vector<3x32xf32> to vector<1x32xf32>
    %cst_262 = arith.constant dense<0.000000e+00> : vector<2xf32>
    %607 = vector.multi_reduction <add>, %568, %cst_262 [1] : vector<2x32xf32> to vector<2xf32>
    %608 = vector.shape_cast %607 : vector<2xf32> to vector<2x1xf32>
    %cst_263 = arith.constant 3.200000e+01 : f32
    %609 = vector.broadcast %cst_263 : f32 to vector<2x1xf32>
    %610 = arith.divf %608, %609 : vector<2x1xf32>
    %611 = vector.broadcast %610 : vector<2x1xf32> to vector<2x32xf32>
    %612 = arith.subf %568, %611 : vector<2x32xf32>
    %613 = arith.mulf %612, %612 : vector<2x32xf32>
    %cst_264 = arith.constant dense<0.000000e+00> : vector<2xf32>
    %614 = vector.multi_reduction <add>, %613, %cst_264 [1] : vector<2x32xf32> to vector<2xf32>
    %615 = vector.shape_cast %614 : vector<2xf32> to vector<2x1xf32>
    %cst_265 = arith.constant 3.200000e+01 : f32
    %616 = vector.broadcast %cst_265 : f32 to vector<2x1xf32>
    %617 = arith.divf %615, %616 : vector<2x1xf32>
    %618 = vector.broadcast %610 : vector<2x1xf32> to vector<2x32xf32>
    %619 = arith.subf %568, %618 : vector<2x32xf32>
    %cst_266 = arith.constant 9.99999974E-6 : f32
    %620 = vector.broadcast %cst_266 : f32 to vector<2x1xf32>
    %621 = arith.addf %617, %620 : vector<2x1xf32>
    %622 = math.rsqrt %621 : vector<2x1xf32>
    %623 = vector.broadcast %622 : vector<2x1xf32> to vector<2x32xf32>
    %624 = arith.mulf %619, %623 : vector<2x32xf32>
    %625 = vector.broadcast %605 : vector<1x32xf32> to vector<2x32xf32>
    %626 = arith.mulf %624, %625 : vector<2x32xf32>
    %627 = vector.broadcast %606 : vector<1x32xf32> to vector<2x32xf32>
    %628 = arith.addf %626, %627 : vector<2x32xf32>
    %cst_267 = arith.constant dense<0.000000e+00> : vector<2x96xf32>
    %629 = tpu.matmul %628, %574, %cst_267 {dimension_numbers = #tpu.dot_dimension_numbers<[1], [0], [0], [1], [0, 0, 1, 1], [], []>} : vector<2x32xf32>, vector<32x96xf32>, vector<2x96xf32> -> vector<2x96xf32>
    %630 = vector.broadcast %576 : vector<1x96xf32> to vector<2x96xf32>
    %631 = arith.addf %629, %630 : vector<2x96xf32>
    %632 = vector.extract_strided_slice %631 {offsets = [0, 64], sizes = [2, 32], strides = [1, 1]} : vector<2x96xf32> to vector<2x32xf32>
    %cst_268 = arith.constant dense<0.000000e+00> : vector<2x32xf32>
    %633 = tpu.matmul %632, %578, %cst_268 {dimension_numbers = #tpu.dot_dimension_numbers<[1], [0], [0], [1], [0, 0, 1, 1], [], []>} : vector<2x32xf32>, vector<32x32xf32>, vector<2x32xf32> -> vector<2x32xf32>
    %634 = vector.broadcast %580 : vector<1x32xf32> to vector<2x32xf32>
    %635 = arith.addf %633, %634 : vector<2x32xf32>
    %636 = arith.addf %568, %635 : vector<2x32xf32>
    %637 = vector.extract_strided_slice %570 {offsets = [1, 0], sizes = [1, 32], strides = [1, 1]} : vector<3x32xf32> to vector<1x32xf32>
    %638 = vector.extract_strided_slice %572 {offsets = [1, 0], sizes = [1, 32], strides = [1, 1]} : vector<3x32xf32> to vector<1x32xf32>
    %cst_269 = arith.constant dense<0.000000e+00> : vector<2xf32>
    %639 = vector.multi_reduction <add>, %636, %cst_269 [1] : vector<2x32xf32> to vector<2xf32>
    %640 = vector.shape_cast %639 : vector<2xf32> to vector<2x1xf32>
    %cst_270 = arith.constant 3.200000e+01 : f32
    %641 = vector.broadcast %cst_270 : f32 to vector<2x1xf32>
    %642 = arith.divf %640, %641 : vector<2x1xf32>
    %643 = vector.broadcast %642 : vector<2x1xf32> to vector<2x32xf32>
    %644 = arith.subf %636, %643 : vector<2x32xf32>
    %645 = arith.mulf %644, %644 : vector<2x32xf32>
    %cst_271 = arith.constant dense<0.000000e+00> : vector<2xf32>
    %646 = vector.multi_reduction <add>, %645, %cst_271 [1] : vector<2x32xf32> to vector<2xf32>
    %647 = vector.shape_cast %646 : vector<2xf32> to vector<2x1xf32>
    %cst_272 = arith.constant 3.200000e+01 : f32
    %648 = vector.broadcast %cst_272 : f32 to vector<2x1xf32>
    %649 = arith.divf %647, %648 : vector<2x1xf32>
    %650 = vector.broadcast %642 : vector<2x1xf32> to vector<2x32xf32>
    %651 = arith.subf %636, %650 : vector<2x32xf32>
    %cst_273 = arith.constant 9.99999974E-6 : f32
    %652 = vector.broadcast %cst_273 : f32 to vector<2x1xf32>
    %653 = arith.addf %649, %652 : vector<2x1xf32>
    %654 = math.rsqrt %653 : vector<2x1xf32>
    %655 = vector.broadcast %654 : vector<2x1xf32> to vector<2x32xf32>
    %656 = arith.mulf %651, %655 : vector<2x32xf32>
    %657 = vector.broadcast %637 : vector<1x32xf32> to vector<2x32xf32>
    %658 = arith.mulf %656, %657 : vector<2x32xf32>
    %659 = vector.broadcast %638 : vector<1x32xf32> to vector<2x32xf32>
    %660 = arith.addf %658, %659 : vector<2x32xf32>
    %cst_274 = arith.constant dense<0.000000e+00> : vector<2x32xf32>
    %661 = tpu.matmul %660, %582, %cst_274 {dimension_numbers = #tpu.dot_dimension_numbers<[1], [0], [0], [1], [0, 0, 1, 1], [], []>} : vector<2x32xf32>, vector<32x32xf32>, vector<2x32xf32> -> vector<2x32xf32>
    %662 = vector.broadcast %584 : vector<1x32xf32> to vector<2x32xf32>
    %663 = arith.addf %661, %662 : vector<2x32xf32>
    %cst_275 = arith.constant dense<0.000000e+00> : vector<16x64xf32>
    %664 = tpu.matmul %287, %586, %cst_275 {dimension_numbers = #tpu.dot_dimension_numbers<[1], [0], [0], [1], [0, 0, 1, 1], [], []>} : vector<16x32xf32>, vector<32x64xf32>, vector<16x64xf32> -> vector<16x64xf32>
    %665 = vector.broadcast %588 : vector<1x64xf32> to vector<16x64xf32>
    %666 = arith.addf %664, %665 : vector<16x64xf32>
    %667 = vector.extract_strided_slice %666 {offsets = [0, 0], sizes = [16, 32], strides = [1, 1]} : vector<16x64xf32> to vector<16x32xf32>
    %668 = vector.extract_strided_slice %666 {offsets = [0, 32], sizes = [16, 32], strides = [1, 1]} : vector<16x64xf32> to vector<16x32xf32>
    %669 = vector.extract_strided_slice %663 {offsets = [0, 0], sizes = [1, 32], strides = [1, 1]} : vector<2x32xf32> to vector<1x32xf32>
    %670 = vector.extract_strided_slice %667 {offsets = [0, 0], sizes = [8, 32], strides = [1, 1]} : vector<16x32xf32> to vector<8x32xf32>
    %671 = vector.extract_strided_slice %668 {offsets = [0, 0], sizes = [8, 32], strides = [1, 1]} : vector<16x32xf32> to vector<8x32xf32>
    %672 = vector.extract_strided_slice %669 {offsets = [0, 0], sizes = [1, 8], strides = [1, 1]} : vector<1x32xf32> to vector<1x8xf32>
    %673 = vector.extract_strided_slice %670 {offsets = [0, 0], sizes = [8, 8], strides = [1, 1]} : vector<8x32xf32> to vector<8x8xf32>
    %674 = vector.extract_strided_slice %671 {offsets = [0, 0], sizes = [8, 8], strides = [1, 1]} : vector<8x32xf32> to vector<8x8xf32>
    %cst_276 = arith.constant dense<0.000000e+00> : vector<1x8xf32>
    %675 = tpu.matmul %672, %673, %cst_276 {dimension_numbers = #tpu.dot_dimension_numbers<[1], [1], [0], [0], [0, 0, 1, 0], [], []>} : vector<1x8xf32>, vector<8x8xf32>, vector<1x8xf32> -> vector<1x8xf32>
    %cst_277 = arith.constant 0.353553385 : f32
    %676 = vector.broadcast %cst_277 : f32 to vector<1x8xf32>
    %677 = arith.mulf %675, %676 : vector<1x8xf32>
    %cst_278 = arith.constant dense<0xFF800000> : vector<1xf32>
    %678 = vector.multi_reduction <maximumf>, %677, %cst_278 [1] : vector<1x8xf32> to vector<1xf32>
    %679 = vector.shape_cast %678 : vector<1xf32> to vector<1x1xf32>
    %680 = vector.broadcast %679 : vector<1x1xf32> to vector<1x8xf32>
    %681 = arith.subf %677, %680 : vector<1x8xf32>
    %682 = math.exp %681 : vector<1x8xf32>
    %cst_279 = arith.constant dense<0.000000e+00> : vector<1xf32>
    %683 = vector.multi_reduction <add>, %682, %cst_279 [1] : vector<1x8xf32> to vector<1xf32>
    %684 = vector.shape_cast %683 : vector<1xf32> to vector<1x1xf32>
    %685 = vector.broadcast %684 : vector<1x1xf32> to vector<1x8xf32>
    %686 = arith.divf %682, %685 : vector<1x8xf32>
    %cst_280 = arith.constant dense<0.000000e+00> : vector<1x8xf32>
    %687 = tpu.matmul %686, %674, %cst_280 {dimension_numbers = #tpu.dot_dimension_numbers<[1], [0], [0], [1], [0, 0, 1, 1], [], []>} : vector<1x8xf32>, vector<8x8xf32>, vector<1x8xf32> -> vector<1x8xf32>
    %688 = vector.extract_strided_slice %669 {offsets = [0, 8], sizes = [1, 8], strides = [1, 1]} : vector<1x32xf32> to vector<1x8xf32>
    %689 = vector.extract_strided_slice %670 {offsets = [0, 8], sizes = [8, 8], strides = [1, 1]} : vector<8x32xf32> to vector<8x8xf32>
    %690 = vector.extract_strided_slice %671 {offsets = [0, 8], sizes = [8, 8], strides = [1, 1]} : vector<8x32xf32> to vector<8x8xf32>
    %cst_281 = arith.constant dense<0.000000e+00> : vector<1x8xf32>
    %691 = tpu.matmul %688, %689, %cst_281 {dimension_numbers = #tpu.dot_dimension_numbers<[1], [1], [0], [0], [0, 0, 1, 0], [], []>} : vector<1x8xf32>, vector<8x8xf32>, vector<1x8xf32> -> vector<1x8xf32>
    %cst_282 = arith.constant 0.353553385 : f32
    %692 = vector.broadcast %cst_282 : f32 to vector<1x8xf32>
    %693 = arith.mulf %691, %692 : vector<1x8xf32>
    %cst_283 = arith.constant dense<0xFF800000> : vector<1xf32>
    %694 = vector.multi_reduction <maximumf>, %693, %cst_283 [1] : vector<1x8xf32> to vector<1xf32>
    %695 = vector.shape_cast %694 : vector<1xf32> to vector<1x1xf32>
    %696 = vector.broadcast %695 : vector<1x1xf32> to vector<1x8xf32>
    %697 = arith.subf %693, %696 : vector<1x8xf32>
    %698 = math.exp %697 : vector<1x8xf32>
    %cst_284 = arith.constant dense<0.000000e+00> : vector<1xf32>
    %699 = vector.multi_reduction <add>, %698, %cst_284 [1] : vector<1x8xf32> to vector<1xf32>
    %700 = vector.shape_cast %699 : vector<1xf32> to vector<1x1xf32>
    %701 = vector.broadcast %700 : vector<1x1xf32> to vector<1x8xf32>
    %702 = arith.divf %698, %701 : vector<1x8xf32>
    %cst_285 = arith.constant dense<0.000000e+00> : vector<1x8xf32>
    %703 = tpu.matmul %702, %690, %cst_285 {dimension_numbers = #tpu.dot_dimension_numbers<[1], [0], [0], [1], [0, 0, 1, 1], [], []>} : vector<1x8xf32>, vector<8x8xf32>, vector<1x8xf32> -> vector<1x8xf32>
    %704 = vector.extract_strided_slice %669 {offsets = [0, 16], sizes = [1, 8], strides = [1, 1]} : vector<1x32xf32> to vector<1x8xf32>
    %705 = vector.extract_strided_slice %670 {offsets = [0, 16], sizes = [8, 8], strides = [1, 1]} : vector<8x32xf32> to vector<8x8xf32>
    %706 = vector.extract_strided_slice %671 {offsets = [0, 16], sizes = [8, 8], strides = [1, 1]} : vector<8x32xf32> to vector<8x8xf32>
    %cst_286 = arith.constant dense<0.000000e+00> : vector<1x8xf32>
    %707 = tpu.matmul %704, %705, %cst_286 {dimension_numbers = #tpu.dot_dimension_numbers<[1], [1], [0], [0], [0, 0, 1, 0], [], []>} : vector<1x8xf32>, vector<8x8xf32>, vector<1x8xf32> -> vector<1x8xf32>
    %cst_287 = arith.constant 0.353553385 : f32
    %708 = vector.broadcast %cst_287 : f32 to vector<1x8xf32>
    %709 = arith.mulf %707, %708 : vector<1x8xf32>
    %cst_288 = arith.constant dense<0xFF800000> : vector<1xf32>
    %710 = vector.multi_reduction <maximumf>, %709, %cst_288 [1] : vector<1x8xf32> to vector<1xf32>
    %711 = vector.shape_cast %710 : vector<1xf32> to vector<1x1xf32>
    %712 = vector.broadcast %711 : vector<1x1xf32> to vector<1x8xf32>
    %713 = arith.subf %709, %712 : vector<1x8xf32>
    %714 = math.exp %713 : vector<1x8xf32>
    %cst_289 = arith.constant dense<0.000000e+00> : vector<1xf32>
    %715 = vector.multi_reduction <add>, %714, %cst_289 [1] : vector<1x8xf32> to vector<1xf32>
    %716 = vector.shape_cast %715 : vector<1xf32> to vector<1x1xf32>
    %717 = vector.broadcast %716 : vector<1x1xf32> to vector<1x8xf32>
    %718 = arith.divf %714, %717 : vector<1x8xf32>
    %cst_290 = arith.constant dense<0.000000e+00> : vector<1x8xf32>
    %719 = tpu.matmul %718, %706, %cst_290 {dimension_numbers = #tpu.dot_dimension_numbers<[1], [0], [0], [1], [0, 0, 1, 1], [], []>} : vector<1x8xf32>, vector<8x8xf32>, vector<1x8xf32> -> vector<1x8xf32>
    %720 = vector.extract_strided_slice %669 {offsets = [0, 24], sizes = [1, 8], strides = [1, 1]} : vector<1x32xf32> to vector<1x8xf32>
    %721 = vector.extract_strided_slice %670 {offsets = [0, 24], sizes = [8, 8], strides = [1, 1]} : vector<8x32xf32> to vector<8x8xf32>
    %722 = vector.extract_strided_slice %671 {offsets = [0, 24], sizes = [8, 8], strides = [1, 1]} : vector<8x32xf32> to vector<8x8xf32>
    %cst_291 = arith.constant dense<0.000000e+00> : vector<1x8xf32>
    %723 = tpu.matmul %720, %721, %cst_291 {dimension_numbers = #tpu.dot_dimension_numbers<[1], [1], [0], [0], [0, 0, 1, 0], [], []>} : vector<1x8xf32>, vector<8x8xf32>, vector<1x8xf32> -> vector<1x8xf32>
    %cst_292 = arith.constant 0.353553385 : f32
    %724 = vector.broadcast %cst_292 : f32 to vector<1x8xf32>
    %725 = arith.mulf %723, %724 : vector<1x8xf32>
    %cst_293 = arith.constant dense<0xFF800000> : vector<1xf32>
    %726 = vector.multi_reduction <maximumf>, %725, %cst_293 [1] : vector<1x8xf32> to vector<1xf32>
    %727 = vector.shape_cast %726 : vector<1xf32> to vector<1x1xf32>
    %728 = vector.broadcast %727 : vector<1x1xf32> to vector<1x8xf32>
    %729 = arith.subf %725, %728 : vector<1x8xf32>
    %730 = math.exp %729 : vector<1x8xf32>
    %cst_294 = arith.constant dense<0.000000e+00> : vector<1xf32>
    %731 = vector.multi_reduction <add>, %730, %cst_294 [1] : vector<1x8xf32> to vector<1xf32>
    %732 = vector.shape_cast %731 : vector<1xf32> to vector<1x1xf32>
    %733 = vector.broadcast %732 : vector<1x1xf32> to vector<1x8xf32>
    %734 = arith.divf %730, %733 : vector<1x8xf32>
    %cst_295 = arith.constant dense<0.000000e+00> : vector<1x8xf32>
    %735 = tpu.matmul %734, %722, %cst_295 {dimension_numbers = #tpu.dot_dimension_numbers<[1], [0], [0], [1], [0, 0, 1, 1], [], []>} : vector<1x8xf32>, vector<8x8xf32>, vector<1x8xf32> -> vector<1x8xf32>
    %736 = tpu.concatenate %687, %703, %719, %735 in 1 : vector<1x8xf32>, vector<1x8xf32>, vector<1x8xf32>, vector<1x8xf32> -> vector<1x32xf32>
    %737 = vector.extract_strided_slice %663 {offsets = [1, 0], sizes = [1, 32], strides = [1, 1]} : vector<2x32xf32> to vector<1x32xf32>
    %738 = vector.extract_strided_slice %667 {offsets = [8, 0], sizes = [8, 32], strides = [1, 1]} : vector<16x32xf32> to vector<8x32xf32>
    %739 = vector.extract_strided_slice %668 {offsets = [8, 0], sizes = [8, 32], strides = [1, 1]} : vector<16x32xf32> to vector<8x32xf32>
    %740 = vector.extract_strided_slice %737 {offsets = [0, 0], sizes = [1, 8], strides = [1, 1]} : vector<1x32xf32> to vector<1x8xf32>
    %741 = vector.extract_strided_slice %738 {offsets = [0, 0], sizes = [8, 8], strides = [1, 1]} : vector<8x32xf32> to vector<8x8xf32>
    %742 = vector.extract_strided_slice %739 {offsets = [0, 0], sizes = [8, 8], strides = [1, 1]} : vector<8x32xf32> to vector<8x8xf32>
    %cst_296 = arith.constant dense<0.000000e+00> : vector<1x8xf32>
    %743 = tpu.matmul %740, %741, %cst_296 {dimension_numbers = #tpu.dot_dimension_numbers<[1], [1], [0], [0], [0, 0, 1, 0], [], []>} : vector<1x8xf32>, vector<8x8xf32>, vector<1x8xf32> -> vector<1x8xf32>
    %cst_297 = arith.constant 0.353553385 : f32
    %744 = vector.broadcast %cst_297 : f32 to vector<1x8xf32>
    %745 = arith.mulf %743, %744 : vector<1x8xf32>
    %cst_298 = arith.constant dense<0xFF800000> : vector<1xf32>
    %746 = vector.multi_reduction <maximumf>, %745, %cst_298 [1] : vector<1x8xf32> to vector<1xf32>
    %747 = vector.shape_cast %746 : vector<1xf32> to vector<1x1xf32>
    %748 = vector.broadcast %747 : vector<1x1xf32> to vector<1x8xf32>
    %749 = arith.subf %745, %748 : vector<1x8xf32>
    %750 = math.exp %749 : vector<1x8xf32>
    %cst_299 = arith.constant dense<0.000000e+00> : vector<1xf32>
    %751 = vector.multi_reduction <add>, %750, %cst_299 [1] : vector<1x8xf32> to vector<1xf32>
    %752 = vector.shape_cast %751 : vector<1xf32> to vector<1x1xf32>
    %753 = vector.broadcast %752 : vector<1x1xf32> to vector<1x8xf32>
    %754 = arith.divf %750, %753 : vector<1x8xf32>
    %cst_300 = arith.constant dense<0.000000e+00> : vector<1x8xf32>
    %755 = tpu.matmul %754, %742, %cst_300 {dimension_numbers = #tpu.dot_dimension_numbers<[1], [0], [0], [1], [0, 0, 1, 1], [], []>} : vector<1x8xf32>, vector<8x8xf32>, vector<1x8xf32> -> vector<1x8xf32>
    %756 = vector.extract_strided_slice %737 {offsets = [0, 8], sizes = [1, 8], strides = [1, 1]} : vector<1x32xf32> to vector<1x8xf32>
    %757 = vector.extract_strided_slice %738 {offsets = [0, 8], sizes = [8, 8], strides = [1, 1]} : vector<8x32xf32> to vector<8x8xf32>
    %758 = vector.extract_strided_slice %739 {offsets = [0, 8], sizes = [8, 8], strides = [1, 1]} : vector<8x32xf32> to vector<8x8xf32>
    %cst_301 = arith.constant dense<0.000000e+00> : vector<1x8xf32>
    %759 = tpu.matmul %756, %757, %cst_301 {dimension_numbers = #tpu.dot_dimension_numbers<[1], [1], [0], [0], [0, 0, 1, 0], [], []>} : vector<1x8xf32>, vector<8x8xf32>, vector<1x8xf32> -> vector<1x8xf32>
    %cst_302 = arith.constant 0.353553385 : f32
    %760 = vector.broadcast %cst_302 : f32 to vector<1x8xf32>
    %761 = arith.mulf %759, %760 : vector<1x8xf32>
    %cst_303 = arith.constant dense<0xFF800000> : vector<1xf32>
    %762 = vector.multi_reduction <maximumf>, %761, %cst_303 [1] : vector<1x8xf32> to vector<1xf32>
    %763 = vector.shape_cast %762 : vector<1xf32> to vector<1x1xf32>
    %764 = vector.broadcast %763 : vector<1x1xf32> to vector<1x8xf32>
    %765 = arith.subf %761, %764 : vector<1x8xf32>
    %766 = math.exp %765 : vector<1x8xf32>
    %cst_304 = arith.constant dense<0.000000e+00> : vector<1xf32>
    %767 = vector.multi_reduction <add>, %766, %cst_304 [1] : vector<1x8xf32> to vector<1xf32>
    %768 = vector.shape_cast %767 : vector<1xf32> to vector<1x1xf32>
    %769 = vector.broadcast %768 : vector<1x1xf32> to vector<1x8xf32>
    %770 = arith.divf %766, %769 : vector<1x8xf32>
    %cst_305 = arith.constant dense<0.000000e+00> : vector<1x8xf32>
    %771 = tpu.matmul %770, %758, %cst_305 {dimension_numbers = #tpu.dot_dimension_numbers<[1], [0], [0], [1], [0, 0, 1, 1], [], []>} : vector<1x8xf32>, vector<8x8xf32>, vector<1x8xf32> -> vector<1x8xf32>
    %772 = vector.extract_strided_slice %737 {offsets = [0, 16], sizes = [1, 8], strides = [1, 1]} : vector<1x32xf32> to vector<1x8xf32>
    %773 = vector.extract_strided_slice %738 {offsets = [0, 16], sizes = [8, 8], strides = [1, 1]} : vector<8x32xf32> to vector<8x8xf32>
    %774 = vector.extract_strided_slice %739 {offsets = [0, 16], sizes = [8, 8], strides = [1, 1]} : vector<8x32xf32> to vector<8x8xf32>
    %cst_306 = arith.constant dense<0.000000e+00> : vector<1x8xf32>
    %775 = tpu.matmul %772, %773, %cst_306 {dimension_numbers = #tpu.dot_dimension_numbers<[1], [1], [0], [0], [0, 0, 1, 0], [], []>} : vector<1x8xf32>, vector<8x8xf32>, vector<1x8xf32> -> vector<1x8xf32>
    %cst_307 = arith.constant 0.353553385 : f32
    %776 = vector.broadcast %cst_307 : f32 to vector<1x8xf32>
    %777 = arith.mulf %775, %776 : vector<1x8xf32>
    %cst_308 = arith.constant dense<0xFF800000> : vector<1xf32>
    %778 = vector.multi_reduction <maximumf>, %777, %cst_308 [1] : vector<1x8xf32> to vector<1xf32>
    %779 = vector.shape_cast %778 : vector<1xf32> to vector<1x1xf32>
    %780 = vector.broadcast %779 : vector<1x1xf32> to vector<1x8xf32>
    %781 = arith.subf %777, %780 : vector<1x8xf32>
    %782 = math.exp %781 : vector<1x8xf32>
    %cst_309 = arith.constant dense<0.000000e+00> : vector<1xf32>
    %783 = vector.multi_reduction <add>, %782, %cst_309 [1] : vector<1x8xf32> to vector<1xf32>
    %784 = vector.shape_cast %783 : vector<1xf32> to vector<1x1xf32>
    %785 = vector.broadcast %784 : vector<1x1xf32> to vector<1x8xf32>
    %786 = arith.divf %782, %785 : vector<1x8xf32>
    %cst_310 = arith.constant dense<0.000000e+00> : vector<1x8xf32>
    %787 = tpu.matmul %786, %774, %cst_310 {dimension_numbers = #tpu.dot_dimension_numbers<[1], [0], [0], [1], [0, 0, 1, 1], [], []>} : vector<1x8xf32>, vector<8x8xf32>, vector<1x8xf32> -> vector<1x8xf32>
    %788 = vector.extract_strided_slice %737 {offsets = [0, 24], sizes = [1, 8], strides = [1, 1]} : vector<1x32xf32> to vector<1x8xf32>
    %789 = vector.extract_strided_slice %738 {offsets = [0, 24], sizes = [8, 8], strides = [1, 1]} : vector<8x32xf32> to vector<8x8xf32>
    %790 = vector.extract_strided_slice %739 {offsets = [0, 24], sizes = [8, 8], strides = [1, 1]} : vector<8x32xf32> to vector<8x8xf32>
    %cst_311 = arith.constant dense<0.000000e+00> : vector<1x8xf32>
    %791 = tpu.matmul %788, %789, %cst_311 {dimension_numbers = #tpu.dot_dimension_numbers<[1], [1], [0], [0], [0, 0, 1, 0], [], []>} : vector<1x8xf32>, vector<8x8xf32>, vector<1x8xf32> -> vector<1x8xf32>
    %cst_312 = arith.constant 0.353553385 : f32
    %792 = vector.broadcast %cst_312 : f32 to vector<1x8xf32>
    %793 = arith.mulf %791, %792 : vector<1x8xf32>
    %cst_313 = arith.constant dense<0xFF800000> : vector<1xf32>
    %794 = vector.multi_reduction <maximumf>, %793, %cst_313 [1] : vector<1x8xf32> to vector<1xf32>
    %795 = vector.shape_cast %794 : vector<1xf32> to vector<1x1xf32>
    %796 = vector.broadcast %795 : vector<1x1xf32> to vector<1x8xf32>
    %797 = arith.subf %793, %796 : vector<1x8xf32>
    %798 = math.exp %797 : vector<1x8xf32>
    %cst_314 = arith.constant dense<0.000000e+00> : vector<1xf32>
    %799 = vector.multi_reduction <add>, %798, %cst_314 [1] : vector<1x8xf32> to vector<1xf32>
    %800 = vector.shape_cast %799 : vector<1xf32> to vector<1x1xf32>
    %801 = vector.broadcast %800 : vector<1x1xf32> to vector<1x8xf32>
    %802 = arith.divf %798, %801 : vector<1x8xf32>
    %cst_315 = arith.constant dense<0.000000e+00> : vector<1x8xf32>
    %803 = tpu.matmul %802, %790, %cst_315 {dimension_numbers = #tpu.dot_dimension_numbers<[1], [0], [0], [1], [0, 0, 1, 1], [], []>} : vector<1x8xf32>, vector<8x8xf32>, vector<1x8xf32> -> vector<1x8xf32>
    %804 = tpu.concatenate %755, %771, %787, %803 in 1 : vector<1x8xf32>, vector<1x8xf32>, vector<1x8xf32>, vector<1x8xf32> -> vector<1x32xf32>
    %805 = tpu.concatenate %736, %804 in 0 : vector<1x32xf32>, vector<1x32xf32> -> vector<2x32xf32>
    %cst_316 = arith.constant dense<0.000000e+00> : vector<2x32xf32>
    %806 = tpu.matmul %805, %590, %cst_316 {dimension_numbers = #tpu.dot_dimension_numbers<[1], [0], [0], [1], [0, 0, 1, 1], [], []>} : vector<2x32xf32>, vector<32x32xf32>, vector<2x32xf32> -> vector<2x32xf32>
    %807 = vector.broadcast %592 : vector<1x32xf32> to vector<2x32xf32>
    %808 = arith.addf %806, %807 : vector<2x32xf32>
    %809 = arith.addf %636, %808 : vector<2x32xf32>
    %810 = vector.extract_strided_slice %570 {offsets = [2, 0], sizes = [1, 32], strides = [1, 1]} : vector<3x32xf32> to vector<1x32xf32>
    %811 = vector.extract_strided_slice %572 {offsets = [2, 0], sizes = [1, 32], strides = [1, 1]} : vector<3x32xf32> to vector<1x32xf32>
    %cst_317 = arith.constant dense<0.000000e+00> : vector<2xf32>
    %812 = vector.multi_reduction <add>, %809, %cst_317 [1] : vector<2x32xf32> to vector<2xf32>
    %813 = vector.shape_cast %812 : vector<2xf32> to vector<2x1xf32>
    %cst_318 = arith.constant 3.200000e+01 : f32
    %814 = vector.broadcast %cst_318 : f32 to vector<2x1xf32>
    %815 = arith.divf %813, %814 : vector<2x1xf32>
    %816 = vector.broadcast %815 : vector<2x1xf32> to vector<2x32xf32>
    %817 = arith.subf %809, %816 : vector<2x32xf32>
    %818 = arith.mulf %817, %817 : vector<2x32xf32>
    %cst_319 = arith.constant dense<0.000000e+00> : vector<2xf32>
    %819 = vector.multi_reduction <add>, %818, %cst_319 [1] : vector<2x32xf32> to vector<2xf32>
    %820 = vector.shape_cast %819 : vector<2xf32> to vector<2x1xf32>
    %cst_320 = arith.constant 3.200000e+01 : f32
    %821 = vector.broadcast %cst_320 : f32 to vector<2x1xf32>
    %822 = arith.divf %820, %821 : vector<2x1xf32>
    %823 = vector.broadcast %815 : vector<2x1xf32> to vector<2x32xf32>
    %824 = arith.subf %809, %823 : vector<2x32xf32>
    %cst_321 = arith.constant 9.99999974E-6 : f32
    %825 = vector.broadcast %cst_321 : f32 to vector<2x1xf32>
    %826 = arith.addf %822, %825 : vector<2x1xf32>
    %827 = math.rsqrt %826 : vector<2x1xf32>
    %828 = vector.broadcast %827 : vector<2x1xf32> to vector<2x32xf32>
    %829 = arith.mulf %824, %828 : vector<2x32xf32>
    %830 = vector.broadcast %810 : vector<1x32xf32> to vector<2x32xf32>
    %831 = arith.mulf %829, %830 : vector<2x32xf32>
    %832 = vector.broadcast %811 : vector<1x32xf32> to vector<2x32xf32>
    %833 = arith.addf %831, %832 : vector<2x32xf32>
    %cst_322 = arith.constant dense<0.000000e+00> : vector<2x2xf32>
    %834 = tpu.matmul %833, %594, %cst_322 {dimension_numbers = #tpu.dot_dimension_numbers<[1], [0], [0], [1], [0, 0, 1, 1], [], []>} : vector<2x32xf32>, vector<32x2xf32>, vector<2x2xf32> -> vector<2x2xf32>
    %835 = vector.broadcast %596 : vector<1x2xf32> to vector<2x2xf32>
    %836 = arith.addf %834, %835 : vector<2x2xf32>
    %cst_323 = arith.constant dense<0xFF800000> : vector<2xf32>
    %837 = vector.multi_reduction <maximumf>, %836, %cst_323 [1] : vector<2x2xf32> to vector<2xf32>
    %838 = vector.shape_cast %837 : vector<2xf32> to vector<2x1xf32>
    %839 = vector.broadcast %838 : vector<2x1xf32> to vector<2x2xf32>
    %840 = arith.subf %836, %839 : vector<2x2xf32>
    %841 = math.exp %840 : vector<2x2xf32>
    %cst_324 = arith.constant dense<0.000000e+00> : vector<2xf32>
    %842 = vector.multi_reduction <add>, %841, %cst_324 [1] : vector<2x2xf32> to vector<2xf32>
    %843 = vector.shape_cast %842 : vector<2xf32> to vector<2x1xf32>
    %844 = vector.broadcast %843 : vector<2x1xf32> to vector<2x2xf32>
    %845 = arith.divf %841, %844 : vector<2x2xf32>
    %846 = vector.extract_strided_slice %845 {offsets = [0, 0], sizes = [2, 1], strides = [1, 1]} : vector<2x2xf32> to vector<2x1xf32>
    %847 = vector.extract_strided_slice %845 {offsets = [0, 1], sizes = [2, 1], strides = [1, 1]} : vector<2x2xf32> to vector<2x1xf32>
    %848 = arith.cmpf ogt, %847, %846 : vector<2x1xf32>
    %849 = arith.extui %848 : vector<2x1xi1> to vector<2x1xi32>
    %850 = arith.sitofp %849 : vector<2x1xi32> to vector<2x1xf32>
    %851 = arith.maximumf %846, %847 : vector<2x1xf32>
    %cst_325 = arith.constant dense<0.000000e+00> : vector<2x128xf32>
    %852 = tpu.matmul %833, %598, %cst_325 {dimension_numbers = #tpu.dot_dimension_numbers<[1], [0], [0], [1], [0, 0, 1, 1], [], []>} : vector<2x32xf32>, vector<32x128xf32>, vector<2x128xf32> -> vector<2x128xf32>
    %853 = vector.broadcast %600 : vector<1x128xf32> to vector<2x128xf32>
    %854 = arith.addf %852, %853 : vector<2x128xf32>
    %cst_326 = arith.constant 0.000000e+00 : f32
    %855 = vector.broadcast %cst_326 : f32 to vector<2x128xf32>
    %856 = arith.maximumf %854, %855 : vector<2x128xf32>
    %cst_327 = arith.constant dense<0.000000e+00> : vector<2x64xf32>
    %857 = tpu.matmul %856, %602, %cst_327 {dimension_numbers = #tpu.dot_dimension_numbers<[1], [0], [0], [1], [0, 0, 1, 1], [], []>} : vector<2x128xf32>, vector<128x64xf32>, vector<2x64xf32> -> vector<2x64xf32>
    %858 = vector.broadcast %604 : vector<1x64xf32> to vector<2x64xf32>
    %859 = arith.addf %857, %858 : vector<2x64xf32>
    %860 = vector.extract_strided_slice %859 {offsets = [0, 0], sizes = [2, 32], strides = [1, 1]} : vector<2x64xf32> to vector<2x32xf32>
    %861 = vector.extract_strided_slice %859 {offsets = [0, 32], sizes = [2, 32], strides = [1, 1]} : vector<2x64xf32> to vector<2x32xf32>
    %862 = vector.broadcast %850 : vector<2x1xf32> to vector<2x32xf32>
    %863 = arith.mulf %862, %861 : vector<2x32xf32>
    %cst_328 = arith.constant 1.000000e+00 : f32
    %864 = vector.broadcast %cst_328 : f32 to vector<2x1xf32>
    %865 = arith.subf %864, %850 : vector<2x1xf32>
    %866 = vector.broadcast %865 : vector<2x1xf32> to vector<2x32xf32>
    %867 = arith.mulf %866, %860 : vector<2x32xf32>
    %868 = arith.addf %863, %867 : vector<2x32xf32>
    %cst_329 = arith.constant 1.000000e+00 : f32
    %869 = vector.broadcast %cst_329 : f32 to vector<2x1xf32>
    %870 = arith.subf %869, %850 : vector<2x1xf32>
    %871 = tpu.concatenate %870, %850 in 1 : vector<2x1xf32>, vector<2x1xf32> -> vector<2x2xf32>
    %872 = tpu.iota {dimensions = array<i32: 0>} : vector<2x2xi32>
    %873 = tpu.iota {dimensions = array<i32: 1>} : vector<2x2xi32>
    %874 = arith.cmpi sge, %872, %873 : vector<2x2xi32>
    %875 = arith.extui %874 : vector<2x2xi1> to vector<2x2xi32>
    %876 = arith.sitofp %875 : vector<2x2xi32> to vector<2x2xf32>
    %cst_330 = arith.constant dense<0.000000e+00> : vector<2x2xf32>
    %877 = tpu.matmul %876, %871, %cst_330 {dimension_numbers = #tpu.dot_dimension_numbers<[1], [0], [0], [1], [0, 0, 1, 1], [], []>} : vector<2x2xf32>, vector<2x2xf32>, vector<2x2xf32> -> vector<2x2xf32>
    %878 = arith.mulf %877, %871 : vector<2x2xf32>
    %cst_331 = arith.constant dense<0.000000e+00> : vector<2xf32>
    %879 = vector.multi_reduction <add>, %878, %cst_331 [1] : vector<2x2xf32> to vector<2xf32>
    %880 = vector.shape_cast %879 : vector<2xf32> to vector<2x1xf32>
    %cst_332 = arith.constant 1.000000e+00 : f32
    %881 = vector.broadcast %cst_332 : f32 to vector<2x1xf32>
    %882 = arith.cmpf ole, %880, %881 : vector<2x1xf32>
    %883 = arith.extui %882 : vector<2x1xi1> to vector<2x1xi32>
    %884 = arith.sitofp %883 : vector<2x1xi32> to vector<2x1xf32>
    %885 = vector.broadcast %884 : vector<2x1xf32> to vector<2x32xf32>
    %886 = arith.mulf %885, %868 : vector<2x32xf32>
    %cst_333 = arith.constant 1.000000e+00 : f32
    %887 = vector.broadcast %cst_333 : f32 to vector<2x1xf32>
    %888 = arith.subf %887, %884 : vector<2x1xf32>
    %889 = vector.broadcast %888 : vector<2x1xf32> to vector<2x32xf32>
    %890 = arith.mulf %889, %833 : vector<2x32xf32>
    %891 = arith.addf %886, %890 : vector<2x32xf32>
    %892 = vector.broadcast %851 : vector<2x1xf32> to vector<2x32xf32>
    %893 = arith.mulf %891, %892 : vector<2x32xf32>
    %894 = arith.addf %809, %893 : vector<2x32xf32>
    %c1_334 = arith.constant 1 : index
    %c0_335 = arith.constant 0 : index
    %c0_336 = arith.constant 0 : index
    %895 = vector.load %arg17[%c1_334, %c0_335, %c0_336] : memref<2x3x32xf32, #tpu.memory_space<vmem>>, vector<1x3x32xf32>
    %896 = vector.shape_cast %895 : vector<1x3x32xf32> to vector<3x32xf32>
    %c1_337 = arith.constant 1 : index
    %c0_338 = arith.constant 0 : index
    %c0_339 = arith.constant 0 : index
    %897 = vector.load %arg18[%c1_337, %c0_338, %c0_339] : memref<2x3x32xf32, #tpu.memory_space<vmem>>, vector<1x3x32xf32>
    %898 = vector.shape_cast %897 : vector<1x3x32xf32> to vector<3x32xf32>
    %c1_340 = arith.constant 1 : index
    %c0_341 = arith.constant 0 : index
    %c0_342 = arith.constant 0 : index
    %899 = vector.load %arg19[%c1_340, %c0_341, %c0_342] : memref<2x32x96xf32, #tpu.memory_space<vmem>>, vector<1x32x96xf32>
    %900 = vector.shape_cast %899 : vector<1x32x96xf32> to vector<32x96xf32>
    %c1_343 = arith.constant 1 : index
    %c0_344 = arith.constant 0 : index
    %c0_345 = arith.constant 0 : index
    %901 = vector.load %arg20[%c1_343, %c0_344, %c0_345] : memref<2x1x96xf32, #tpu.memory_space<vmem>>, vector<1x1x96xf32>
    %902 = vector.shape_cast %901 : vector<1x1x96xf32> to vector<1x96xf32>
    %c1_346 = arith.constant 1 : index
    %c0_347 = arith.constant 0 : index
    %c0_348 = arith.constant 0 : index
    %903 = vector.load %arg21[%c1_346, %c0_347, %c0_348] : memref<2x32x32xf32, #tpu.memory_space<vmem>>, vector<1x32x32xf32>
    %904 = vector.shape_cast %903 : vector<1x32x32xf32> to vector<32x32xf32>
    %c1_349 = arith.constant 1 : index
    %c0_350 = arith.constant 0 : index
    %c0_351 = arith.constant 0 : index
    %905 = vector.load %arg22[%c1_349, %c0_350, %c0_351] : memref<2x1x32xf32, #tpu.memory_space<vmem>>, vector<1x1x32xf32>
    %906 = vector.shape_cast %905 : vector<1x1x32xf32> to vector<1x32xf32>
    %c1_352 = arith.constant 1 : index
    %c0_353 = arith.constant 0 : index
    %c0_354 = arith.constant 0 : index
    %907 = vector.load %arg23[%c1_352, %c0_353, %c0_354] : memref<2x32x32xf32, #tpu.memory_space<vmem>>, vector<1x32x32xf32>
    %908 = vector.shape_cast %907 : vector<1x32x32xf32> to vector<32x32xf32>
    %c1_355 = arith.constant 1 : index
    %c0_356 = arith.constant 0 : index
    %c0_357 = arith.constant 0 : index
    %909 = vector.load %arg24[%c1_355, %c0_356, %c0_357] : memref<2x1x32xf32, #tpu.memory_space<vmem>>, vector<1x1x32xf32>
    %910 = vector.shape_cast %909 : vector<1x1x32xf32> to vector<1x32xf32>
    %c1_358 = arith.constant 1 : index
    %c0_359 = arith.constant 0 : index
    %c0_360 = arith.constant 0 : index
    %911 = vector.load %arg25[%c1_358, %c0_359, %c0_360] : memref<2x32x64xf32, #tpu.memory_space<vmem>>, vector<1x32x64xf32>
    %912 = vector.shape_cast %911 : vector<1x32x64xf32> to vector<32x64xf32>
    %c1_361 = arith.constant 1 : index
    %c0_362 = arith.constant 0 : index
    %c0_363 = arith.constant 0 : index
    %913 = vector.load %arg26[%c1_361, %c0_362, %c0_363] : memref<2x1x64xf32, #tpu.memory_space<vmem>>, vector<1x1x64xf32>
    %914 = vector.shape_cast %913 : vector<1x1x64xf32> to vector<1x64xf32>
    %c1_364 = arith.constant 1 : index
    %c0_365 = arith.constant 0 : index
    %c0_366 = arith.constant 0 : index
    %915 = vector.load %arg27[%c1_364, %c0_365, %c0_366] : memref<2x32x32xf32, #tpu.memory_space<vmem>>, vector<1x32x32xf32>
    %916 = vector.shape_cast %915 : vector<1x32x32xf32> to vector<32x32xf32>
    %c1_367 = arith.constant 1 : index
    %c0_368 = arith.constant 0 : index
    %c0_369 = arith.constant 0 : index
    %917 = vector.load %arg28[%c1_367, %c0_368, %c0_369] : memref<2x1x32xf32, #tpu.memory_space<vmem>>, vector<1x1x32xf32>
    %918 = vector.shape_cast %917 : vector<1x1x32xf32> to vector<1x32xf32>
    %c1_370 = arith.constant 1 : index
    %c0_371 = arith.constant 0 : index
    %c0_372 = arith.constant 0 : index
    %919 = vector.load %arg29[%c1_370, %c0_371, %c0_372] : memref<2x32x2xf32, #tpu.memory_space<vmem>>, vector<1x32x2xf32>
    %920 = vector.shape_cast %919 : vector<1x32x2xf32> to vector<32x2xf32>
    %c1_373 = arith.constant 1 : index
    %c0_374 = arith.constant 0 : index
    %c0_375 = arith.constant 0 : index
    %921 = vector.load %arg30[%c1_373, %c0_374, %c0_375] : memref<2x1x2xf32, #tpu.memory_space<vmem>>, vector<1x1x2xf32>
    %922 = vector.shape_cast %921 : vector<1x1x2xf32> to vector<1x2xf32>
    %c1_376 = arith.constant 1 : index
    %c0_377 = arith.constant 0 : index
    %c0_378 = arith.constant 0 : index
    %923 = vector.load %arg31[%c1_376, %c0_377, %c0_378] : memref<2x32x128xf32, #tpu.memory_space<vmem>>, vector<1x32x128xf32>
    %924 = vector.shape_cast %923 : vector<1x32x128xf32> to vector<32x128xf32>
    %c1_379 = arith.constant 1 : index
    %c0_380 = arith.constant 0 : index
    %c0_381 = arith.constant 0 : index
    %925 = vector.load %arg32[%c1_379, %c0_380, %c0_381] : memref<2x1x128xf32, #tpu.memory_space<vmem>>, vector<1x1x128xf32>
    %926 = vector.shape_cast %925 : vector<1x1x128xf32> to vector<1x128xf32>
    %c1_382 = arith.constant 1 : index
    %c0_383 = arith.constant 0 : index
    %c0_384 = arith.constant 0 : index
    %927 = vector.load %arg33[%c1_382, %c0_383, %c0_384] : memref<2x128x64xf32, #tpu.memory_space<vmem>>, vector<1x128x64xf32>
    %928 = vector.shape_cast %927 : vector<1x128x64xf32> to vector<128x64xf32>
    %c1_385 = arith.constant 1 : index
    %c0_386 = arith.constant 0 : index
    %c0_387 = arith.constant 0 : index
    %929 = vector.load %arg34[%c1_385, %c0_386, %c0_387] : memref<2x1x64xf32, #tpu.memory_space<vmem>>, vector<1x1x64xf32>
    %930 = vector.shape_cast %929 : vector<1x1x64xf32> to vector<1x64xf32>
    %931 = vector.extract_strided_slice %896 {offsets = [0, 0], sizes = [1, 32], strides = [1, 1]} : vector<3x32xf32> to vector<1x32xf32>
    %932 = vector.extract_strided_slice %898 {offsets = [0, 0], sizes = [1, 32], strides = [1, 1]} : vector<3x32xf32> to vector<1x32xf32>
    %cst_388 = arith.constant dense<0.000000e+00> : vector<2xf32>
    %933 = vector.multi_reduction <add>, %894, %cst_388 [1] : vector<2x32xf32> to vector<2xf32>
    %934 = vector.shape_cast %933 : vector<2xf32> to vector<2x1xf32>
    %cst_389 = arith.constant 3.200000e+01 : f32
    %935 = vector.broadcast %cst_389 : f32 to vector<2x1xf32>
    %936 = arith.divf %934, %935 : vector<2x1xf32>
    %937 = vector.broadcast %936 : vector<2x1xf32> to vector<2x32xf32>
    %938 = arith.subf %894, %937 : vector<2x32xf32>
    %939 = arith.mulf %938, %938 : vector<2x32xf32>
    %cst_390 = arith.constant dense<0.000000e+00> : vector<2xf32>
    %940 = vector.multi_reduction <add>, %939, %cst_390 [1] : vector<2x32xf32> to vector<2xf32>
    %941 = vector.shape_cast %940 : vector<2xf32> to vector<2x1xf32>
    %cst_391 = arith.constant 3.200000e+01 : f32
    %942 = vector.broadcast %cst_391 : f32 to vector<2x1xf32>
    %943 = arith.divf %941, %942 : vector<2x1xf32>
    %944 = vector.broadcast %936 : vector<2x1xf32> to vector<2x32xf32>
    %945 = arith.subf %894, %944 : vector<2x32xf32>
    %cst_392 = arith.constant 9.99999974E-6 : f32
    %946 = vector.broadcast %cst_392 : f32 to vector<2x1xf32>
    %947 = arith.addf %943, %946 : vector<2x1xf32>
    %948 = math.rsqrt %947 : vector<2x1xf32>
    %949 = vector.broadcast %948 : vector<2x1xf32> to vector<2x32xf32>
    %950 = arith.mulf %945, %949 : vector<2x32xf32>
    %951 = vector.broadcast %931 : vector<1x32xf32> to vector<2x32xf32>
    %952 = arith.mulf %950, %951 : vector<2x32xf32>
    %953 = vector.broadcast %932 : vector<1x32xf32> to vector<2x32xf32>
    %954 = arith.addf %952, %953 : vector<2x32xf32>
    %cst_393 = arith.constant dense<0.000000e+00> : vector<2x96xf32>
    %955 = tpu.matmul %954, %900, %cst_393 {dimension_numbers = #tpu.dot_dimension_numbers<[1], [0], [0], [1], [0, 0, 1, 1], [], []>} : vector<2x32xf32>, vector<32x96xf32>, vector<2x96xf32> -> vector<2x96xf32>
    %956 = vector.broadcast %902 : vector<1x96xf32> to vector<2x96xf32>
    %957 = arith.addf %955, %956 : vector<2x96xf32>
    %958 = vector.extract_strided_slice %957 {offsets = [0, 64], sizes = [2, 32], strides = [1, 1]} : vector<2x96xf32> to vector<2x32xf32>
    %cst_394 = arith.constant dense<0.000000e+00> : vector<2x32xf32>
    %959 = tpu.matmul %958, %904, %cst_394 {dimension_numbers = #tpu.dot_dimension_numbers<[1], [0], [0], [1], [0, 0, 1, 1], [], []>} : vector<2x32xf32>, vector<32x32xf32>, vector<2x32xf32> -> vector<2x32xf32>
    %960 = vector.broadcast %906 : vector<1x32xf32> to vector<2x32xf32>
    %961 = arith.addf %959, %960 : vector<2x32xf32>
    %962 = arith.addf %894, %961 : vector<2x32xf32>
    %963 = vector.extract_strided_slice %896 {offsets = [1, 0], sizes = [1, 32], strides = [1, 1]} : vector<3x32xf32> to vector<1x32xf32>
    %964 = vector.extract_strided_slice %898 {offsets = [1, 0], sizes = [1, 32], strides = [1, 1]} : vector<3x32xf32> to vector<1x32xf32>
    %cst_395 = arith.constant dense<0.000000e+00> : vector<2xf32>
    %965 = vector.multi_reduction <add>, %962, %cst_395 [1] : vector<2x32xf32> to vector<2xf32>
    %966 = vector.shape_cast %965 : vector<2xf32> to vector<2x1xf32>
    %cst_396 = arith.constant 3.200000e+01 : f32
    %967 = vector.broadcast %cst_396 : f32 to vector<2x1xf32>
    %968 = arith.divf %966, %967 : vector<2x1xf32>
    %969 = vector.broadcast %968 : vector<2x1xf32> to vector<2x32xf32>
    %970 = arith.subf %962, %969 : vector<2x32xf32>
    %971 = arith.mulf %970, %970 : vector<2x32xf32>
    %cst_397 = arith.constant dense<0.000000e+00> : vector<2xf32>
    %972 = vector.multi_reduction <add>, %971, %cst_397 [1] : vector<2x32xf32> to vector<2xf32>
    %973 = vector.shape_cast %972 : vector<2xf32> to vector<2x1xf32>
    %cst_398 = arith.constant 3.200000e+01 : f32
    %974 = vector.broadcast %cst_398 : f32 to vector<2x1xf32>
    %975 = arith.divf %973, %974 : vector<2x1xf32>
    %976 = vector.broadcast %968 : vector<2x1xf32> to vector<2x32xf32>
    %977 = arith.subf %962, %976 : vector<2x32xf32>
    %cst_399 = arith.constant 9.99999974E-6 : f32
    %978 = vector.broadcast %cst_399 : f32 to vector<2x1xf32>
    %979 = arith.addf %975, %978 : vector<2x1xf32>
    %980 = math.rsqrt %979 : vector<2x1xf32>
    %981 = vector.broadcast %980 : vector<2x1xf32> to vector<2x32xf32>
    %982 = arith.mulf %977, %981 : vector<2x32xf32>
    %983 = vector.broadcast %963 : vector<1x32xf32> to vector<2x32xf32>
    %984 = arith.mulf %982, %983 : vector<2x32xf32>
    %985 = vector.broadcast %964 : vector<1x32xf32> to vector<2x32xf32>
    %986 = arith.addf %984, %985 : vector<2x32xf32>
    %cst_400 = arith.constant dense<0.000000e+00> : vector<2x32xf32>
    %987 = tpu.matmul %986, %908, %cst_400 {dimension_numbers = #tpu.dot_dimension_numbers<[1], [0], [0], [1], [0, 0, 1, 1], [], []>} : vector<2x32xf32>, vector<32x32xf32>, vector<2x32xf32> -> vector<2x32xf32>
    %988 = vector.broadcast %910 : vector<1x32xf32> to vector<2x32xf32>
    %989 = arith.addf %987, %988 : vector<2x32xf32>
    %cst_401 = arith.constant dense<0.000000e+00> : vector<16x64xf32>
    %990 = tpu.matmul %567, %912, %cst_401 {dimension_numbers = #tpu.dot_dimension_numbers<[1], [0], [0], [1], [0, 0, 1, 1], [], []>} : vector<16x32xf32>, vector<32x64xf32>, vector<16x64xf32> -> vector<16x64xf32>
    %991 = vector.broadcast %914 : vector<1x64xf32> to vector<16x64xf32>
    %992 = arith.addf %990, %991 : vector<16x64xf32>
    %993 = vector.extract_strided_slice %992 {offsets = [0, 0], sizes = [16, 32], strides = [1, 1]} : vector<16x64xf32> to vector<16x32xf32>
    %994 = vector.extract_strided_slice %992 {offsets = [0, 32], sizes = [16, 32], strides = [1, 1]} : vector<16x64xf32> to vector<16x32xf32>
    %995 = vector.extract_strided_slice %989 {offsets = [0, 0], sizes = [1, 32], strides = [1, 1]} : vector<2x32xf32> to vector<1x32xf32>
    %996 = vector.extract_strided_slice %993 {offsets = [0, 0], sizes = [8, 32], strides = [1, 1]} : vector<16x32xf32> to vector<8x32xf32>
    %997 = vector.extract_strided_slice %994 {offsets = [0, 0], sizes = [8, 32], strides = [1, 1]} : vector<16x32xf32> to vector<8x32xf32>
    %998 = vector.extract_strided_slice %995 {offsets = [0, 0], sizes = [1, 8], strides = [1, 1]} : vector<1x32xf32> to vector<1x8xf32>
    %999 = vector.extract_strided_slice %996 {offsets = [0, 0], sizes = [8, 8], strides = [1, 1]} : vector<8x32xf32> to vector<8x8xf32>
    %1000 = vector.extract_strided_slice %997 {offsets = [0, 0], sizes = [8, 8], strides = [1, 1]} : vector<8x32xf32> to vector<8x8xf32>
    %cst_402 = arith.constant dense<0.000000e+00> : vector<1x8xf32>
    %1001 = tpu.matmul %998, %999, %cst_402 {dimension_numbers = #tpu.dot_dimension_numbers<[1], [1], [0], [0], [0, 0, 1, 0], [], []>} : vector<1x8xf32>, vector<8x8xf32>, vector<1x8xf32> -> vector<1x8xf32>
    %cst_403 = arith.constant 0.353553385 : f32
    %1002 = vector.broadcast %cst_403 : f32 to vector<1x8xf32>
    %1003 = arith.mulf %1001, %1002 : vector<1x8xf32>
    %cst_404 = arith.constant dense<0xFF800000> : vector<1xf32>
    %1004 = vector.multi_reduction <maximumf>, %1003, %cst_404 [1] : vector<1x8xf32> to vector<1xf32>
    %1005 = vector.shape_cast %1004 : vector<1xf32> to vector<1x1xf32>
    %1006 = vector.broadcast %1005 : vector<1x1xf32> to vector<1x8xf32>
    %1007 = arith.subf %1003, %1006 : vector<1x8xf32>
    %1008 = math.exp %1007 : vector<1x8xf32>
    %cst_405 = arith.constant dense<0.000000e+00> : vector<1xf32>
    %1009 = vector.multi_reduction <add>, %1008, %cst_405 [1] : vector<1x8xf32> to vector<1xf32>
    %1010 = vector.shape_cast %1009 : vector<1xf32> to vector<1x1xf32>
    %1011 = vector.broadcast %1010 : vector<1x1xf32> to vector<1x8xf32>
    %1012 = arith.divf %1008, %1011 : vector<1x8xf32>
    %cst_406 = arith.constant dense<0.000000e+00> : vector<1x8xf32>
    %1013 = tpu.matmul %1012, %1000, %cst_406 {dimension_numbers = #tpu.dot_dimension_numbers<[1], [0], [0], [1], [0, 0, 1, 1], [], []>} : vector<1x8xf32>, vector<8x8xf32>, vector<1x8xf32> -> vector<1x8xf32>
    %1014 = vector.extract_strided_slice %995 {offsets = [0, 8], sizes = [1, 8], strides = [1, 1]} : vector<1x32xf32> to vector<1x8xf32>
    %1015 = vector.extract_strided_slice %996 {offsets = [0, 8], sizes = [8, 8], strides = [1, 1]} : vector<8x32xf32> to vector<8x8xf32>
    %1016 = vector.extract_strided_slice %997 {offsets = [0, 8], sizes = [8, 8], strides = [1, 1]} : vector<8x32xf32> to vector<8x8xf32>
    %cst_407 = arith.constant dense<0.000000e+00> : vector<1x8xf32>
    %1017 = tpu.matmul %1014, %1015, %cst_407 {dimension_numbers = #tpu.dot_dimension_numbers<[1], [1], [0], [0], [0, 0, 1, 0], [], []>} : vector<1x8xf32>, vector<8x8xf32>, vector<1x8xf32> -> vector<1x8xf32>
    %cst_408 = arith.constant 0.353553385 : f32
    %1018 = vector.broadcast %cst_408 : f32 to vector<1x8xf32>
    %1019 = arith.mulf %1017, %1018 : vector<1x8xf32>
    %cst_409 = arith.constant dense<0xFF800000> : vector<1xf32>
    %1020 = vector.multi_reduction <maximumf>, %1019, %cst_409 [1] : vector<1x8xf32> to vector<1xf32>
    %1021 = vector.shape_cast %1020 : vector<1xf32> to vector<1x1xf32>
    %1022 = vector.broadcast %1021 : vector<1x1xf32> to vector<1x8xf32>
    %1023 = arith.subf %1019, %1022 : vector<1x8xf32>
    %1024 = math.exp %1023 : vector<1x8xf32>
    %cst_410 = arith.constant dense<0.000000e+00> : vector<1xf32>
    %1025 = vector.multi_reduction <add>, %1024, %cst_410 [1] : vector<1x8xf32> to vector<1xf32>
    %1026 = vector.shape_cast %1025 : vector<1xf32> to vector<1x1xf32>
    %1027 = vector.broadcast %1026 : vector<1x1xf32> to vector<1x8xf32>
    %1028 = arith.divf %1024, %1027 : vector<1x8xf32>
    %cst_411 = arith.constant dense<0.000000e+00> : vector<1x8xf32>
    %1029 = tpu.matmul %1028, %1016, %cst_411 {dimension_numbers = #tpu.dot_dimension_numbers<[1], [0], [0], [1], [0, 0, 1, 1], [], []>} : vector<1x8xf32>, vector<8x8xf32>, vector<1x8xf32> -> vector<1x8xf32>
    %1030 = vector.extract_strided_slice %995 {offsets = [0, 16], sizes = [1, 8], strides = [1, 1]} : vector<1x32xf32> to vector<1x8xf32>
    %1031 = vector.extract_strided_slice %996 {offsets = [0, 16], sizes = [8, 8], strides = [1, 1]} : vector<8x32xf32> to vector<8x8xf32>
    %1032 = vector.extract_strided_slice %997 {offsets = [0, 16], sizes = [8, 8], strides = [1, 1]} : vector<8x32xf32> to vector<8x8xf32>
    %cst_412 = arith.constant dense<0.000000e+00> : vector<1x8xf32>
    %1033 = tpu.matmul %1030, %1031, %cst_412 {dimension_numbers = #tpu.dot_dimension_numbers<[1], [1], [0], [0], [0, 0, 1, 0], [], []>} : vector<1x8xf32>, vector<8x8xf32>, vector<1x8xf32> -> vector<1x8xf32>
    %cst_413 = arith.constant 0.353553385 : f32
    %1034 = vector.broadcast %cst_413 : f32 to vector<1x8xf32>
    %1035 = arith.mulf %1033, %1034 : vector<1x8xf32>
    %cst_414 = arith.constant dense<0xFF800000> : vector<1xf32>
    %1036 = vector.multi_reduction <maximumf>, %1035, %cst_414 [1] : vector<1x8xf32> to vector<1xf32>
    %1037 = vector.shape_cast %1036 : vector<1xf32> to vector<1x1xf32>
    %1038 = vector.broadcast %1037 : vector<1x1xf32> to vector<1x8xf32>
    %1039 = arith.subf %1035, %1038 : vector<1x8xf32>
    %1040 = math.exp %1039 : vector<1x8xf32>
    %cst_415 = arith.constant dense<0.000000e+00> : vector<1xf32>
    %1041 = vector.multi_reduction <add>, %1040, %cst_415 [1] : vector<1x8xf32> to vector<1xf32>
    %1042 = vector.shape_cast %1041 : vector<1xf32> to vector<1x1xf32>
    %1043 = vector.broadcast %1042 : vector<1x1xf32> to vector<1x8xf32>
    %1044 = arith.divf %1040, %1043 : vector<1x8xf32>
    %cst_416 = arith.constant dense<0.000000e+00> : vector<1x8xf32>
    %1045 = tpu.matmul %1044, %1032, %cst_416 {dimension_numbers = #tpu.dot_dimension_numbers<[1], [0], [0], [1], [0, 0, 1, 1], [], []>} : vector<1x8xf32>, vector<8x8xf32>, vector<1x8xf32> -> vector<1x8xf32>
    %1046 = vector.extract_strided_slice %995 {offsets = [0, 24], sizes = [1, 8], strides = [1, 1]} : vector<1x32xf32> to vector<1x8xf32>
    %1047 = vector.extract_strided_slice %996 {offsets = [0, 24], sizes = [8, 8], strides = [1, 1]} : vector<8x32xf32> to vector<8x8xf32>
    %1048 = vector.extract_strided_slice %997 {offsets = [0, 24], sizes = [8, 8], strides = [1, 1]} : vector<8x32xf32> to vector<8x8xf32>
    %cst_417 = arith.constant dense<0.000000e+00> : vector<1x8xf32>
    %1049 = tpu.matmul %1046, %1047, %cst_417 {dimension_numbers = #tpu.dot_dimension_numbers<[1], [1], [0], [0], [0, 0, 1, 0], [], []>} : vector<1x8xf32>, vector<8x8xf32>, vector<1x8xf32> -> vector<1x8xf32>
    %cst_418 = arith.constant 0.353553385 : f32
    %1050 = vector.broadcast %cst_418 : f32 to vector<1x8xf32>
    %1051 = arith.mulf %1049, %1050 : vector<1x8xf32>
    %cst_419 = arith.constant dense<0xFF800000> : vector<1xf32>
    %1052 = vector.multi_reduction <maximumf>, %1051, %cst_419 [1] : vector<1x8xf32> to vector<1xf32>
    %1053 = vector.shape_cast %1052 : vector<1xf32> to vector<1x1xf32>
    %1054 = vector.broadcast %1053 : vector<1x1xf32> to vector<1x8xf32>
    %1055 = arith.subf %1051, %1054 : vector<1x8xf32>
    %1056 = math.exp %1055 : vector<1x8xf32>
    %cst_420 = arith.constant dense<0.000000e+00> : vector<1xf32>
    %1057 = vector.multi_reduction <add>, %1056, %cst_420 [1] : vector<1x8xf32> to vector<1xf32>
    %1058 = vector.shape_cast %1057 : vector<1xf32> to vector<1x1xf32>
    %1059 = vector.broadcast %1058 : vector<1x1xf32> to vector<1x8xf32>
    %1060 = arith.divf %1056, %1059 : vector<1x8xf32>
    %cst_421 = arith.constant dense<0.000000e+00> : vector<1x8xf32>
    %1061 = tpu.matmul %1060, %1048, %cst_421 {dimension_numbers = #tpu.dot_dimension_numbers<[1], [0], [0], [1], [0, 0, 1, 1], [], []>} : vector<1x8xf32>, vector<8x8xf32>, vector<1x8xf32> -> vector<1x8xf32>
    %1062 = tpu.concatenate %1013, %1029, %1045, %1061 in 1 : vector<1x8xf32>, vector<1x8xf32>, vector<1x8xf32>, vector<1x8xf32> -> vector<1x32xf32>
    %1063 = vector.extract_strided_slice %989 {offsets = [1, 0], sizes = [1, 32], strides = [1, 1]} : vector<2x32xf32> to vector<1x32xf32>
    %1064 = vector.extract_strided_slice %993 {offsets = [8, 0], sizes = [8, 32], strides = [1, 1]} : vector<16x32xf32> to vector<8x32xf32>
    %1065 = vector.extract_strided_slice %994 {offsets = [8, 0], sizes = [8, 32], strides = [1, 1]} : vector<16x32xf32> to vector<8x32xf32>
    %1066 = vector.extract_strided_slice %1063 {offsets = [0, 0], sizes = [1, 8], strides = [1, 1]} : vector<1x32xf32> to vector<1x8xf32>
    %1067 = vector.extract_strided_slice %1064 {offsets = [0, 0], sizes = [8, 8], strides = [1, 1]} : vector<8x32xf32> to vector<8x8xf32>
    %1068 = vector.extract_strided_slice %1065 {offsets = [0, 0], sizes = [8, 8], strides = [1, 1]} : vector<8x32xf32> to vector<8x8xf32>
    %cst_422 = arith.constant dense<0.000000e+00> : vector<1x8xf32>
    %1069 = tpu.matmul %1066, %1067, %cst_422 {dimension_numbers = #tpu.dot_dimension_numbers<[1], [1], [0], [0], [0, 0, 1, 0], [], []>} : vector<1x8xf32>, vector<8x8xf32>, vector<1x8xf32> -> vector<1x8xf32>
    %cst_423 = arith.constant 0.353553385 : f32
    %1070 = vector.broadcast %cst_423 : f32 to vector<1x8xf32>
    %1071 = arith.mulf %1069, %1070 : vector<1x8xf32>
    %cst_424 = arith.constant dense<0xFF800000> : vector<1xf32>
    %1072 = vector.multi_reduction <maximumf>, %1071, %cst_424 [1] : vector<1x8xf32> to vector<1xf32>
    %1073 = vector.shape_cast %1072 : vector<1xf32> to vector<1x1xf32>
    %1074 = vector.broadcast %1073 : vector<1x1xf32> to vector<1x8xf32>
    %1075 = arith.subf %1071, %1074 : vector<1x8xf32>
    %1076 = math.exp %1075 : vector<1x8xf32>
    %cst_425 = arith.constant dense<0.000000e+00> : vector<1xf32>
    %1077 = vector.multi_reduction <add>, %1076, %cst_425 [1] : vector<1x8xf32> to vector<1xf32>
    %1078 = vector.shape_cast %1077 : vector<1xf32> to vector<1x1xf32>
    %1079 = vector.broadcast %1078 : vector<1x1xf32> to vector<1x8xf32>
    %1080 = arith.divf %1076, %1079 : vector<1x8xf32>
    %cst_426 = arith.constant dense<0.000000e+00> : vector<1x8xf32>
    %1081 = tpu.matmul %1080, %1068, %cst_426 {dimension_numbers = #tpu.dot_dimension_numbers<[1], [0], [0], [1], [0, 0, 1, 1], [], []>} : vector<1x8xf32>, vector<8x8xf32>, vector<1x8xf32> -> vector<1x8xf32>
    %1082 = vector.extract_strided_slice %1063 {offsets = [0, 8], sizes = [1, 8], strides = [1, 1]} : vector<1x32xf32> to vector<1x8xf32>
    %1083 = vector.extract_strided_slice %1064 {offsets = [0, 8], sizes = [8, 8], strides = [1, 1]} : vector<8x32xf32> to vector<8x8xf32>
    %1084 = vector.extract_strided_slice %1065 {offsets = [0, 8], sizes = [8, 8], strides = [1, 1]} : vector<8x32xf32> to vector<8x8xf32>
    %cst_427 = arith.constant dense<0.000000e+00> : vector<1x8xf32>
    %1085 = tpu.matmul %1082, %1083, %cst_427 {dimension_numbers = #tpu.dot_dimension_numbers<[1], [1], [0], [0], [0, 0, 1, 0], [], []>} : vector<1x8xf32>, vector<8x8xf32>, vector<1x8xf32> -> vector<1x8xf32>
    %cst_428 = arith.constant 0.353553385 : f32
    %1086 = vector.broadcast %cst_428 : f32 to vector<1x8xf32>
    %1087 = arith.mulf %1085, %1086 : vector<1x8xf32>
    %cst_429 = arith.constant dense<0xFF800000> : vector<1xf32>
    %1088 = vector.multi_reduction <maximumf>, %1087, %cst_429 [1] : vector<1x8xf32> to vector<1xf32>
    %1089 = vector.shape_cast %1088 : vector<1xf32> to vector<1x1xf32>
    %1090 = vector.broadcast %1089 : vector<1x1xf32> to vector<1x8xf32>
    %1091 = arith.subf %1087, %1090 : vector<1x8xf32>
    %1092 = math.exp %1091 : vector<1x8xf32>
    %cst_430 = arith.constant dense<0.000000e+00> : vector<1xf32>
    %1093 = vector.multi_reduction <add>, %1092, %cst_430 [1] : vector<1x8xf32> to vector<1xf32>
    %1094 = vector.shape_cast %1093 : vector<1xf32> to vector<1x1xf32>
    %1095 = vector.broadcast %1094 : vector<1x1xf32> to vector<1x8xf32>
    %1096 = arith.divf %1092, %1095 : vector<1x8xf32>
    %cst_431 = arith.constant dense<0.000000e+00> : vector<1x8xf32>
    %1097 = tpu.matmul %1096, %1084, %cst_431 {dimension_numbers = #tpu.dot_dimension_numbers<[1], [0], [0], [1], [0, 0, 1, 1], [], []>} : vector<1x8xf32>, vector<8x8xf32>, vector<1x8xf32> -> vector<1x8xf32>
    %1098 = vector.extract_strided_slice %1063 {offsets = [0, 16], sizes = [1, 8], strides = [1, 1]} : vector<1x32xf32> to vector<1x8xf32>
    %1099 = vector.extract_strided_slice %1064 {offsets = [0, 16], sizes = [8, 8], strides = [1, 1]} : vector<8x32xf32> to vector<8x8xf32>
    %1100 = vector.extract_strided_slice %1065 {offsets = [0, 16], sizes = [8, 8], strides = [1, 1]} : vector<8x32xf32> to vector<8x8xf32>
    %cst_432 = arith.constant dense<0.000000e+00> : vector<1x8xf32>
    %1101 = tpu.matmul %1098, %1099, %cst_432 {dimension_numbers = #tpu.dot_dimension_numbers<[1], [1], [0], [0], [0, 0, 1, 0], [], []>} : vector<1x8xf32>, vector<8x8xf32>, vector<1x8xf32> -> vector<1x8xf32>
    %cst_433 = arith.constant 0.353553385 : f32
    %1102 = vector.broadcast %cst_433 : f32 to vector<1x8xf32>
    %1103 = arith.mulf %1101, %1102 : vector<1x8xf32>
    %cst_434 = arith.constant dense<0xFF800000> : vector<1xf32>
    %1104 = vector.multi_reduction <maximumf>, %1103, %cst_434 [1] : vector<1x8xf32> to vector<1xf32>
    %1105 = vector.shape_cast %1104 : vector<1xf32> to vector<1x1xf32>
    %1106 = vector.broadcast %1105 : vector<1x1xf32> to vector<1x8xf32>
    %1107 = arith.subf %1103, %1106 : vector<1x8xf32>
    %1108 = math.exp %1107 : vector<1x8xf32>
    %cst_435 = arith.constant dense<0.000000e+00> : vector<1xf32>
    %1109 = vector.multi_reduction <add>, %1108, %cst_435 [1] : vector<1x8xf32> to vector<1xf32>
    %1110 = vector.shape_cast %1109 : vector<1xf32> to vector<1x1xf32>
    %1111 = vector.broadcast %1110 : vector<1x1xf32> to vector<1x8xf32>
    %1112 = arith.divf %1108, %1111 : vector<1x8xf32>
    %cst_436 = arith.constant dense<0.000000e+00> : vector<1x8xf32>
    %1113 = tpu.matmul %1112, %1100, %cst_436 {dimension_numbers = #tpu.dot_dimension_numbers<[1], [0], [0], [1], [0, 0, 1, 1], [], []>} : vector<1x8xf32>, vector<8x8xf32>, vector<1x8xf32> -> vector<1x8xf32>
    %1114 = vector.extract_strided_slice %1063 {offsets = [0, 24], sizes = [1, 8], strides = [1, 1]} : vector<1x32xf32> to vector<1x8xf32>
    %1115 = vector.extract_strided_slice %1064 {offsets = [0, 24], sizes = [8, 8], strides = [1, 1]} : vector<8x32xf32> to vector<8x8xf32>
    %1116 = vector.extract_strided_slice %1065 {offsets = [0, 24], sizes = [8, 8], strides = [1, 1]} : vector<8x32xf32> to vector<8x8xf32>
    %cst_437 = arith.constant dense<0.000000e+00> : vector<1x8xf32>
    %1117 = tpu.matmul %1114, %1115, %cst_437 {dimension_numbers = #tpu.dot_dimension_numbers<[1], [1], [0], [0], [0, 0, 1, 0], [], []>} : vector<1x8xf32>, vector<8x8xf32>, vector<1x8xf32> -> vector<1x8xf32>
    %cst_438 = arith.constant 0.353553385 : f32
    %1118 = vector.broadcast %cst_438 : f32 to vector<1x8xf32>
    %1119 = arith.mulf %1117, %1118 : vector<1x8xf32>
    %cst_439 = arith.constant dense<0xFF800000> : vector<1xf32>
    %1120 = vector.multi_reduction <maximumf>, %1119, %cst_439 [1] : vector<1x8xf32> to vector<1xf32>
    %1121 = vector.shape_cast %1120 : vector<1xf32> to vector<1x1xf32>
    %1122 = vector.broadcast %1121 : vector<1x1xf32> to vector<1x8xf32>
    %1123 = arith.subf %1119, %1122 : vector<1x8xf32>
    %1124 = math.exp %1123 : vector<1x8xf32>
    %cst_440 = arith.constant dense<0.000000e+00> : vector<1xf32>
    %1125 = vector.multi_reduction <add>, %1124, %cst_440 [1] : vector<1x8xf32> to vector<1xf32>
    %1126 = vector.shape_cast %1125 : vector<1xf32> to vector<1x1xf32>
    %1127 = vector.broadcast %1126 : vector<1x1xf32> to vector<1x8xf32>
    %1128 = arith.divf %1124, %1127 : vector<1x8xf32>
    %cst_441 = arith.constant dense<0.000000e+00> : vector<1x8xf32>
    %1129 = tpu.matmul %1128, %1116, %cst_441 {dimension_numbers = #tpu.dot_dimension_numbers<[1], [0], [0], [1], [0, 0, 1, 1], [], []>} : vector<1x8xf32>, vector<8x8xf32>, vector<1x8xf32> -> vector<1x8xf32>
    %1130 = tpu.concatenate %1081, %1097, %1113, %1129 in 1 : vector<1x8xf32>, vector<1x8xf32>, vector<1x8xf32>, vector<1x8xf32> -> vector<1x32xf32>
    %1131 = tpu.concatenate %1062, %1130 in 0 : vector<1x32xf32>, vector<1x32xf32> -> vector<2x32xf32>
    %cst_442 = arith.constant dense<0.000000e+00> : vector<2x32xf32>
    %1132 = tpu.matmul %1131, %916, %cst_442 {dimension_numbers = #tpu.dot_dimension_numbers<[1], [0], [0], [1], [0, 0, 1, 1], [], []>} : vector<2x32xf32>, vector<32x32xf32>, vector<2x32xf32> -> vector<2x32xf32>
    %1133 = vector.broadcast %918 : vector<1x32xf32> to vector<2x32xf32>
    %1134 = arith.addf %1132, %1133 : vector<2x32xf32>
    %1135 = arith.addf %962, %1134 : vector<2x32xf32>
    %1136 = vector.extract_strided_slice %896 {offsets = [2, 0], sizes = [1, 32], strides = [1, 1]} : vector<3x32xf32> to vector<1x32xf32>
    %1137 = vector.extract_strided_slice %898 {offsets = [2, 0], sizes = [1, 32], strides = [1, 1]} : vector<3x32xf32> to vector<1x32xf32>
    %cst_443 = arith.constant dense<0.000000e+00> : vector<2xf32>
    %1138 = vector.multi_reduction <add>, %1135, %cst_443 [1] : vector<2x32xf32> to vector<2xf32>
    %1139 = vector.shape_cast %1138 : vector<2xf32> to vector<2x1xf32>
    %cst_444 = arith.constant 3.200000e+01 : f32
    %1140 = vector.broadcast %cst_444 : f32 to vector<2x1xf32>
    %1141 = arith.divf %1139, %1140 : vector<2x1xf32>
    %1142 = vector.broadcast %1141 : vector<2x1xf32> to vector<2x32xf32>
    %1143 = arith.subf %1135, %1142 : vector<2x32xf32>
    %1144 = arith.mulf %1143, %1143 : vector<2x32xf32>
    %cst_445 = arith.constant dense<0.000000e+00> : vector<2xf32>
    %1145 = vector.multi_reduction <add>, %1144, %cst_445 [1] : vector<2x32xf32> to vector<2xf32>
    %1146 = vector.shape_cast %1145 : vector<2xf32> to vector<2x1xf32>
    %cst_446 = arith.constant 3.200000e+01 : f32
    %1147 = vector.broadcast %cst_446 : f32 to vector<2x1xf32>
    %1148 = arith.divf %1146, %1147 : vector<2x1xf32>
    %1149 = vector.broadcast %1141 : vector<2x1xf32> to vector<2x32xf32>
    %1150 = arith.subf %1135, %1149 : vector<2x32xf32>
    %cst_447 = arith.constant 9.99999974E-6 : f32
    %1151 = vector.broadcast %cst_447 : f32 to vector<2x1xf32>
    %1152 = arith.addf %1148, %1151 : vector<2x1xf32>
    %1153 = math.rsqrt %1152 : vector<2x1xf32>
    %1154 = vector.broadcast %1153 : vector<2x1xf32> to vector<2x32xf32>
    %1155 = arith.mulf %1150, %1154 : vector<2x32xf32>
    %1156 = vector.broadcast %1136 : vector<1x32xf32> to vector<2x32xf32>
    %1157 = arith.mulf %1155, %1156 : vector<2x32xf32>
    %1158 = vector.broadcast %1137 : vector<1x32xf32> to vector<2x32xf32>
    %1159 = arith.addf %1157, %1158 : vector<2x32xf32>
    %cst_448 = arith.constant dense<0.000000e+00> : vector<2x2xf32>
    %1160 = tpu.matmul %1159, %920, %cst_448 {dimension_numbers = #tpu.dot_dimension_numbers<[1], [0], [0], [1], [0, 0, 1, 1], [], []>} : vector<2x32xf32>, vector<32x2xf32>, vector<2x2xf32> -> vector<2x2xf32>
    %1161 = vector.broadcast %922 : vector<1x2xf32> to vector<2x2xf32>
    %1162 = arith.addf %1160, %1161 : vector<2x2xf32>
    %cst_449 = arith.constant dense<0xFF800000> : vector<2xf32>
    %1163 = vector.multi_reduction <maximumf>, %1162, %cst_449 [1] : vector<2x2xf32> to vector<2xf32>
    %1164 = vector.shape_cast %1163 : vector<2xf32> to vector<2x1xf32>
    %1165 = vector.broadcast %1164 : vector<2x1xf32> to vector<2x2xf32>
    %1166 = arith.subf %1162, %1165 : vector<2x2xf32>
    %1167 = math.exp %1166 : vector<2x2xf32>
    %cst_450 = arith.constant dense<0.000000e+00> : vector<2xf32>
    %1168 = vector.multi_reduction <add>, %1167, %cst_450 [1] : vector<2x2xf32> to vector<2xf32>
    %1169 = vector.shape_cast %1168 : vector<2xf32> to vector<2x1xf32>
    %1170 = vector.broadcast %1169 : vector<2x1xf32> to vector<2x2xf32>
    %1171 = arith.divf %1167, %1170 : vector<2x2xf32>
    %1172 = vector.extract_strided_slice %1171 {offsets = [0, 0], sizes = [2, 1], strides = [1, 1]} : vector<2x2xf32> to vector<2x1xf32>
    %1173 = vector.extract_strided_slice %1171 {offsets = [0, 1], sizes = [2, 1], strides = [1, 1]} : vector<2x2xf32> to vector<2x1xf32>
    %1174 = arith.cmpf ogt, %1173, %1172 : vector<2x1xf32>
    %1175 = arith.extui %1174 : vector<2x1xi1> to vector<2x1xi32>
    %1176 = arith.sitofp %1175 : vector<2x1xi32> to vector<2x1xf32>
    %1177 = arith.maximumf %1172, %1173 : vector<2x1xf32>
    %cst_451 = arith.constant dense<0.000000e+00> : vector<2x128xf32>
    %1178 = tpu.matmul %1159, %924, %cst_451 {dimension_numbers = #tpu.dot_dimension_numbers<[1], [0], [0], [1], [0, 0, 1, 1], [], []>} : vector<2x32xf32>, vector<32x128xf32>, vector<2x128xf32> -> vector<2x128xf32>
    %1179 = vector.broadcast %926 : vector<1x128xf32> to vector<2x128xf32>
    %1180 = arith.addf %1178, %1179 : vector<2x128xf32>
    %cst_452 = arith.constant 0.000000e+00 : f32
    %1181 = vector.broadcast %cst_452 : f32 to vector<2x128xf32>
    %1182 = arith.maximumf %1180, %1181 : vector<2x128xf32>
    %cst_453 = arith.constant dense<0.000000e+00> : vector<2x64xf32>
    %1183 = tpu.matmul %1182, %928, %cst_453 {dimension_numbers = #tpu.dot_dimension_numbers<[1], [0], [0], [1], [0, 0, 1, 1], [], []>} : vector<2x128xf32>, vector<128x64xf32>, vector<2x64xf32> -> vector<2x64xf32>
    %1184 = vector.broadcast %930 : vector<1x64xf32> to vector<2x64xf32>
    %1185 = arith.addf %1183, %1184 : vector<2x64xf32>
    %1186 = vector.extract_strided_slice %1185 {offsets = [0, 0], sizes = [2, 32], strides = [1, 1]} : vector<2x64xf32> to vector<2x32xf32>
    %1187 = vector.extract_strided_slice %1185 {offsets = [0, 32], sizes = [2, 32], strides = [1, 1]} : vector<2x64xf32> to vector<2x32xf32>
    %1188 = vector.broadcast %1176 : vector<2x1xf32> to vector<2x32xf32>
    %1189 = arith.mulf %1188, %1187 : vector<2x32xf32>
    %cst_454 = arith.constant 1.000000e+00 : f32
    %1190 = vector.broadcast %cst_454 : f32 to vector<2x1xf32>
    %1191 = arith.subf %1190, %1176 : vector<2x1xf32>
    %1192 = vector.broadcast %1191 : vector<2x1xf32> to vector<2x32xf32>
    %1193 = arith.mulf %1192, %1186 : vector<2x32xf32>
    %1194 = arith.addf %1189, %1193 : vector<2x32xf32>
    %cst_455 = arith.constant 1.000000e+00 : f32
    %1195 = vector.broadcast %cst_455 : f32 to vector<2x1xf32>
    %1196 = arith.subf %1195, %1176 : vector<2x1xf32>
    %1197 = tpu.concatenate %1196, %1176 in 1 : vector<2x1xf32>, vector<2x1xf32> -> vector<2x2xf32>
    %1198 = tpu.iota {dimensions = array<i32: 0>} : vector<2x2xi32>
    %1199 = tpu.iota {dimensions = array<i32: 1>} : vector<2x2xi32>
    %1200 = arith.cmpi sge, %1198, %1199 : vector<2x2xi32>
    %1201 = arith.extui %1200 : vector<2x2xi1> to vector<2x2xi32>
    %1202 = arith.sitofp %1201 : vector<2x2xi32> to vector<2x2xf32>
    %cst_456 = arith.constant dense<0.000000e+00> : vector<2x2xf32>
    %1203 = tpu.matmul %1202, %1197, %cst_456 {dimension_numbers = #tpu.dot_dimension_numbers<[1], [0], [0], [1], [0, 0, 1, 1], [], []>} : vector<2x2xf32>, vector<2x2xf32>, vector<2x2xf32> -> vector<2x2xf32>
    %1204 = arith.mulf %1203, %1197 : vector<2x2xf32>
    %cst_457 = arith.constant dense<0.000000e+00> : vector<2xf32>
    %1205 = vector.multi_reduction <add>, %1204, %cst_457 [1] : vector<2x2xf32> to vector<2xf32>
    %1206 = vector.shape_cast %1205 : vector<2xf32> to vector<2x1xf32>
    %cst_458 = arith.constant 1.000000e+00 : f32
    %1207 = vector.broadcast %cst_458 : f32 to vector<2x1xf32>
    %1208 = arith.cmpf ole, %1206, %1207 : vector<2x1xf32>
    %1209 = arith.extui %1208 : vector<2x1xi1> to vector<2x1xi32>
    %1210 = arith.sitofp %1209 : vector<2x1xi32> to vector<2x1xf32>
    %1211 = vector.broadcast %1210 : vector<2x1xf32> to vector<2x32xf32>
    %1212 = arith.mulf %1211, %1194 : vector<2x32xf32>
    %cst_459 = arith.constant 1.000000e+00 : f32
    %1213 = vector.broadcast %cst_459 : f32 to vector<2x1xf32>
    %1214 = arith.subf %1213, %1210 : vector<2x1xf32>
    %1215 = vector.broadcast %1214 : vector<2x1xf32> to vector<2x32xf32>
    %1216 = arith.mulf %1215, %1159 : vector<2x32xf32>
    %1217 = arith.addf %1212, %1216 : vector<2x32xf32>
    %1218 = vector.broadcast %1177 : vector<2x1xf32> to vector<2x32xf32>
    %1219 = arith.mulf %1217, %1218 : vector<2x32xf32>
    %1220 = arith.addf %1135, %1219 : vector<2x32xf32>
    %c0_460 = arith.constant 0 : index
    %c0_461 = arith.constant 0 : index
    %1221 = vector.load %arg35[%c0_460, %c0_461] : memref<32x8xf32, #tpu.memory_space<vmem>>, vector<32x8xf32>
    %cst_462 = arith.constant dense<0.000000e+00> : vector<2x8xf32>
    %1222 = tpu.matmul %1220, %1221, %cst_462 {dimension_numbers = #tpu.dot_dimension_numbers<[1], [0], [0], [1], [0, 0, 1, 1], [], []>} : vector<2x32xf32>, vector<32x8xf32>, vector<2x8xf32> -> vector<2x8xf32>
    %c0_463 = arith.constant 0 : index
    %c0_464 = arith.constant 0 : index
    %1223 = vector.load %arg36[%c0_463, %c0_464] : memref<1x8xf32, #tpu.memory_space<vmem>>, vector<1x8xf32>
    %1224 = vector.broadcast %1223 : vector<1x8xf32> to vector<2x8xf32>
    %1225 = arith.addf %1222, %1224 : vector<2x8xf32>
    %c0_465 = arith.constant 0 : index
    %c0_466 = arith.constant 0 : index
    %1226 = vector.load %arg37[%c0_465, %c0_466] : memref<2x8xf32, #tpu.memory_space<vmem>>, vector<2x8xf32>
    tpu.vector_store %arg37[%c0_465, %c0_466], %1225 {strides = array<i32>} : memref<2x8xf32, #tpu.memory_space<vmem>>, vector<2x8xf32>,
    return
  }
}

</mosaic_0001>

<llo_original>
// kernel: switch_transformer_forward.1
$region0: #{switch_transformer_forward.1}
  #allocation0 [shape = 'u32[]', space=smem, size = 0x4, offset = 0x4, fixed_abs, tag = 'smem constant byte address 0x4 - core index']
  #allocation1 [shape = 'u32[144,128]{1,0:T(1,128)}', space=vmem, size = 0x12000, scoped, tag = 'internal scratch']
  %s0 = inlined_call_operand.smem [shape: u32[38], index: -1, kind: input, shape index: {}]
  %s1 = sld [smem:[%s0]]
  %s2 = scalar_lea.smem %s0, 1
  %s3 = sld [smem:[%s2]]
  %s4 = scalar_lea.smem %s0, 2
  %s5 = sld [smem:[%s4]]
  %s6 = scalar_lea.smem %s0, 3
  %s7 = sld [smem:[%s6]]
  %s8 = scalar_lea.smem %s0, 4
  %s9 = sld [smem:[%s8]]
  %s10 = scalar_lea.smem %s0, 5
  %s11 = sld [smem:[%s10]]
  %s12 = scalar_lea.smem %s0, 6
  %s13 = sld [smem:[%s12]]
  %s14 = scalar_lea.smem %s0, 7
  %s15 = sld [smem:[%s14]]
  %s16 = scalar_lea.smem %s0, 8
  %s17 = sld [smem:[%s16]]
  %s18 = scalar_lea.smem %s0, 9
  %s19 = sld [smem:[%s18]]
  %s20 = scalar_lea.smem %s0, 10
  %s21 = sld [smem:[%s20]]
  %s22 = scalar_lea.smem %s0, 11
  %s23 = sld [smem:[%s22]]
  %s24 = scalar_lea.smem %s0, 12
  %s25 = sld [smem:[%s24]]
  %s26 = scalar_lea.smem %s0, 13
  %s27 = sld [smem:[%s26]]
  %s28 = scalar_lea.smem %s0, 14
  %s29 = sld [smem:[%s28]]
  %s30 = scalar_lea.smem %s0, 15
  %s31 = sld [smem:[%s30]]
  %s32 = scalar_lea.smem %s0, 16
  %s33 = sld [smem:[%s32]]
  %s34 = scalar_lea.smem %s0, 17
  %s35 = sld [smem:[%s34]]
  %s36 = scalar_lea.smem %s0, 18
  %s37 = sld [smem:[%s36]]
  %s38 = scalar_lea.smem %s0, 19
  %s39 = sld [smem:[%s38]]
  %s40 = scalar_lea.smem %s0, 20
  %s41 = sld [smem:[%s40]]
  %s42 = scalar_lea.smem %s0, 21
  %s43 = sld [smem:[%s42]]
  %s44 = scalar_lea.smem %s0, 22
  %s45 = sld [smem:[%s44]]
  %s46 = scalar_lea.smem %s0, 23
  %s47 = sld [smem:[%s46]]
  %s48 = scalar_lea.smem %s0, 24
  %s49 = sld [smem:[%s48]]
  %s50 = scalar_lea.smem %s0, 25
  %s51 = sld [smem:[%s50]]
  %s52 = scalar_lea.smem %s0, 26
  %s53 = sld [smem:[%s52]]
  %s54 = scalar_lea.smem %s0, 27
  %s55 = sld [smem:[%s54]]
  %s56 = scalar_lea.smem %s0, 28
  %s57 = sld [smem:[%s56]]
  %s58 = scalar_lea.smem %s0, 29
  %s59 = sld [smem:[%s58]]
  %s60 = scalar_lea.smem %s0, 30
  %s61 = sld [smem:[%s60]]
  %s62 = scalar_lea.smem %s0, 31
  %s63 = sld [smem:[%s62]]
  %s64 = scalar_lea.smem %s0, 32
  %s65 = sld [smem:[%s64]]
  %s66 = scalar_lea.smem %s0, 33
  %s67 = sld [smem:[%s66]]
  %s68 = scalar_lea.smem %s0, 34
  %s69 = sld [smem:[%s68]]
  %s70 = scalar_lea.smem %s0, 35
  %s71 = sld [smem:[%s70]]
  %s72 = scalar_lea.smem %s0, 36
  %s73 = sld [smem:[%s72]]
  %s74 = scalar_lea.smem %s0, 37
  %s75 = sld [smem:[%s74]]
  %s76 = sld [smem:[#allocation0]]
  $region158: #{switch_transformer_forward.1} parent=0
    _
  %s78 = ssub.s32 1, %s76
  %s79 = scalar_select 0, %s78, %s76
  $region1: #{switch_transformer_forward.1} parent=0
    #allocation2 [shape = 'u8[1024]{0}', space=vmem, size = 0x400, scoped, tag = 'output window, operand 0, single buffered']
    #allocation3 [shape = 's32[1]{0}', space=sflag, size = 0x4, scoped, tag = 'scoped memory for switch_transformer_forward.1']
    %80 = vsyncpa [#allocation3], 0
    // Predicated region
    $region2: #{switch_transformer_forward.1} parent=1 // pred_check
      _
    $region3: #{switch_transformer_forward.1} parent=1 // pred_check_branch
      %82 = sbr.rel (0) target = $region5
    $region4: #{switch_transformer_forward.1} parent=1 // pred_region
      _
    $region5: #{switch_transformer_forward.1} parent=1 // pred_fallthru
      _
    // Predicated region
    $region6: #{switch_transformer_forward.1} parent=1 // pred_check
      _
    $region7: #{switch_transformer_forward.1} parent=1 // pred_check_branch
      %84 = sbr.rel (0) target = $region9
    $region8: #{switch_transformer_forward.1} parent=1 // pred_region
      _
    $region9: #{switch_transformer_forward.1} parent=1 // pred_fallthru
      _
    // Predicated region
    $region10: #{switch_transformer_forward.1} parent=1 // pred_check
      _
    $region11: #{switch_transformer_forward.1} parent=1 // pred_check_branch
      %86 = sbr.rel (0) target = $region13
    $region12: #{switch_transformer_forward.1} parent=1 // pred_region
      _
    $region13: #{switch_transformer_forward.1} parent=1 // pred_fallthru
      _
    // Predicated region
    $region14: #{switch_transformer_forward.1} parent=1 // pred_check
      _
    $region15: #{switch_transformer_forward.1} parent=1 // pred_check_branch
      %88 = sbr.rel (0) target = $region17
    $region16: #{switch_transformer_forward.1} parent=1 // pred_region
      _
    $region17: #{switch_transformer_forward.1} parent=1 // pred_fallthru
      _
    // Predicated region
    $region18: #{switch_transformer_forward.1} parent=1 // pred_check
      _
    $region19: #{switch_transformer_forward.1} parent=1 // pred_check_branch
      %90 = sbr.rel (0) target = $region21
    $region20: #{switch_transformer_forward.1} parent=1 // pred_region
      _
    $region21: #{switch_transformer_forward.1} parent=1 // pred_fallthru
      _
    // Predicated region
    $region22: #{switch_transformer_forward.1} parent=1 // pred_check
      _
    $region23: #{switch_transformer_forward.1} parent=1 // pred_check_branch
      %92 = sbr.rel (0) target = $region25
    $region24: #{switch_transformer_forward.1} parent=1 // pred_region
      _
    $region25: #{switch_transformer_forward.1} parent=1 // pred_fallthru
      _
    // Predicated region
    $region26: #{switch_transformer_forward.1} parent=1 // pred_check
      _
    $region27: #{switch_transformer_forward.1} parent=1 // pred_check_branch
      %94 = sbr.rel (0) target = $region29
    $region28: #{switch_transformer_forward.1} parent=1 // pred_region
      _
    $region29: #{switch_transformer_forward.1} parent=1 // pred_fallthru
      _
    // Predicated region
    $region30: #{switch_transformer_forward.1} parent=1 // pred_check
      _
    $region31: #{switch_transformer_forward.1} parent=1 // pred_check_branch
      %96 = sbr.rel (0) target = $region33
    $region32: #{switch_transformer_forward.1} parent=1 // pred_region
      _
    $region33: #{switch_transformer_forward.1} parent=1 // pred_fallthru
      _
    // Predicated region
    $region34: #{switch_transformer_forward.1} parent=1 // pred_check
      _
    $region35: #{switch_transformer_forward.1} parent=1 // pred_check_branch
      %98 = sbr.rel (0) target = $region37
    $region36: #{switch_transformer_forward.1} parent=1 // pred_region
      _
    $region37: #{switch_transformer_forward.1} parent=1 // pred_fallthru
      _
    // Predicated region
    $region38: #{switch_transformer_forward.1} parent=1 // pred_check
      _
    $region39: #{switch_transformer_forward.1} parent=1 // pred_check_branch
      %100 = sbr.rel (0) target = $region41
    $region40: #{switch_transformer_forward.1} parent=1 // pred_region
      _
    $region41: #{switch_transformer_forward.1} parent=1 // pred_fallthru
      _
    // Predicated region
    $region42: #{switch_transformer_forward.1} parent=1 // pred_check
      _
    $region43: #{switch_transformer_forward.1} parent=1 // pred_check_branch
      %102 = sbr.rel (0) target = $region45
    $region44: #{switch_transformer_forward.1} parent=1 // pred_region
      _
    $region45: #{switch_transformer_forward.1} parent=1 // pred_fallthru
      _
    // Predicated region
    $region46: #{switch_transformer_forward.1} parent=1 // pred_check
      _
    $region47: #{switch_transformer_forward.1} parent=1 // pred_check_branch
      %104 = sbr.rel (0) target = $region49
    $region48: #{switch_transformer_forward.1} parent=1 // pred_region
      _
    $region49: #{switch_transformer_forward.1} parent=1 // pred_fallthru
      _
    // Predicated region
    $region50: #{switch_transformer_forward.1} parent=1 // pred_check
      _
    $region51: #{switch_transformer_forward.1} parent=1 // pred_check_branch
      %106 = sbr.rel (0) target = $region53
    $region52: #{switch_transformer_forward.1} parent=1 // pred_region
      _
    $region53: #{switch_transformer_forward.1} parent=1 // pred_fallthru
      _
    // Predicated region
    $region54: #{switch_transformer_forward.1} parent=1 // pred_check
      _
    $region55: #{switch_transformer_forward.1} parent=1 // pred_check_branch
      %108 = sbr.rel (0) target = $region57
    $region56: #{switch_transformer_forward.1} parent=1 // pred_region
      _
    $region57: #{switch_transformer_forward.1} parent=1 // pred_fallthru
      _
    // Predicated region
    $region58: #{switch_transformer_forward.1} parent=1 // pred_check
      _
    $region59: #{switch_transformer_forward.1} parent=1 // pred_check_branch
      %110 = sbr.rel (0) target = $region61
    $region60: #{switch_transformer_forward.1} parent=1 // pred_region
      _
    $region61: #{switch_transformer_forward.1} parent=1 // pred_fallthru
      _
    // Predicated region
    $region62: #{switch_transformer_forward.1} parent=1 // pred_check
      _
    $region63: #{switch_transformer_forward.1} parent=1 // pred_check_branch
      %112 = sbr.rel (0) target = $region65
    $region64: #{switch_transformer_forward.1} parent=1 // pred_region
      _
    $region65: #{switch_transformer_forward.1} parent=1 // pred_fallthru
      _
    // Predicated region
    $region66: #{switch_transformer_forward.1} parent=1 // pred_check
      _
    $region67: #{switch_transformer_forward.1} parent=1 // pred_check_branch
      %114 = sbr.rel (0) target = $region69
    $region68: #{switch_transformer_forward.1} parent=1 // pred_region
      _
    $region69: #{switch_transformer_forward.1} parent=1 // pred_fallthru
      _
    // Predicated region
    $region70: #{switch_transformer_forward.1} parent=1 // pred_check
      _
    $region71: #{switch_transformer_forward.1} parent=1 // pred_check_branch
      %116 = sbr.rel (0) target = $region73
    $region72: #{switch_transformer_forward.1} parent=1 // pred_region
      _
    $region73: #{switch_transformer_forward.1} parent=1 // pred_fallthru
      _
    // Predicated region
    $region74: #{switch_transformer_forward.1} parent=1 // pred_check
      _
    $region75: #{switch_transformer_forward.1} parent=1 // pred_check_branch
      %118 = sbr.rel (0) target = $region77
    $region76: #{switch_transformer_forward.1} parent=1 // pred_region
      _
    $region77: #{switch_transformer_forward.1} parent=1 // pred_fallthru
      _
    // Predicated region
    $region78: #{switch_transformer_forward.1} parent=1 // pred_check
      _
    $region79: #{switch_transformer_forward.1} parent=1 // pred_check_branch
      %120 = sbr.rel (0) target = $region81
    $region80: #{switch_transformer_forward.1} parent=1 // pred_region
      _
    $region81: #{switch_transformer_forward.1} parent=1 // pred_fallthru
      _
    // Predicated region
    $region82: #{switch_transformer_forward.1} parent=1 // pred_check
      _
    $region83: #{switch_transformer_forward.1} parent=1 // pred_check_branch
      %122 = sbr.rel (0) target = $region85
    $region84: #{switch_transformer_forward.1} parent=1 // pred_region
      _
    $region85: #{switch_transformer_forward.1} parent=1 // pred_fallthru
      _
    // Predicated region
    $region86: #{switch_transformer_forward.1} parent=1 // pred_check
      _
    $region87: #{switch_transformer_forward.1} parent=1 // pred_check_branch
      %124 = sbr.rel (0) target = $region89
    $region88: #{switch_transformer_forward.1} parent=1 // pred_region
      _
    $region89: #{switch_transformer_forward.1} parent=1 // pred_fallthru
      _
    // Predicated region
    $region90: #{switch_transformer_forward.1} parent=1 // pred_check
      _
    $region91: #{switch_transformer_forward.1} parent=1 // pred_check_branch
      %126 = sbr.rel (0) target = $region93
    $region92: #{switch_transformer_forward.1} parent=1 // pred_region
      _
    $region93: #{switch_transformer_forward.1} parent=1 // pred_fallthru
      _
    // Predicated region
    $region94: #{switch_transformer_forward.1} parent=1 // pred_check
      _
    $region95: #{switch_transformer_forward.1} parent=1 // pred_check_branch
      %128 = sbr.rel (0) target = $region97
    $region96: #{switch_transformer_forward.1} parent=1 // pred_region
      _
    $region97: #{switch_transformer_forward.1} parent=1 // pred_fallthru
      _
    // Predicated region
    $region98: #{switch_transformer_forward.1} parent=1 // pred_check
      _
    $region99: #{switch_transformer_forward.1} parent=1 // pred_check_branch
      %130 = sbr.rel (0) target = $region101
    $region100: #{switch_transformer_forward.1} parent=1 // pred_region
      _
    $region101: #{switch_transformer_forward.1} parent=1 // pred_fallthru
      _
    // Predicated region
    $region102: #{switch_transformer_forward.1} parent=1 // pred_check
      _
    $region103: #{switch_transformer_forward.1} parent=1 // pred_check_branch
      %132 = sbr.rel (0) target = $region105
    $region104: #{switch_transformer_forward.1} parent=1 // pred_region
      _
    $region105: #{switch_transformer_forward.1} parent=1 // pred_fallthru
      _
    // Predicated region
    $region106: #{switch_transformer_forward.1} parent=1 // pred_check
      _
    $region107: #{switch_transformer_forward.1} parent=1 // pred_check_branch
      %134 = sbr.rel (0) target = $region109
    $region108: #{switch_transformer_forward.1} parent=1 // pred_region
      _
    $region109: #{switch_transformer_forward.1} parent=1 // pred_fallthru
      _
    // Predicated region
    $region110: #{switch_transformer_forward.1} parent=1 // pred_check
      _
    $region111: #{switch_transformer_forward.1} parent=1 // pred_check_branch
      %136 = sbr.rel (0) target = $region113
    $region112: #{switch_transformer_forward.1} parent=1 // pred_region
      _
    $region113: #{switch_transformer_forward.1} parent=1 // pred_fallthru
      _
    // Predicated region
    $region114: #{switch_transformer_forward.1} parent=1 // pred_check
      _
    $region115: #{switch_transformer_forward.1} parent=1 // pred_check_branch
      %138 = sbr.rel (0) target = $region117
    $region116: #{switch_transformer_forward.1} parent=1 // pred_region
      _
    $region117: #{switch_transformer_forward.1} parent=1 // pred_fallthru
      _
    // Predicated region
    $region118: #{switch_transformer_forward.1} parent=1 // pred_check
      _
    $region119: #{switch_transformer_forward.1} parent=1 // pred_check_branch
      %140 = sbr.rel (0) target = $region121
    $region120: #{switch_transformer_forward.1} parent=1 // pred_region
      _
    $region121: #{switch_transformer_forward.1} parent=1 // pred_fallthru
      _
    // Predicated region
    $region122: #{switch_transformer_forward.1} parent=1 // pred_check
      _
    $region123: #{switch_transformer_forward.1} parent=1 // pred_check_branch
      %142 = sbr.rel (0) target = $region125
    $region124: #{switch_transformer_forward.1} parent=1 // pred_region
      _
    $region125: #{switch_transformer_forward.1} parent=1 // pred_fallthru
      _
    // Predicated region
    $region126: #{switch_transformer_forward.1} parent=1 // pred_check
      _
    $region127: #{switch_transformer_forward.1} parent=1 // pred_check_branch
      %144 = sbr.rel (0) target = $region129
    $region128: #{switch_transformer_forward.1} parent=1 // pred_region
      _
    $region129: #{switch_transformer_forward.1} parent=1 // pred_fallthru
      _
    // Predicated region
    $region130: #{switch_transformer_forward.1} parent=1 // pred_check
      _
    $region131: #{switch_transformer_forward.1} parent=1 // pred_check_branch
      %146 = sbr.rel (0) target = $region133
    $region132: #{switch_transformer_forward.1} parent=1 // pred_region
      _
    $region133: #{switch_transformer_forward.1} parent=1 // pred_fallthru
      _
    // Predicated region
    $region134: #{switch_transformer_forward.1} parent=1 // pred_check
      _
    $region135: #{switch_transformer_forward.1} parent=1 // pred_check_branch
      %148 = sbr.rel (0) target = $region137
    $region136: #{switch_transformer_forward.1} parent=1 // pred_region
      _
    $region137: #{switch_transformer_forward.1} parent=1 // pred_fallthru
      _
    // Predicated region
    $region138: #{switch_transformer_forward.1} parent=1 // pred_check
      _
    $region139: #{switch_transformer_forward.1} parent=1 // pred_check_branch
      %150 = sbr.rel (0) target = $region141
    $region140: #{switch_transformer_forward.1} parent=1 // pred_region
      _
    $region141: #{switch_transformer_forward.1} parent=1 // pred_fallthru
      _
    // Predicated region
    $region142: #{switch_transformer_forward.1} parent=1 // pred_check
      _
    $region143: #{switch_transformer_forward.1} parent=1 // pred_check_branch
      %152 = sbr.rel (0) target = $region145
    $region144: #{switch_transformer_forward.1} parent=1 // pred_region
      _
    $region145: #{switch_transformer_forward.1} parent=1 // pred_fallthru
      _
    // Predicated region
    $region146: #{switch_transformer_forward.1} parent=1 // pred_check
      _
    $region147: #{switch_transformer_forward.1} parent=1 // pred_check_branch
      %154 = sbr.rel (0) target = $region149
    $region148: #{switch_transformer_forward.1} parent=1 // pred_region
      _
    $region149: #{switch_transformer_forward.1} parent=1 // pred_fallthru
      _
    %v155 = vld [vmem:[%s1] sm:$0xff]
    %v156 = vld [vmem:[%s1 + $0x8] sm:$0xff]
    %v157 = vld [vmem:[%s5] sm:$0xff]
    %v158 = vld [vmem:[%s5 + $0x8] sm:$0xff]
    %v159 = vld [vmem:[%s7] sm:$0x1]
    %v161 = vlaneseq
    %v162 = vshrl.u32 %v161, 7
    %v163 = vsub.s32 0, %v162
    %v164 = vrot.slane %v159, %v163
    %vm166 = vcmask 130048
    %v168 = vsel %vm166, %v155, 0
    %v171 = vsel %vm166, %v156, 0
    %173 = vmatprep.subr.mxu0 0.0
    %174 = vmatpush1.msra.mxu0 %v157
    %175 = vmatprep.subr.mxu0 0.0
    %176 = vmatpush1.msra.mxu0 %v158
    %177 = vmatprep.subr.mxu0 0.0
    %178 = vmatpush1.msra.mxu0 0.0
    %179 = vmatprep.subr.mxu0 0.0
    %180 = vmatpush1.msra.mxu0 0.0
    %181 = vmatprep.subr.mxu0 0.0
    %182 = vmatpush1.msra.mxu0 0.0
    %183 = vmatprep.subr.mxu0 0.0
    %184 = vmatpush1.msra.mxu0 0.0
    %185 = vmatprep.subr.mxu0 0.0
    %186 = vmatpush1.msra.mxu0 0.0
    %187 = vmatprep.subr.mxu0 0.0
    %188 = vmatpush1.msra.mxu0 0.0
    %189 = vmatprep.subr.mxu0 0.0
    %190 = vmatpush1.msra.mxu0 0.0
    %191 = vmatprep.subr.mxu0 0.0
    %192 = vmatpush1.msra.mxu0 0.0
    %193 = vmatprep.subr.mxu0 0.0
    %194 = vmatpush1.msra.mxu0 0.0
    %195 = vmatprep.subr.mxu0 0.0
    %196 = vmatpush1.msra.mxu0 0.0
    %197 = vmatprep.subr.mxu0 0.0
    %198 = vmatpush1.msra.mxu0 0.0
    %199 = vmatprep.subr.mxu0 0.0
    %200 = vmatpush1.msra.mxu0 0.0
    %201 = vmatprep.subr.mxu0 0.0
    %202 = vmatpush1.msra.mxu0 0.0
    %203 = vmatprep.subr.mxu0 0.0
    %204 = vmatpush1.msra.mxu0 0.0
    %205 = vmatprep.subr.mxu0 0.0
    %206 = vmatpush1.msra.mxu0 0.0
    %207 = vmatprep.subr.mxu0 0.0
    %208 = vmatpush1.msra.mxu0 0.0
    %209 = vmatprep.subr.mxu0 0.0
    %210 = vmatpush1.msra.mxu0 0.0
    %211 = vmatprep.subr.mxu0 0.0
    %212 = vmatpush1.msra.mxu0 0.0
    %213 = vmatprep.subr.mxu0 0.0
    %214 = vmatpush1.msra.mxu0 0.0
    %215 = vmatprep.subr.mxu0 0.0
    %216 = vmatpush1.msra.mxu0 0.0
    %217 = vmatprep.subr.mxu0 0.0
    %218 = vmatpush1.msra.mxu0 0.0
    %219 = vmatprep.subr.mxu0 0.0
    %220 = vmatpush1.msra.mxu0 0.0
    %221 = vmatprep.subr.mxu0 0.0
    %222 = vmatpush1.msra.mxu0 0.0
    %223 = vmatprep.subr.mxu0 0.0
    %224 = vmatpush1.msra.mxu0 0.0
    %225 = vmatprep.subr.mxu0 0.0
    %226 = vmatpush1.msra.mxu0 0.0
    %227 = vmatprep.subr.mxu0 0.0
    %228 = vmatpush1.msra.mxu0 0.0
    %229 = vmatprep.subr.mxu0 0.0
    %230 = vmatpush1.msra.mxu0 0.0
    %231 = vmatprep.subr.mxu0 0.0
    %232 = vmatpush1.msra.mxu0 0.0
    %233 = vmatprep.subr.mxu0 0.0
    %234 = vmatpush1.msra.mxu0 0.0
    %235 = vmatprep.subr.mxu0 0.0
    %236 = vmatpush1.msra.mxu0 0.0
    %237 = vmatprep.mubr.f32.mxu0 0.0
    %238 = vmatmul.mubr.f32.gmra.mrb[0].mxu0 %v168
    %v239 = vpop.f32.mrb[0].mxu0
    %v240 = vadd.f32 %v164, %v239
    %v241 = vpop.f32.mrb[0].mxu0
    %242 = vmatprep.mubr.f32.mxu0 0.0
    %243 = vmatmul.mubr.f32.gmra.mrb[0].mxu0 %v171
    %v244 = vpop.f32.mrb[0].mxu0
    %v245 = vadd.f32 %v164, %v244
    %v246 = vpop.f32.mrb[0].mxu0
    %247 = vdwg.mxu0
    %v248 = vld [vmem:[%s3] sm:$0xff]
    %v249 = vld [vmem:[%s3 + $0x8] sm:$0xff]
    %v250 = vadd.f32 %v240, %v248
    %v251 = vadd.f32 %v245, %v249
    %v252 = vld [vmem:[%s9] sm:$0x3]
    %v253 = vld [vmem:[%s11] sm:$0x3]
    %v254 = vld [vmem:[%s13] sm:$0xff]
    %v255 = vld [vmem:[%s13 + $0x8] sm:$0xff]
    %v256 = vld [vmem:[%s13 + $0x10] sm:$0xff]
    %v257 = vld [vmem:[%s13 + $0x18] sm:$0xff]
    %v258 = vld [vmem:[%s15] sm:$0x1]
    %v259 = vld [vmem:[%s17] sm:$0xff]
    %v260 = vld [vmem:[%s17 + $0x8] sm:$0xff]
    %v261 = vld [vmem:[%s17 + $0x10] sm:$0xff]
    %v262 = vld [vmem:[%s17 + $0x18] sm:$0xff]
    %v263 = vld [vmem:[%s19] sm:$0x1]
    %v264 = vld [vmem:[%s21] sm:$0xff]
    %v265 = vld [vmem:[%s21 + $0x8] sm:$0xff]
    %v266 = vld [vmem:[%s21 + $0x10] sm:$0xff]
    %v267 = vld [vmem:[%s21 + $0x18] sm:$0xff]
    %v268 = vld [vmem:[%s23] sm:$0x1]
    %v269 = vld [vmem:[%s25] sm:$0xff]
    %v270 = vld [vmem:[%s25 + $0x8] sm:$0xff]
    %v271 = vld [vmem:[%s25 + $0x10] sm:$0xff]
    %v272 = vld [vmem:[%s25 + $0x18] sm:$0xff]
    %v273 = vld [vmem:[%s27] sm:$0x1]
    %v274 = vld [vmem:[%s29] sm:$0xff]
    %v275 = vld [vmem:[%s29 + $0x8] sm:$0xff]
    %v276 = vld [vmem:[%s29 + $0x10] sm:$0xff]
    %v277 = vld [vmem:[%s29 + $0x18] sm:$0xff]
    %v278 = vld [vmem:[%s29 + $0x20] sm:$0xff]
    %v279 = vld [vmem:[%s29 + $0x28] sm:$0xff]
    %v280 = vld [vmem:[%s29 + $0x30] sm:$0xff]
    %v281 = vld [vmem:[%s29 + $0x38] sm:$0xff]
    %v282 = vld [vmem:[%s29 + $0x40] sm:$0xff]
    %v283 = vld [vmem:[%s29 + $0x48] sm:$0xff]
    %v284 = vld [vmem:[%s29 + $0x50] sm:$0xff]
    %v285 = vld [vmem:[%s29 + $0x58] sm:$0xff]
    %v286 = vld [vmem:[%s29 + $0x60] sm:$0xff]
    %v287 = vld [vmem:[%s29 + $0x68] sm:$0xff]
    %v288 = vld [vmem:[%s29 + $0x70] sm:$0xff]
    %v289 = vld [vmem:[%s29 + $0x78] sm:$0xff]
    %v290 = vld [vmem:[%s31] sm:$0x1]
    %vm291 = vcmask 261120
    %v292 = vsel %vm291, %v250, 0.0
    %293 = vadd.xlane.f32.xlu0 %v292
    %v294 = vpop.xlane.xlu0 %293
    %v295 = vsel %vm291, %v251, 0.0
    %296 = vadd.xlane.f32.xlu0 %v295
    %v297 = vpop.xlane.xlu0 %296
    %v298 = vrcp.pop 32.0
    %v299 = vmul.f32 %v294, %v298
    %v300 = vmul.f32 %v297, %v298
    %v301 = vsub.f32 %v250, %v299
    %v302 = vsub.f32 %v251, %v300
    %v303 = vmul.f32 %v301, %v301
    %v304 = vmul.f32 %v302, %v302
    %v305 = vsel %vm291, %v303, 0.0
    %306 = vadd.xlane.f32.xlu0 %v305
    %v307 = vpop.xlane.xlu0 %306
    %v308 = vsel %vm291, %v304, 0.0
    %309 = vadd.xlane.f32.xlu0 %v308
    %v310 = vpop.xlane.xlu0 %309
    %v311 = vmul.f32 %v307, %v298
    %v312 = vmul.f32 %v310, %v298
    %v313 = vadd.f32 %v311, 1e-05
    %v314 = vadd.f32 %v312, 1e-05
    %v315 = vrsqrt.pop %v313
    %v316 = vrsqrt.pop %v314
    %v317 = vmul.f32 %v301, %v315
    %v318 = vmul.f32 %v302, %v316
    %v319 = vlaneseq
    %v320 = vshrl.u32 %v319, 7
    %v321 = vsub.s32 0, %v320
    %v322 = vrot.slane %v252, %v321
    %v323 = vmul.f32 %v317, %v322
    %v324 = vmul.f32 %v318, %v322
    %v325 = vlaneseq
    %v326 = vshrl.u32 %v325, 7
    %v327 = vsub.s32 0, %v326
    %v328 = vrot.slane %v253, %v327
    %v329 = vadd.f32 %v323, %v328
    %v330 = vadd.f32 %v324, %v328
    %v332 = vlaneseq
    %v333 = vshrl.u32 %v332, 7
    %v334 = vsub.s32 0, %v333
    %v335 = vrot.slane %v258, %v334
    %v338 = vsel %vm291, %v329, 0
    %v341 = vsel %vm291, %v330, 0
    %343 = vmatprep.subr.mxu0 0.0
    %344 = vmatpush1.msra.mxu0 %v254
    %345 = vmatprep.subr.mxu0 0.0
    %346 = vmatpush1.msra.mxu0 %v255
    %347 = vmatprep.subr.mxu0 0.0
    %348 = vmatpush1.msra.mxu0 %v256
    %349 = vmatprep.subr.mxu0 0.0
    %350 = vmatpush1.msra.mxu0 %v257
    %351 = vmatprep.subr.mxu0 0.0
    %352 = vmatpush1.msra.mxu0 0.0
    %353 = vmatprep.subr.mxu0 0.0
    %354 = vmatpush1.msra.mxu0 0.0
    %355 = vmatprep.subr.mxu0 0.0
    %356 = vmatpush1.msra.mxu0 0.0
    %357 = vmatprep.subr.mxu0 0.0
    %358 = vmatpush1.msra.mxu0 0.0
    %359 = vmatprep.subr.mxu0 0.0
    %360 = vmatpush1.msra.mxu0 0.0
    %361 = vmatprep.subr.mxu0 0.0
    %362 = vmatpush1.msra.mxu0 0.0
    %363 = vmatprep.subr.mxu0 0.0
    %364 = vmatpush1.msra.mxu0 0.0
    %365 = vmatprep.subr.mxu0 0.0
    %366 = vmatpush1.msra.mxu0 0.0
    %367 = vmatprep.subr.mxu0 0.0
    %368 = vmatpush1.msra.mxu0 0.0
    %369 = vmatprep.subr.mxu0 0.0
    %370 = vmatpush1.msra.mxu0 0.0
    %371 = vmatprep.subr.mxu0 0.0
    %372 = vmatpush1.msra.mxu0 0.0
    %373 = vmatprep.subr.mxu0 0.0
    %374 = vmatpush1.msra.mxu0 0.0
    %375 = vmatprep.subr.mxu0 0.0
    %376 = vmatpush1.msra.mxu0 0.0
    %377 = vmatprep.subr.mxu0 0.0
    %378 = vmatpush1.msra.mxu0 0.0
    %379 = vmatprep.subr.mxu0 0.0
    %380 = vmatpush1.msra.mxu0 0.0
    %381 = vmatprep.subr.mxu0 0.0
    %382 = vmatpush1.msra.mxu0 0.0
    %383 = vmatprep.subr.mxu0 0.0
    %384 = vmatpush1.msra.mxu0 0.0
    %385 = vmatprep.subr.mxu0 0.0
    %386 = vmatpush1.msra.mxu0 0.0
    %387 = vmatprep.subr.mxu0 0.0
    %388 = vmatpush1.msra.mxu0 0.0
    %389 = vmatprep.subr.mxu0 0.0
    %390 = vmatpush1.msra.mxu0 0.0
    %391 = vmatprep.subr.mxu0 0.0
    %392 = vmatpush1.msra.mxu0 0.0
    %393 = vmatprep.subr.mxu0 0.0
    %394 = vmatpush1.msra.mxu0 0.0
    %395 = vmatprep.subr.mxu0 0.0
    %396 = vmatpush1.msra.mxu0 0.0
    %397 = vmatprep.subr.mxu0 0.0
    %398 = vmatpush1.msra.mxu0 0.0
    %399 = vmatprep.subr.mxu0 0.0
    %400 = vmatpush1.msra.mxu0 0.0
    %401 = vmatprep.subr.mxu0 0.0
    %402 = vmatpush1.msra.mxu0 0.0
    %403 = vmatprep.subr.mxu0 0.0
    %404 = vmatpush1.msra.mxu0 0.0
    %405 = vmatprep.subr.mxu0 0.0
    %406 = vmatpush1.msra.mxu0 0.0
    %407 = vmatprep.mubr.f32.mxu0 0.0
    %408 = vmatmul.mubr.f32.gmra.mrb[0].mxu0 %v338
    %v409 = vpop.f32.mrb[0].mxu0
    %v410 = vadd.f32 %v335, %v409
    %v411 = vpop.f32.mrb[0].mxu0
    %412 = vmatprep.mubr.f32.mxu0 0.0
    %413 = vmatmul.mubr.f32.gmra.mrb[0].mxu0 %v341
    %v414 = vpop.f32.mrb[0].mxu0
    %v415 = vadd.f32 %v335, %v414
    %v416 = vpop.f32.mrb[0].mxu0
    %417 = vdwg.mxu0
    %419 = vrot.lane.b32.xlu0 %v410, 96
    %v420 = vpop.permute.xlu0 %419
    %vm421 = vcmask 64512
    %v422 = vsel %vm421, %v410, 0
    %v424 = vsel %vm421, %v420, 0
    %426 = vmatprep.subr.mxu0 0.0
    %427 = vmatpush1.xpose.msra.mxu0 %v424
    %428 = vmatprep.subr.mxu0 0.0
    %429 = vmatpush1.xpose.msra.mxu0 0.0
    %430 = vmatprep.subr.mxu0 0.0
    %431 = vmatpush1.xpose.msra.mxu0 0.0
    %432 = vmatprep.subr.mxu0 0.0
    %433 = vmatpush1.xpose.msra.mxu0 0.0
    %434 = vmatprep.subr.mxu0 0.0
    %435 = vmatpush1.xpose.msra.mxu0 0.0
    %436 = vmatprep.subr.mxu0 0.0
    %437 = vmatpush1.xpose.msra.mxu0 0.0
    %438 = vmatprep.subr.mxu0 0.0
    %439 = vmatpush1.xpose.msra.mxu0 0.0
    %440 = vmatprep.subr.mxu0 0.0
    %441 = vmatpush1.xpose.msra.mxu0 0.0
    %442 = vmatprep.subr.mxu0 0.0
    %443 = vmatpush1.xpose.msra.mxu0 0.0
    %444 = vmatprep.subr.mxu0 0.0
    %445 = vmatpush1.xpose.msra.mxu0 0.0
    %446 = vmatprep.subr.mxu0 0.0
    %447 = vmatpush1.xpose.msra.mxu0 0.0
    %448 = vmatprep.subr.mxu0 0.0
    %449 = vmatpush1.xpose.msra.mxu0 0.0
    %450 = vmatprep.subr.mxu0 0.0
    %451 = vmatpush1.xpose.msra.mxu0 0.0
    %452 = vmatprep.subr.mxu0 0.0
    %453 = vmatpush1.xpose.msra.mxu0 0.0
    %454 = vmatprep.subr.mxu0 0.0
    %455 = vmatpush1.xpose.msra.mxu0 0.0
    %456 = vmatprep.subr.mxu0 0.0
    %457 = vmatpush1.xpose.msra.mxu0 0.0
    %458 = vmatprep.subr.mxu0 0.0
    %459 = vmatpush1.xpose.msra.mxu0 0.0
    %460 = vmatprep.subr.mxu0 0.0
    %461 = vmatpush1.xpose.msra.mxu0 0.0
    %462 = vmatprep.subr.mxu0 0.0
    %463 = vmatpush1.xpose.msra.mxu0 0.0
    %464 = vmatprep.subr.mxu0 0.0
    %465 = vmatpush1.xpose.msra.mxu0 0.0
    %466 = vmatprep.subr.mxu0 0.0
    %467 = vmatpush1.xpose.msra.mxu0 0.0
    %468 = vmatprep.subr.mxu0 0.0
    %469 = vmatpush1.xpose.msra.mxu0 0.0
    %470 = vmatprep.subr.mxu0 0.0
    %471 = vmatpush1.xpose.msra.mxu0 0.0
    %472 = vmatprep.subr.mxu0 0.0
    %473 = vmatpush1.xpose.msra.mxu0 0.0
    %474 = vmatprep.subr.mxu0 0.0
    %475 = vmatpush1.xpose.msra.mxu0 0.0
    %476 = vmatprep.subr.mxu0 0.0
    %477 = vmatpush1.xpose.msra.mxu0 0.0
    %478 = vmatprep.subr.mxu0 0.0
    %479 = vmatpush1.xpose.msra.mxu0 0.0
    %480 = vmatprep.subr.mxu0 0.0
    %481 = vmatpush1.xpose.msra.mxu0 0.0
    %482 = vmatprep.subr.mxu0 0.0
    %483 = vmatpush1.xpose.msra.mxu0 0.0
    %484 = vmatprep.subr.mxu0 0.0
    %485 = vmatpush1.xpose.msra.mxu0 0.0
    %486 = vmatprep.subr.mxu0 0.0
    %487 = vmatpush1.xpose.msra.mxu0 0.0
    %488 = vmatprep.subr.mxu0 0.0
    %489 = vmatpush1.xpose.msra.mxu0 0.0
    %490 = vmatprep.mubr.f32.mxu0 0.0
    %491 = vmatmul.mubr.f32.gmra.mrb[0].mxu0 %v422
    %v492 = vpop.f32.mrb[0].mxu0
    %v493 = vadd.f32 0.0, %v492
    %v494 = vpop.f32.mrb[0].mxu0
    %495 = vdwg.mxu0
    %v496 = vmul.f32 %v493, 0.35355338
    %v497 = vsel %vm421, %v496, -inf
    %498 = vmax.xlane.f32.xlu0 %v497
    %v499 = vpop.xlane.xlu0 %498
    %v500 = vsub.f32 %v496, %v499
    %v501 = vmul.f32 %v500, 1.442695
    %v502 = vpow.pop %v501
    %v503 = vsel %vm421, %v502, 0.0
    %504 = vadd.xlane.f32.xlu0 %v503
    %v505 = vpop.xlane.xlu0 %504
    %v506 = vrcp.pop %v505
    %v507 = vmul.f32 %v502, %v506
    %508 = vrot.lane.b32.xlu0 %v410, 64
    %v509 = vpop.permute.xlu0 %508
    %v512 = vsel %vm421, %v507, 0
    %514 = vmatprep.subr.mxu0 0.0
    %515 = vmatpush1.msra.mxu0 %v509
    %516 = vmatprep.subr.mxu0 0.0
    %517 = vmatpush1.msra.mxu0 0.0
    %518 = vmatprep.subr.mxu0 0.0
    %519 = vmatpush1.msra.mxu0 0.0
    %520 = vmatprep.subr.mxu0 0.0
    %521 = vmatpush1.msra.mxu0 0.0
    %522 = vmatprep.subr.mxu0 0.0
    %523 = vmatpush1.msra.mxu0 0.0
    %524 = vmatprep.subr.mxu0 0.0
    %525 = vmatpush1.msra.mxu0 0.0
    %526 = vmatprep.subr.mxu0 0.0
    %527 = vmatpush1.msra.mxu0 0.0
    %528 = vmatprep.subr.mxu0 0.0
    %529 = vmatpush1.msra.mxu0 0.0
    %530 = vmatprep.subr.mxu0 0.0
    %531 = vmatpush1.msra.mxu0 0.0
    %532 = vmatprep.subr.mxu0 0.0
    %533 = vmatpush1.msra.mxu0 0.0
    %534 = vmatprep.subr.mxu0 0.0
    %535 = vmatpush1.msra.mxu0 0.0
    %536 = vmatprep.subr.mxu0 0.0
    %537 = vmatpush1.msra.mxu0 0.0
    %538 = vmatprep.subr.mxu0 0.0
    %539 = vmatpush1.msra.mxu0 0.0
    %540 = vmatprep.subr.mxu0 0.0
    %541 = vmatpush1.msra.mxu0 0.0
    %542 = vmatprep.subr.mxu0 0.0
    %543 = vmatpush1.msra.mxu0 0.0
    %544 = vmatprep.subr.mxu0 0.0
    %545 = vmatpush1.msra.mxu0 0.0
    %546 = vmatprep.subr.mxu0 0.0
    %547 = vmatpush1.msra.mxu0 0.0
    %548 = vmatprep.subr.mxu0 0.0
    %549 = vmatpush1.msra.mxu0 0.0
    %550 = vmatprep.subr.mxu0 0.0
    %551 = vmatpush1.msra.mxu0 0.0
    %552 = vmatprep.subr.mxu0 0.0
    %553 = vmatpush1.msra.mxu0 0.0
    %554 = vmatprep.subr.mxu0 0.0
    %555 = vmatpush1.msra.mxu0 0.0
    %556 = vmatprep.subr.mxu0 0.0
    %557 = vmatpush1.msra.mxu0 0.0
    %558 = vmatprep.subr.mxu0 0.0
    %559 = vmatpush1.msra.mxu0 0.0
    %560 = vmatprep.subr.mxu0 0.0
    %561 = vmatpush1.msra.mxu0 0.0
    %562 = vmatprep.subr.mxu0 0.0
    %563 = vmatpush1.msra.mxu0 0.0
    %564 = vmatprep.subr.mxu0 0.0
    %565 = vmatpush1.msra.mxu0 0.0
    %566 = vmatprep.subr.mxu0 0.0
    %567 = vmatpush1.msra.mxu0 0.0
    %568 = vmatprep.subr.mxu0 0.0
    %569 = vmatpush1.msra.mxu0 0.0
    %570 = vmatprep.subr.mxu0 0.0
    %571 = vmatpush1.msra.mxu0 0.0
    %572 = vmatprep.subr.mxu0 0.0
    %573 = vmatpush1.msra.mxu0 0.0
    %574 = vmatprep.subr.mxu0 0.0
    %575 = vmatpush1.msra.mxu0 0.0
    %576 = vmatprep.subr.mxu0 0.0
    %577 = vmatpush1.msra.mxu0 0.0
    %578 = vmatprep.mubr.f32.mxu0 0.0
    %579 = vmatmul.mubr.f32.gmra.mrb[0].mxu0 %v512
    %v580 = vpop.f32.mrb[0].mxu0
    %v581 = vadd.f32 0.0, %v580
    %v582 = vpop.f32.mrb[0].mxu0
    %583 = vdwg.mxu0
    %584 = vrot.lane.b32.xlu0 %v410, 120
    %v585 = vpop.permute.xlu0 %584
    %586 = vrot.lane.b32.xlu0 %v410, 88
    %v587 = vpop.permute.xlu0 %586
    %v588 = vsel %vm421, %v585, 0
    %v590 = vsel %vm421, %v587, 0
    %592 = vmatprep.subr.mxu0 0.0
    %593 = vmatpush1.xpose.msra.mxu0 %v590
    %594 = vmatprep.subr.mxu0 0.0
    %595 = vmatpush1.xpose.msra.mxu0 0.0
    %596 = vmatprep.subr.mxu0 0.0
    %597 = vmatpush1.xpose.msra.mxu0 0.0
    %598 = vmatprep.subr.mxu0 0.0
    %599 = vmatpush1.xpose.msra.mxu0 0.0
    %600 = vmatprep.subr.mxu0 0.0
    %601 = vmatpush1.xpose.msra.mxu0 0.0
    %602 = vmatprep.subr.mxu0 0.0
    %603 = vmatpush1.xpose.msra.mxu0 0.0
    %604 = vmatprep.subr.mxu0 0.0
    %605 = vmatpush1.xpose.msra.mxu0 0.0
    %606 = vmatprep.subr.mxu0 0.0
    %607 = vmatpush1.xpose.msra.mxu0 0.0
    %608 = vmatprep.subr.mxu0 0.0
    %609 = vmatpush1.xpose.msra.mxu0 0.0
    %610 = vmatprep.subr.mxu0 0.0
    %611 = vmatpush1.xpose.msra.mxu0 0.0
    %612 = vmatprep.subr.mxu0 0.0
    %613 = vmatpush1.xpose.msra.mxu0 0.0
    %614 = vmatprep.subr.mxu0 0.0
    %615 = vmatpush1.xpose.msra.mxu0 0.0
    %616 = vmatprep.subr.mxu0 0.0
    %617 = vmatpush1.xpose.msra.mxu0 0.0
    %618 = vmatprep.subr.mxu0 0.0
    %619 = vmatpush1.xpose.msra.mxu0 0.0
    %620 = vmatprep.subr.mxu0 0.0
    %621 = vmatpush1.xpose.msra.mxu0 0.0
    %622 = vmatprep.subr.mxu0 0.0
    %623 = vmatpush1.xpose.msra.mxu0 0.0
    %624 = vmatprep.subr.mxu0 0.0
    %625 = vmatpush1.xpose.msra.mxu0 0.0
    %626 = vmatprep.subr.mxu0 0.0
    %627 = vmatpush1.xpose.msra.mxu0 0.0
    %628 = vmatprep.subr.mxu0 0.0
    %629 = vmatpush1.xpose.msra.mxu0 0.0
    %630 = vmatprep.subr.mxu0 0.0
    %631 = vmatpush1.xpose.msra.mxu0 0.0
    %632 = vmatprep.subr.mxu0 0.0
    %633 = vmatpush1.xpose.msra.mxu0 0.0
    %634 = vmatprep.subr.mxu0 0.0
    %635 = vmatpush1.xpose.msra.mxu0 0.0
    %636 = vmatprep.subr.mxu0 0.0
    %637 = vmatpush1.xpose.msra.mxu0 0.0
    %638 = vmatprep.subr.mxu0 0.0
    %639 = vmatpush1.xpose.msra.mxu0 0.0
    %640 = vmatprep.subr.mxu0 0.0
    %641 = vmatpush1.xpose.msra.mxu0 0.0
    %642 = vmatprep.subr.mxu0 0.0
    %643 = vmatpush1.xpose.msra.mxu0 0.0
    %644 = vmatprep.subr.mxu0 0.0
    %645 = vmatpush1.xpose.msra.mxu0 0.0
    %646 = vmatprep.subr.mxu0 0.0
    %647 = vmatpush1.xpose.msra.mxu0 0.0
    %648 = vmatprep.subr.mxu0 0.0
    %649 = vmatpush1.xpose.msra.mxu0 0.0
    %650 = vmatprep.subr.mxu0 0.0
    %651 = vmatpush1.xpose.msra.mxu0 0.0
    %652 = vmatprep.subr.mxu0 0.0
    %653 = vmatpush1.xpose.msra.mxu0 0.0
    %654 = vmatprep.subr.mxu0 0.0
    %655 = vmatpush1.xpose.msra.mxu0 0.0
    %656 = vmatprep.mubr.f32.mxu0 0.0
    %657 = vmatmul.mubr.f32.gmra.mrb[0].mxu0 %v588
    %v658 = vpop.f32.mrb[0].mxu0
    %v659 = vadd.f32 0.0, %v658
    %v660 = vpop.f32.mrb[0].mxu0
    %661 = vdwg.mxu0
    %v662 = vmul.f32 %v659, 0.35355338
    %v663 = vsel %vm421, %v662, -inf
    %664 = vmax.xlane.f32.xlu0 %v663
    %v665 = vpop.xlane.xlu0 %664
    %v666 = vsub.f32 %v662, %v665
    %v667 = vmul.f32 %v666, 1.442695
    %v668 = vpow.pop %v667
    %v669 = vsel %vm421, %v668, 0.0
    %670 = vadd.xlane.f32.xlu0 %v669
    %v671 = vpop.xlane.xlu0 %670
    %v672 = vrcp.pop %v671
    %v673 = vmul.f32 %v668, %v672
    %674 = vrot.lane.b32.xlu0 %v410, 56
    %v675 = vpop.permute.xlu0 %674
    %v678 = vsel %vm421, %v673, 0
    %680 = vmatprep.subr.mxu0 0.0
    %681 = vmatpush1.msra.mxu0 %v675
    %682 = vmatprep.subr.mxu0 0.0
    %683 = vmatpush1.msra.mxu0 0.0
    %684 = vmatprep.subr.mxu0 0.0
    %685 = vmatpush1.msra.mxu0 0.0
    %686 = vmatprep.subr.mxu0 0.0
    %687 = vmatpush1.msra.mxu0 0.0
    %688 = vmatprep.subr.mxu0 0.0
    %689 = vmatpush1.msra.mxu0 0.0
    %690 = vmatprep.subr.mxu0 0.0
    %691 = vmatpush1.msra.mxu0 0.0
    %692 = vmatprep.subr.mxu0 0.0
    %693 = vmatpush1.msra.mxu0 0.0
    %694 = vmatprep.subr.mxu0 0.0
    %695 = vmatpush1.msra.mxu0 0.0
    %696 = vmatprep.subr.mxu0 0.0
    %697 = vmatpush1.msra.mxu0 0.0
    %698 = vmatprep.subr.mxu0 0.0
    %699 = vmatpush1.msra.mxu0 0.0
    %700 = vmatprep.subr.mxu0 0.0
    %701 = vmatpush1.msra.mxu0 0.0
    %702 = vmatprep.subr.mxu0 0.0
    %703 = vmatpush1.msra.mxu0 0.0
    %704 = vmatprep.subr.mxu0 0.0
    %705 = vmatpush1.msra.mxu0 0.0
    %706 = vmatprep.subr.mxu0 0.0
    %707 = vmatpush1.msra.mxu0 0.0
    %708 = vmatprep.subr.mxu0 0.0
    %709 = vmatpush1.msra.mxu0 0.0
    %710 = vmatprep.subr.mxu0 0.0
    %711 = vmatpush1.msra.mxu0 0.0
    %712 = vmatprep.subr.mxu0 0.0
    %713 = vmatpush1.msra.mxu0 0.0
    %714 = vmatprep.subr.mxu0 0.0
    %715 = vmatpush1.msra.mxu0 0.0
    %716 = vmatprep.subr.mxu0 0.0
    %717 = vmatpush1.msra.mxu0 0.0
    %718 = vmatprep.subr.mxu0 0.0
    %719 = vmatpush1.msra.mxu0 0.0
    %720 = vmatprep.subr.mxu0 0.0
    %721 = vmatpush1.msra.mxu0 0.0
    %722 = vmatprep.subr.mxu0 0.0
    %723 = vmatpush1.msra.mxu0 0.0
    %724 = vmatprep.subr.mxu0 0.0
    %725 = vmatpush1.msra.mxu0 0.0
    %726 = vmatprep.subr.mxu0 0.0
    %727 = vmatpush1.msra.mxu0 0.0
    %728 = vmatprep.subr.mxu0 0.0
    %729 = vmatpush1.msra.mxu0 0.0
    %730 = vmatprep.subr.mxu0 0.0
    %731 = vmatpush1.msra.mxu0 0.0
    %732 = vmatprep.subr.mxu0 0.0
    %733 = vmatpush1.msra.mxu0 0.0
    %734 = vmatprep.subr.mxu0 0.0
    %735 = vmatpush1.msra.mxu0 0.0
    %736 = vmatprep.subr.mxu0 0.0
    %737 = vmatpush1.msra.mxu0 0.0
    %738 = vmatprep.subr.mxu0 0.0
    %739 = vmatpush1.msra.mxu0 0.0
    %740 = vmatprep.subr.mxu0 0.0
    %741 = vmatpush1.msra.mxu0 0.0
    %742 = vmatprep.subr.mxu0 0.0
    %743 = vmatpush1.msra.mxu0 0.0
    %744 = vmatprep.mubr.f32.mxu0 0.0
    %745 = vmatmul.mubr.f32.gmra.mrb[0].mxu0 %v678
    %v746 = vpop.f32.mrb[0].mxu0
    %v747 = vadd.f32 0.0, %v746
    %v748 = vpop.f32.mrb[0].mxu0
    %749 = vdwg.mxu0
    %750 = vrot.lane.b32.xlu0 %v410, 112
    %v751 = vpop.permute.xlu0 %750
    %752 = vrot.lane.b32.xlu0 %v410, 80
    %v753 = vpop.permute.xlu0 %752
    %v754 = vsel %vm421, %v751, 0
    %v756 = vsel %vm421, %v753, 0
    %758 = vmatprep.subr.mxu0 0.0
    %759 = vmatpush1.xpose.msra.mxu0 %v756
    %760 = vmatprep.subr.mxu0 0.0
    %761 = vmatpush1.xpose.msra.mxu0 0.0
    %762 = vmatprep.subr.mxu0 0.0
    %763 = vmatpush1.xpose.msra.mxu0 0.0
    %764 = vmatprep.subr.mxu0 0.0
    %765 = vmatpush1.xpose.msra.mxu0 0.0
    %766 = vmatprep.subr.mxu0 0.0
    %767 = vmatpush1.xpose.msra.mxu0 0.0
    %768 = vmatprep.subr.mxu0 0.0
    %769 = vmatpush1.xpose.msra.mxu0 0.0
    %770 = vmatprep.subr.mxu0 0.0
    %771 = vmatpush1.xpose.msra.mxu0 0.0
    %772 = vmatprep.subr.mxu0 0.0
    %773 = vmatpush1.xpose.msra.mxu0 0.0
    %774 = vmatprep.subr.mxu0 0.0
    %775 = vmatpush1.xpose.msra.mxu0 0.0
    %776 = vmatprep.subr.mxu0 0.0
    %777 = vmatpush1.xpose.msra.mxu0 0.0
    %778 = vmatprep.subr.mxu0 0.0
    %779 = vmatpush1.xpose.msra.mxu0 0.0
    %780 = vmatprep.subr.mxu0 0.0
    %781 = vmatpush1.xpose.msra.mxu0 0.0
    %782 = vmatprep.subr.mxu0 0.0
    %783 = vmatpush1.xpose.msra.mxu0 0.0
    %784 = vmatprep.subr.mxu0 0.0
    %785 = vmatpush1.xpose.msra.mxu0 0.0
    %786 = vmatprep.subr.mxu0 0.0
    %787 = vmatpush1.xpose.msra.mxu0 0.0
    %788 = vmatprep.subr.mxu0 0.0
    %789 = vmatpush1.xpose.msra.mxu0 0.0
    %790 = vmatprep.subr.mxu0 0.0
    %791 = vmatpush1.xpose.msra.mxu0 0.0
    %792 = vmatprep.subr.mxu0 0.0
    %793 = vmatpush1.xpose.msra.mxu0 0.0
    %794 = vmatprep.subr.mxu0 0.0
    %795 = vmatpush1.xpose.msra.mxu0 0.0
    %796 = vmatprep.subr.mxu0 0.0
    %797 = vmatpush1.xpose.msra.mxu0 0.0
    %798 = vmatprep.subr.mxu0 0.0
    %799 = vmatpush1.xpose.msra.mxu0 0.0
    %800 = vmatprep.subr.mxu0 0.0
    %801 = vmatpush1.xpose.msra.mxu0 0.0
    %802 = vmatprep.subr.mxu0 0.0
    %803 = vmatpush1.xpose.msra.mxu0 0.0
    %804 = vmatprep.subr.mxu0 0.0
    %805 = vmatpush1.xpose.msra.mxu0 0.0
    %806 = vmatprep.subr.mxu0 0.0
    %807 = vmatpush1.xpose.msra.mxu0 0.0
    %808 = vmatprep.subr.mxu0 0.0
    %809 = vmatpush1.xpose.msra.mxu0 0.0
    %810 = vmatprep.subr.mxu0 0.0
    %811 = vmatpush1.xpose.msra.mxu0 0.0
    %812 = vmatprep.subr.mxu0 0.0
    %813 = vmatpush1.xpose.msra.mxu0 0.0
    %814 = vmatprep.subr.mxu0 0.0
    %815 = vmatpush1.xpose.msra.mxu0 0.0
    %816 = vmatprep.subr.mxu0 0.0
    %817 = vmatpush1.xpose.msra.mxu0 0.0
    %818 = vmatprep.subr.mxu0 0.0
    %819 = vmatpush1.xpose.msra.mxu0 0.0
    %820 = vmatprep.subr.mxu0 0.0
    %821 = vmatpush1.xpose.msra.mxu0 0.0
    %822 = vmatprep.mubr.f32.mxu0 0.0
    %823 = vmatmul.mubr.f32.gmra.mrb[0].mxu0 %v754
    %v824 = vpop.f32.mrb[0].mxu0
    %v825 = vadd.f32 0.0, %v824
    %v826 = vpop.f32.mrb[0].mxu0
    %827 = vdwg.mxu0
    %v828 = vmul.f32 %v825, 0.35355338
    %v829 = vsel %vm421, %v828, -inf
    %830 = vmax.xlane.f32.xlu0 %v829
    %v831 = vpop.xlane.xlu0 %830
    %v832 = vsub.f32 %v828, %v831
    %v833 = vmul.f32 %v832, 1.442695
    %v834 = vpow.pop %v833
    %v835 = vsel %vm421, %v834, 0.0
    %836 = vadd.xlane.f32.xlu0 %v835
    %v837 = vpop.xlane.xlu0 %836
    %v838 = vrcp.pop %v837
    %v839 = vmul.f32 %v834, %v838
    %840 = vrot.lane.b32.xlu0 %v410, 48
    %v841 = vpop.permute.xlu0 %840
    %v844 = vsel %vm421, %v839, 0
    %846 = vmatprep.subr.mxu0 0.0
    %847 = vmatpush1.msra.mxu0 %v841
    %848 = vmatprep.subr.mxu0 0.0
    %849 = vmatpush1.msra.mxu0 0.0
    %850 = vmatprep.subr.mxu0 0.0
    %851 = vmatpush1.msra.mxu0 0.0
    %852 = vmatprep.subr.mxu0 0.0
    %853 = vmatpush1.msra.mxu0 0.0
    %854 = vmatprep.subr.mxu0 0.0
    %855 = vmatpush1.msra.mxu0 0.0
    %856 = vmatprep.subr.mxu0 0.0
    %857 = vmatpush1.msra.mxu0 0.0
    %858 = vmatprep.subr.mxu0 0.0
    %859 = vmatpush1.msra.mxu0 0.0
    %860 = vmatprep.subr.mxu0 0.0
    %861 = vmatpush1.msra.mxu0 0.0
    %862 = vmatprep.subr.mxu0 0.0
    %863 = vmatpush1.msra.mxu0 0.0
    %864 = vmatprep.subr.mxu0 0.0
    %865 = vmatpush1.msra.mxu0 0.0
    %866 = vmatprep.subr.mxu0 0.0
    %867 = vmatpush1.msra.mxu0 0.0
    %868 = vmatprep.subr.mxu0 0.0
    %869 = vmatpush1.msra.mxu0 0.0
    %870 = vmatprep.subr.mxu0 0.0
    %871 = vmatpush1.msra.mxu0 0.0
    %872 = vmatprep.subr.mxu0 0.0
    %873 = vmatpush1.msra.mxu0 0.0
    %874 = vmatprep.subr.mxu0 0.0
    %875 = vmatpush1.msra.mxu0 0.0
    %876 = vmatprep.subr.mxu0 0.0
    %877 = vmatpush1.msra.mxu0 0.0
    %878 = vmatprep.subr.mxu0 0.0
    %879 = vmatpush1.msra.mxu0 0.0
    %880 = vmatprep.subr.mxu0 0.0
    %881 = vmatpush1.msra.mxu0 0.0
    %882 = vmatprep.subr.mxu0 0.0
    %883 = vmatpush1.msra.mxu0 0.0
    %884 = vmatprep.subr.mxu0 0.0
    %885 = vmatpush1.msra.mxu0 0.0
    %886 = vmatprep.subr.mxu0 0.0
    %887 = vmatpush1.msra.mxu0 0.0
    %888 = vmatprep.subr.mxu0 0.0
    %889 = vmatpush1.msra.mxu0 0.0
    %890 = vmatprep.subr.mxu0 0.0
    %891 = vmatpush1.msra.mxu0 0.0
    %892 = vmatprep.subr.mxu0 0.0
    %893 = vmatpush1.msra.mxu0 0.0
    %894 = vmatprep.subr.mxu0 0.0
    %895 = vmatpush1.msra.mxu0 0.0
    %896 = vmatprep.subr.mxu0 0.0
    %897 = vmatpush1.msra.mxu0 0.0
    %898 = vmatprep.subr.mxu0 0.0
    %899 = vmatpush1.msra.mxu0 0.0
    %900 = vmatprep.subr.mxu0 0.0
    %901 = vmatpush1.msra.mxu0 0.0
    %902 = vmatprep.subr.mxu0 0.0
    %903 = vmatpush1.msra.mxu0 0.0
    %904 = vmatprep.subr.mxu0 0.0
    %905 = vmatpush1.msra.mxu0 0.0
    %906 = vmatprep.subr.mxu0 0.0
    %907 = vmatpush1.msra.mxu0 0.0
    %908 = vmatprep.subr.mxu0 0.0
    %909 = vmatpush1.msra.mxu0 0.0
    %910 = vmatprep.mubr.f32.mxu0 0.0
    %911 = vmatmul.mubr.f32.gmra.mrb[0].mxu0 %v844
    %v912 = vpop.f32.mrb[0].mxu0
    %v913 = vadd.f32 0.0, %v912
    %v914 = vpop.f32.mrb[0].mxu0
    %915 = vdwg.mxu0
    %916 = vrot.lane.b32.xlu0 %v410, 104
    %v917 = vpop.permute.xlu0 %916
    %918 = vrot.lane.b32.xlu0 %v410, 72
    %v919 = vpop.permute.xlu0 %918
    %v920 = vsel %vm421, %v917, 0
    %v922 = vsel %vm421, %v919, 0
    %924 = vmatprep.subr.mxu0 0.0
    %925 = vmatpush1.xpose.msra.mxu0 %v922
    %926 = vmatprep.subr.mxu0 0.0
    %927 = vmatpush1.xpose.msra.mxu0 0.0
    %928 = vmatprep.subr.mxu0 0.0
    %929 = vmatpush1.xpose.msra.mxu0 0.0
    %930 = vmatprep.subr.mxu0 0.0
    %931 = vmatpush1.xpose.msra.mxu0 0.0
    %932 = vmatprep.subr.mxu0 0.0
    %933 = vmatpush1.xpose.msra.mxu0 0.0
    %934 = vmatprep.subr.mxu0 0.0
    %935 = vmatpush1.xpose.msra.mxu0 0.0
    %936 = vmatprep.subr.mxu0 0.0
    %937 = vmatpush1.xpose.msra.mxu0 0.0
    %938 = vmatprep.subr.mxu0 0.0
    %939 = vmatpush1.xpose.msra.mxu0 0.0
    %940 = vmatprep.subr.mxu0 0.0
    %941 = vmatpush1.xpose.msra.mxu0 0.0
    %942 = vmatprep.subr.mxu0 0.0
    %943 = vmatpush1.xpose.msra.mxu0 0.0
    %944 = vmatprep.subr.mxu0 0.0
    %945 = vmatpush1.xpose.msra.mxu0 0.0
    %946 = vmatprep.subr.mxu0 0.0
    %947 = vmatpush1.xpose.msra.mxu0 0.0
    %948 = vmatprep.subr.mxu0 0.0
    %949 = vmatpush1.xpose.msra.mxu0 0.0
    %950 = vmatprep.subr.mxu0 0.0
    %951 = vmatpush1.xpose.msra.mxu0 0.0
    %952 = vmatprep.subr.mxu0 0.0
    %953 = vmatpush1.xpose.msra.mxu0 0.0
    %954 = vmatprep.subr.mxu0 0.0
    %955 = vmatpush1.xpose.msra.mxu0 0.0
    %956 = vmatprep.subr.mxu0 0.0
    %957 = vmatpush1.xpose.msra.mxu0 0.0
    %958 = vmatprep.subr.mxu0 0.0
    %959 = vmatpush1.xpose.msra.mxu0 0.0
    %960 = vmatprep.subr.mxu0 0.0
    %961 = vmatpush1.xpose.msra.mxu0 0.0
    %962 = vmatprep.subr.mxu0 0.0
    %963 = vmatpush1.xpose.msra.mxu0 0.0
    %964 = vmatprep.subr.mxu0 0.0
    %965 = vmatpush1.xpose.msra.mxu0 0.0
    %966 = vmatprep.subr.mxu0 0.0
    %967 = vmatpush1.xpose.msra.mxu0 0.0
    %968 = vmatprep.subr.mxu0 0.0
    %969 = vmatpush1.xpose.msra.mxu0 0.0
    %970 = vmatprep.subr.mxu0 0.0
    %971 = vmatpush1.xpose.msra.mxu0 0.0
    %972 = vmatprep.subr.mxu0 0.0
    %973 = vmatpush1.xpose.msra.mxu0 0.0
    %974 = vmatprep.subr.mxu0 0.0
    %975 = vmatpush1.xpose.msra.mxu0 0.0
    %976 = vmatprep.subr.mxu0 0.0
    %977 = vmatpush1.xpose.msra.mxu0 0.0
    %978 = vmatprep.subr.mxu0 0.0
    %979 = vmatpush1.xpose.msra.mxu0 0.0
    %980 = vmatprep.subr.mxu0 0.0
    %981 = vmatpush1.xpose.msra.mxu0 0.0
    %982 = vmatprep.subr.mxu0 0.0
    %983 = vmatpush1.xpose.msra.mxu0 0.0
    %984 = vmatprep.subr.mxu0 0.0
    %985 = vmatpush1.xpose.msra.mxu0 0.0
    %986 = vmatprep.subr.mxu0 0.0
    %987 = vmatpush1.xpose.msra.mxu0 0.0
    %988 = vmatprep.mubr.f32.mxu0 0.0
    %989 = vmatmul.mubr.f32.gmra.mrb[0].mxu0 %v920
    %v990 = vpop.f32.mrb[0].mxu0
    %v991 = vadd.f32 0.0, %v990
    %v992 = vpop.f32.mrb[0].mxu0
    %993 = vdwg.mxu0
    %v994 = vmul.f32 %v991, 0.35355338
    %v995 = vsel %vm421, %v994, -inf
    %996 = vmax.xlane.f32.xlu0 %v995
    %v997 = vpop.xlane.xlu0 %996
    %v998 = vsub.f32 %v994, %v997
    %v999 = vmul.f32 %v998, 1.442695
    %v1000 = vpow.pop %v999
    %v1001 = vsel %vm421, %v1000, 0.0
    %1002 = vadd.xlane.f32.xlu0 %v1001
    %v1003 = vpop.xlane.xlu0 %1002
    %v1004 = vrcp.pop %v1003
    %v1005 = vmul.f32 %v1000, %v1004
    %1006 = vrot.lane.b32.xlu0 %v410, 40
    %v1007 = vpop.permute.xlu0 %1006
    %v1010 = vsel %vm421, %v1005, 0
    %1012 = vmatprep.subr.mxu0 0.0
    %1013 = vmatpush1.msra.mxu0 %v1007
    %1014 = vmatprep.subr.mxu0 0.0
    %1015 = vmatpush1.msra.mxu0 0.0
    %1016 = vmatprep.subr.mxu0 0.0
    %1017 = vmatpush1.msra.mxu0 0.0
    %1018 = vmatprep.subr.mxu0 0.0
    %1019 = vmatpush1.msra.mxu0 0.0
    %1020 = vmatprep.subr.mxu0 0.0
    %1021 = vmatpush1.msra.mxu0 0.0
    %1022 = vmatprep.subr.mxu0 0.0
    %1023 = vmatpush1.msra.mxu0 0.0
    %1024 = vmatprep.subr.mxu0 0.0
    %1025 = vmatpush1.msra.mxu0 0.0
    %1026 = vmatprep.subr.mxu0 0.0
    %1027 = vmatpush1.msra.mxu0 0.0
    %1028 = vmatprep.subr.mxu0 0.0
    %1029 = vmatpush1.msra.mxu0 0.0
    %1030 = vmatprep.subr.mxu0 0.0
    %1031 = vmatpush1.msra.mxu0 0.0
    %1032 = vmatprep.subr.mxu0 0.0
    %1033 = vmatpush1.msra.mxu0 0.0
    %1034 = vmatprep.subr.mxu0 0.0
    %1035 = vmatpush1.msra.mxu0 0.0
    %1036 = vmatprep.subr.mxu0 0.0
    %1037 = vmatpush1.msra.mxu0 0.0
    %1038 = vmatprep.subr.mxu0 0.0
    %1039 = vmatpush1.msra.mxu0 0.0
    %1040 = vmatprep.subr.mxu0 0.0
    %1041 = vmatpush1.msra.mxu0 0.0
    %1042 = vmatprep.subr.mxu0 0.0
    %1043 = vmatpush1.msra.mxu0 0.0
    %1044 = vmatprep.subr.mxu0 0.0
    %1045 = vmatpush1.msra.mxu0 0.0
    %1046 = vmatprep.subr.mxu0 0.0
    %1047 = vmatpush1.msra.mxu0 0.0
    %1048 = vmatprep.subr.mxu0 0.0
    %1049 = vmatpush1.msra.mxu0 0.0
    %1050 = vmatprep.subr.mxu0 0.0
    %1051 = vmatpush1.msra.mxu0 0.0
    %1052 = vmatprep.subr.mxu0 0.0
    %1053 = vmatpush1.msra.mxu0 0.0
    %1054 = vmatprep.subr.mxu0 0.0
    %1055 = vmatpush1.msra.mxu0 0.0
    %1056 = vmatprep.subr.mxu0 0.0
    %1057 = vmatpush1.msra.mxu0 0.0
    %1058 = vmatprep.subr.mxu0 0.0
    %1059 = vmatpush1.msra.mxu0 0.0
    %1060 = vmatprep.subr.mxu0 0.0
    %1061 = vmatpush1.msra.mxu0 0.0
    %1062 = vmatprep.subr.mxu0 0.0
    %1063 = vmatpush1.msra.mxu0 0.0
    %1064 = vmatprep.subr.mxu0 0.0
    %1065 = vmatpush1.msra.mxu0 0.0
    %1066 = vmatprep.subr.mxu0 0.0
    %1067 = vmatpush1.msra.mxu0 0.0
    %1068 = vmatprep.subr.mxu0 0.0
    %1069 = vmatpush1.msra.mxu0 0.0
    %1070 = vmatprep.subr.mxu0 0.0
    %1071 = vmatpush1.msra.mxu0 0.0
    %1072 = vmatprep.subr.mxu0 0.0
    %1073 = vmatpush1.msra.mxu0 0.0
    %1074 = vmatprep.subr.mxu0 0.0
    %1075 = vmatpush1.msra.mxu0 0.0
    %1076 = vmatprep.mubr.f32.mxu0 0.0
    %1077 = vmatmul.mubr.f32.gmra.mrb[0].mxu0 %v1010
    %v1078 = vpop.f32.mrb[0].mxu0
    %v1079 = vadd.f32 0.0, %v1078
    %v1080 = vpop.f32.mrb[0].mxu0
    %1081 = vdwg.mxu0
    %1083 = vrot.lane.b32.xlu0 %v747, 8
    %v1084 = vpop.permute.xlu0 %1083
    %1087 = vrot.lane.b32.xlu0 %v913, 16
    %v1088 = vpop.permute.xlu0 %1087
    %1091 = vrot.lane.b32.xlu0 %v1079, 24
    %v1092 = vpop.permute.xlu0 %1091
    %v1094 = vsel %vm421, %v581, %v1084
    %v1095 = vsel %vm166, %v1094, %v1088
    %vm1096 = vcmask 195584
    %v1097 = vsel %vm1096, %v1095, %v1092
    %1099 = vrot.lane.b32.xlu0 %v415, 96
    %v1100 = vpop.permute.xlu0 %1099
    %v1101 = vsel %vm421, %v415, 0
    %v1103 = vsel %vm421, %v1100, 0
    %1105 = vmatprep.subr.mxu0 0.0
    %1106 = vmatpush1.xpose.msra.mxu0 %v1103
    %1107 = vmatprep.subr.mxu0 0.0
    %1108 = vmatpush1.xpose.msra.mxu0 0.0
    %1109 = vmatprep.subr.mxu0 0.0
    %1110 = vmatpush1.xpose.msra.mxu0 0.0
    %1111 = vmatprep.subr.mxu0 0.0
    %1112 = vmatpush1.xpose.msra.mxu0 0.0
    %1113 = vmatprep.subr.mxu0 0.0
    %1114 = vmatpush1.xpose.msra.mxu0 0.0
    %1115 = vmatprep.subr.mxu0 0.0
    %1116 = vmatpush1.xpose.msra.mxu0 0.0
    %1117 = vmatprep.subr.mxu0 0.0
    %1118 = vmatpush1.xpose.msra.mxu0 0.0
    %1119 = vmatprep.subr.mxu0 0.0
    %1120 = vmatpush1.xpose.msra.mxu0 0.0
    %1121 = vmatprep.subr.mxu0 0.0
    %1122 = vmatpush1.xpose.msra.mxu0 0.0
    %1123 = vmatprep.subr.mxu0 0.0
    %1124 = vmatpush1.xpose.msra.mxu0 0.0
    %1125 = vmatprep.subr.mxu0 0.0
    %1126 = vmatpush1.xpose.msra.mxu0 0.0
    %1127 = vmatprep.subr.mxu0 0.0
    %1128 = vmatpush1.xpose.msra.mxu0 0.0
    %1129 = vmatprep.subr.mxu0 0.0
    %1130 = vmatpush1.xpose.msra.mxu0 0.0
    %1131 = vmatprep.subr.mxu0 0.0
    %1132 = vmatpush1.xpose.msra.mxu0 0.0
    %1133 = vmatprep.subr.mxu0 0.0
    %1134 = vmatpush1.xpose.msra.mxu0 0.0
    %1135 = vmatprep.subr.mxu0 0.0
    %1136 = vmatpush1.xpose.msra.mxu0 0.0
    %1137 = vmatprep.subr.mxu0 0.0
    %1138 = vmatpush1.xpose.msra.mxu0 0.0
    %1139 = vmatprep.subr.mxu0 0.0
    %1140 = vmatpush1.xpose.msra.mxu0 0.0
    %1141 = vmatprep.subr.mxu0 0.0
    %1142 = vmatpush1.xpose.msra.mxu0 0.0
    %1143 = vmatprep.subr.mxu0 0.0
    %1144 = vmatpush1.xpose.msra.mxu0 0.0
    %1145 = vmatprep.subr.mxu0 0.0
    %1146 = vmatpush1.xpose.msra.mxu0 0.0
    %1147 = vmatprep.subr.mxu0 0.0
    %1148 = vmatpush1.xpose.msra.mxu0 0.0
    %1149 = vmatprep.subr.mxu0 0.0
    %1150 = vmatpush1.xpose.msra.mxu0 0.0
    %1151 = vmatprep.subr.mxu0 0.0
    %1152 = vmatpush1.xpose.msra.mxu0 0.0
    %1153 = vmatprep.subr.mxu0 0.0
    %1154 = vmatpush1.xpose.msra.mxu0 0.0
    %1155 = vmatprep.subr.mxu0 0.0
    %1156 = vmatpush1.xpose.msra.mxu0 0.0
    %1157 = vmatprep.subr.mxu0 0.0
    %1158 = vmatpush1.xpose.msra.mxu0 0.0
    %1159 = vmatprep.subr.mxu0 0.0
    %1160 = vmatpush1.xpose.msra.mxu0 0.0
    %1161 = vmatprep.subr.mxu0 0.0
    %1162 = vmatpush1.xpose.msra.mxu0 0.0
    %1163 = vmatprep.subr.mxu0 0.0
    %1164 = vmatpush1.xpose.msra.mxu0 0.0
    %1165 = vmatprep.subr.mxu0 0.0
    %1166 = vmatpush1.xpose.msra.mxu0 0.0
    %1167 = vmatprep.subr.mxu0 0.0
    %1168 = vmatpush1.xpose.msra.mxu0 0.0
    %1169 = vmatprep.mubr.f32.mxu0 0.0
    %1170 = vmatmul.mubr.f32.gmra.mrb[0].mxu0 %v1101
    %v1171 = vpop.f32.mrb[0].mxu0
    %v1172 = vadd.f32 0.0, %v1171
    %v1173 = vpop.f32.mrb[0].mxu0
    %1174 = vdwg.mxu0
    %v1175 = vmul.f32 %v1172, 0.35355338
    %v1176 = vsel %vm421, %v1175, -inf
    %1177 = vmax.xlane.f32.xlu0 %v1176
    %v1178 = vpop.xlane.xlu0 %1177
    %v1179 = vsub.f32 %v1175, %v1178
    %v1180 = vmul.f32 %v1179, 1.442695
    %v1181 = vpow.pop %v1180
    %v1182 = vsel %vm421, %v1181, 0.0
    %1183 = vadd.xlane.f32.xlu0 %v1182
    %v1184 = vpop.xlane.xlu0 %1183
    %v1185 = vrcp.pop %v1184
    %v1186 = vmul.f32 %v1181, %v1185
    %1187 = vrot.lane.b32.xlu0 %v415, 64
    %v1188 = vpop.permute.xlu0 %1187
    %v1191 = vsel %vm421, %v1186, 0
    %1193 = vmatprep.subr.mxu0 0.0
    %1194 = vmatpush1.msra.mxu0 %v1188
    %1195 = vmatprep.subr.mxu0 0.0
    %1196 = vmatpush1.msra.mxu0 0.0
    %1197 = vmatprep.subr.mxu0 0.0
    %1198 = vmatpush1.msra.mxu0 0.0
    %1199 = vmatprep.subr.mxu0 0.0
    %1200 = vmatpush1.msra.mxu0 0.0
    %1201 = vmatprep.subr.mxu0 0.0
    %1202 = vmatpush1.msra.mxu0 0.0
    %1203 = vmatprep.subr.mxu0 0.0
    %1204 = vmatpush1.msra.mxu0 0.0
    %1205 = vmatprep.subr.mxu0 0.0
    %1206 = vmatpush1.msra.mxu0 0.0
    %1207 = vmatprep.subr.mxu0 0.0
    %1208 = vmatpush1.msra.mxu0 0.0
    %1209 = vmatprep.subr.mxu0 0.0
    %1210 = vmatpush1.msra.mxu0 0.0
    %1211 = vmatprep.subr.mxu0 0.0
    %1212 = vmatpush1.msra.mxu0 0.0
    %1213 = vmatprep.subr.mxu0 0.0
    %1214 = vmatpush1.msra.mxu0 0.0
    %1215 = vmatprep.subr.mxu0 0.0
    %1216 = vmatpush1.msra.mxu0 0.0
    %1217 = vmatprep.subr.mxu0 0.0
    %1218 = vmatpush1.msra.mxu0 0.0
    %1219 = vmatprep.subr.mxu0 0.0
    %1220 = vmatpush1.msra.mxu0 0.0
    %1221 = vmatprep.subr.mxu0 0.0
    %1222 = vmatpush1.msra.mxu0 0.0
    %1223 = vmatprep.subr.mxu0 0.0
    %1224 = vmatpush1.msra.mxu0 0.0
    %1225 = vmatprep.subr.mxu0 0.0
    %1226 = vmatpush1.msra.mxu0 0.0
    %1227 = vmatprep.subr.mxu0 0.0
    %1228 = vmatpush1.msra.mxu0 0.0
    %1229 = vmatprep.subr.mxu0 0.0
    %1230 = vmatpush1.msra.mxu0 0.0
    %1231 = vmatprep.subr.mxu0 0.0
    %1232 = vmatpush1.msra.mxu0 0.0
    %1233 = vmatprep.subr.mxu0 0.0
    %1234 = vmatpush1.msra.mxu0 0.0
    %1235 = vmatprep.subr.mxu0 0.0
    %1236 = vmatpush1.msra.mxu0 0.0
    %1237 = vmatprep.subr.mxu0 0.0
    %1238 = vmatpush1.msra.mxu0 0.0
    %1239 = vmatprep.subr.mxu0 0.0
    %1240 = vmatpush1.msra.mxu0 0.0
    %1241 = vmatprep.subr.mxu0 0.0
    %1242 = vmatpush1.msra.mxu0 0.0
    %1243 = vmatprep.subr.mxu0 0.0
    %1244 = vmatpush1.msra.mxu0 0.0
    %1245 = vmatprep.subr.mxu0 0.0
    %1246 = vmatpush1.msra.mxu0 0.0
    %1247 = vmatprep.subr.mxu0 0.0
    %1248 = vmatpush1.msra.mxu0 0.0
    %1249 = vmatprep.subr.mxu0 0.0
    %1250 = vmatpush1.msra.mxu0 0.0
    %1251 = vmatprep.subr.mxu0 0.0
    %1252 = vmatpush1.msra.mxu0 0.0
    %1253 = vmatprep.subr.mxu0 0.0
    %1254 = vmatpush1.msra.mxu0 0.0
    %1255 = vmatprep.subr.mxu0 0.0
    %1256 = vmatpush1.msra.mxu0 0.0
    %1257 = vmatprep.mubr.f32.mxu0 0.0
    %1258 = vmatmul.mubr.f32.gmra.mrb[0].mxu0 %v1191
    %v1259 = vpop.f32.mrb[0].mxu0
    %v1260 = vadd.f32 0.0, %v1259
    %v1261 = vpop.f32.mrb[0].mxu0
    %1262 = vdwg.mxu0
    %1263 = vrot.lane.b32.xlu0 %v415, 120
    %v1264 = vpop.permute.xlu0 %1263
    %1265 = vrot.lane.b32.xlu0 %v415, 88
    %v1266 = vpop.permute.xlu0 %1265
    %v1267 = vsel %vm421, %v1264, 0
    %v1269 = vsel %vm421, %v1266, 0
    %1271 = vmatprep.subr.mxu0 0.0
    %1272 = vmatpush1.xpose.msra.mxu0 %v1269
    %1273 = vmatprep.subr.mxu0 0.0
    %1274 = vmatpush1.xpose.msra.mxu0 0.0
    %1275 = vmatprep.subr.mxu0 0.0
    %1276 = vmatpush1.xpose.msra.mxu0 0.0
    %1277 = vmatprep.subr.mxu0 0.0
    %1278 = vmatpush1.xpose.msra.mxu0 0.0
    %1279 = vmatprep.subr.mxu0 0.0
    %1280 = vmatpush1.xpose.msra.mxu0 0.0
    %1281 = vmatprep.subr.mxu0 0.0
    %1282 = vmatpush1.xpose.msra.mxu0 0.0
    %1283 = vmatprep.subr.mxu0 0.0
    %1284 = vmatpush1.xpose.msra.mxu0 0.0
    %1285 = vmatprep.subr.mxu0 0.0
    %1286 = vmatpush1.xpose.msra.mxu0 0.0
    %1287 = vmatprep.subr.mxu0 0.0
    %1288 = vmatpush1.xpose.msra.mxu0 0.0
    %1289 = vmatprep.subr.mxu0 0.0
    %1290 = vmatpush1.xpose.msra.mxu0 0.0
    %1291 = vmatprep.subr.mxu0 0.0
    %1292 = vmatpush1.xpose.msra.mxu0 0.0
    %1293 = vmatprep.subr.mxu0 0.0
    %1294 = vmatpush1.xpose.msra.mxu0 0.0
    %1295 = vmatprep.subr.mxu0 0.0
    %1296 = vmatpush1.xpose.msra.mxu0 0.0
    %1297 = vmatprep.subr.mxu0 0.0
    %1298 = vmatpush1.xpose.msra.mxu0 0.0
    %1299 = vmatprep.subr.mxu0 0.0
    %1300 = vmatpush1.xpose.msra.mxu0 0.0
    %1301 = vmatprep.subr.mxu0 0.0
    %1302 = vmatpush1.xpose.msra.mxu0 0.0
    %1303 = vmatprep.subr.mxu0 0.0
    %1304 = vmatpush1.xpose.msra.mxu0 0.0
    %1305 = vmatprep.subr.mxu0 0.0
    %1306 = vmatpush1.xpose.msra.mxu0 0.0
    %1307 = vmatprep.subr.mxu0 0.0
    %1308 = vmatpush1.xpose.msra.mxu0 0.0
    %1309 = vmatprep.subr.mxu0 0.0
    %1310 = vmatpush1.xpose.msra.mxu0 0.0
    %1311 = vmatprep.subr.mxu0 0.0
    %1312 = vmatpush1.xpose.msra.mxu0 0.0
    %1313 = vmatprep.subr.mxu0 0.0
    %1314 = vmatpush1.xpose.msra.mxu0 0.0
    %1315 = vmatprep.subr.mxu0 0.0
    %1316 = vmatpush1.xpose.msra.mxu0 0.0
    %1317 = vmatprep.subr.mxu0 0.0
    %1318 = vmatpush1.xpose.msra.mxu0 0.0
    %1319 = vmatprep.subr.mxu0 0.0
    %1320 = vmatpush1.xpose.msra.mxu0 0.0
    %1321 = vmatprep.subr.mxu0 0.0
    %1322 = vmatpush1.xpose.msra.mxu0 0.0
    %1323 = vmatprep.subr.mxu0 0.0
    %1324 = vmatpush1.xpose.msra.mxu0 0.0
    %1325 = vmatprep.subr.mxu0 0.0
    %1326 = vmatpush1.xpose.msra.mxu0 0.0
    %1327 = vmatprep.subr.mxu0 0.0
    %1328 = vmatpush1.xpose.msra.mxu0 0.0
    %1329 = vmatprep.subr.mxu0 0.0
    %1330 = vmatpush1.xpose.msra.mxu0 0.0
    %1331 = vmatprep.subr.mxu0 0.0
    %1332 = vmatpush1.xpose.msra.mxu0 0.0
    %1333 = vmatprep.subr.mxu0 0.0
    %1334 = vmatpush1.xpose.msra.mxu0 0.0
    %1335 = vmatprep.mubr.f32.mxu0 0.0
    %1336 = vmatmul.mubr.f32.gmra.mrb[0].mxu0 %v1267
    %v1337 = vpop.f32.mrb[0].mxu0
    %v1338 = vadd.f32 0.0, %v1337
    %v1339 = vpop.f32.mrb[0].mxu0
    %1340 = vdwg.mxu0
    %v1341 = vmul.f32 %v1338, 0.35355338
    %v1342 = vsel %vm421, %v1341, -inf
    %1343 = vmax.xlane.f32.xlu0 %v1342
    %v1344 = vpop.xlane.xlu0 %1343
    %v1345 = vsub.f32 %v1341, %v1344
    %v1346 = vmul.f32 %v1345, 1.442695
    %v1347 = vpow.pop %v1346
    %v1348 = vsel %vm421, %v1347, 0.0
    %1349 = vadd.xlane.f32.xlu0 %v1348
    %v1350 = vpop.xlane.xlu0 %1349
    %v1351 = vrcp.pop %v1350
    %v1352 = vmul.f32 %v1347, %v1351
    %1353 = vrot.lane.b32.xlu0 %v415, 56
    %v1354 = vpop.permute.xlu0 %1353
    %v1357 = vsel %vm421, %v1352, 0
    %1359 = vmatprep.subr.mxu0 0.0
    %1360 = vmatpush1.msra.mxu0 %v1354
    %1361 = vmatprep.subr.mxu0 0.0
    %1362 = vmatpush1.msra.mxu0 0.0
    %1363 = vmatprep.subr.mxu0 0.0
    %1364 = vmatpush1.msra.mxu0 0.0
    %1365 = vmatprep.subr.mxu0 0.0
    %1366 = vmatpush1.msra.mxu0 0.0
    %1367 = vmatprep.subr.mxu0 0.0
    %1368 = vmatpush1.msra.mxu0 0.0
    %1369 = vmatprep.subr.mxu0 0.0
    %1370 = vmatpush1.msra.mxu0 0.0
    %1371 = vmatprep.subr.mxu0 0.0
    %1372 = vmatpush1.msra.mxu0 0.0
    %1373 = vmatprep.subr.mxu0 0.0
    %1374 = vmatpush1.msra.mxu0 0.0
    %1375 = vmatprep.subr.mxu0 0.0
    %1376 = vmatpush1.msra.mxu0 0.0
    %1377 = vmatprep.subr.mxu0 0.0
    %1378 = vmatpush1.msra.mxu0 0.0
    %1379 = vmatprep.subr.mxu0 0.0
    %1380 = vmatpush1.msra.mxu0 0.0
    %1381 = vmatprep.subr.mxu0 0.0
    %1382 = vmatpush1.msra.mxu0 0.0
    %1383 = vmatprep.subr.mxu0 0.0
    %1384 = vmatpush1.msra.mxu0 0.0
    %1385 = vmatprep.subr.mxu0 0.0
    %1386 = vmatpush1.msra.mxu0 0.0
    %1387 = vmatprep.subr.mxu0 0.0
    %1388 = vmatpush1.msra.mxu0 0.0
    %1389 = vmatprep.subr.mxu0 0.0
    %1390 = vmatpush1.msra.mxu0 0.0
    %1391 = vmatprep.subr.mxu0 0.0
    %1392 = vmatpush1.msra.mxu0 0.0
    %1393 = vmatprep.subr.mxu0 0.0
    %1394 = vmatpush1.msra.mxu0 0.0
    %1395 = vmatprep.subr.mxu0 0.0
    %1396 = vmatpush1.msra.mxu0 0.0
    %1397 = vmatprep.subr.mxu0 0.0
    %1398 = vmatpush1.msra.mxu0 0.0
    %1399 = vmatprep.subr.mxu0 0.0
    %1400 = vmatpush1.msra.mxu0 0.0
    %1401 = vmatprep.subr.mxu0 0.0
    %1402 = vmatpush1.msra.mxu0 0.0
    %1403 = vmatprep.subr.mxu0 0.0
    %1404 = vmatpush1.msra.mxu0 0.0
    %1405 = vmatprep.subr.mxu0 0.0
    %1406 = vmatpush1.msra.mxu0 0.0
    %1407 = vmatprep.subr.mxu0 0.0
    %1408 = vmatpush1.msra.mxu0 0.0
    %1409 = vmatprep.subr.mxu0 0.0
    %1410 = vmatpush1.msra.mxu0 0.0
    %1411 = vmatprep.subr.mxu0 0.0
    %1412 = vmatpush1.msra.mxu0 0.0
    %1413 = vmatprep.subr.mxu0 0.0
    %1414 = vmatpush1.msra.mxu0 0.0
    %1415 = vmatprep.subr.mxu0 0.0
    %1416 = vmatpush1.msra.mxu0 0.0
    %1417 = vmatprep.subr.mxu0 0.0
    %1418 = vmatpush1.msra.mxu0 0.0
    %1419 = vmatprep.subr.mxu0 0.0
    %1420 = vmatpush1.msra.mxu0 0.0
    %1421 = vmatprep.subr.mxu0 0.0
    %1422 = vmatpush1.msra.mxu0 0.0
    %1423 = vmatprep.mubr.f32.mxu0 0.0
    %1424 = vmatmul.mubr.f32.gmra.mrb[0].mxu0 %v1357
    %v1425 = vpop.f32.mrb[0].mxu0
    %v1426 = vadd.f32 0.0, %v1425
    %v1427 = vpop.f32.mrb[0].mxu0
    %1428 = vdwg.mxu0
    %1429 = vrot.lane.b32.xlu0 %v415, 112
    %v1430 = vpop.permute.xlu0 %1429
    %1431 = vrot.lane.b32.xlu0 %v415, 80
    %v1432 = vpop.permute.xlu0 %1431
    %v1433 = vsel %vm421, %v1430, 0
    %v1435 = vsel %vm421, %v1432, 0
    %1437 = vmatprep.subr.mxu0 0.0
    %1438 = vmatpush1.xpose.msra.mxu0 %v1435
    %1439 = vmatprep.subr.mxu0 0.0
    %1440 = vmatpush1.xpose.msra.mxu0 0.0
    %1441 = vmatprep.subr.mxu0 0.0
    %1442 = vmatpush1.xpose.msra.mxu0 0.0
    %1443 = vmatprep.subr.mxu0 0.0
    %1444 = vmatpush1.xpose.msra.mxu0 0.0
    %1445 = vmatprep.subr.mxu0 0.0
    %1446 = vmatpush1.xpose.msra.mxu0 0.0
    %1447 = vmatprep.subr.mxu0 0.0
    %1448 = vmatpush1.xpose.msra.mxu0 0.0
    %1449 = vmatprep.subr.mxu0 0.0
    %1450 = vmatpush1.xpose.msra.mxu0 0.0
    %1451 = vmatprep.subr.mxu0 0.0
    %1452 = vmatpush1.xpose.msra.mxu0 0.0
    %1453 = vmatprep.subr.mxu0 0.0
    %1454 = vmatpush1.xpose.msra.mxu0 0.0
    %1455 = vmatprep.subr.mxu0 0.0
    %1456 = vmatpush1.xpose.msra.mxu0 0.0
    %1457 = vmatprep.subr.mxu0 0.0
    %1458 = vmatpush1.xpose.msra.mxu0 0.0
    %1459 = vmatprep.subr.mxu0 0.0
    %1460 = vmatpush1.xpose.msra.mxu0 0.0
    %1461 = vmatprep.subr.mxu0 0.0
    %1462 = vmatpush1.xpose.msra.mxu0 0.0
    %1463 = vmatprep.subr.mxu0 0.0
    %1464 = vmatpush1.xpose.msra.mxu0 0.0
    %1465 = vmatprep.subr.mxu0 0.0
    %1466 = vmatpush1.xpose.msra.mxu0 0.0
    %1467 = vmatprep.subr.mxu0 0.0
    %1468 = vmatpush1.xpose.msra.mxu0 0.0
    %1469 = vmatprep.subr.mxu0 0.0
    %1470 = vmatpush1.xpose.msra.mxu0 0.0
    %1471 = vmatprep.subr.mxu0 0.0
    %1472 = vmatpush1.xpose.msra.mxu0 0.0
    %1473 = vmatprep.subr.mxu0 0.0
    %1474 = vmatpush1.xpose.msra.mxu0 0.0
    %1475 = vmatprep.subr.mxu0 0.0
    %1476 = vmatpush1.xpose.msra.mxu0 0.0
    %1477 = vmatprep.subr.mxu0 0.0
    %1478 = vmatpush1.xpose.msra.mxu0 0.0
    %1479 = vmatprep.subr.mxu0 0.0
    %1480 = vmatpush1.xpose.msra.mxu0 0.0
    %1481 = vmatprep.subr.mxu0 0.0
    %1482 = vmatpush1.xpose.msra.mxu0 0.0
    %1483 = vmatprep.subr.mxu0 0.0
    %1484 = vmatpush1.xpose.msra.mxu0 0.0
    %1485 = vmatprep.subr.mxu0 0.0
    %1486 = vmatpush1.xpose.msra.mxu0 0.0
    %1487 = vmatprep.subr.mxu0 0.0
    %1488 = vmatpush1.xpose.msra.mxu0 0.0
    %1489 = vmatprep.subr.mxu0 0.0
    %1490 = vmatpush1.xpose.msra.mxu0 0.0
    %1491 = vmatprep.subr.mxu0 0.0
    %1492 = vmatpush1.xpose.msra.mxu0 0.0
    %1493 = vmatprep.subr.mxu0 0.0
    %1494 = vmatpush1.xpose.msra.mxu0 0.0
    %1495 = vmatprep.subr.mxu0 0.0
    %1496 = vmatpush1.xpose.msra.mxu0 0.0
    %1497 = vmatprep.subr.mxu0 0.0
    %1498 = vmatpush1.xpose.msra.mxu0 0.0
    %1499 = vmatprep.subr.mxu0 0.0
    %1500 = vmatpush1.xpose.msra.mxu0 0.0
    %1501 = vmatprep.mubr.f32.mxu0 0.0
    %1502 = vmatmul.mubr.f32.gmra.mrb[0].mxu0 %v1433
    %v1503 = vpop.f32.mrb[0].mxu0
    %v1504 = vadd.f32 0.0, %v1503
    %v1505 = vpop.f32.mrb[0].mxu0
    %1506 = vdwg.mxu0
    %v1507 = vmul.f32 %v1504, 0.35355338
    %v1508 = vsel %vm421, %v1507, -inf
    %1509 = vmax.xlane.f32.xlu0 %v1508
    %v1510 = vpop.xlane.xlu0 %1509
    %v1511 = vsub.f32 %v1507, %v1510
    %v1512 = vmul.f32 %v1511, 1.442695
    %v1513 = vpow.pop %v1512
    %v1514 = vsel %vm421, %v1513, 0.0
    %1515 = vadd.xlane.f32.xlu0 %v1514
    %v1516 = vpop.xlane.xlu0 %1515
    %v1517 = vrcp.pop %v1516
    %v1518 = vmul.f32 %v1513, %v1517
    %1519 = vrot.lane.b32.xlu0 %v415, 48
    %v1520 = vpop.permute.xlu0 %1519
    %v1523 = vsel %vm421, %v1518, 0
    %1525 = vmatprep.subr.mxu0 0.0
    %1526 = vmatpush1.msra.mxu0 %v1520
    %1527 = vmatprep.subr.mxu0 0.0
    %1528 = vmatpush1.msra.mxu0 0.0
    %1529 = vmatprep.subr.mxu0 0.0
    %1530 = vmatpush1.msra.mxu0 0.0
    %1531 = vmatprep.subr.mxu0 0.0
    %1532 = vmatpush1.msra.mxu0 0.0
    %1533 = vmatprep.subr.mxu0 0.0
    %1534 = vmatpush1.msra.mxu0 0.0
    %1535 = vmatprep.subr.mxu0 0.0
    %1536 = vmatpush1.msra.mxu0 0.0
    %1537 = vmatprep.subr.mxu0 0.0
    %1538 = vmatpush1.msra.mxu0 0.0
    %1539 = vmatprep.subr.mxu0 0.0
    %1540 = vmatpush1.msra.mxu0 0.0
    %1541 = vmatprep.subr.mxu0 0.0
    %1542 = vmatpush1.msra.mxu0 0.0
    %1543 = vmatprep.subr.mxu0 0.0
    %1544 = vmatpush1.msra.mxu0 0.0
    %1545 = vmatprep.subr.mxu0 0.0
    %1546 = vmatpush1.msra.mxu0 0.0
    %1547 = vmatprep.subr.mxu0 0.0
    %1548 = vmatpush1.msra.mxu0 0.0
    %1549 = vmatprep.subr.mxu0 0.0
    %1550 = vmatpush1.msra.mxu0 0.0
    %1551 = vmatprep.subr.mxu0 0.0
    %1552 = vmatpush1.msra.mxu0 0.0
    %1553 = vmatprep.subr.mxu0 0.0
    %1554 = vmatpush1.msra.mxu0 0.0
    %1555 = vmatprep.subr.mxu0 0.0
    %1556 = vmatpush1.msra.mxu0 0.0
    %1557 = vmatprep.subr.mxu0 0.0
    %1558 = vmatpush1.msra.mxu0 0.0
    %1559 = vmatprep.subr.mxu0 0.0
    %1560 = vmatpush1.msra.mxu0 0.0
    %1561 = vmatprep.subr.mxu0 0.0
    %1562 = vmatpush1.msra.mxu0 0.0
    %1563 = vmatprep.subr.mxu0 0.0
    %1564 = vmatpush1.msra.mxu0 0.0
    %1565 = vmatprep.subr.mxu0 0.0
    %1566 = vmatpush1.msra.mxu0 0.0
    %1567 = vmatprep.subr.mxu0 0.0
    %1568 = vmatpush1.msra.mxu0 0.0
    %1569 = vmatprep.subr.mxu0 0.0
    %1570 = vmatpush1.msra.mxu0 0.0
    %1571 = vmatprep.subr.mxu0 0.0
    %1572 = vmatpush1.msra.mxu0 0.0
    %1573 = vmatprep.subr.mxu0 0.0
    %1574 = vmatpush1.msra.mxu0 0.0
    %1575 = vmatprep.subr.mxu0 0.0
    %1576 = vmatpush1.msra.mxu0 0.0
    %1577 = vmatprep.subr.mxu0 0.0
    %1578 = vmatpush1.msra.mxu0 0.0
    %1579 = vmatprep.subr.mxu0 0.0
    %1580 = vmatpush1.msra.mxu0 0.0
    %1581 = vmatprep.subr.mxu0 0.0
    %1582 = vmatpush1.msra.mxu0 0.0
    %1583 = vmatprep.subr.mxu0 0.0
    %1584 = vmatpush1.msra.mxu0 0.0
    %1585 = vmatprep.subr.mxu0 0.0
    %1586 = vmatpush1.msra.mxu0 0.0
    %1587 = vmatprep.subr.mxu0 0.0
    %1588 = vmatpush1.msra.mxu0 0.0
    %1589 = vmatprep.mubr.f32.mxu0 0.0
    %1590 = vmatmul.mubr.f32.gmra.mrb[0].mxu0 %v1523
    %v1591 = vpop.f32.mrb[0].mxu0
    %v1592 = vadd.f32 0.0, %v1591
    %v1593 = vpop.f32.mrb[0].mxu0
    %1594 = vdwg.mxu0
    %1595 = vrot.lane.b32.xlu0 %v415, 104
    %v1596 = vpop.permute.xlu0 %1595
    %1597 = vrot.lane.b32.xlu0 %v415, 72
    %v1598 = vpop.permute.xlu0 %1597
    %v1599 = vsel %vm421, %v1596, 0
    %v1601 = vsel %vm421, %v1598, 0
    %1603 = vmatprep.subr.mxu0 0.0
    %1604 = vmatpush1.xpose.msra.mxu0 %v1601
    %1605 = vmatprep.subr.mxu0 0.0
    %1606 = vmatpush1.xpose.msra.mxu0 0.0
    %1607 = vmatprep.subr.mxu0 0.0
    %1608 = vmatpush1.xpose.msra.mxu0 0.0
    %1609 = vmatprep.subr.mxu0 0.0
    %1610 = vmatpush1.xpose.msra.mxu0 0.0
    %1611 = vmatprep.subr.mxu0 0.0
    %1612 = vmatpush1.xpose.msra.mxu0 0.0
    %1613 = vmatprep.subr.mxu0 0.0
    %1614 = vmatpush1.xpose.msra.mxu0 0.0
    %1615 = vmatprep.subr.mxu0 0.0
    %1616 = vmatpush1.xpose.msra.mxu0 0.0
    %1617 = vmatprep.subr.mxu0 0.0
    %1618 = vmatpush1.xpose.msra.mxu0 0.0
    %1619 = vmatprep.subr.mxu0 0.0
    %1620 = vmatpush1.xpose.msra.mxu0 0.0
    %1621 = vmatprep.subr.mxu0 0.0
    %1622 = vmatpush1.xpose.msra.mxu0 0.0
    %1623 = vmatprep.subr.mxu0 0.0
    %1624 = vmatpush1.xpose.msra.mxu0 0.0
    %1625 = vmatprep.subr.mxu0 0.0
    %1626 = vmatpush1.xpose.msra.mxu0 0.0
    %1627 = vmatprep.subr.mxu0 0.0
    %1628 = vmatpush1.xpose.msra.mxu0 0.0
    %1629 = vmatprep.subr.mxu0 0.0
    %1630 = vmatpush1.xpose.msra.mxu0 0.0
    %1631 = vmatprep.subr.mxu0 0.0
    %1632 = vmatpush1.xpose.msra.mxu0 0.0
    %1633 = vmatprep.subr.mxu0 0.0
    %1634 = vmatpush1.xpose.msra.mxu0 0.0
    %1635 = vmatprep.subr.mxu0 0.0
    %1636 = vmatpush1.xpose.msra.mxu0 0.0
    %1637 = vmatprep.subr.mxu0 0.0
    %1638 = vmatpush1.xpose.msra.mxu0 0.0
    %1639 = vmatprep.subr.mxu0 0.0
    %1640 = vmatpush1.xpose.msra.mxu0 0.0
    %1641 = vmatprep.subr.mxu0 0.0
    %1642 = vmatpush1.xpose.msra.mxu0 0.0
    %1643 = vmatprep.subr.mxu0 0.0
    %1644 = vmatpush1.xpose.msra.mxu0 0.0
    %1645 = vmatprep.subr.mxu0 0.0
    %1646 = vmatpush1.xpose.msra.mxu0 0.0
    %1647 = vmatprep.subr.mxu0 0.0
    %1648 = vmatpush1.xpose.msra.mxu0 0.0
    %1649 = vmatprep.subr.mxu0 0.0
    %1650 = vmatpush1.xpose.msra.mxu0 0.0
    %1651 = vmatprep.subr.mxu0 0.0
    %1652 = vmatpush1.xpose.msra.mxu0 0.0
    %1653 = vmatprep.subr.mxu0 0.0
    %1654 = vmatpush1.xpose.msra.mxu0 0.0
    %1655 = vmatprep.subr.mxu0 0.0
    %1656 = vmatpush1.xpose.msra.mxu0 0.0
    %1657 = vmatprep.subr.mxu0 0.0
    %1658 = vmatpush1.xpose.msra.mxu0 0.0
    %1659 = vmatprep.subr.mxu0 0.0
    %1660 = vmatpush1.xpose.msra.mxu0 0.0
    %1661 = vmatprep.subr.mxu0 0.0
    %1662 = vmatpush1.xpose.msra.mxu0 0.0
    %1663 = vmatprep.subr.mxu0 0.0
    %1664 = vmatpush1.xpose.msra.mxu0 0.0
    %1665 = vmatprep.subr.mxu0 0.0
    %1666 = vmatpush1.xpose.msra.mxu0 0.0
    %1667 = vmatprep.mubr.f32.mxu0 0.0
    %1668 = vmatmul.mubr.f32.gmra.mrb[0].mxu0 %v1599
    %v1669 = vpop.f32.mrb[0].mxu0
    %v1670 = vadd.f32 0.0, %v1669
    %v1671 = vpop.f32.mrb[0].mxu0
    %1672 = vdwg.mxu0
    %v1673 = vmul.f32 %v1670, 0.35355338
    %v1674 = vsel %vm421, %v1673, -inf
    %1675 = vmax.xlane.f32.xlu0 %v1674
    %v1676 = vpop.xlane.xlu0 %1675
    %v1677 = vsub.f32 %v1673, %v1676
    %v1678 = vmul.f32 %v1677, 1.442695
    %v1679 = vpow.pop %v1678
    %v1680 = vsel %vm421, %v1679, 0.0
    %1681 = vadd.xlane.f32.xlu0 %v1680
    %v1682 = vpop.xlane.xlu0 %1681
    %v1683 = vrcp.pop %v1682
    %v1684 = vmul.f32 %v1679, %v1683
    %1685 = vrot.lane.b32.xlu0 %v415, 40
    %v1686 = vpop.permute.xlu0 %1685
    %v1689 = vsel %vm421, %v1684, 0
    %1691 = vmatprep.subr.mxu0 0.0
    %1692 = vmatpush1.msra.mxu0 %v1686
    %1693 = vmatprep.subr.mxu0 0.0
    %1694 = vmatpush1.msra.mxu0 0.0
    %1695 = vmatprep.subr.mxu0 0.0
    %1696 = vmatpush1.msra.mxu0 0.0
    %1697 = vmatprep.subr.mxu0 0.0
    %1698 = vmatpush1.msra.mxu0 0.0
    %1699 = vmatprep.subr.mxu0 0.0
    %1700 = vmatpush1.msra.mxu0 0.0
    %1701 = vmatprep.subr.mxu0 0.0
    %1702 = vmatpush1.msra.mxu0 0.0
    %1703 = vmatprep.subr.mxu0 0.0
    %1704 = vmatpush1.msra.mxu0 0.0
    %1705 = vmatprep.subr.mxu0 0.0
    %1706 = vmatpush1.msra.mxu0 0.0
    %1707 = vmatprep.subr.mxu0 0.0
    %1708 = vmatpush1.msra.mxu0 0.0
    %1709 = vmatprep.subr.mxu0 0.0
    %1710 = vmatpush1.msra.mxu0 0.0
    %1711 = vmatprep.subr.mxu0 0.0
    %1712 = vmatpush1.msra.mxu0 0.0
    %1713 = vmatprep.subr.mxu0 0.0
    %1714 = vmatpush1.msra.mxu0 0.0
    %1715 = vmatprep.subr.mxu0 0.0
    %1716 = vmatpush1.msra.mxu0 0.0
    %1717 = vmatprep.subr.mxu0 0.0
    %1718 = vmatpush1.msra.mxu0 0.0
    %1719 = vmatprep.subr.mxu0 0.0
    %1720 = vmatpush1.msra.mxu0 0.0
    %1721 = vmatprep.subr.mxu0 0.0
    %1722 = vmatpush1.msra.mxu0 0.0
    %1723 = vmatprep.subr.mxu0 0.0
    %1724 = vmatpush1.msra.mxu0 0.0
    %1725 = vmatprep.subr.mxu0 0.0
    %1726 = vmatpush1.msra.mxu0 0.0
    %1727 = vmatprep.subr.mxu0 0.0
    %1728 = vmatpush1.msra.mxu0 0.0
    %1729 = vmatprep.subr.mxu0 0.0
    %1730 = vmatpush1.msra.mxu0 0.0
    %1731 = vmatprep.subr.mxu0 0.0
    %1732 = vmatpush1.msra.mxu0 0.0
    %1733 = vmatprep.subr.mxu0 0.0
    %1734 = vmatpush1.msra.mxu0 0.0
    %1735 = vmatprep.subr.mxu0 0.0
    %1736 = vmatpush1.msra.mxu0 0.0
    %1737 = vmatprep.subr.mxu0 0.0
    %1738 = vmatpush1.msra.mxu0 0.0
    %1739 = vmatprep.subr.mxu0 0.0
    %1740 = vmatpush1.msra.mxu0 0.0
    %1741 = vmatprep.subr.mxu0 0.0
    %1742 = vmatpush1.msra.mxu0 0.0
    %1743 = vmatprep.subr.mxu0 0.0
    %1744 = vmatpush1.msra.mxu0 0.0
    %1745 = vmatprep.subr.mxu0 0.0
    %1746 = vmatpush1.msra.mxu0 0.0
    %1747 = vmatprep.subr.mxu0 0.0
    %1748 = vmatpush1.msra.mxu0 0.0
    %1749 = vmatprep.subr.mxu0 0.0
    %1750 = vmatpush1.msra.mxu0 0.0
    %1751 = vmatprep.subr.mxu0 0.0
    %1752 = vmatpush1.msra.mxu0 0.0
    %1753 = vmatprep.subr.mxu0 0.0
    %1754 = vmatpush1.msra.mxu0 0.0
    %1755 = vmatprep.mubr.f32.mxu0 0.0
    %1756 = vmatmul.mubr.f32.gmra.mrb[0].mxu0 %v1689
    %v1757 = vpop.f32.mrb[0].mxu0
    %v1758 = vadd.f32 0.0, %v1757
    %v1759 = vpop.f32.mrb[0].mxu0
    %1760 = vdwg.mxu0
    %1762 = vrot.lane.b32.xlu0 %v1426, 8
    %v1763 = vpop.permute.xlu0 %1762
    %1766 = vrot.lane.b32.xlu0 %v1592, 16
    %v1767 = vpop.permute.xlu0 %1766
    %1770 = vrot.lane.b32.xlu0 %v1758, 24
    %v1771 = vpop.permute.xlu0 %1770
    %v1773 = vsel %vm421, %v1260, %v1763
    %v1774 = vsel %vm166, %v1773, %v1767
    %v1775 = vsel %vm1096, %v1774, %v1771
    %v1777 = vlaneseq
    %v1778 = vshrl.u32 %v1777, 7
    %v1779 = vsub.s32 0, %v1778
    %v1780 = vrot.slane %v263, %v1779
    %v1783 = vsel %vm291, %v1097, 0
    %v1786 = vsel %vm291, %v1775, 0
    %1788 = vmatprep.subr.mxu0 0.0
    %1789 = vmatpush1.msra.mxu0 %v259
    %1790 = vmatprep.subr.mxu0 0.0
    %1791 = vmatpush1.msra.mxu0 %v260
    %1792 = vmatprep.subr.mxu0 0.0
    %1793 = vmatpush1.msra.mxu0 %v261
    %1794 = vmatprep.subr.mxu0 0.0
    %1795 = vmatpush1.msra.mxu0 %v262
    %1796 = vmatprep.subr.mxu0 0.0
    %1797 = vmatpush1.msra.mxu0 0.0
    %1798 = vmatprep.subr.mxu0 0.0
    %1799 = vmatpush1.msra.mxu0 0.0
    %1800 = vmatprep.subr.mxu0 0.0
    %1801 = vmatpush1.msra.mxu0 0.0
    %1802 = vmatprep.subr.mxu0 0.0
    %1803 = vmatpush1.msra.mxu0 0.0
    %1804 = vmatprep.subr.mxu0 0.0
    %1805 = vmatpush1.msra.mxu0 0.0
    %1806 = vmatprep.subr.mxu0 0.0
    %1807 = vmatpush1.msra.mxu0 0.0
    %1808 = vmatprep.subr.mxu0 0.0
    %1809 = vmatpush1.msra.mxu0 0.0
    %1810 = vmatprep.subr.mxu0 0.0
    %1811 = vmatpush1.msra.mxu0 0.0
    %1812 = vmatprep.subr.mxu0 0.0
    %1813 = vmatpush1.msra.mxu0 0.0
    %1814 = vmatprep.subr.mxu0 0.0
    %1815 = vmatpush1.msra.mxu0 0.0
    %1816 = vmatprep.subr.mxu0 0.0
    %1817 = vmatpush1.msra.mxu0 0.0
    %1818 = vmatprep.subr.mxu0 0.0
    %1819 = vmatpush1.msra.mxu0 0.0
    %1820 = vmatprep.subr.mxu0 0.0
    %1821 = vmatpush1.msra.mxu0 0.0
    %1822 = vmatprep.subr.mxu0 0.0
    %1823 = vmatpush1.msra.mxu0 0.0
    %1824 = vmatprep.subr.mxu0 0.0
    %1825 = vmatpush1.msra.mxu0 0.0
    %1826 = vmatprep.subr.mxu0 0.0
    %1827 = vmatpush1.msra.mxu0 0.0
    %1828 = vmatprep.subr.mxu0 0.0
    %1829 = vmatpush1.msra.mxu0 0.0
    %1830 = vmatprep.subr.mxu0 0.0
    %1831 = vmatpush1.msra.mxu0 0.0
    %1832 = vmatprep.subr.mxu0 0.0
    %1833 = vmatpush1.msra.mxu0 0.0
    %1834 = vmatprep.subr.mxu0 0.0
    %1835 = vmatpush1.msra.mxu0 0.0
    %1836 = vmatprep.subr.mxu0 0.0
    %1837 = vmatpush1.msra.mxu0 0.0
    %1838 = vmatprep.subr.mxu0 0.0
    %1839 = vmatpush1.msra.mxu0 0.0
    %1840 = vmatprep.subr.mxu0 0.0
    %1841 = vmatpush1.msra.mxu0 0.0
    %1842 = vmatprep.subr.mxu0 0.0
    %1843 = vmatpush1.msra.mxu0 0.0
    %1844 = vmatprep.subr.mxu0 0.0
    %1845 = vmatpush1.msra.mxu0 0.0
    %1846 = vmatprep.subr.mxu0 0.0
    %1847 = vmatpush1.msra.mxu0 0.0
    %1848 = vmatprep.subr.mxu0 0.0
    %1849 = vmatpush1.msra.mxu0 0.0
    %1850 = vmatprep.subr.mxu0 0.0
    %1851 = vmatpush1.msra.mxu0 0.0
    %1852 = vmatprep.mubr.f32.mxu0 0.0
    %1853 = vmatmul.mubr.f32.gmra.mrb[0].mxu0 %v1783
    %v1854 = vpop.f32.mrb[0].mxu0
    %v1855 = vadd.f32 %v1780, %v1854
    %v1856 = vpop.f32.mrb[0].mxu0
    %1857 = vmatprep.mubr.f32.mxu0 0.0
    %1858 = vmatmul.mubr.f32.gmra.mrb[0].mxu0 %v1786
    %v1859 = vpop.f32.mrb[0].mxu0
    %v1860 = vadd.f32 %v1780, %v1859
    %v1861 = vpop.f32.mrb[0].mxu0
    %1862 = vdwg.mxu0
    %v1863 = vadd.f32 %v250, %v1855
    %v1864 = vadd.f32 %v251, %v1860
    %v1865 = vsel %vm291, %v1863, 0.0
    %1866 = vadd.xlane.f32.xlu0 %v1865
    %v1867 = vpop.xlane.xlu0 %1866
    %v1868 = vsel %vm291, %v1864, 0.0
    %1869 = vadd.xlane.f32.xlu0 %v1868
    %v1870 = vpop.xlane.xlu0 %1869
    %v1871 = vmul.f32 %v1867, %v298
    %v1872 = vmul.f32 %v1870, %v298
    %v1873 = vsub.f32 %v1863, %v1871
    %v1874 = vsub.f32 %v1864, %v1872
    %v1875 = vmul.f32 %v1873, %v1873
    %v1876 = vmul.f32 %v1874, %v1874
    %v1877 = vsel %vm291, %v1875, 0.0
    %1878 = vadd.xlane.f32.xlu0 %v1877
    %v1879 = vpop.xlane.xlu0 %1878
    %v1880 = vsel %vm291, %v1876, 0.0
    %1881 = vadd.xlane.f32.xlu0 %v1880
    %v1882 = vpop.xlane.xlu0 %1881
    %v1883 = vmul.f32 %v1879, %v298
    %v1884 = vmul.f32 %v1882, %v298
    %v1885 = vadd.f32 %v1883, 1e-05
    %v1886 = vadd.f32 %v1884, 1e-05
    %v1887 = vrsqrt.pop %v1885
    %v1888 = vrsqrt.pop %v1886
    %v1889 = vmul.f32 %v1873, %v1887
    %v1890 = vmul.f32 %v1874, %v1888
    %v1891 = vlaneseq
    %v1892 = vshrl.u32 %v1891, 7
    %v1893 = vsub.s32 1, %v1892
    %v1894 = vrot.slane %v252, %v1893
    %v1895 = vmul.f32 %v1889, %v1894
    %v1896 = vmul.f32 %v1890, %v1894
    %v1897 = vlaneseq
    %v1898 = vshrl.u32 %v1897, 7
    %v1899 = vsub.s32 1, %v1898
    %v1900 = vrot.slane %v253, %v1899
    %v1901 = vadd.f32 %v1895, %v1900
    %v1902 = vadd.f32 %v1896, %v1900
    %v1904 = vlaneseq
    %v1905 = vshrl.u32 %v1904, 7
    %v1906 = vsub.s32 0, %v1905
    %v1907 = vrot.slane %v268, %v1906
    %v1910 = vsel %vm291, %v1901, 0
    %v1913 = vsel %vm291, %v1902, 0
    %1915 = vmatprep.subr.mxu0 0.0
    %1916 = vmatpush1.msra.mxu0 %v264
    %1917 = vmatprep.subr.mxu0 0.0
    %1918 = vmatpush1.msra.mxu0 %v265
    %1919 = vmatprep.subr.mxu0 0.0
    %1920 = vmatpush1.msra.mxu0 %v266
    %1921 = vmatprep.subr.mxu0 0.0
    %1922 = vmatpush1.msra.mxu0 %v267
    %1923 = vmatprep.subr.mxu0 0.0
    %1924 = vmatpush1.msra.mxu0 0.0
    %1925 = vmatprep.subr.mxu0 0.0
    %1926 = vmatpush1.msra.mxu0 0.0
    %1927 = vmatprep.subr.mxu0 0.0
    %1928 = vmatpush1.msra.mxu0 0.0
    %1929 = vmatprep.subr.mxu0 0.0
    %1930 = vmatpush1.msra.mxu0 0.0
    %1931 = vmatprep.subr.mxu0 0.0
    %1932 = vmatpush1.msra.mxu0 0.0
    %1933 = vmatprep.subr.mxu0 0.0
    %1934 = vmatpush1.msra.mxu0 0.0
    %1935 = vmatprep.subr.mxu0 0.0
    %1936 = vmatpush1.msra.mxu0 0.0
    %1937 = vmatprep.subr.mxu0 0.0
    %1938 = vmatpush1.msra.mxu0 0.0
    %1939 = vmatprep.subr.mxu0 0.0
    %1940 = vmatpush1.msra.mxu0 0.0
    %1941 = vmatprep.subr.mxu0 0.0
    %1942 = vmatpush1.msra.mxu0 0.0
    %1943 = vmatprep.subr.mxu0 0.0
    %1944 = vmatpush1.msra.mxu0 0.0
    %1945 = vmatprep.subr.mxu0 0.0
    %1946 = vmatpush1.msra.mxu0 0.0
    %1947 = vmatprep.subr.mxu0 0.0
    %1948 = vmatpush1.msra.mxu0 0.0
    %1949 = vmatprep.subr.mxu0 0.0
    %1950 = vmatpush1.msra.mxu0 0.0
    %1951 = vmatprep.subr.mxu0 0.0
    %1952 = vmatpush1.msra.mxu0 0.0
    %1953 = vmatprep.subr.mxu0 0.0
    %1954 = vmatpush1.msra.mxu0 0.0
    %1955 = vmatprep.subr.mxu0 0.0
    %1956 = vmatpush1.msra.mxu0 0.0
    %1957 = vmatprep.subr.mxu0 0.0
    %1958 = vmatpush1.msra.mxu0 0.0
    %1959 = vmatprep.subr.mxu0 0.0
    %1960 = vmatpush1.msra.mxu0 0.0
    %1961 = vmatprep.subr.mxu0 0.0
    %1962 = vmatpush1.msra.mxu0 0.0
    %1963 = vmatprep.subr.mxu0 0.0
    %1964 = vmatpush1.msra.mxu0 0.0
    %1965 = vmatprep.subr.mxu0 0.0
    %1966 = vmatpush1.msra.mxu0 0.0
    %1967 = vmatprep.subr.mxu0 0.0
    %1968 = vmatpush1.msra.mxu0 0.0
    %1969 = vmatprep.subr.mxu0 0.0
    %1970 = vmatpush1.msra.mxu0 0.0
    %1971 = vmatprep.subr.mxu0 0.0
    %1972 = vmatpush1.msra.mxu0 0.0
    %1973 = vmatprep.subr.mxu0 0.0
    %1974 = vmatpush1.msra.mxu0 0.0
    %1975 = vmatprep.subr.mxu0 0.0
    %1976 = vmatpush1.msra.mxu0 0.0
    %1977 = vmatprep.subr.mxu0 0.0
    %1978 = vmatpush1.msra.mxu0 0.0
    %1979 = vmatprep.mubr.f32.mxu0 0.0
    %1980 = vmatmul.mubr.f32.gmra.mrb[0].mxu0 %v1910
    %v1981 = vpop.f32.mrb[0].mxu0
    %v1982 = vadd.f32 %v1907, %v1981
    %v1983 = vpop.f32.mrb[0].mxu0
    %1984 = vmatprep.mubr.f32.mxu0 0.0
    %1985 = vmatmul.mubr.f32.gmra.mrb[0].mxu0 %v1913
    %v1986 = vpop.f32.mrb[0].mxu0
    %v1987 = vadd.f32 %v1907, %v1986
    %v1988 = vpop.f32.mrb[0].mxu0
    %1989 = vdwg.mxu0
    %vm1990 = vcmask 15360
    %v1991 = vsel %vm1990, %v1982, -inf
    %1992 = vmax.xlane.f32.xlu0 %v1991
    %v1993 = vpop.xlane.xlu0 %1992
    %v1994 = vsel %vm1990, %v1987, -inf
    %1995 = vmax.xlane.f32.xlu0 %v1994
    %v1996 = vpop.xlane.xlu0 %1995
    %v1997 = vsub.f32 %v1982, %v1993
    %v1998 = vsub.f32 %v1987, %v1996
    %v1999 = vmul.f32 %v1997, 1.442695
    %v2000 = vpow.pop %v1999
    %v2001 = vmul.f32 %v1998, 1.442695
    %v2002 = vpow.pop %v2001
    %v2003 = vsel %vm1990, %v2000, 0.0
    %2004 = vadd.xlane.f32.xlu0 %v2003
    %v2005 = vpop.xlane.xlu0 %2004
    %v2006 = vsel %vm1990, %v2002, 0.0
    %2007 = vadd.xlane.f32.xlu0 %v2006
    %v2008 = vpop.xlane.xlu0 %2007
    %v2009 = vrcp.pop %v2005
    %v2010 = vmul.f32 %v2000, %v2009
    %v2011 = vrcp.pop %v2008
    %v2012 = vmul.f32 %v2002, %v2011
    %2015 = vrot.lane.b32.xlu0 %v2010, 1
    %v2016 = vpop.permute.xlu0 %2015
    %2017 = vrot.lane.b32.xlu0 %v2012, 1
    %v2018 = vpop.permute.xlu0 %2017
    %vm2021 = vcmp.gt.f32.partialorder %v2010, %v2016
    %vm2022 = vcmp.gt.f32.partialorder %v2012, %v2018
    %v2023 = vsel %vm2021, 1, 0
    %v2024 = vsel %vm2022, 1, 0
    %v2025 = vcvt.s32.f32 %v2023
    %v2026 = vcvt.s32.f32 %v2024
    %2027 = vrot.lane.b32.xlu0 %v2010, 127
    %v2028 = vpop.permute.xlu0 %2027
    %2029 = vrot.lane.b32.xlu0 %v2012, 127
    %v2030 = vpop.permute.xlu0 %2029
    %v2033 = vmax.f32 %v2010, %v2028
    %v2034 = vmax.f32 %v2012, %v2030
    %v2036 = vlaneseq
    %v2037 = vshrl.u32 %v2036, 7
    %v2038 = vsub.s32 0, %v2037
    %v2039 = vrot.slane %v273, %v2038
    %2041 = vmatprep.subr.mxu0 0.0
    %2042 = vmatpush1.msra.mxu0 %v269
    %2043 = vmatprep.subr.mxu0 0.0
    %2044 = vmatpush1.msra.mxu0 %v270
    %2045 = vmatprep.subr.mxu0 0.0
    %2046 = vmatpush1.msra.mxu0 %v271
    %2047 = vmatprep.subr.mxu0 0.0
    %2048 = vmatpush1.msra.mxu0 %v272
    %2049 = vmatprep.subr.mxu0 0.0
    %2050 = vmatpush1.msra.mxu0 0.0
    %2051 = vmatprep.subr.mxu0 0.0
    %2052 = vmatpush1.msra.mxu0 0.0
    %2053 = vmatprep.subr.mxu0 0.0
    %2054 = vmatpush1.msra.mxu0 0.0
    %2055 = vmatprep.subr.mxu0 0.0
    %2056 = vmatpush1.msra.mxu0 0.0
    %2057 = vmatprep.subr.mxu0 0.0
    %2058 = vmatpush1.msra.mxu0 0.0
    %2059 = vmatprep.subr.mxu0 0.0
    %2060 = vmatpush1.msra.mxu0 0.0
    %2061 = vmatprep.subr.mxu0 0.0
    %2062 = vmatpush1.msra.mxu0 0.0
    %2063 = vmatprep.subr.mxu0 0.0
    %2064 = vmatpush1.msra.mxu0 0.0
    %2065 = vmatprep.subr.mxu0 0.0
    %2066 = vmatpush1.msra.mxu0 0.0
    %2067 = vmatprep.subr.mxu0 0.0
    %2068 = vmatpush1.msra.mxu0 0.0
    %2069 = vmatprep.subr.mxu0 0.0
    %2070 = vmatpush1.msra.mxu0 0.0
    %2071 = vmatprep.subr.mxu0 0.0
    %2072 = vmatpush1.msra.mxu0 0.0
    %2073 = vmatprep.subr.mxu0 0.0
    %2074 = vmatpush1.msra.mxu0 0.0
    %2075 = vmatprep.subr.mxu0 0.0
    %2076 = vmatpush1.msra.mxu0 0.0
    %2077 = vmatprep.subr.mxu0 0.0
    %2078 = vmatpush1.msra.mxu0 0.0
    %2079 = vmatprep.subr.mxu0 0.0
    %2080 = vmatpush1.msra.mxu0 0.0
    %2081 = vmatprep.subr.mxu0 0.0
    %2082 = vmatpush1.msra.mxu0 0.0
    %2083 = vmatprep.subr.mxu0 0.0
    %2084 = vmatpush1.msra.mxu0 0.0
    %2085 = vmatprep.subr.mxu0 0.0
    %2086 = vmatpush1.msra.mxu0 0.0
    %2087 = vmatprep.subr.mxu0 0.0
    %2088 = vmatpush1.msra.mxu0 0.0
    %2089 = vmatprep.subr.mxu0 0.0
    %2090 = vmatpush1.msra.mxu0 0.0
    %2091 = vmatprep.subr.mxu0 0.0
    %2092 = vmatpush1.msra.mxu0 0.0
    %2093 = vmatprep.subr.mxu0 0.0
    %2094 = vmatpush1.msra.mxu0 0.0
    %2095 = vmatprep.subr.mxu0 0.0
    %2096 = vmatpush1.msra.mxu0 0.0
    %2097 = vmatprep.subr.mxu0 0.0
    %2098 = vmatpush1.msra.mxu0 0.0
    %2099 = vmatprep.subr.mxu0 0.0
    %2100 = vmatpush1.msra.mxu0 0.0
    %2101 = vmatprep.subr.mxu0 0.0
    %2102 = vmatpush1.msra.mxu0 0.0
    %2103 = vmatprep.subr.mxu0 0.0
    %2104 = vmatpush1.msra.mxu0 0.0
    %2105 = vmatprep.mubr.f32.mxu0 0.0
    %2106 = vmatmul.mubr.f32.gmra.mrb[0].mxu0 %v1910
    %v2107 = vpop.f32.mrb[0].mxu0
    %v2108 = vadd.f32 %v2039, %v2107
    %v2109 = vpop.f32.mrb[0].mxu0
    %2110 = vmatprep.mubr.f32.mxu0 0.0
    %2111 = vmatmul.mubr.f32.gmra.mrb[0].mxu0 %v1913
    %v2112 = vpop.f32.mrb[0].mxu0
    %v2113 = vadd.f32 %v2039, %v2112
    %v2114 = vpop.f32.mrb[0].mxu0
    %2115 = vdwg.mxu0
    %v2116 = vmax.f32 %v2108, 0.0
    %v2117 = vmax.f32 %v2113, 0.0
    %v2119 = vlaneseq
    %v2120 = vshrl.u32 %v2119, 7
    %v2121 = vsub.s32 0, %v2120
    %v2122 = vrot.slane %v290, %v2121
    %2124 = vmatprep.subr.mxu0 0.0
    %2125 = vmatpush1.msra.mxu0 %v274
    %2126 = vmatprep.subr.mxu0 0.0
    %2127 = vmatpush1.msra.mxu0 %v275
    %2128 = vmatprep.subr.mxu0 0.0
    %2129 = vmatpush1.msra.mxu0 %v276
    %2130 = vmatprep.subr.mxu0 0.0
    %2131 = vmatpush1.msra.mxu0 %v277
    %2132 = vmatprep.subr.mxu0 0.0
    %2133 = vmatpush1.msra.mxu0 %v278
    %2134 = vmatprep.subr.mxu0 0.0
    %2135 = vmatpush1.msra.mxu0 %v279
    %2136 = vmatprep.subr.mxu0 0.0
    %2137 = vmatpush1.msra.mxu0 %v280
    %2138 = vmatprep.subr.mxu0 0.0
    %2139 = vmatpush1.msra.mxu0 %v281
    %2140 = vmatprep.subr.mxu0 0.0
    %2141 = vmatpush1.msra.mxu0 %v282
    %2142 = vmatprep.subr.mxu0 0.0
    %2143 = vmatpush1.msra.mxu0 %v283
    %2144 = vmatprep.subr.mxu0 0.0
    %2145 = vmatpush1.msra.mxu0 %v284
    %2146 = vmatprep.subr.mxu0 0.0
    %2147 = vmatpush1.msra.mxu0 %v285
    %2148 = vmatprep.subr.mxu0 0.0
    %2149 = vmatpush1.msra.mxu0 %v286
    %2150 = vmatprep.subr.mxu0 0.0
    %2151 = vmatpush1.msra.mxu0 %v287
    %2152 = vmatprep.subr.mxu0 0.0
    %2153 = vmatpush1.msra.mxu0 %v288
    %2154 = vmatprep.subr.mxu0 0.0
    %2155 = vmatpush1.msra.mxu0 %v289
    %2156 = vmatprep.subr.mxu0 0.0
    %2157 = vmatpush1.msra.mxu0 0.0
    %2158 = vmatprep.subr.mxu0 0.0
    %2159 = vmatpush1.msra.mxu0 0.0
    %2160 = vmatprep.subr.mxu0 0.0
    %2161 = vmatpush1.msra.mxu0 0.0
    %2162 = vmatprep.subr.mxu0 0.0
    %2163 = vmatpush1.msra.mxu0 0.0
    %2164 = vmatprep.subr.mxu0 0.0
    %2165 = vmatpush1.msra.mxu0 0.0
    %2166 = vmatprep.subr.mxu0 0.0
    %2167 = vmatpush1.msra.mxu0 0.0
    %2168 = vmatprep.subr.mxu0 0.0
    %2169 = vmatpush1.msra.mxu0 0.0
    %2170 = vmatprep.subr.mxu0 0.0
    %2171 = vmatpush1.msra.mxu0 0.0
    %2172 = vmatprep.subr.mxu0 0.0
    %2173 = vmatpush1.msra.mxu0 0.0
    %2174 = vmatprep.subr.mxu0 0.0
    %2175 = vmatpush1.msra.mxu0 0.0
    %2176 = vmatprep.subr.mxu0 0.0
    %2177 = vmatpush1.msra.mxu0 0.0
    %2178 = vmatprep.subr.mxu0 0.0
    %2179 = vmatpush1.msra.mxu0 0.0
    %2180 = vmatprep.subr.mxu0 0.0
    %2181 = vmatpush1.msra.mxu0 0.0
    %2182 = vmatprep.subr.mxu0 0.0
    %2183 = vmatpush1.msra.mxu0 0.0
    %2184 = vmatprep.subr.mxu0 0.0
    %2185 = vmatpush1.msra.mxu0 0.0
    %2186 = vmatprep.subr.mxu0 0.0
    %2187 = vmatpush1.msra.mxu0 0.0
    %2188 = vmatprep.mubr.f32.mxu0 0.0
    %2189 = vmatmul.mubr.f32.gmra.mrb[0].mxu0 %v2116
    %v2190 = vpop.f32.mrb[0].mxu0
    %v2191 = vadd.f32 %v2122, %v2190
    %v2192 = vpop.f32.mrb[0].mxu0
    %2193 = vmatprep.mubr.f32.mxu0 0.0
    %2194 = vmatmul.mubr.f32.gmra.mrb[0].mxu0 %v2117
    %v2195 = vpop.f32.mrb[0].mxu0
    %v2196 = vadd.f32 %v2122, %v2195
    %v2197 = vpop.f32.mrb[0].mxu0
    %2198 = vdwg.mxu0
    %2200 = vset.pattern.permute.xlu0 1
    %2201 = vperm.xlu0 %2200, %v2025
    %v2202 = vpop.permute.xlu0 %2201
    %2205 = vset.pattern.permute.xlu0 1
    %2206 = vperm.xlu0 %2205, %v2026
    %v2207 = vpop.permute.xlu0 %2206
    %v2209 = vmul.f32 %v2202, %v2191
    %v2210 = vmul.f32 %v2207, %v2196
    %v2211 = vsub.f32 1.0, %v2025
    %v2212 = vsub.f32 1.0, %v2026
    %2214 = vset.pattern.permute.xlu0 1
    %2215 = vperm.xlu0 %2214, %v2211
    %v2216 = vpop.permute.xlu0 %2215
    %2219 = vset.pattern.permute.xlu0 1
    %2220 = vperm.xlu0 %2219, %v2212
    %v2221 = vpop.permute.xlu0 %2220
    %v2223 = vmul.f32 %v2216, %v2191
    %v2224 = vmul.f32 %v2221, %v2196
    %2227 = vrot.lane.b32.xlu0 %v2223, 32
    %v2228 = vpop.permute.xlu0 %2227
    %2229 = vrot.lane.b32.xlu0 %v2224, 32
    %v2230 = vpop.permute.xlu0 %2229
    %v2233 = vadd.f32 %v2209, %v2228
    %v2234 = vadd.f32 %v2210, %v2230
    %2235 = vrot.lane.b32.xlu0 %v2211, 127
    %v2236 = vpop.permute.xlu0 %2235
    %2237 = vrot.lane.b32.xlu0 %v2212, 127
    %v2238 = vpop.permute.xlu0 %2237
    %vm2241 = vcmask 7168
    %v2242 = vsel %vm2241, %v2236, %v2025
    %v2243 = vsel %vm2241, %v2238, %v2026
    %v2244 = vlaneseq
    %v2245 = vshrl.u32 %v2244, 7
    %v2246 = vadd.s32 %v2245, 8
    %v2247 = vlaneseq
    %v2248 = vand.u32 %v2247, 127
    %vm2249 = vcmp.ge.s32.totalorder %v2245, %v2248
    %vm2250 = vcmp.ge.s32.totalorder %v2246, %v2248
    %v2251 = vsel %vm2249, 1, 0
    %v2252 = vsel %vm2250, 1, 0
    %v2253 = vcvt.s32.f32 %v2251
    %v2254 = vcvt.s32.f32 %v2252
    %v2256 = vsel %vm166, %v2253, 0
    %v2259 = vsel %vm166, %v2254, 0
    %2261 = vmatprep.subr.mxu0 0.0
    %2262 = vmatpush1.msra.mxu0 %v2242
    %2263 = vmatprep.subr.mxu0 0.0
    %2264 = vmatpush1.msra.mxu0 %v2243
    %2265 = vmatprep.subr.mxu0 0.0
    %2266 = vmatpush1.msra.mxu0 0.0
    %2267 = vmatprep.subr.mxu0 0.0
    %2268 = vmatpush1.msra.mxu0 0.0
    %2269 = vmatprep.subr.mxu0 0.0
    %2270 = vmatpush1.msra.mxu0 0.0
    %2271 = vmatprep.subr.mxu0 0.0
    %2272 = vmatpush1.msra.mxu0 0.0
    %2273 = vmatprep.subr.mxu0 0.0
    %2274 = vmatpush1.msra.mxu0 0.0
    %2275 = vmatprep.subr.mxu0 0.0
    %2276 = vmatpush1.msra.mxu0 0.0
    %2277 = vmatprep.subr.mxu0 0.0
    %2278 = vmatpush1.msra.mxu0 0.0
    %2279 = vmatprep.subr.mxu0 0.0
    %2280 = vmatpush1.msra.mxu0 0.0
    %2281 = vmatprep.subr.mxu0 0.0
    %2282 = vmatpush1.msra.mxu0 0.0
    %2283 = vmatprep.subr.mxu0 0.0
    %2284 = vmatpush1.msra.mxu0 0.0
    %2285 = vmatprep.subr.mxu0 0.0
    %2286 = vmatpush1.msra.mxu0 0.0
    %2287 = vmatprep.subr.mxu0 0.0
    %2288 = vmatpush1.msra.mxu0 0.0
    %2289 = vmatprep.subr.mxu0 0.0
    %2290 = vmatpush1.msra.mxu0 0.0
    %2291 = vmatprep.subr.mxu0 0.0
    %2292 = vmatpush1.msra.mxu0 0.0
    %2293 = vmatprep.subr.mxu0 0.0
    %2294 = vmatpush1.msra.mxu0 0.0
    %2295 = vmatprep.subr.mxu0 0.0
    %2296 = vmatpush1.msra.mxu0 0.0
    %2297 = vmatprep.subr.mxu0 0.0
    %2298 = vmatpush1.msra.mxu0 0.0
    %2299 = vmatprep.subr.mxu0 0.0
    %2300 = vmatpush1.msra.mxu0 0.0
    %2301 = vmatprep.subr.mxu0 0.0
    %2302 = vmatpush1.msra.mxu0 0.0
    %2303 = vmatprep.subr.mxu0 0.0
    %2304 = vmatpush1.msra.mxu0 0.0
    %2305 = vmatprep.subr.mxu0 0.0
    %2306 = vmatpush1.msra.mxu0 0.0
    %2307 = vmatprep.subr.mxu0 0.0
    %2308 = vmatpush1.msra.mxu0 0.0
    %2309 = vmatprep.subr.mxu0 0.0
    %2310 = vmatpush1.msra.mxu0 0.0
    %2311 = vmatprep.subr.mxu0 0.0
    %2312 = vmatpush1.msra.mxu0 0.0
    %2313 = vmatprep.subr.mxu0 0.0
    %2314 = vmatpush1.msra.mxu0 0.0
    %2315 = vmatprep.subr.mxu0 0.0
    %2316 = vmatpush1.msra.mxu0 0.0
    %2317 = vmatprep.subr.mxu0 0.0
    %2318 = vmatpush1.msra.mxu0 0.0
    %2319 = vmatprep.subr.mxu0 0.0
    %2320 = vmatpush1.msra.mxu0 0.0
    %2321 = vmatprep.subr.mxu0 0.0
    %2322 = vmatpush1.msra.mxu0 0.0
    %2323 = vmatprep.subr.mxu0 0.0
    %2324 = vmatpush1.msra.mxu0 0.0
    %2325 = vmatprep.mubr.f32.mxu0 0.0
    %2326 = vmatmul.mubr.f32.gmra.mrb[0].mxu0 %v2256
    %v2327 = vpop.f32.mrb[0].mxu0
    %v2328 = vadd.f32 0.0, %v2327
    %v2329 = vpop.f32.mrb[0].mxu0
    %2330 = vmatprep.mubr.f32.mxu0 0.0
    %2331 = vmatmul.mubr.f32.gmra.mrb[0].mxu0 %v2259
    %v2332 = vpop.f32.mrb[0].mxu0
    %v2333 = vadd.f32 0.0, %v2332
    %v2334 = vpop.f32.mrb[0].mxu0
    %2335 = vdwg.mxu0
    %v2336 = vmul.f32 %v2328, %v2242
    %v2337 = vmul.f32 %v2333, %v2243
    %v2338 = vsel %vm1990, %v2336, 0.0
    %2339 = vadd.xlane.f32.xlu0 %v2338
    %v2340 = vpop.xlane.xlu0 %2339
    %v2341 = vsel %vm1990, %v2337, 0.0
    %2342 = vadd.xlane.f32.xlu0 %v2341
    %v2343 = vpop.xlane.xlu0 %2342
    %vm2344 = vcmp.le.f32.partialorder %v2340, 8.0
    %vm2345 = vcmp.le.f32.partialorder %v2343, 8.0
    %v2346 = vsel %vm2344, 1, 0
    %v2347 = vsel %vm2345, 1, 0
    %v2348 = vcvt.s32.f32 %v2346
    %v2349 = vcvt.s32.f32 %v2347
    %v2350 = vmul.f32 %v2348, %v2233
    %v2351 = vmul.f32 %v2349, %v2234
    %v2352 = vsub.f32 1.0, %v2348
    %v2353 = vsub.f32 1.0, %v2349
    %v2354 = vmul.f32 %v2352, %v1901
    %v2355 = vmul.f32 %v2353, %v1902
    %2358 = vrot.lane.b32.xlu0 %v2354, 32
    %v2359 = vpop.permute.xlu0 %2358
    %2360 = vrot.lane.b32.xlu0 %v2355, 32
    %v2361 = vpop.permute.xlu0 %2360
    %v2364 = vadd.f32 %v2350, %v2359
    %v2365 = vadd.f32 %v2351, %v2361
    %2367 = vset.pattern.permute.xlu0 0
    %2368 = vperm.xlu0 %2367, %v2033
    %v2369 = vpop.permute.xlu0 %2368
    %2372 = vset.pattern.permute.xlu0 0
    %2373 = vperm.xlu0 %2372, %v2034
    %v2374 = vpop.permute.xlu0 %2373
    %v2376 = vmul.f32 %v2364, %v2369
    %v2377 = vmul.f32 %v2365, %v2374
    %2380 = vrot.lane.b32.xlu0 %v2376, 96
    %v2381 = vpop.permute.xlu0 %2380
    %2382 = vrot.lane.b32.xlu0 %v2377, 96
    %v2383 = vpop.permute.xlu0 %2382
    %v2386 = vadd.f32 %v1863, %v2381
    %v2387 = vadd.f32 %v1864, %v2383
    %s2388 = scalar_lea.vmem %s9, 2
    %v2389 = vld [vmem:[%s2388] sm:$0x3]
    %s2390 = scalar_lea.vmem %s11, 2
    %v2391 = vld [vmem:[%s2390] sm:$0x3]
    %s2392 = scalar_lea.vmem %s13, 32
    %v2393 = vld [vmem:[%s2392] sm:$0xff]
    %v2394 = vld [vmem:[%s2392 + $0x8] sm:$0xff]
    %v2395 = vld [vmem:[%s2392 + $0x10] sm:$0xff]
    %v2396 = vld [vmem:[%s2392 + $0x18] sm:$0xff]
    %s2397 = scalar_lea.vmem %s15, 1
    %v2398 = vld [vmem:[%s2397] sm:$0x1]
    %s2399 = scalar_lea.vmem %s17, 32
    %v2400 = vld [vmem:[%s2399] sm:$0xff]
    %v2401 = vld [vmem:[%s2399 + $0x8] sm:$0xff]
    %v2402 = vld [vmem:[%s2399 + $0x10] sm:$0xff]
    %v2403 = vld [vmem:[%s2399 + $0x18] sm:$0xff]
    %s2404 = scalar_lea.vmem %s19, 1
    %v2405 = vld [vmem:[%s2404] sm:$0x1]
    %s2406 = scalar_lea.vmem %s21, 32
    %v2407 = vld [vmem:[%s2406] sm:$0xff]
    %v2408 = vld [vmem:[%s2406 + $0x8] sm:$0xff]
    %v2409 = vld [vmem:[%s2406 + $0x10] sm:$0xff]
    %v2410 = vld [vmem:[%s2406 + $0x18] sm:$0xff]
    %s2411 = scalar_lea.vmem %s23, 1
    %v2412 = vld [vmem:[%s2411] sm:$0x1]
    %s2413 = scalar_lea.vmem %s25, 32
    %v2414 = vld [vmem:[%s2413] sm:$0xff]
    %v2415 = vld [vmem:[%s2413 + $0x8] sm:$0xff]
    %v2416 = vld [vmem:[%s2413 + $0x10] sm:$0xff]
    %v2417 = vld [vmem:[%s2413 + $0x18] sm:$0xff]
    %s2418 = scalar_lea.vmem %s27, 1
    %v2419 = vld [vmem:[%s2418] sm:$0x1]
    %s2420 = scalar_lea.vmem %s29, 128
    %v2421 = vld [vmem:[%s2420] sm:$0xff]
    %v2422 = vld [vmem:[%s2420 + $0x8] sm:$0xff]
    %v2423 = vld [vmem:[%s2420 + $0x10] sm:$0xff]
    %v2424 = vld [vmem:[%s2420 + $0x18] sm:$0xff]
    %v2425 = vld [vmem:[%s2420 + $0x20] sm:$0xff]
    %v2426 = vld [vmem:[%s2420 + $0x28] sm:$0xff]
    %v2427 = vld [vmem:[%s2420 + $0x30] sm:$0xff]
    %v2428 = vld [vmem:[%s2420 + $0x38] sm:$0xff]
    %v2429 = vld [vmem:[%s2420 + $0x40] sm:$0xff]
    %v2430 = vld [vmem:[%s2420 + $0x48] sm:$0xff]
    %v2431 = vld [vmem:[%s2420 + $0x50] sm:$0xff]
    %v2432 = vld [vmem:[%s2420 + $0x58] sm:$0xff]
    %v2433 = vld [vmem:[%s2420 + $0x60] sm:$0xff]
    %v2434 = vld [vmem:[%s2420 + $0x68] sm:$0xff]
    %v2435 = vld [vmem:[%s2420 + $0x70] sm:$0xff]
    %v2436 = vld [vmem:[%s2420 + $0x78] sm:$0xff]
    %s2437 = scalar_lea.vmem %s31, 1
    %v2438 = vld [vmem:[%s2437] sm:$0x1]
    %v2439 = vsel %vm291, %v2386, 0.0
    %2440 = vadd.xlane.f32.xlu0 %v2439
    %v2441 = vpop.xlane.xlu0 %2440
    %v2442 = vsel %vm291, %v2387, 0.0
    %2443 = vadd.xlane.f32.xlu0 %v2442
    %v2444 = vpop.xlane.xlu0 %2443
    %v2445 = vmul.f32 %v2441, %v298
    %v2446 = vmul.f32 %v2444, %v298
    %v2447 = vsub.f32 %v2386, %v2445
    %v2448 = vsub.f32 %v2387, %v2446
    %v2449 = vmul.f32 %v2447, %v2447
    %v2450 = vmul.f32 %v2448, %v2448
    %v2451 = vsel %vm291, %v2449, 0.0
    %2452 = vadd.xlane.f32.xlu0 %v2451
    %v2453 = vpop.xlane.xlu0 %2452
    %v2454 = vsel %vm291, %v2450, 0.0
    %2455 = vadd.xlane.f32.xlu0 %v2454
    %v2456 = vpop.xlane.xlu0 %2455
    %v2457 = vmul.f32 %v2453, %v298
    %v2458 = vmul.f32 %v2456, %v298
    %v2459 = vadd.f32 %v2457, 1e-05
    %v2460 = vadd.f32 %v2458, 1e-05
    %v2461 = vrsqrt.pop %v2459
    %v2462 = vrsqrt.pop %v2460
    %v2463 = vmul.f32 %v2447, %v2461
    %v2464 = vmul.f32 %v2448, %v2462
    %v2465 = vlaneseq
    %v2466 = vshrl.u32 %v2465, 7
    %v2467 = vsub.s32 0, %v2466
    %v2468 = vrot.slane %v2389, %v2467
    %v2469 = vmul.f32 %v2463, %v2468
    %v2470 = vmul.f32 %v2464, %v2468
    %v2471 = vlaneseq
    %v2472 = vshrl.u32 %v2471, 7
    %v2473 = vsub.s32 0, %v2472
    %v2474 = vrot.slane %v2391, %v2473
    %v2475 = vadd.f32 %v2469, %v2474
    %v2476 = vadd.f32 %v2470, %v2474
    %v2478 = vlaneseq
    %v2479 = vshrl.u32 %v2478, 7
    %v2480 = vsub.s32 0, %v2479
    %v2481 = vrot.slane %v2398, %v2480
    %v2484 = vsel %vm291, %v2475, 0
    %v2487 = vsel %vm291, %v2476, 0
    %2489 = vmatprep.subr.mxu0 0.0
    %2490 = vmatpush1.msra.mxu0 %v2393
    %2491 = vmatprep.subr.mxu0 0.0
    %2492 = vmatpush1.msra.mxu0 %v2394
    %2493 = vmatprep.subr.mxu0 0.0
    %2494 = vmatpush1.msra.mxu0 %v2395
    %2495 = vmatprep.subr.mxu0 0.0
    %2496 = vmatpush1.msra.mxu0 %v2396
    %2497 = vmatprep.subr.mxu0 0.0
    %2498 = vmatpush1.msra.mxu0 0.0
    %2499 = vmatprep.subr.mxu0 0.0
    %2500 = vmatpush1.msra.mxu0 0.0
    %2501 = vmatprep.subr.mxu0 0.0
    %2502 = vmatpush1.msra.mxu0 0.0
    %2503 = vmatprep.subr.mxu0 0.0
    %2504 = vmatpush1.msra.mxu0 0.0
    %2505 = vmatprep.subr.mxu0 0.0
    %2506 = vmatpush1.msra.mxu0 0.0
    %2507 = vmatprep.subr.mxu0 0.0
    %2508 = vmatpush1.msra.mxu0 0.0
    %2509 = vmatprep.subr.mxu0 0.0
    %2510 = vmatpush1.msra.mxu0 0.0
    %2511 = vmatprep.subr.mxu0 0.0
    %2512 = vmatpush1.msra.mxu0 0.0
    %2513 = vmatprep.subr.mxu0 0.0
    %2514 = vmatpush1.msra.mxu0 0.0
    %2515 = vmatprep.subr.mxu0 0.0
    %2516 = vmatpush1.msra.mxu0 0.0
    %2517 = vmatprep.subr.mxu0 0.0
    %2518 = vmatpush1.msra.mxu0 0.0
    %2519 = vmatprep.subr.mxu0 0.0
    %2520 = vmatpush1.msra.mxu0 0.0
    %2521 = vmatprep.subr.mxu0 0.0
    %2522 = vmatpush1.msra.mxu0 0.0
    %2523 = vmatprep.subr.mxu0 0.0
    %2524 = vmatpush1.msra.mxu0 0.0
    %2525 = vmatprep.subr.mxu0 0.0
    %2526 = vmatpush1.msra.mxu0 0.0
    %2527 = vmatprep.subr.mxu0 0.0
    %2528 = vmatpush1.msra.mxu0 0.0
    %2529 = vmatprep.subr.mxu0 0.0
    %2530 = vmatpush1.msra.mxu0 0.0
    %2531 = vmatprep.subr.mxu0 0.0
    %2532 = vmatpush1.msra.mxu0 0.0
    %2533 = vmatprep.subr.mxu0 0.0
    %2534 = vmatpush1.msra.mxu0 0.0
    %2535 = vmatprep.subr.mxu0 0.0
    %2536 = vmatpush1.msra.mxu0 0.0
    %2537 = vmatprep.subr.mxu0 0.0
    %2538 = vmatpush1.msra.mxu0 0.0
    %2539 = vmatprep.subr.mxu0 0.0
    %2540 = vmatpush1.msra.mxu0 0.0
    %2541 = vmatprep.subr.mxu0 0.0
    %2542 = vmatpush1.msra.mxu0 0.0
    %2543 = vmatprep.subr.mxu0 0.0
    %2544 = vmatpush1.msra.mxu0 0.0
    %2545 = vmatprep.subr.mxu0 0.0
    %2546 = vmatpush1.msra.mxu0 0.0
    %2547 = vmatprep.subr.mxu0 0.0
    %2548 = vmatpush1.msra.mxu0 0.0
    %2549 = vmatprep.subr.mxu0 0.0
    %2550 = vmatpush1.msra.mxu0 0.0
    %2551 = vmatprep.subr.mxu0 0.0
    %2552 = vmatpush1.msra.mxu0 0.0
    %2553 = vmatprep.mubr.f32.mxu0 0.0
    %2554 = vmatmul.mubr.f32.gmra.mrb[0].mxu0 %v2484
    %v2555 = vpop.f32.mrb[0].mxu0
    %v2556 = vadd.f32 %v2481, %v2555
    %v2557 = vpop.f32.mrb[0].mxu0
    %2558 = vmatprep.mubr.f32.mxu0 0.0
    %2559 = vmatmul.mubr.f32.gmra.mrb[0].mxu0 %v2487
    %v2560 = vpop.f32.mrb[0].mxu0
    %v2561 = vadd.f32 %v2481, %v2560
    %v2562 = vpop.f32.mrb[0].mxu0
    %2563 = vdwg.mxu0
    %2565 = vrot.lane.b32.xlu0 %v2556, 96
    %v2566 = vpop.permute.xlu0 %2565
    %v2567 = vsel %vm421, %v2556, 0
    %v2569 = vsel %vm421, %v2566, 0
    %2571 = vmatprep.subr.mxu0 0.0
    %2572 = vmatpush1.xpose.msra.mxu0 %v2569
    %2573 = vmatprep.subr.mxu0 0.0
    %2574 = vmatpush1.xpose.msra.mxu0 0.0
    %2575 = vmatprep.subr.mxu0 0.0
    %2576 = vmatpush1.xpose.msra.mxu0 0.0
    %2577 = vmatprep.subr.mxu0 0.0
    %2578 = vmatpush1.xpose.msra.mxu0 0.0
    %2579 = vmatprep.subr.mxu0 0.0
    %2580 = vmatpush1.xpose.msra.mxu0 0.0
    %2581 = vmatprep.subr.mxu0 0.0
    %2582 = vmatpush1.xpose.msra.mxu0 0.0
    %2583 = vmatprep.subr.mxu0 0.0
    %2584 = vmatpush1.xpose.msra.mxu0 0.0
    %2585 = vmatprep.subr.mxu0 0.0
    %2586 = vmatpush1.xpose.msra.mxu0 0.0
    %2587 = vmatprep.subr.mxu0 0.0
    %2588 = vmatpush1.xpose.msra.mxu0 0.0
    %2589 = vmatprep.subr.mxu0 0.0
    %2590 = vmatpush1.xpose.msra.mxu0 0.0
    %2591 = vmatprep.subr.mxu0 0.0
    %2592 = vmatpush1.xpose.msra.mxu0 0.0
    %2593 = vmatprep.subr.mxu0 0.0
    %2594 = vmatpush1.xpose.msra.mxu0 0.0
    %2595 = vmatprep.subr.mxu0 0.0
    %2596 = vmatpush1.xpose.msra.mxu0 0.0
    %2597 = vmatprep.subr.mxu0 0.0
    %2598 = vmatpush1.xpose.msra.mxu0 0.0
    %2599 = vmatprep.subr.mxu0 0.0
    %2600 = vmatpush1.xpose.msra.mxu0 0.0
    %2601 = vmatprep.subr.mxu0 0.0
    %2602 = vmatpush1.xpose.msra.mxu0 0.0
    %2603 = vmatprep.subr.mxu0 0.0
    %2604 = vmatpush1.xpose.msra.mxu0 0.0
    %2605 = vmatprep.subr.mxu0 0.0
    %2606 = vmatpush1.xpose.msra.mxu0 0.0
    %2607 = vmatprep.subr.mxu0 0.0
    %2608 = vmatpush1.xpose.msra.mxu0 0.0
    %2609 = vmatprep.subr.mxu0 0.0
    %2610 = vmatpush1.xpose.msra.mxu0 0.0
    %2611 = vmatprep.subr.mxu0 0.0
    %2612 = vmatpush1.xpose.msra.mxu0 0.0
    %2613 = vmatprep.subr.mxu0 0.0
    %2614 = vmatpush1.xpose.msra.mxu0 0.0
    %2615 = vmatprep.subr.mxu0 0.0
    %2616 = vmatpush1.xpose.msra.mxu0 0.0
    %2617 = vmatprep.subr.mxu0 0.0
    %2618 = vmatpush1.xpose.msra.mxu0 0.0
    %2619 = vmatprep.subr.mxu0 0.0
    %2620 = vmatpush1.xpose.msra.mxu0 0.0
    %2621 = vmatprep.subr.mxu0 0.0
    %2622 = vmatpush1.xpose.msra.mxu0 0.0
    %2623 = vmatprep.subr.mxu0 0.0
    %2624 = vmatpush1.xpose.msra.mxu0 0.0
    %2625 = vmatprep.subr.mxu0 0.0
    %2626 = vmatpush1.xpose.msra.mxu0 0.0
    %2627 = vmatprep.subr.mxu0 0.0
    %2628 = vmatpush1.xpose.msra.mxu0 0.0
    %2629 = vmatprep.subr.mxu0 0.0
    %2630 = vmatpush1.xpose.msra.mxu0 0.0
    %2631 = vmatprep.subr.mxu0 0.0
    %2632 = vmatpush1.xpose.msra.mxu0 0.0
    %2633 = vmatprep.subr.mxu0 0.0
    %2634 = vmatpush1.xpose.msra.mxu0 0.0
    %2635 = vmatprep.mubr.f32.mxu0 0.0
    %2636 = vmatmul.mubr.f32.gmra.mrb[0].mxu0 %v2567
    %v2637 = vpop.f32.mrb[0].mxu0
    %v2638 = vadd.f32 0.0, %v2637
    %v2639 = vpop.f32.mrb[0].mxu0
    %2640 = vdwg.mxu0
    %v2641 = vmul.f32 %v2638, 0.35355338
    %v2642 = vsel %vm421, %v2641, -inf
    %2643 = vmax.xlane.f32.xlu0 %v2642
    %v2644 = vpop.xlane.xlu0 %2643
    %v2645 = vsub.f32 %v2641, %v2644
    %v2646 = vmul.f32 %v2645, 1.442695
    %v2647 = vpow.pop %v2646
    %v2648 = vsel %vm421, %v2647, 0.0
    %2649 = vadd.xlane.f32.xlu0 %v2648
    %v2650 = vpop.xlane.xlu0 %2649
    %v2651 = vrcp.pop %v2650
    %v2652 = vmul.f32 %v2647, %v2651
    %2653 = vrot.lane.b32.xlu0 %v2556, 64
    %v2654 = vpop.permute.xlu0 %2653
    %v2657 = vsel %vm421, %v2652, 0
    %2659 = vmatprep.subr.mxu0 0.0
    %2660 = vmatpush1.msra.mxu0 %v2654
    %2661 = vmatprep.subr.mxu0 0.0
    %2662 = vmatpush1.msra.mxu0 0.0
    %2663 = vmatprep.subr.mxu0 0.0
    %2664 = vmatpush1.msra.mxu0 0.0
    %2665 = vmatprep.subr.mxu0 0.0
    %2666 = vmatpush1.msra.mxu0 0.0
    %2667 = vmatprep.subr.mxu0 0.0
    %2668 = vmatpush1.msra.mxu0 0.0
    %2669 = vmatprep.subr.mxu0 0.0
    %2670 = vmatpush1.msra.mxu0 0.0
    %2671 = vmatprep.subr.mxu0 0.0
    %2672 = vmatpush1.msra.mxu0 0.0
    %2673 = vmatprep.subr.mxu0 0.0
    %2674 = vmatpush1.msra.mxu0 0.0
    %2675 = vmatprep.subr.mxu0 0.0
    %2676 = vmatpush1.msra.mxu0 0.0
    %2677 = vmatprep.subr.mxu0 0.0
    %2678 = vmatpush1.msra.mxu0 0.0
    %2679 = vmatprep.subr.mxu0 0.0
    %2680 = vmatpush1.msra.mxu0 0.0
    %2681 = vmatprep.subr.mxu0 0.0
    %2682 = vmatpush1.msra.mxu0 0.0
    %2683 = vmatprep.subr.mxu0 0.0
    %2684 = vmatpush1.msra.mxu0 0.0
    %2685 = vmatprep.subr.mxu0 0.0
    %2686 = vmatpush1.msra.mxu0 0.0
    %2687 = vmatprep.subr.mxu0 0.0
    %2688 = vmatpush1.msra.mxu0 0.0
    %2689 = vmatprep.subr.mxu0 0.0
    %2690 = vmatpush1.msra.mxu0 0.0
    %2691 = vmatprep.subr.mxu0 0.0
    %2692 = vmatpush1.msra.mxu0 0.0
    %2693 = vmatprep.subr.mxu0 0.0
    %2694 = vmatpush1.msra.mxu0 0.0
    %2695 = vmatprep.subr.mxu0 0.0
    %2696 = vmatpush1.msra.mxu0 0.0
    %2697 = vmatprep.subr.mxu0 0.0
    %2698 = vmatpush1.msra.mxu0 0.0
    %2699 = vmatprep.subr.mxu0 0.0
    %2700 = vmatpush1.msra.mxu0 0.0
    %2701 = vmatprep.subr.mxu0 0.0
    %2702 = vmatpush1.msra.mxu0 0.0
    %2703 = vmatprep.subr.mxu0 0.0
    %2704 = vmatpush1.msra.mxu0 0.0
    %2705 = vmatprep.subr.mxu0 0.0
    %2706 = vmatpush1.msra.mxu0 0.0
    %2707 = vmatprep.subr.mxu0 0.0
    %2708 = vmatpush1.msra.mxu0 0.0
    %2709 = vmatprep.subr.mxu0 0.0
    %2710 = vmatpush1.msra.mxu0 0.0
    %2711 = vmatprep.subr.mxu0 0.0
    %2712 = vmatpush1.msra.mxu0 0.0
    %2713 = vmatprep.subr.mxu0 0.0
    %2714 = vmatpush1.msra.mxu0 0.0
    %2715 = vmatprep.subr.mxu0 0.0
    %2716 = vmatpush1.msra.mxu0 0.0
    %2717 = vmatprep.subr.mxu0 0.0
    %2718 = vmatpush1.msra.mxu0 0.0
    %2719 = vmatprep.subr.mxu0 0.0
    %2720 = vmatpush1.msra.mxu0 0.0
    %2721 = vmatprep.subr.mxu0 0.0
    %2722 = vmatpush1.msra.mxu0 0.0
    %2723 = vmatprep.mubr.f32.mxu0 0.0
    %2724 = vmatmul.mubr.f32.gmra.mrb[0].mxu0 %v2657
    %v2725 = vpop.f32.mrb[0].mxu0
    %v2726 = vadd.f32 0.0, %v2725
    %v2727 = vpop.f32.mrb[0].mxu0
    %2728 = vdwg.mxu0
    %2729 = vrot.lane.b32.xlu0 %v2556, 120
    %v2730 = vpop.permute.xlu0 %2729
    %2731 = vrot.lane.b32.xlu0 %v2556, 88
    %v2732 = vpop.permute.xlu0 %2731
    %v2733 = vsel %vm421, %v2730, 0
    %v2735 = vsel %vm421, %v2732, 0
    %2737 = vmatprep.subr.mxu0 0.0
    %2738 = vmatpush1.xpose.msra.mxu0 %v2735
    %2739 = vmatprep.subr.mxu0 0.0
    %2740 = vmatpush1.xpose.msra.mxu0 0.0
    %2741 = vmatprep.subr.mxu0 0.0
    %2742 = vmatpush1.xpose.msra.mxu0 0.0
    %2743 = vmatprep.subr.mxu0 0.0
    %2744 = vmatpush1.xpose.msra.mxu0 0.0
    %2745 = vmatprep.subr.mxu0 0.0
    %2746 = vmatpush1.xpose.msra.mxu0 0.0
    %2747 = vmatprep.subr.mxu0 0.0
    %2748 = vmatpush1.xpose.msra.mxu0 0.0
    %2749 = vmatprep.subr.mxu0 0.0
    %2750 = vmatpush1.xpose.msra.mxu0 0.0
    %2751 = vmatprep.subr.mxu0 0.0
    %2752 = vmatpush1.xpose.msra.mxu0 0.0
    %2753 = vmatprep.subr.mxu0 0.0
    %2754 = vmatpush1.xpose.msra.mxu0 0.0
    %2755 = vmatprep.subr.mxu0 0.0
    %2756 = vmatpush1.xpose.msra.mxu0 0.0
    %2757 = vmatprep.subr.mxu0 0.0
    %2758 = vmatpush1.xpose.msra.mxu0 0.0
    %2759 = vmatprep.subr.mxu0 0.0
    %2760 = vmatpush1.xpose.msra.mxu0 0.0
    %2761 = vmatprep.subr.mxu0 0.0
    %2762 = vmatpush1.xpose.msra.mxu0 0.0
    %2763 = vmatprep.subr.mxu0 0.0
    %2764 = vmatpush1.xpose.msra.mxu0 0.0
    %2765 = vmatprep.subr.mxu0 0.0
    %2766 = vmatpush1.xpose.msra.mxu0 0.0
    %2767 = vmatprep.subr.mxu0 0.0
    %2768 = vmatpush1.xpose.msra.mxu0 0.0
    %2769 = vmatprep.subr.mxu0 0.0
    %2770 = vmatpush1.xpose.msra.mxu0 0.0
    %2771 = vmatprep.subr.mxu0 0.0
    %2772 = vmatpush1.xpose.msra.mxu0 0.0
    %2773 = vmatprep.subr.mxu0 0.0
    %2774 = vmatpush1.xpose.msra.mxu0 0.0
    %2775 = vmatprep.subr.mxu0 0.0
    %2776 = vmatpush1.xpose.msra.mxu0 0.0
    %2777 = vmatprep.subr.mxu0 0.0
    %2778 = vmatpush1.xpose.msra.mxu0 0.0
    %2779 = vmatprep.subr.mxu0 0.0
    %2780 = vmatpush1.xpose.msra.mxu0 0.0
    %2781 = vmatprep.subr.mxu0 0.0
    %2782 = vmatpush1.xpose.msra.mxu0 0.0
    %2783 = vmatprep.subr.mxu0 0.0
    %2784 = vmatpush1.xpose.msra.mxu0 0.0
    %2785 = vmatprep.subr.mxu0 0.0
    %2786 = vmatpush1.xpose.msra.mxu0 0.0
    %2787 = vmatprep.subr.mxu0 0.0
    %2788 = vmatpush1.xpose.msra.mxu0 0.0
    %2789 = vmatprep.subr.mxu0 0.0
    %2790 = vmatpush1.xpose.msra.mxu0 0.0
    %2791 = vmatprep.subr.mxu0 0.0
    %2792 = vmatpush1.xpose.msra.mxu0 0.0
    %2793 = vmatprep.subr.mxu0 0.0
    %2794 = vmatpush1.xpose.msra.mxu0 0.0
    %2795 = vmatprep.subr.mxu0 0.0
    %2796 = vmatpush1.xpose.msra.mxu0 0.0
    %2797 = vmatprep.subr.mxu0 0.0
    %2798 = vmatpush1.xpose.msra.mxu0 0.0
    %2799 = vmatprep.subr.mxu0 0.0
    %2800 = vmatpush1.xpose.msra.mxu0 0.0
    %2801 = vmatprep.mubr.f32.mxu0 0.0
    %2802 = vmatmul.mubr.f32.gmra.mrb[0].mxu0 %v2733
    %v2803 = vpop.f32.mrb[0].mxu0
    %v2804 = vadd.f32 0.0, %v2803
    %v2805 = vpop.f32.mrb[0].mxu0
    %2806 = vdwg.mxu0
    %v2807 = vmul.f32 %v2804, 0.35355338
    %v2808 = vsel %vm421, %v2807, -inf
    %2809 = vmax.xlane.f32.xlu0 %v2808
    %v2810 = vpop.xlane.xlu0 %2809
    %v2811 = vsub.f32 %v2807, %v2810
    %v2812 = vmul.f32 %v2811, 1.442695
    %v2813 = vpow.pop %v2812
    %v2814 = vsel %vm421, %v2813, 0.0
    %2815 = vadd.xlane.f32.xlu0 %v2814
    %v2816 = vpop.xlane.xlu0 %2815
    %v2817 = vrcp.pop %v2816
    %v2818 = vmul.f32 %v2813, %v2817
    %2819 = vrot.lane.b32.xlu0 %v2556, 56
    %v2820 = vpop.permute.xlu0 %2819
    %v2823 = vsel %vm421, %v2818, 0
    %2825 = vmatprep.subr.mxu0 0.0
    %2826 = vmatpush1.msra.mxu0 %v2820
    %2827 = vmatprep.subr.mxu0 0.0
    %2828 = vmatpush1.msra.mxu0 0.0
    %2829 = vmatprep.subr.mxu0 0.0
    %2830 = vmatpush1.msra.mxu0 0.0
    %2831 = vmatprep.subr.mxu0 0.0
    %2832 = vmatpush1.msra.mxu0 0.0
    %2833 = vmatprep.subr.mxu0 0.0
    %2834 = vmatpush1.msra.mxu0 0.0
    %2835 = vmatprep.subr.mxu0 0.0
    %2836 = vmatpush1.msra.mxu0 0.0
    %2837 = vmatprep.subr.mxu0 0.0
    %2838 = vmatpush1.msra.mxu0 0.0
    %2839 = vmatprep.subr.mxu0 0.0
    %2840 = vmatpush1.msra.mxu0 0.0
    %2841 = vmatprep.subr.mxu0 0.0
    %2842 = vmatpush1.msra.mxu0 0.0
    %2843 = vmatprep.subr.mxu0 0.0
    %2844 = vmatpush1.msra.mxu0 0.0
    %2845 = vmatprep.subr.mxu0 0.0
    %2846 = vmatpush1.msra.mxu0 0.0
    %2847 = vmatprep.subr.mxu0 0.0
    %2848 = vmatpush1.msra.mxu0 0.0
    %2849 = vmatprep.subr.mxu0 0.0
    %2850 = vmatpush1.msra.mxu0 0.0
    %2851 = vmatprep.subr.mxu0 0.0
    %2852 = vmatpush1.msra.mxu0 0.0
    %2853 = vmatprep.subr.mxu0 0.0
    %2854 = vmatpush1.msra.mxu0 0.0
    %2855 = vmatprep.subr.mxu0 0.0
    %2856 = vmatpush1.msra.mxu0 0.0
    %2857 = vmatprep.subr.mxu0 0.0
    %2858 = vmatpush1.msra.mxu0 0.0
    %2859 = vmatprep.subr.mxu0 0.0
    %2860 = vmatpush1.msra.mxu0 0.0
    %2861 = vmatprep.subr.mxu0 0.0
    %2862 = vmatpush1.msra.mxu0 0.0
    %2863 = vmatprep.subr.mxu0 0.0
    %2864 = vmatpush1.msra.mxu0 0.0
    %2865 = vmatprep.subr.mxu0 0.0
    %2866 = vmatpush1.msra.mxu0 0.0
    %2867 = vmatprep.subr.mxu0 0.0
    %2868 = vmatpush1.msra.mxu0 0.0
    %2869 = vmatprep.subr.mxu0 0.0
    %2870 = vmatpush1.msra.mxu0 0.0
    %2871 = vmatprep.subr.mxu0 0.0
    %2872 = vmatpush1.msra.mxu0 0.0
    %2873 = vmatprep.subr.mxu0 0.0
    %2874 = vmatpush1.msra.mxu0 0.0
    %2875 = vmatprep.subr.mxu0 0.0
    %2876 = vmatpush1.msra.mxu0 0.0
    %2877 = vmatprep.subr.mxu0 0.0
    %2878 = vmatpush1.msra.mxu0 0.0
    %2879 = vmatprep.subr.mxu0 0.0
    %2880 = vmatpush1.msra.mxu0 0.0
    %2881 = vmatprep.subr.mxu0 0.0
    %2882 = vmatpush1.msra.mxu0 0.0
    %2883 = vmatprep.subr.mxu0 0.0
    %2884 = vmatpush1.msra.mxu0 0.0
    %2885 = vmatprep.subr.mxu0 0.0
    %2886 = vmatpush1.msra.mxu0 0.0
    %2887 = vmatprep.subr.mxu0 0.0
    %2888 = vmatpush1.msra.mxu0 0.0
    %2889 = vmatprep.mubr.f32.mxu0 0.0
    %2890 = vmatmul.mubr.f32.gmra.mrb[0].mxu0 %v2823
    %v2891 = vpop.f32.mrb[0].mxu0
    %v2892 = vadd.f32 0.0, %v2891
    %v2893 = vpop.f32.mrb[0].mxu0
    %2894 = vdwg.mxu0
    %2895 = vrot.lane.b32.xlu0 %v2556, 112
    %v2896 = vpop.permute.xlu0 %2895
    %2897 = vrot.lane.b32.xlu0 %v2556, 80
    %v2898 = vpop.permute.xlu0 %2897
    %v2899 = vsel %vm421, %v2896, 0
    %v2901 = vsel %vm421, %v2898, 0
    %2903 = vmatprep.subr.mxu0 0.0
    %2904 = vmatpush1.xpose.msra.mxu0 %v2901
    %2905 = vmatprep.subr.mxu0 0.0
    %2906 = vmatpush1.xpose.msra.mxu0 0.0
    %2907 = vmatprep.subr.mxu0 0.0
    %2908 = vmatpush1.xpose.msra.mxu0 0.0
    %2909 = vmatprep.subr.mxu0 0.0
    %2910 = vmatpush1.xpose.msra.mxu0 0.0
    %2911 = vmatprep.subr.mxu0 0.0
    %2912 = vmatpush1.xpose.msra.mxu0 0.0
    %2913 = vmatprep.subr.mxu0 0.0
    %2914 = vmatpush1.xpose.msra.mxu0 0.0
    %2915 = vmatprep.subr.mxu0 0.0
    %2916 = vmatpush1.xpose.msra.mxu0 0.0
    %2917 = vmatprep.subr.mxu0 0.0
    %2918 = vmatpush1.xpose.msra.mxu0 0.0
    %2919 = vmatprep.subr.mxu0 0.0
    %2920 = vmatpush1.xpose.msra.mxu0 0.0
    %2921 = vmatprep.subr.mxu0 0.0
    %2922 = vmatpush1.xpose.msra.mxu0 0.0
    %2923 = vmatprep.subr.mxu0 0.0
    %2924 = vmatpush1.xpose.msra.mxu0 0.0
    %2925 = vmatprep.subr.mxu0 0.0
    %2926 = vmatpush1.xpose.msra.mxu0 0.0
    %2927 = vmatprep.subr.mxu0 0.0
    %2928 = vmatpush1.xpose.msra.mxu0 0.0
    %2929 = vmatprep.subr.mxu0 0.0
    %2930 = vmatpush1.xpose.msra.mxu0 0.0
    %2931 = vmatprep.subr.mxu0 0.0
    %2932 = vmatpush1.xpose.msra.mxu0 0.0
    %2933 = vmatprep.subr.mxu0 0.0
    %2934 = vmatpush1.xpose.msra.mxu0 0.0
    %2935 = vmatprep.subr.mxu0 0.0
    %2936 = vmatpush1.xpose.msra.mxu0 0.0
    %2937 = vmatprep.subr.mxu0 0.0
    %2938 = vmatpush1.xpose.msra.mxu0 0.0
    %2939 = vmatprep.subr.mxu0 0.0
    %2940 = vmatpush1.xpose.msra.mxu0 0.0
    %2941 = vmatprep.subr.mxu0 0.0
    %2942 = vmatpush1.xpose.msra.mxu0 0.0
    %2943 = vmatprep.subr.mxu0 0.0
    %2944 = vmatpush1.xpose.msra.mxu0 0.0
    %2945 = vmatprep.subr.mxu0 0.0
    %2946 = vmatpush1.xpose.msra.mxu0 0.0
    %2947 = vmatprep.subr.mxu0 0.0
    %2948 = vmatpush1.xpose.msra.mxu0 0.0
    %2949 = vmatprep.subr.mxu0 0.0
    %2950 = vmatpush1.xpose.msra.mxu0 0.0
    %2951 = vmatprep.subr.mxu0 0.0
    %2952 = vmatpush1.xpose.msra.mxu0 0.0
    %2953 = vmatprep.subr.mxu0 0.0
    %2954 = vmatpush1.xpose.msra.mxu0 0.0
    %2955 = vmatprep.subr.mxu0 0.0
    %2956 = vmatpush1.xpose.msra.mxu0 0.0
    %2957 = vmatprep.subr.mxu0 0.0
    %2958 = vmatpush1.xpose.msra.mxu0 0.0
    %2959 = vmatprep.subr.mxu0 0.0
    %2960 = vmatpush1.xpose.msra.mxu0 0.0
    %2961 = vmatprep.subr.mxu0 0.0
    %2962 = vmatpush1.xpose.msra.mxu0 0.0
    %2963 = vmatprep.subr.mxu0 0.0
    %2964 = vmatpush1.xpose.msra.mxu0 0.0
    %2965 = vmatprep.subr.mxu0 0.0
    %2966 = vmatpush1.xpose.msra.mxu0 0.0
    %2967 = vmatprep.mubr.f32.mxu0 0.0
    %2968 = vmatmul.mubr.f32.gmra.mrb[0].mxu0 %v2899
    %v2969 = vpop.f32.mrb[0].mxu0
    %v2970 = vadd.f32 0.0, %v2969
    %v2971 = vpop.f32.mrb[0].mxu0
    %2972 = vdwg.mxu0
    %v2973 = vmul.f32 %v2970, 0.35355338
    %v2974 = vsel %vm421, %v2973, -inf
    %2975 = vmax.xlane.f32.xlu0 %v2974
    %v2976 = vpop.xlane.xlu0 %2975
    %v2977 = vsub.f32 %v2973, %v2976
    %v2978 = vmul.f32 %v2977, 1.442695
    %v2979 = vpow.pop %v2978
    %v2980 = vsel %vm421, %v2979, 0.0
    %2981 = vadd.xlane.f32.xlu0 %v2980
    %v2982 = vpop.xlane.xlu0 %2981
    %v2983 = vrcp.pop %v2982
    %v2984 = vmul.f32 %v2979, %v2983
    %2985 = vrot.lane.b32.xlu0 %v2556, 48
    %v2986 = vpop.permute.xlu0 %2985
    %v2989 = vsel %vm421, %v2984, 0
    %2991 = vmatprep.subr.mxu0 0.0
    %2992 = vmatpush1.msra.mxu0 %v2986
    %2993 = vmatprep.subr.mxu0 0.0
    %2994 = vmatpush1.msra.mxu0 0.0
    %2995 = vmatprep.subr.mxu0 0.0
    %2996 = vmatpush1.msra.mxu0 0.0
    %2997 = vmatprep.subr.mxu0 0.0
    %2998 = vmatpush1.msra.mxu0 0.0
    %2999 = vmatprep.subr.mxu0 0.0
    %3000 = vmatpush1.msra.mxu0 0.0
    %3001 = vmatprep.subr.mxu0 0.0
    %3002 = vmatpush1.msra.mxu0 0.0
    %3003 = vmatprep.subr.mxu0 0.0
    %3004 = vmatpush1.msra.mxu0 0.0
    %3005 = vmatprep.subr.mxu0 0.0
    %3006 = vmatpush1.msra.mxu0 0.0
    %3007 = vmatprep.subr.mxu0 0.0
    %3008 = vmatpush1.msra.mxu0 0.0
    %3009 = vmatprep.subr.mxu0 0.0
    %3010 = vmatpush1.msra.mxu0 0.0
    %3011 = vmatprep.subr.mxu0 0.0
    %3012 = vmatpush1.msra.mxu0 0.0
    %3013 = vmatprep.subr.mxu0 0.0
    %3014 = vmatpush1.msra.mxu0 0.0
    %3015 = vmatprep.subr.mxu0 0.0
    %3016 = vmatpush1.msra.mxu0 0.0
    %3017 = vmatprep.subr.mxu0 0.0
    %3018 = vmatpush1.msra.mxu0 0.0
    %3019 = vmatprep.subr.mxu0 0.0
    %3020 = vmatpush1.msra.mxu0 0.0
    %3021 = vmatprep.subr.mxu0 0.0
    %3022 = vmatpush1.msra.mxu0 0.0
    %3023 = vmatprep.subr.mxu0 0.0
    %3024 = vmatpush1.msra.mxu0 0.0
    %3025 = vmatprep.subr.mxu0 0.0
    %3026 = vmatpush1.msra.mxu0 0.0
    %3027 = vmatprep.subr.mxu0 0.0
    %3028 = vmatpush1.msra.mxu0 0.0
    %3029 = vmatprep.subr.mxu0 0.0
    %3030 = vmatpush1.msra.mxu0 0.0
    %3031 = vmatprep.subr.mxu0 0.0
    %3032 = vmatpush1.msra.mxu0 0.0
    %3033 = vmatprep.subr.mxu0 0.0
    %3034 = vmatpush1.msra.mxu0 0.0
    %3035 = vmatprep.subr.mxu0 0.0
    %3036 = vmatpush1.msra.mxu0 0.0
    %3037 = vmatprep.subr.mxu0 0.0
    %3038 = vmatpush1.msra.mxu0 0.0
    %3039 = vmatprep.subr.mxu0 0.0
    %3040 = vmatpush1.msra.mxu0 0.0
    %3041 = vmatprep.subr.mxu0 0.0
    %3042 = vmatpush1.msra.mxu0 0.0
    %3043 = vmatprep.subr.mxu0 0.0
    %3044 = vmatpush1.msra.mxu0 0.0
    %3045 = vmatprep.subr.mxu0 0.0
    %3046 = vmatpush1.msra.mxu0 0.0
    %3047 = vmatprep.subr.mxu0 0.0
    %3048 = vmatpush1.msra.mxu0 0.0
    %3049 = vmatprep.subr.mxu0 0.0
    %3050 = vmatpush1.msra.mxu0 0.0
    %3051 = vmatprep.subr.mxu0 0.0
    %3052 = vmatpush1.msra.mxu0 0.0
    %3053 = vmatprep.subr.mxu0 0.0
    %3054 = vmatpush1.msra.mxu0 0.0
    %3055 = vmatprep.mubr.f32.mxu0 0.0
    %3056 = vmatmul.mubr.f32.gmra.mrb[0].mxu0 %v2989
    %v3057 = vpop.f32.mrb[0].mxu0
    %v3058 = vadd.f32 0.0, %v3057
    %v3059 = vpop.f32.mrb[0].mxu0
    %3060 = vdwg.mxu0
    %3061 = vrot.lane.b32.xlu0 %v2556, 104
    %v3062 = vpop.permute.xlu0 %3061
    %3063 = vrot.lane.b32.xlu0 %v2556, 72
    %v3064 = vpop.permute.xlu0 %3063
    %v3065 = vsel %vm421, %v3062, 0
    %v3067 = vsel %vm421, %v3064, 0
    %3069 = vmatprep.subr.mxu0 0.0
    %3070 = vmatpush1.xpose.msra.mxu0 %v3067
    %3071 = vmatprep.subr.mxu0 0.0
    %3072 = vmatpush1.xpose.msra.mxu0 0.0
    %3073 = vmatprep.subr.mxu0 0.0
    %3074 = vmatpush1.xpose.msra.mxu0 0.0
    %3075 = vmatprep.subr.mxu0 0.0
    %3076 = vmatpush1.xpose.msra.mxu0 0.0
    %3077 = vmatprep.subr.mxu0 0.0
    %3078 = vmatpush1.xpose.msra.mxu0 0.0
    %3079 = vmatprep.subr.mxu0 0.0
    %3080 = vmatpush1.xpose.msra.mxu0 0.0
    %3081 = vmatprep.subr.mxu0 0.0
    %3082 = vmatpush1.xpose.msra.mxu0 0.0
    %3083 = vmatprep.subr.mxu0 0.0
    %3084 = vmatpush1.xpose.msra.mxu0 0.0
    %3085 = vmatprep.subr.mxu0 0.0
    %3086 = vmatpush1.xpose.msra.mxu0 0.0
    %3087 = vmatprep.subr.mxu0 0.0
    %3088 = vmatpush1.xpose.msra.mxu0 0.0
    %3089 = vmatprep.subr.mxu0 0.0
    %3090 = vmatpush1.xpose.msra.mxu0 0.0
    %3091 = vmatprep.subr.mxu0 0.0
    %3092 = vmatpush1.xpose.msra.mxu0 0.0
    %3093 = vmatprep.subr.mxu0 0.0
    %3094 = vmatpush1.xpose.msra.mxu0 0.0
    %3095 = vmatprep.subr.mxu0 0.0
    %3096 = vmatpush1.xpose.msra.mxu0 0.0
    %3097 = vmatprep.subr.mxu0 0.0
    %3098 = vmatpush1.xpose.msra.mxu0 0.0
    %3099 = vmatprep.subr.mxu0 0.0
    %3100 = vmatpush1.xpose.msra.mxu0 0.0
    %3101 = vmatprep.subr.mxu0 0.0
    %3102 = vmatpush1.xpose.msra.mxu0 0.0
    %3103 = vmatprep.subr.mxu0 0.0
    %3104 = vmatpush1.xpose.msra.mxu0 0.0
    %3105 = vmatprep.subr.mxu0 0.0
    %3106 = vmatpush1.xpose.msra.mxu0 0.0
    %3107 = vmatprep.subr.mxu0 0.0
    %3108 = vmatpush1.xpose.msra.mxu0 0.0
    %3109 = vmatprep.subr.mxu0 0.0
    %3110 = vmatpush1.xpose.msra.mxu0 0.0
    %3111 = vmatprep.subr.mxu0 0.0
    %3112 = vmatpush1.xpose.msra.mxu0 0.0
    %3113 = vmatprep.subr.mxu0 0.0
    %3114 = vmatpush1.xpose.msra.mxu0 0.0
    %3115 = vmatprep.subr.mxu0 0.0
    %3116 = vmatpush1.xpose.msra.mxu0 0.0
    %3117 = vmatprep.subr.mxu0 0.0
    %3118 = vmatpush1.xpose.msra.mxu0 0.0
    %3119 = vmatprep.subr.mxu0 0.0
    %3120 = vmatpush1.xpose.msra.mxu0 0.0
    %3121 = vmatprep.subr.mxu0 0.0
    %3122 = vmatpush1.xpose.msra.mxu0 0.0
    %3123 = vmatprep.subr.mxu0 0.0
    %3124 = vmatpush1.xpose.msra.mxu0 0.0
    %3125 = vmatprep.subr.mxu0 0.0
    %3126 = vmatpush1.xpose.msra.mxu0 0.0
    %3127 = vmatprep.subr.mxu0 0.0
    %3128 = vmatpush1.xpose.msra.mxu0 0.0
    %3129 = vmatprep.subr.mxu0 0.0
    %3130 = vmatpush1.xpose.msra.mxu0 0.0
    %3131 = vmatprep.subr.mxu0 0.0
    %3132 = vmatpush1.xpose.msra.mxu0 0.0
    %3133 = vmatprep.mubr.f32.mxu0 0.0
    %3134 = vmatmul.mubr.f32.gmra.mrb[0].mxu0 %v3065
    %v3135 = vpop.f32.mrb[0].mxu0
    %v3136 = vadd.f32 0.0, %v3135
    %v3137 = vpop.f32.mrb[0].mxu0
    %3138 = vdwg.mxu0
    %v3139 = vmul.f32 %v3136, 0.35355338
    %v3140 = vsel %vm421, %v3139, -inf
    %3141 = vmax.xlane.f32.xlu0 %v3140
    %v3142 = vpop.xlane.xlu0 %3141
    %v3143 = vsub.f32 %v3139, %v3142
    %v3144 = vmul.f32 %v3143, 1.442695
    %v3145 = vpow.pop %v3144
    %v3146 = vsel %vm421, %v3145, 0.0
    %3147 = vadd.xlane.f32.xlu0 %v3146
    %v3148 = vpop.xlane.xlu0 %3147
    %v3149 = vrcp.pop %v3148
    %v3150 = vmul.f32 %v3145, %v3149
    %3151 = vrot.lane.b32.xlu0 %v2556, 40
    %v3152 = vpop.permute.xlu0 %3151
    %v3155 = vsel %vm421, %v3150, 0
    %3157 = vmatprep.subr.mxu0 0.0
    %3158 = vmatpush1.msra.mxu0 %v3152
    %3159 = vmatprep.subr.mxu0 0.0
    %3160 = vmatpush1.msra.mxu0 0.0
    %3161 = vmatprep.subr.mxu0 0.0
    %3162 = vmatpush1.msra.mxu0 0.0
    %3163 = vmatprep.subr.mxu0 0.0
    %3164 = vmatpush1.msra.mxu0 0.0
    %3165 = vmatprep.subr.mxu0 0.0
    %3166 = vmatpush1.msra.mxu0 0.0
    %3167 = vmatprep.subr.mxu0 0.0
    %3168 = vmatpush1.msra.mxu0 0.0
    %3169 = vmatprep.subr.mxu0 0.0
    %3170 = vmatpush1.msra.mxu0 0.0
    %3171 = vmatprep.subr.mxu0 0.0
    %3172 = vmatpush1.msra.mxu0 0.0
    %3173 = vmatprep.subr.mxu0 0.0
    %3174 = vmatpush1.msra.mxu0 0.0
    %3175 = vmatprep.subr.mxu0 0.0
    %3176 = vmatpush1.msra.mxu0 0.0
    %3177 = vmatprep.subr.mxu0 0.0
    %3178 = vmatpush1.msra.mxu0 0.0
    %3179 = vmatprep.subr.mxu0 0.0
    %3180 = vmatpush1.msra.mxu0 0.0
    %3181 = vmatprep.subr.mxu0 0.0
    %3182 = vmatpush1.msra.mxu0 0.0
    %3183 = vmatprep.subr.mxu0 0.0
    %3184 = vmatpush1.msra.mxu0 0.0
    %3185 = vmatprep.subr.mxu0 0.0
    %3186 = vmatpush1.msra.mxu0 0.0
    %3187 = vmatprep.subr.mxu0 0.0
    %3188 = vmatpush1.msra.mxu0 0.0
    %3189 = vmatprep.subr.mxu0 0.0
    %3190 = vmatpush1.msra.mxu0 0.0
    %3191 = vmatprep.subr.mxu0 0.0
    %3192 = vmatpush1.msra.mxu0 0.0
    %3193 = vmatprep.subr.mxu0 0.0
    %3194 = vmatpush1.msra.mxu0 0.0
    %3195 = vmatprep.subr.mxu0 0.0
    %3196 = vmatpush1.msra.mxu0 0.0
    %3197 = vmatprep.subr.mxu0 0.0
    %3198 = vmatpush1.msra.mxu0 0.0
    %3199 = vmatprep.subr.mxu0 0.0
    %3200 = vmatpush1.msra.mxu0 0.0
    %3201 = vmatprep.subr.mxu0 0.0
    %3202 = vmatpush1.msra.mxu0 0.0
    %3203 = vmatprep.subr.mxu0 0.0
    %3204 = vmatpush1.msra.mxu0 0.0
    %3205 = vmatprep.subr.mxu0 0.0
    %3206 = vmatpush1.msra.mxu0 0.0
    %3207 = vmatprep.subr.mxu0 0.0
    %3208 = vmatpush1.msra.mxu0 0.0
    %3209 = vmatprep.subr.mxu0 0.0
    %3210 = vmatpush1.msra.mxu0 0.0
    %3211 = vmatprep.subr.mxu0 0.0
    %3212 = vmatpush1.msra.mxu0 0.0
    %3213 = vmatprep.subr.mxu0 0.0
    %3214 = vmatpush1.msra.mxu0 0.0
    %3215 = vmatprep.subr.mxu0 0.0
    %3216 = vmatpush1.msra.mxu0 0.0
    %3217 = vmatprep.subr.mxu0 0.0
    %3218 = vmatpush1.msra.mxu0 0.0
    %3219 = vmatprep.subr.mxu0 0.0
    %3220 = vmatpush1.msra.mxu0 0.0
    %3221 = vmatprep.mubr.f32.mxu0 0.0
    %3222 = vmatmul.mubr.f32.gmra.mrb[0].mxu0 %v3155
    %v3223 = vpop.f32.mrb[0].mxu0
    %v3224 = vadd.f32 0.0, %v3223
    %v3225 = vpop.f32.mrb[0].mxu0
    %3226 = vdwg.mxu0
    %3228 = vrot.lane.b32.xlu0 %v2892, 8
    %v3229 = vpop.permute.xlu0 %3228
    %3232 = vrot.lane.b32.xlu0 %v3058, 16
    %v3233 = vpop.permute.xlu0 %3232
    %3236 = vrot.lane.b32.xlu0 %v3224, 24
    %v3237 = vpop.permute.xlu0 %3236
    %v3239 = vsel %vm421, %v2726, %v3229
    %v3240 = vsel %vm166, %v3239, %v3233
    %v3241 = vsel %vm1096, %v3240, %v3237
    %3243 = vrot.lane.b32.xlu0 %v2561, 96
    %v3244 = vpop.permute.xlu0 %3243
    %v3245 = vsel %vm421, %v2561, 0
    %v3247 = vsel %vm421, %v3244, 0
    %3249 = vmatprep.subr.mxu0 0.0
    %3250 = vmatpush1.xpose.msra.mxu0 %v3247
    %3251 = vmatprep.subr.mxu0 0.0
    %3252 = vmatpush1.xpose.msra.mxu0 0.0
    %3253 = vmatprep.subr.mxu0 0.0
    %3254 = vmatpush1.xpose.msra.mxu0 0.0
    %3255 = vmatprep.subr.mxu0 0.0
    %3256 = vmatpush1.xpose.msra.mxu0 0.0
    %3257 = vmatprep.subr.mxu0 0.0
    %3258 = vmatpush1.xpose.msra.mxu0 0.0
    %3259 = vmatprep.subr.mxu0 0.0
    %3260 = vmatpush1.xpose.msra.mxu0 0.0
    %3261 = vmatprep.subr.mxu0 0.0
    %3262 = vmatpush1.xpose.msra.mxu0 0.0
    %3263 = vmatprep.subr.mxu0 0.0
    %3264 = vmatpush1.xpose.msra.mxu0 0.0
    %3265 = vmatprep.subr.mxu0 0.0
    %3266 = vmatpush1.xpose.msra.mxu0 0.0
    %3267 = vmatprep.subr.mxu0 0.0
    %3268 = vmatpush1.xpose.msra.mxu0 0.0
    %3269 = vmatprep.subr.mxu0 0.0
    %3270 = vmatpush1.xpose.msra.mxu0 0.0
    %3271 = vmatprep.subr.mxu0 0.0
    %3272 = vmatpush1.xpose.msra.mxu0 0.0
    %3273 = vmatprep.subr.mxu0 0.0
    %3274 = vmatpush1.xpose.msra.mxu0 0.0
    %3275 = vmatprep.subr.mxu0 0.0
    %3276 = vmatpush1.xpose.msra.mxu0 0.0
    %3277 = vmatprep.subr.mxu0 0.0
    %3278 = vmatpush1.xpose.msra.mxu0 0.0
    %3279 = vmatprep.subr.mxu0 0.0
    %3280 = vmatpush1.xpose.msra.mxu0 0.0
    %3281 = vmatprep.subr.mxu0 0.0
    %3282 = vmatpush1.xpose.msra.mxu0 0.0
    %3283 = vmatprep.subr.mxu0 0.0
    %3284 = vmatpush1.xpose.msra.mxu0 0.0
    %3285 = vmatprep.subr.mxu0 0.0
    %3286 = vmatpush1.xpose.msra.mxu0 0.0
    %3287 = vmatprep.subr.mxu0 0.0
    %3288 = vmatpush1.xpose.msra.mxu0 0.0
    %3289 = vmatprep.subr.mxu0 0.0
    %3290 = vmatpush1.xpose.msra.mxu0 0.0
    %3291 = vmatprep.subr.mxu0 0.0
    %3292 = vmatpush1.xpose.msra.mxu0 0.0
    %3293 = vmatprep.subr.mxu0 0.0
    %3294 = vmatpush1.xpose.msra.mxu0 0.0
    %3295 = vmatprep.subr.mxu0 0.0
    %3296 = vmatpush1.xpose.msra.mxu0 0.0
    %3297 = vmatprep.subr.mxu0 0.0
    %3298 = vmatpush1.xpose.msra.mxu0 0.0
    %3299 = vmatprep.subr.mxu0 0.0
    %3300 = vmatpush1.xpose.msra.mxu0 0.0
    %3301 = vmatprep.subr.mxu0 0.0
    %3302 = vmatpush1.xpose.msra.mxu0 0.0
    %3303 = vmatprep.subr.mxu0 0.0
    %3304 = vmatpush1.xpose.msra.mxu0 0.0
    %3305 = vmatprep.subr.mxu0 0.0
    %3306 = vmatpush1.xpose.msra.mxu0 0.0
    %3307 = vmatprep.subr.mxu0 0.0
    %3308 = vmatpush1.xpose.msra.mxu0 0.0
    %3309 = vmatprep.subr.mxu0 0.0
    %3310 = vmatpush1.xpose.msra.mxu0 0.0
    %3311 = vmatprep.subr.mxu0 0.0
    %3312 = vmatpush1.xpose.msra.mxu0 0.0
    %3313 = vmatprep.mubr.f32.mxu0 0.0
    %3314 = vmatmul.mubr.f32.gmra.mrb[0].mxu0 %v3245
    %v3315 = vpop.f32.mrb[0].mxu0
    %v3316 = vadd.f32 0.0, %v3315
    %v3317 = vpop.f32.mrb[0].mxu0
    %3318 = vdwg.mxu0
    %v3319 = vmul.f32 %v3316, 0.35355338
    %v3320 = vsel %vm421, %v3319, -inf
    %3321 = vmax.xlane.f32.xlu0 %v3320
    %v3322 = vpop.xlane.xlu0 %3321
    %v3323 = vsub.f32 %v3319, %v3322
    %v3324 = vmul.f32 %v3323, 1.442695
    %v3325 = vpow.pop %v3324
    %v3326 = vsel %vm421, %v3325, 0.0
    %3327 = vadd.xlane.f32.xlu0 %v3326
    %v3328 = vpop.xlane.xlu0 %3327
    %v3329 = vrcp.pop %v3328
    %v3330 = vmul.f32 %v3325, %v3329
    %3331 = vrot.lane.b32.xlu0 %v2561, 64
    %v3332 = vpop.permute.xlu0 %3331
    %v3335 = vsel %vm421, %v3330, 0
    %3337 = vmatprep.subr.mxu0 0.0
    %3338 = vmatpush1.msra.mxu0 %v3332
    %3339 = vmatprep.subr.mxu0 0.0
    %3340 = vmatpush1.msra.mxu0 0.0
    %3341 = vmatprep.subr.mxu0 0.0
    %3342 = vmatpush1.msra.mxu0 0.0
    %3343 = vmatprep.subr.mxu0 0.0
    %3344 = vmatpush1.msra.mxu0 0.0
    %3345 = vmatprep.subr.mxu0 0.0
    %3346 = vmatpush1.msra.mxu0 0.0
    %3347 = vmatprep.subr.mxu0 0.0
    %3348 = vmatpush1.msra.mxu0 0.0
    %3349 = vmatprep.subr.mxu0 0.0
    %3350 = vmatpush1.msra.mxu0 0.0
    %3351 = vmatprep.subr.mxu0 0.0
    %3352 = vmatpush1.msra.mxu0 0.0
    %3353 = vmatprep.subr.mxu0 0.0
    %3354 = vmatpush1.msra.mxu0 0.0
    %3355 = vmatprep.subr.mxu0 0.0
    %3356 = vmatpush1.msra.mxu0 0.0
    %3357 = vmatprep.subr.mxu0 0.0
    %3358 = vmatpush1.msra.mxu0 0.0
    %3359 = vmatprep.subr.mxu0 0.0
    %3360 = vmatpush1.msra.mxu0 0.0
    %3361 = vmatprep.subr.mxu0 0.0
    %3362 = vmatpush1.msra.mxu0 0.0
    %3363 = vmatprep.subr.mxu0 0.0
    %3364 = vmatpush1.msra.mxu0 0.0
    %3365 = vmatprep.subr.mxu0 0.0
    %3366 = vmatpush1.msra.mxu0 0.0
    %3367 = vmatprep.subr.mxu0 0.0
    %3368 = vmatpush1.msra.mxu0 0.0
    %3369 = vmatprep.subr.mxu0 0.0
    %3370 = vmatpush1.msra.mxu0 0.0
    %3371 = vmatprep.subr.mxu0 0.0
    %3372 = vmatpush1.msra.mxu0 0.0
    %3373 = vmatprep.subr.mxu0 0.0
    %3374 = vmatpush1.msra.mxu0 0.0
    %3375 = vmatprep.subr.mxu0 0.0
    %3376 = vmatpush1.msra.mxu0 0.0
    %3377 = vmatprep.subr.mxu0 0.0
    %3378 = vmatpush1.msra.mxu0 0.0
    %3379 = vmatprep.subr.mxu0 0.0
    %3380 = vmatpush1.msra.mxu0 0.0
    %3381 = vmatprep.subr.mxu0 0.0
    %3382 = vmatpush1.msra.mxu0 0.0
    %3383 = vmatprep.subr.mxu0 0.0
    %3384 = vmatpush1.msra.mxu0 0.0
    %3385 = vmatprep.subr.mxu0 0.0
    %3386 = vmatpush1.msra.mxu0 0.0
    %3387 = vmatprep.subr.mxu0 0.0
    %3388 = vmatpush1.msra.mxu0 0.0
    %3389 = vmatprep.subr.mxu0 0.0
    %3390 = vmatpush1.msra.mxu0 0.0
    %3391 = vmatprep.subr.mxu0 0.0
    %3392 = vmatpush1.msra.mxu0 0.0
    %3393 = vmatprep.subr.mxu0 0.0
    %3394 = vmatpush1.msra.mxu0 0.0
    %3395 = vmatprep.subr.mxu0 0.0
    %3396 = vmatpush1.msra.mxu0 0.0
    %3397 = vmatprep.subr.mxu0 0.0
    %3398 = vmatpush1.msra.mxu0 0.0
    %3399 = vmatprep.subr.mxu0 0.0
    %3400 = vmatpush1.msra.mxu0 0.0
    %3401 = vmatprep.mubr.f32.mxu0 0.0
    %3402 = vmatmul.mubr.f32.gmra.mrb[0].mxu0 %v3335
    %v3403 = vpop.f32.mrb[0].mxu0
    %v3404 = vadd.f32 0.0, %v3403
    %v3405 = vpop.f32.mrb[0].mxu0
    %3406 = vdwg.mxu0
    %3407 = vrot.lane.b32.xlu0 %v2561, 120
    %v3408 = vpop.permute.xlu0 %3407
    %3409 = vrot.lane.b32.xlu0 %v2561, 88
    %v3410 = vpop.permute.xlu0 %3409
    %v3411 = vsel %vm421, %v3408, 0
    %v3413 = vsel %vm421, %v3410, 0
    %3415 = vmatprep.subr.mxu0 0.0
    %3416 = vmatpush1.xpose.msra.mxu0 %v3413
    %3417 = vmatprep.subr.mxu0 0.0
    %3418 = vmatpush1.xpose.msra.mxu0 0.0
    %3419 = vmatprep.subr.mxu0 0.0
    %3420 = vmatpush1.xpose.msra.mxu0 0.0
    %3421 = vmatprep.subr.mxu0 0.0
    %3422 = vmatpush1.xpose.msra.mxu0 0.0
    %3423 = vmatprep.subr.mxu0 0.0
    %3424 = vmatpush1.xpose.msra.mxu0 0.0
    %3425 = vmatprep.subr.mxu0 0.0
    %3426 = vmatpush1.xpose.msra.mxu0 0.0
    %3427 = vmatprep.subr.mxu0 0.0
    %3428 = vmatpush1.xpose.msra.mxu0 0.0
    %3429 = vmatprep.subr.mxu0 0.0
    %3430 = vmatpush1.xpose.msra.mxu0 0.0
    %3431 = vmatprep.subr.mxu0 0.0
    %3432 = vmatpush1.xpose.msra.mxu0 0.0
    %3433 = vmatprep.subr.mxu0 0.0
    %3434 = vmatpush1.xpose.msra.mxu0 0.0
    %3435 = vmatprep.subr.mxu0 0.0
    %3436 = vmatpush1.xpose.msra.mxu0 0.0
    %3437 = vmatprep.subr.mxu0 0.0
    %3438 = vmatpush1.xpose.msra.mxu0 0.0
    %3439 = vmatprep.subr.mxu0 0.0
    %3440 = vmatpush1.xpose.msra.mxu0 0.0
    %3441 = vmatprep.subr.mxu0 0.0
    %3442 = vmatpush1.xpose.msra.mxu0 0.0
    %3443 = vmatprep.subr.mxu0 0.0
    %3444 = vmatpush1.xpose.msra.mxu0 0.0
    %3445 = vmatprep.subr.mxu0 0.0
    %3446 = vmatpush1.xpose.msra.mxu0 0.0
    %3447 = vmatprep.subr.mxu0 0.0
    %3448 = vmatpush1.xpose.msra.mxu0 0.0
    %3449 = vmatprep.subr.mxu0 0.0
    %3450 = vmatpush1.xpose.msra.mxu0 0.0
    %3451 = vmatprep.subr.mxu0 0.0
    %3452 = vmatpush1.xpose.msra.mxu0 0.0
    %3453 = vmatprep.subr.mxu0 0.0
    %3454 = vmatpush1.xpose.msra.mxu0 0.0
    %3455 = vmatprep.subr.mxu0 0.0
    %3456 = vmatpush1.xpose.msra.mxu0 0.0
    %3457 = vmatprep.subr.mxu0 0.0
    %3458 = vmatpush1.xpose.msra.mxu0 0.0
    %3459 = vmatprep.subr.mxu0 0.0
    %3460 = vmatpush1.xpose.msra.mxu0 0.0
    %3461 = vmatprep.subr.mxu0 0.0
    %3462 = vmatpush1.xpose.msra.mxu0 0.0
    %3463 = vmatprep.subr.mxu0 0.0
    %3464 = vmatpush1.xpose.msra.mxu0 0.0
    %3465 = vmatprep.subr.mxu0 0.0
    %3466 = vmatpush1.xpose.msra.mxu0 0.0
    %3467 = vmatprep.subr.mxu0 0.0
    %3468 = vmatpush1.xpose.msra.mxu0 0.0
    %3469 = vmatprep.subr.mxu0 0.0
    %3470 = vmatpush1.xpose.msra.mxu0 0.0
    %3471 = vmatprep.subr.mxu0 0.0
    %3472 = vmatpush1.xpose.msra.mxu0 0.0
    %3473 = vmatprep.subr.mxu0 0.0
    %3474 = vmatpush1.xpose.msra.mxu0 0.0
    %3475 = vmatprep.subr.mxu0 0.0
    %3476 = vmatpush1.xpose.msra.mxu0 0.0
    %3477 = vmatprep.subr.mxu0 0.0
    %3478 = vmatpush1.xpose.msra.mxu0 0.0
    %3479 = vmatprep.mubr.f32.mxu0 0.0
    %3480 = vmatmul.mubr.f32.gmra.mrb[0].mxu0 %v3411
    %v3481 = vpop.f32.mrb[0].mxu0
    %v3482 = vadd.f32 0.0, %v3481
    %v3483 = vpop.f32.mrb[0].mxu0
    %3484 = vdwg.mxu0
    %v3485 = vmul.f32 %v3482, 0.35355338
    %v3486 = vsel %vm421, %v3485, -inf
    %3487 = vmax.xlane.f32.xlu0 %v3486
    %v3488 = vpop.xlane.xlu0 %3487
    %v3489 = vsub.f32 %v3485, %v3488
    %v3490 = vmul.f32 %v3489, 1.442695
    %v3491 = vpow.pop %v3490
    %v3492 = vsel %vm421, %v3491, 0.0
    %3493 = vadd.xlane.f32.xlu0 %v3492
    %v3494 = vpop.xlane.xlu0 %3493
    %v3495 = vrcp.pop %v3494
    %v3496 = vmul.f32 %v3491, %v3495
    %3497 = vrot.lane.b32.xlu0 %v2561, 56
    %v3498 = vpop.permute.xlu0 %3497
    %v3501 = vsel %vm421, %v3496, 0
    %3503 = vmatprep.subr.mxu0 0.0
    %3504 = vmatpush1.msra.mxu0 %v3498
    %3505 = vmatprep.subr.mxu0 0.0
    %3506 = vmatpush1.msra.mxu0 0.0
    %3507 = vmatprep.subr.mxu0 0.0
    %3508 = vmatpush1.msra.mxu0 0.0
    %3509 = vmatprep.subr.mxu0 0.0
    %3510 = vmatpush1.msra.mxu0 0.0
    %3511 = vmatprep.subr.mxu0 0.0
    %3512 = vmatpush1.msra.mxu0 0.0
    %3513 = vmatprep.subr.mxu0 0.0
    %3514 = vmatpush1.msra.mxu0 0.0
    %3515 = vmatprep.subr.mxu0 0.0
    %3516 = vmatpush1.msra.mxu0 0.0
    %3517 = vmatprep.subr.mxu0 0.0
    %3518 = vmatpush1.msra.mxu0 0.0
    %3519 = vmatprep.subr.mxu0 0.0
    %3520 = vmatpush1.msra.mxu0 0.0
    %3521 = vmatprep.subr.mxu0 0.0
    %3522 = vmatpush1.msra.mxu0 0.0
    %3523 = vmatprep.subr.mxu0 0.0
    %3524 = vmatpush1.msra.mxu0 0.0
    %3525 = vmatprep.subr.mxu0 0.0
    %3526 = vmatpush1.msra.mxu0 0.0
    %3527 = vmatprep.subr.mxu0 0.0
    %3528 = vmatpush1.msra.mxu0 0.0
    %3529 = vmatprep.subr.mxu0 0.0
    %3530 = vmatpush1.msra.mxu0 0.0
    %3531 = vmatprep.subr.mxu0 0.0
    %3532 = vmatpush1.msra.mxu0 0.0
    %3533 = vmatprep.subr.mxu0 0.0
    %3534 = vmatpush1.msra.mxu0 0.0
    %3535 = vmatprep.subr.mxu0 0.0
    %3536 = vmatpush1.msra.mxu0 0.0
    %3537 = vmatprep.subr.mxu0 0.0
    %3538 = vmatpush1.msra.mxu0 0.0
    %3539 = vmatprep.subr.mxu0 0.0
    %3540 = vmatpush1.msra.mxu0 0.0
    %3541 = vmatprep.subr.mxu0 0.0
    %3542 = vmatpush1.msra.mxu0 0.0
    %3543 = vmatprep.subr.mxu0 0.0
    %3544 = vmatpush1.msra.mxu0 0.0
    %3545 = vmatprep.subr.mxu0 0.0
    %3546 = vmatpush1.msra.mxu0 0.0
    %3547 = vmatprep.subr.mxu0 0.0
    %3548 = vmatpush1.msra.mxu0 0.0
    %3549 = vmatprep.subr.mxu0 0.0
    %3550 = vmatpush1.msra.mxu0 0.0
    %3551 = vmatprep.subr.mxu0 0.0
    %3552 = vmatpush1.msra.mxu0 0.0
    %3553 = vmatprep.subr.mxu0 0.0
    %3554 = vmatpush1.msra.mxu0 0.0
    %3555 = vmatprep.subr.mxu0 0.0
    %3556 = vmatpush1.msra.mxu0 0.0
    %3557 = vmatprep.subr.mxu0 0.0
    %3558 = vmatpush1.msra.mxu0 0.0
    %3559 = vmatprep.subr.mxu0 0.0
    %3560 = vmatpush1.msra.mxu0 0.0
    %3561 = vmatprep.subr.mxu0 0.0
    %3562 = vmatpush1.msra.mxu0 0.0
    %3563 = vmatprep.subr.mxu0 0.0
    %3564 = vmatpush1.msra.mxu0 0.0
    %3565 = vmatprep.subr.mxu0 0.0
    %3566 = vmatpush1.msra.mxu0 0.0
    %3567 = vmatprep.mubr.f32.mxu0 0.0
    %3568 = vmatmul.mubr.f32.gmra.mrb[0].mxu0 %v3501
    %v3569 = vpop.f32.mrb[0].mxu0
    %v3570 = vadd.f32 0.0, %v3569
    %v3571 = vpop.f32.mrb[0].mxu0
    %3572 = vdwg.mxu0
    %3573 = vrot.lane.b32.xlu0 %v2561, 112
    %v3574 = vpop.permute.xlu0 %3573
    %3575 = vrot.lane.b32.xlu0 %v2561, 80
    %v3576 = vpop.permute.xlu0 %3575
    %v3577 = vsel %vm421, %v3574, 0
    %v3579 = vsel %vm421, %v3576, 0
    %3581 = vmatprep.subr.mxu0 0.0
    %3582 = vmatpush1.xpose.msra.mxu0 %v3579
    %3583 = vmatprep.subr.mxu0 0.0
    %3584 = vmatpush1.xpose.msra.mxu0 0.0
    %3585 = vmatprep.subr.mxu0 0.0
    %3586 = vmatpush1.xpose.msra.mxu0 0.0
    %3587 = vmatprep.subr.mxu0 0.0
    %3588 = vmatpush1.xpose.msra.mxu0 0.0
    %3589 = vmatprep.subr.mxu0 0.0
    %3590 = vmatpush1.xpose.msra.mxu0 0.0
    %3591 = vmatprep.subr.mxu0 0.0
    %3592 = vmatpush1.xpose.msra.mxu0 0.0
    %3593 = vmatprep.subr.mxu0 0.0
    %3594 = vmatpush1.xpose.msra.mxu0 0.0
    %3595 = vmatprep.subr.mxu0 0.0
    %3596 = vmatpush1.xpose.msra.mxu0 0.0
    %3597 = vmatprep.subr.mxu0 0.0
    %3598 = vmatpush1.xpose.msra.mxu0 0.0
    %3599 = vmatprep.subr.mxu0 0.0
    %3600 = vmatpush1.xpose.msra.mxu0 0.0
    %3601 = vmatprep.subr.mxu0 0.0
    %3602 = vmatpush1.xpose.msra.mxu0 0.0
    %3603 = vmatprep.subr.mxu0 0.0
    %3604 = vmatpush1.xpose.msra.mxu0 0.0
    %3605 = vmatprep.subr.mxu0 0.0
    %3606 = vmatpush1.xpose.msra.mxu0 0.0
    %3607 = vmatprep.subr.mxu0 0.0
    %3608 = vmatpush1.xpose.msra.mxu0 0.0
    %3609 = vmatprep.subr.mxu0 0.0
    %3610 = vmatpush1.xpose.msra.mxu0 0.0
    %3611 = vmatprep.subr.mxu0 0.0
    %3612 = vmatpush1.xpose.msra.mxu0 0.0
    %3613 = vmatprep.subr.mxu0 0.0
    %3614 = vmatpush1.xpose.msra.mxu0 0.0
    %3615 = vmatprep.subr.mxu0 0.0
    %3616 = vmatpush1.xpose.msra.mxu0 0.0
    %3617 = vmatprep.subr.mxu0 0.0
    %3618 = vmatpush1.xpose.msra.mxu0 0.0
    %3619 = vmatprep.subr.mxu0 0.0
    %3620 = vmatpush1.xpose.msra.mxu0 0.0
    %3621 = vmatprep.subr.mxu0 0.0
    %3622 = vmatpush1.xpose.msra.mxu0 0.0
    %3623 = vmatprep.subr.mxu0 0.0
    %3624 = vmatpush1.xpose.msra.mxu0 0.0
    %3625 = vmatprep.subr.mxu0 0.0
    %3626 = vmatpush1.xpose.msra.mxu0 0.0
    %3627 = vmatprep.subr.mxu0 0.0
    %3628 = vmatpush1.xpose.msra.mxu0 0.0
    %3629 = vmatprep.subr.mxu0 0.0
    %3630 = vmatpush1.xpose.msra.mxu0 0.0
    %3631 = vmatprep.subr.mxu0 0.0
    %3632 = vmatpush1.xpose.msra.mxu0 0.0
    %3633 = vmatprep.subr.mxu0 0.0
    %3634 = vmatpush1.xpose.msra.mxu0 0.0
    %3635 = vmatprep.subr.mxu0 0.0
    %3636 = vmatpush1.xpose.msra.mxu0 0.0
    %3637 = vmatprep.subr.mxu0 0.0
    %3638 = vmatpush1.xpose.msra.mxu0 0.0
    %3639 = vmatprep.subr.mxu0 0.0
    %3640 = vmatpush1.xpose.msra.mxu0 0.0
    %3641 = vmatprep.subr.mxu0 0.0
    %3642 = vmatpush1.xpose.msra.mxu0 0.0
    %3643 = vmatprep.subr.mxu0 0.0
    %3644 = vmatpush1.xpose.msra.mxu0 0.0
    %3645 = vmatprep.mubr.f32.mxu0 0.0
    %3646 = vmatmul.mubr.f32.gmra.mrb[0].mxu0 %v3577
    %v3647 = vpop.f32.mrb[0].mxu0
    %v3648 = vadd.f32 0.0, %v3647
    %v3649 = vpop.f32.mrb[0].mxu0
    %3650 = vdwg.mxu0
    %v3651 = vmul.f32 %v3648, 0.35355338
    %v3652 = vsel %vm421, %v3651, -inf
    %3653 = vmax.xlane.f32.xlu0 %v3652
    %v3654 = vpop.xlane.xlu0 %3653
    %v3655 = vsub.f32 %v3651, %v3654
    %v3656 = vmul.f32 %v3655, 1.442695
    %v3657 = vpow.pop %v3656
    %v3658 = vsel %vm421, %v3657, 0.0
    %3659 = vadd.xlane.f32.xlu0 %v3658
    %v3660 = vpop.xlane.xlu0 %3659
    %v3661 = vrcp.pop %v3660
    %v3662 = vmul.f32 %v3657, %v3661
    %3663 = vrot.lane.b32.xlu0 %v2561, 48
    %v3664 = vpop.permute.xlu0 %3663
    %v3667 = vsel %vm421, %v3662, 0
    %3669 = vmatprep.subr.mxu0 0.0
    %3670 = vmatpush1.msra.mxu0 %v3664
    %3671 = vmatprep.subr.mxu0 0.0
    %3672 = vmatpush1.msra.mxu0 0.0
    %3673 = vmatprep.subr.mxu0 0.0
    %3674 = vmatpush1.msra.mxu0 0.0
    %3675 = vmatprep.subr.mxu0 0.0
    %3676 = vmatpush1.msra.mxu0 0.0
    %3677 = vmatprep.subr.mxu0 0.0
    %3678 = vmatpush1.msra.mxu0 0.0
    %3679 = vmatprep.subr.mxu0 0.0
    %3680 = vmatpush1.msra.mxu0 0.0
    %3681 = vmatprep.subr.mxu0 0.0
    %3682 = vmatpush1.msra.mxu0 0.0
    %3683 = vmatprep.subr.mxu0 0.0
    %3684 = vmatpush1.msra.mxu0 0.0
    %3685 = vmatprep.subr.mxu0 0.0
    %3686 = vmatpush1.msra.mxu0 0.0
    %3687 = vmatprep.subr.mxu0 0.0
    %3688 = vmatpush1.msra.mxu0 0.0
    %3689 = vmatprep.subr.mxu0 0.0
    %3690 = vmatpush1.msra.mxu0 0.0
    %3691 = vmatprep.subr.mxu0 0.0
    %3692 = vmatpush1.msra.mxu0 0.0
    %3693 = vmatprep.subr.mxu0 0.0
    %3694 = vmatpush1.msra.mxu0 0.0
    %3695 = vmatprep.subr.mxu0 0.0
    %3696 = vmatpush1.msra.mxu0 0.0
    %3697 = vmatprep.subr.mxu0 0.0
    %3698 = vmatpush1.msra.mxu0 0.0
    %3699 = vmatprep.subr.mxu0 0.0
    %3700 = vmatpush1.msra.mxu0 0.0
    %3701 = vmatprep.subr.mxu0 0.0
    %3702 = vmatpush1.msra.mxu0 0.0
    %3703 = vmatprep.subr.mxu0 0.0
    %3704 = vmatpush1.msra.mxu0 0.0
    %3705 = vmatprep.subr.mxu0 0.0
    %3706 = vmatpush1.msra.mxu0 0.0
    %3707 = vmatprep.subr.mxu0 0.0
    %3708 = vmatpush1.msra.mxu0 0.0
    %3709 = vmatprep.subr.mxu0 0.0
    %3710 = vmatpush1.msra.mxu0 0.0
    %3711 = vmatprep.subr.mxu0 0.0
    %3712 = vmatpush1.msra.mxu0 0.0
    %3713 = vmatprep.subr.mxu0 0.0
    %3714 = vmatpush1.msra.mxu0 0.0
    %3715 = vmatprep.subr.mxu0 0.0
    %3716 = vmatpush1.msra.mxu0 0.0
    %3717 = vmatprep.subr.mxu0 0.0
    %3718 = vmatpush1.msra.mxu0 0.0
    %3719 = vmatprep.subr.mxu0 0.0
    %3720 = vmatpush1.msra.mxu0 0.0
    %3721 = vmatprep.subr.mxu0 0.0
    %3722 = vmatpush1.msra.mxu0 0.0
    %3723 = vmatprep.subr.mxu0 0.0
    %3724 = vmatpush1.msra.mxu0 0.0
    %3725 = vmatprep.subr.mxu0 0.0
    %3726 = vmatpush1.msra.mxu0 0.0
    %3727 = vmatprep.subr.mxu0 0.0
    %3728 = vmatpush1.msra.mxu0 0.0
    %3729 = vmatprep.subr.mxu0 0.0
    %3730 = vmatpush1.msra.mxu0 0.0
    %3731 = vmatprep.subr.mxu0 0.0
    %3732 = vmatpush1.msra.mxu0 0.0
    %3733 = vmatprep.mubr.f32.mxu0 0.0
    %3734 = vmatmul.mubr.f32.gmra.mrb[0].mxu0 %v3667
    %v3735 = vpop.f32.mrb[0].mxu0
    %v3736 = vadd.f32 0.0, %v3735
    %v3737 = vpop.f32.mrb[0].mxu0
    %3738 = vdwg.mxu0
    %3739 = vrot.lane.b32.xlu0 %v2561, 104
    %v3740 = vpop.permute.xlu0 %3739
    %3741 = vrot.lane.b32.xlu0 %v2561, 72
    %v3742 = vpop.permute.xlu0 %3741
    %v3743 = vsel %vm421, %v3740, 0
    %v3745 = vsel %vm421, %v3742, 0
    %3747 = vmatprep.subr.mxu0 0.0
    %3748 = vmatpush1.xpose.msra.mxu0 %v3745
    %3749 = vmatprep.subr.mxu0 0.0
    %3750 = vmatpush1.xpose.msra.mxu0 0.0
    %3751 = vmatprep.subr.mxu0 0.0
    %3752 = vmatpush1.xpose.msra.mxu0 0.0
    %3753 = vmatprep.subr.mxu0 0.0
    %3754 = vmatpush1.xpose.msra.mxu0 0.0
    %3755 = vmatprep.subr.mxu0 0.0
    %3756 = vmatpush1.xpose.msra.mxu0 0.0
    %3757 = vmatprep.subr.mxu0 0.0
    %3758 = vmatpush1.xpose.msra.mxu0 0.0
    %3759 = vmatprep.subr.mxu0 0.0
    %3760 = vmatpush1.xpose.msra.mxu0 0.0
    %3761 = vmatprep.subr.mxu0 0.0
    %3762 = vmatpush1.xpose.msra.mxu0 0.0
    %3763 = vmatprep.subr.mxu0 0.0
    %3764 = vmatpush1.xpose.msra.mxu0 0.0
    %3765 = vmatprep.subr.mxu0 0.0
    %3766 = vmatpush1.xpose.msra.mxu0 0.0
    %3767 = vmatprep.subr.mxu0 0.0
    %3768 = vmatpush1.xpose.msra.mxu0 0.0
    %3769 = vmatprep.subr.mxu0 0.0
    %3770 = vmatpush1.xpose.msra.mxu0 0.0
    %3771 = vmatprep.subr.mxu0 0.0
    %3772 = vmatpush1.xpose.msra.mxu0 0.0
    %3773 = vmatprep.subr.mxu0 0.0
    %3774 = vmatpush1.xpose.msra.mxu0 0.0
    %3775 = vmatprep.subr.mxu0 0.0
    %3776 = vmatpush1.xpose.msra.mxu0 0.0
    %3777 = vmatprep.subr.mxu0 0.0
    %3778 = vmatpush1.xpose.msra.mxu0 0.0
    %3779 = vmatprep.subr.mxu0 0.0
    %3780 = vmatpush1.xpose.msra.mxu0 0.0
    %3781 = vmatprep.subr.mxu0 0.0
    %3782 = vmatpush1.xpose.msra.mxu0 0.0
    %3783 = vmatprep.subr.mxu0 0.0
    %3784 = vmatpush1.xpose.msra.mxu0 0.0
    %3785 = vmatprep.subr.mxu0 0.0
    %3786 = vmatpush1.xpose.msra.mxu0 0.0
    %3787 = vmatprep.subr.mxu0 0.0
    %3788 = vmatpush1.xpose.msra.mxu0 0.0
    %3789 = vmatprep.subr.mxu0 0.0
    %3790 = vmatpush1.xpose.msra.mxu0 0.0
    %3791 = vmatprep.subr.mxu0 0.0
    %3792 = vmatpush1.xpose.msra.mxu0 0.0
    %3793 = vmatprep.subr.mxu0 0.0
    %3794 = vmatpush1.xpose.msra.mxu0 0.0
    %3795 = vmatprep.subr.mxu0 0.0
    %3796 = vmatpush1.xpose.msra.mxu0 0.0
    %3797 = vmatprep.subr.mxu0 0.0
    %3798 = vmatpush1.xpose.msra.mxu0 0.0
    %3799 = vmatprep.subr.mxu0 0.0
    %3800 = vmatpush1.xpose.msra.mxu0 0.0
    %3801 = vmatprep.subr.mxu0 0.0
    %3802 = vmatpush1.xpose.msra.mxu0 0.0
    %3803 = vmatprep.subr.mxu0 0.0
    %3804 = vmatpush1.xpose.msra.mxu0 0.0
    %3805 = vmatprep.subr.mxu0 0.0
    %3806 = vmatpush1.xpose.msra.mxu0 0.0
    %3807 = vmatprep.subr.mxu0 0.0
    %3808 = vmatpush1.xpose.msra.mxu0 0.0
    %3809 = vmatprep.subr.mxu0 0.0
    %3810 = vmatpush1.xpose.msra.mxu0 0.0
    %3811 = vmatprep.mubr.f32.mxu0 0.0
    %3812 = vmatmul.mubr.f32.gmra.mrb[0].mxu0 %v3743
    %v3813 = vpop.f32.mrb[0].mxu0
    %v3814 = vadd.f32 0.0, %v3813
    %v3815 = vpop.f32.mrb[0].mxu0
    %3816 = vdwg.mxu0
    %v3817 = vmul.f32 %v3814, 0.35355338
    %v3818 = vsel %vm421, %v3817, -inf
    %3819 = vmax.xlane.f32.xlu0 %v3818
    %v3820 = vpop.xlane.xlu0 %3819
    %v3821 = vsub.f32 %v3817, %v3820
    %v3822 = vmul.f32 %v3821, 1.442695
    %v3823 = vpow.pop %v3822
    %v3824 = vsel %vm421, %v3823, 0.0
    %3825 = vadd.xlane.f32.xlu0 %v3824
    %v3826 = vpop.xlane.xlu0 %3825
    %v3827 = vrcp.pop %v3826
    %v3828 = vmul.f32 %v3823, %v3827
    %3829 = vrot.lane.b32.xlu0 %v2561, 40
    %v3830 = vpop.permute.xlu0 %3829
    %v3833 = vsel %vm421, %v3828, 0
    %3835 = vmatprep.subr.mxu0 0.0
    %3836 = vmatpush1.msra.mxu0 %v3830
    %3837 = vmatprep.subr.mxu0 0.0
    %3838 = vmatpush1.msra.mxu0 0.0
    %3839 = vmatprep.subr.mxu0 0.0
    %3840 = vmatpush1.msra.mxu0 0.0
    %3841 = vmatprep.subr.mxu0 0.0
    %3842 = vmatpush1.msra.mxu0 0.0
    %3843 = vmatprep.subr.mxu0 0.0
    %3844 = vmatpush1.msra.mxu0 0.0
    %3845 = vmatprep.subr.mxu0 0.0
    %3846 = vmatpush1.msra.mxu0 0.0
    %3847 = vmatprep.subr.mxu0 0.0
    %3848 = vmatpush1.msra.mxu0 0.0
    %3849 = vmatprep.subr.mxu0 0.0
    %3850 = vmatpush1.msra.mxu0 0.0
    %3851 = vmatprep.subr.mxu0 0.0
    %3852 = vmatpush1.msra.mxu0 0.0
    %3853 = vmatprep.subr.mxu0 0.0
    %3854 = vmatpush1.msra.mxu0 0.0
    %3855 = vmatprep.subr.mxu0 0.0
    %3856 = vmatpush1.msra.mxu0 0.0
    %3857 = vmatprep.subr.mxu0 0.0
    %3858 = vmatpush1.msra.mxu0 0.0
    %3859 = vmatprep.subr.mxu0 0.0
    %3860 = vmatpush1.msra.mxu0 0.0
    %3861 = vmatprep.subr.mxu0 0.0
    %3862 = vmatpush1.msra.mxu0 0.0
    %3863 = vmatprep.subr.mxu0 0.0
    %3864 = vmatpush1.msra.mxu0 0.0
    %3865 = vmatprep.subr.mxu0 0.0
    %3866 = vmatpush1.msra.mxu0 0.0
    %3867 = vmatprep.subr.mxu0 0.0
    %3868 = vmatpush1.msra.mxu0 0.0
    %3869 = vmatprep.subr.mxu0 0.0
    %3870 = vmatpush1.msra.mxu0 0.0
    %3871 = vmatprep.subr.mxu0 0.0
    %3872 = vmatpush1.msra.mxu0 0.0
    %3873 = vmatprep.subr.mxu0 0.0
    %3874 = vmatpush1.msra.mxu0 0.0
    %3875 = vmatprep.subr.mxu0 0.0
    %3876 = vmatpush1.msra.mxu0 0.0
    %3877 = vmatprep.subr.mxu0 0.0
    %3878 = vmatpush1.msra.mxu0 0.0
    %3879 = vmatprep.subr.mxu0 0.0
    %3880 = vmatpush1.msra.mxu0 0.0
    %3881 = vmatprep.subr.mxu0 0.0
    %3882 = vmatpush1.msra.mxu0 0.0
    %3883 = vmatprep.subr.mxu0 0.0
    %3884 = vmatpush1.msra.mxu0 0.0
    %3885 = vmatprep.subr.mxu0 0.0
    %3886 = vmatpush1.msra.mxu0 0.0
    %3887 = vmatprep.subr.mxu0 0.0
    %3888 = vmatpush1.msra.mxu0 0.0
    %3889 = vmatprep.subr.mxu0 0.0
    %3890 = vmatpush1.msra.mxu0 0.0
    %3891 = vmatprep.subr.mxu0 0.0
    %3892 = vmatpush1.msra.mxu0 0.0
    %3893 = vmatprep.subr.mxu0 0.0
    %3894 = vmatpush1.msra.mxu0 0.0
    %3895 = vmatprep.subr.mxu0 0.0
    %3896 = vmatpush1.msra.mxu0 0.0
    %3897 = vmatprep.subr.mxu0 0.0
    %3898 = vmatpush1.msra.mxu0 0.0
    %3899 = vmatprep.mubr.f32.mxu0 0.0
    %3900 = vmatmul.mubr.f32.gmra.mrb[0].mxu0 %v3833
    %v3901 = vpop.f32.mrb[0].mxu0
    %v3902 = vadd.f32 0.0, %v3901
    %v3903 = vpop.f32.mrb[0].mxu0
    %3904 = vdwg.mxu0
    %3906 = vrot.lane.b32.xlu0 %v3570, 8
    %v3907 = vpop.permute.xlu0 %3906
    %3910 = vrot.lane.b32.xlu0 %v3736, 16
    %v3911 = vpop.permute.xlu0 %3910
    %3914 = vrot.lane.b32.xlu0 %v3902, 24
    %v3915 = vpop.permute.xlu0 %3914
    %v3917 = vsel %vm421, %v3404, %v3907
    %v3918 = vsel %vm166, %v3917, %v3911
    %v3919 = vsel %vm1096, %v3918, %v3915
    %v3921 = vlaneseq
    %v3922 = vshrl.u32 %v3921, 7
    %v3923 = vsub.s32 0, %v3922
    %v3924 = vrot.slane %v2405, %v3923
    %v3927 = vsel %vm291, %v3241, 0
    %v3930 = vsel %vm291, %v3919, 0
    %3932 = vmatprep.subr.mxu0 0.0
    %3933 = vmatpush1.msra.mxu0 %v2400
    %3934 = vmatprep.subr.mxu0 0.0
    %3935 = vmatpush1.msra.mxu0 %v2401
    %3936 = vmatprep.subr.mxu0 0.0
    %3937 = vmatpush1.msra.mxu0 %v2402
    %3938 = vmatprep.subr.mxu0 0.0
    %3939 = vmatpush1.msra.mxu0 %v2403
    %3940 = vmatprep.subr.mxu0 0.0
    %3941 = vmatpush1.msra.mxu0 0.0
    %3942 = vmatprep.subr.mxu0 0.0
    %3943 = vmatpush1.msra.mxu0 0.0
    %3944 = vmatprep.subr.mxu0 0.0
    %3945 = vmatpush1.msra.mxu0 0.0
    %3946 = vmatprep.subr.mxu0 0.0
    %3947 = vmatpush1.msra.mxu0 0.0
    %3948 = vmatprep.subr.mxu0 0.0
    %3949 = vmatpush1.msra.mxu0 0.0
    %3950 = vmatprep.subr.mxu0 0.0
    %3951 = vmatpush1.msra.mxu0 0.0
    %3952 = vmatprep.subr.mxu0 0.0
    %3953 = vmatpush1.msra.mxu0 0.0
    %3954 = vmatprep.subr.mxu0 0.0
    %3955 = vmatpush1.msra.mxu0 0.0
    %3956 = vmatprep.subr.mxu0 0.0
    %3957 = vmatpush1.msra.mxu0 0.0
    %3958 = vmatprep.subr.mxu0 0.0
    %3959 = vmatpush1.msra.mxu0 0.0
    %3960 = vmatprep.subr.mxu0 0.0
    %3961 = vmatpush1.msra.mxu0 0.0
    %3962 = vmatprep.subr.mxu0 0.0
    %3963 = vmatpush1.msra.mxu0 0.0
    %3964 = vmatprep.subr.mxu0 0.0
    %3965 = vmatpush1.msra.mxu0 0.0
    %3966 = vmatprep.subr.mxu0 0.0
    %3967 = vmatpush1.msra.mxu0 0.0
    %3968 = vmatprep.subr.mxu0 0.0
    %3969 = vmatpush1.msra.mxu0 0.0
    %3970 = vmatprep.subr.mxu0 0.0
    %3971 = vmatpush1.msra.mxu0 0.0
    %3972 = vmatprep.subr.mxu0 0.0
    %3973 = vmatpush1.msra.mxu0 0.0
    %3974 = vmatprep.subr.mxu0 0.0
    %3975 = vmatpush1.msra.mxu0 0.0
    %3976 = vmatprep.subr.mxu0 0.0
    %3977 = vmatpush1.msra.mxu0 0.0
    %3978 = vmatprep.subr.mxu0 0.0
    %3979 = vmatpush1.msra.mxu0 0.0
    %3980 = vmatprep.subr.mxu0 0.0
    %3981 = vmatpush1.msra.mxu0 0.0
    %3982 = vmatprep.subr.mxu0 0.0
    %3983 = vmatpush1.msra.mxu0 0.0
    %3984 = vmatprep.subr.mxu0 0.0
    %3985 = vmatpush1.msra.mxu0 0.0
    %3986 = vmatprep.subr.mxu0 0.0
    %3987 = vmatpush1.msra.mxu0 0.0
    %3988 = vmatprep.subr.mxu0 0.0
    %3989 = vmatpush1.msra.mxu0 0.0
    %3990 = vmatprep.subr.mxu0 0.0
    %3991 = vmatpush1.msra.mxu0 0.0
    %3992 = vmatprep.subr.mxu0 0.0
    %3993 = vmatpush1.msra.mxu0 0.0
    %3994 = vmatprep.subr.mxu0 0.0
    %3995 = vmatpush1.msra.mxu0 0.0
    %3996 = vmatprep.mubr.f32.mxu0 0.0
    %3997 = vmatmul.mubr.f32.gmra.mrb[0].mxu0 %v3927
    %v3998 = vpop.f32.mrb[0].mxu0
    %v3999 = vadd.f32 %v3924, %v3998
    %v4000 = vpop.f32.mrb[0].mxu0
    %4001 = vmatprep.mubr.f32.mxu0 0.0
    %4002 = vmatmul.mubr.f32.gmra.mrb[0].mxu0 %v3930
    %v4003 = vpop.f32.mrb[0].mxu0
    %v4004 = vadd.f32 %v3924, %v4003
    %v4005 = vpop.f32.mrb[0].mxu0
    %4006 = vdwg.mxu0
    %v4007 = vadd.f32 %v2386, %v3999
    %v4008 = vadd.f32 %v2387, %v4004
    %v4009 = vsel %vm291, %v4007, 0.0
    %4010 = vadd.xlane.f32.xlu0 %v4009
    %v4011 = vpop.xlane.xlu0 %4010
    %v4012 = vsel %vm291, %v4008, 0.0
    %4013 = vadd.xlane.f32.xlu0 %v4012
    %v4014 = vpop.xlane.xlu0 %4013
    %v4015 = vmul.f32 %v4011, %v298
    %v4016 = vmul.f32 %v4014, %v298
    %v4017 = vsub.f32 %v4007, %v4015
    %v4018 = vsub.f32 %v4008, %v4016
    %v4019 = vmul.f32 %v4017, %v4017
    %v4020 = vmul.f32 %v4018, %v4018
    %v4021 = vsel %vm291, %v4019, 0.0
    %4022 = vadd.xlane.f32.xlu0 %v4021
    %v4023 = vpop.xlane.xlu0 %4022
    %v4024 = vsel %vm291, %v4020, 0.0
    %4025 = vadd.xlane.f32.xlu0 %v4024
    %v4026 = vpop.xlane.xlu0 %4025
    %v4027 = vmul.f32 %v4023, %v298
    %v4028 = vmul.f32 %v4026, %v298
    %v4029 = vadd.f32 %v4027, 1e-05
    %v4030 = vadd.f32 %v4028, 1e-05
    %v4031 = vrsqrt.pop %v4029
    %v4032 = vrsqrt.pop %v4030
    %v4033 = vmul.f32 %v4017, %v4031
    %v4034 = vmul.f32 %v4018, %v4032
    %v4035 = vlaneseq
    %v4036 = vshrl.u32 %v4035, 7
    %v4037 = vsub.s32 1, %v4036
    %v4038 = vrot.slane %v2389, %v4037
    %v4039 = vmul.f32 %v4033, %v4038
    %v4040 = vmul.f32 %v4034, %v4038
    %v4041 = vlaneseq
    %v4042 = vshrl.u32 %v4041, 7
    %v4043 = vsub.s32 1, %v4042
    %v4044 = vrot.slane %v2391, %v4043
    %v4045 = vadd.f32 %v4039, %v4044
    %v4046 = vadd.f32 %v4040, %v4044
    %v4048 = vlaneseq
    %v4049 = vshrl.u32 %v4048, 7
    %v4050 = vsub.s32 0, %v4049
    %v4051 = vrot.slane %v2412, %v4050
    %v4054 = vsel %vm291, %v4045, 0
    %v4057 = vsel %vm291, %v4046, 0
    %4059 = vmatprep.subr.mxu0 0.0
    %4060 = vmatpush1.msra.mxu0 %v2407
    %4061 = vmatprep.subr.mxu0 0.0
    %4062 = vmatpush1.msra.mxu0 %v2408
    %4063 = vmatprep.subr.mxu0 0.0
    %4064 = vmatpush1.msra.mxu0 %v2409
    %4065 = vmatprep.subr.mxu0 0.0
    %4066 = vmatpush1.msra.mxu0 %v2410
    %4067 = vmatprep.subr.mxu0 0.0
    %4068 = vmatpush1.msra.mxu0 0.0
    %4069 = vmatprep.subr.mxu0 0.0
    %4070 = vmatpush1.msra.mxu0 0.0
    %4071 = vmatprep.subr.mxu0 0.0
    %4072 = vmatpush1.msra.mxu0 0.0
    %4073 = vmatprep.subr.mxu0 0.0
    %4074 = vmatpush1.msra.mxu0 0.0
    %4075 = vmatprep.subr.mxu0 0.0
    %4076 = vmatpush1.msra.mxu0 0.0
    %4077 = vmatprep.subr.mxu0 0.0
    %4078 = vmatpush1.msra.mxu0 0.0
    %4079 = vmatprep.subr.mxu0 0.0
    %4080 = vmatpush1.msra.mxu0 0.0
    %4081 = vmatprep.subr.mxu0 0.0
    %4082 = vmatpush1.msra.mxu0 0.0
    %4083 = vmatprep.subr.mxu0 0.0
    %4084 = vmatpush1.msra.mxu0 0.0
    %4085 = vmatprep.subr.mxu0 0.0
    %4086 = vmatpush1.msra.mxu0 0.0
    %4087 = vmatprep.subr.mxu0 0.0
    %4088 = vmatpush1.msra.mxu0 0.0
    %4089 = vmatprep.subr.mxu0 0.0
    %4090 = vmatpush1.msra.mxu0 0.0
    %4091 = vmatprep.subr.mxu0 0.0
    %4092 = vmatpush1.msra.mxu0 0.0
    %4093 = vmatprep.subr.mxu0 0.0
    %4094 = vmatpush1.msra.mxu0 0.0
    %4095 = vmatprep.subr.mxu0 0.0
    %4096 = vmatpush1.msra.mxu0 0.0
    %4097 = vmatprep.subr.mxu0 0.0
    %4098 = vmatpush1.msra.mxu0 0.0
    %4099 = vmatprep.subr.mxu0 0.0
    %4100 = vmatpush1.msra.mxu0 0.0
    %4101 = vmatprep.subr.mxu0 0.0
    %4102 = vmatpush1.msra.mxu0 0.0
    %4103 = vmatprep.subr.mxu0 0.0
    %4104 = vmatpush1.msra.mxu0 0.0
    %4105 = vmatprep.subr.mxu0 0.0
    %4106 = vmatpush1.msra.mxu0 0.0
    %4107 = vmatprep.subr.mxu0 0.0
    %4108 = vmatpush1.msra.mxu0 0.0
    %4109 = vmatprep.subr.mxu0 0.0
    %4110 = vmatpush1.msra.mxu0 0.0
    %4111 = vmatprep.subr.mxu0 0.0
    %4112 = vmatpush1.msra.mxu0 0.0
    %4113 = vmatprep.subr.mxu0 0.0
    %4114 = vmatpush1.msra.mxu0 0.0
    %4115 = vmatprep.subr.mxu0 0.0
    %4116 = vmatpush1.msra.mxu0 0.0
    %4117 = vmatprep.subr.mxu0 0.0
    %4118 = vmatpush1.msra.mxu0 0.0
    %4119 = vmatprep.subr.mxu0 0.0
    %4120 = vmatpush1.msra.mxu0 0.0
    %4121 = vmatprep.subr.mxu0 0.0
    %4122 = vmatpush1.msra.mxu0 0.0
    %4123 = vmatprep.mubr.f32.mxu0 0.0
    %4124 = vmatmul.mubr.f32.gmra.mrb[0].mxu0 %v4054
    %v4125 = vpop.f32.mrb[0].mxu0
    %v4126 = vadd.f32 %v4051, %v4125
    %v4127 = vpop.f32.mrb[0].mxu0
    %4128 = vmatprep.mubr.f32.mxu0 0.0
    %4129 = vmatmul.mubr.f32.gmra.mrb[0].mxu0 %v4057
    %v4130 = vpop.f32.mrb[0].mxu0
    %v4131 = vadd.f32 %v4051, %v4130
    %v4132 = vpop.f32.mrb[0].mxu0
    %4133 = vdwg.mxu0
    %v4134 = vsel %vm1990, %v4126, -inf
    %4135 = vmax.xlane.f32.xlu0 %v4134
    %v4136 = vpop.xlane.xlu0 %4135
    %v4137 = vsel %vm1990, %v4131, -inf
    %4138 = vmax.xlane.f32.xlu0 %v4137
    %v4139 = vpop.xlane.xlu0 %4138
    %v4140 = vsub.f32 %v4126, %v4136
    %v4141 = vsub.f32 %v4131, %v4139
    %v4142 = vmul.f32 %v4140, 1.442695
    %v4143 = vpow.pop %v4142
    %v4144 = vmul.f32 %v4141, 1.442695
    %v4145 = vpow.pop %v4144
    %v4146 = vsel %vm1990, %v4143, 0.0
    %4147 = vadd.xlane.f32.xlu0 %v4146
    %v4148 = vpop.xlane.xlu0 %4147
    %v4149 = vsel %vm1990, %v4145, 0.0
    %4150 = vadd.xlane.f32.xlu0 %v4149
    %v4151 = vpop.xlane.xlu0 %4150
    %v4152 = vrcp.pop %v4148
    %v4153 = vmul.f32 %v4143, %v4152
    %v4154 = vrcp.pop %v4151
    %v4155 = vmul.f32 %v4145, %v4154
    %4158 = vrot.lane.b32.xlu0 %v4153, 1
    %v4159 = vpop.permute.xlu0 %4158
    %4160 = vrot.lane.b32.xlu0 %v4155, 1
    %v4161 = vpop.permute.xlu0 %4160
    %vm4164 = vcmp.gt.f32.partialorder %v4153, %v4159
    %vm4165 = vcmp.gt.f32.partialorder %v4155, %v4161
    %v4166 = vsel %vm4164, 1, 0
    %v4167 = vsel %vm4165, 1, 0
    %v4168 = vcvt.s32.f32 %v4166
    %v4169 = vcvt.s32.f32 %v4167
    %4170 = vrot.lane.b32.xlu0 %v4153, 127
    %v4171 = vpop.permute.xlu0 %4170
    %4172 = vrot.lane.b32.xlu0 %v4155, 127
    %v4173 = vpop.permute.xlu0 %4172
    %v4176 = vmax.f32 %v4153, %v4171
    %v4177 = vmax.f32 %v4155, %v4173
    %v4179 = vlaneseq
    %v4180 = vshrl.u32 %v4179, 7
    %v4181 = vsub.s32 0, %v4180
    %v4182 = vrot.slane %v2419, %v4181
    %4184 = vmatprep.subr.mxu0 0.0
    %4185 = vmatpush1.msra.mxu0 %v2414
    %4186 = vmatprep.subr.mxu0 0.0
    %4187 = vmatpush1.msra.mxu0 %v2415
    %4188 = vmatprep.subr.mxu0 0.0
    %4189 = vmatpush1.msra.mxu0 %v2416
    %4190 = vmatprep.subr.mxu0 0.0
    %4191 = vmatpush1.msra.mxu0 %v2417
    %4192 = vmatprep.subr.mxu0 0.0
    %4193 = vmatpush1.msra.mxu0 0.0
    %4194 = vmatprep.subr.mxu0 0.0
    %4195 = vmatpush1.msra.mxu0 0.0
    %4196 = vmatprep.subr.mxu0 0.0
    %4197 = vmatpush1.msra.mxu0 0.0
    %4198 = vmatprep.subr.mxu0 0.0
    %4199 = vmatpush1.msra.mxu0 0.0
    %4200 = vmatprep.subr.mxu0 0.0
    %4201 = vmatpush1.msra.mxu0 0.0
    %4202 = vmatprep.subr.mxu0 0.0
    %4203 = vmatpush1.msra.mxu0 0.0
    %4204 = vmatprep.subr.mxu0 0.0
    %4205 = vmatpush1.msra.mxu0 0.0
    %4206 = vmatprep.subr.mxu0 0.0
    %4207 = vmatpush1.msra.mxu0 0.0
    %4208 = vmatprep.subr.mxu0 0.0
    %4209 = vmatpush1.msra.mxu0 0.0
    %4210 = vmatprep.subr.mxu0 0.0
    %4211 = vmatpush1.msra.mxu0 0.0
    %4212 = vmatprep.subr.mxu0 0.0
    %4213 = vmatpush1.msra.mxu0 0.0
    %4214 = vmatprep.subr.mxu0 0.0
    %4215 = vmatpush1.msra.mxu0 0.0
    %4216 = vmatprep.subr.mxu0 0.0
    %4217 = vmatpush1.msra.mxu0 0.0
    %4218 = vmatprep.subr.mxu0 0.0
    %4219 = vmatpush1.msra.mxu0 0.0
    %4220 = vmatprep.subr.mxu0 0.0
    %4221 = vmatpush1.msra.mxu0 0.0
    %4222 = vmatprep.subr.mxu0 0.0
    %4223 = vmatpush1.msra.mxu0 0.0
    %4224 = vmatprep.subr.mxu0 0.0
    %4225 = vmatpush1.msra.mxu0 0.0
    %4226 = vmatprep.subr.mxu0 0.0
    %4227 = vmatpush1.msra.mxu0 0.0
    %4228 = vmatprep.subr.mxu0 0.0
    %4229 = vmatpush1.msra.mxu0 0.0
    %4230 = vmatprep.subr.mxu0 0.0
    %4231 = vmatpush1.msra.mxu0 0.0
    %4232 = vmatprep.subr.mxu0 0.0
    %4233 = vmatpush1.msra.mxu0 0.0
    %4234 = vmatprep.subr.mxu0 0.0
    %4235 = vmatpush1.msra.mxu0 0.0
    %4236 = vmatprep.subr.mxu0 0.0
    %4237 = vmatpush1.msra.mxu0 0.0
    %4238 = vmatprep.subr.mxu0 0.0
    %4239 = vmatpush1.msra.mxu0 0.0
    %4240 = vmatprep.subr.mxu0 0.0
    %4241 = vmatpush1.msra.mxu0 0.0
    %4242 = vmatprep.subr.mxu0 0.0
    %4243 = vmatpush1.msra.mxu0 0.0
    %4244 = vmatprep.subr.mxu0 0.0
    %4245 = vmatpush1.msra.mxu0 0.0
    %4246 = vmatprep.subr.mxu0 0.0
    %4247 = vmatpush1.msra.mxu0 0.0
    %4248 = vmatprep.mubr.f32.mxu0 0.0
    %4249 = vmatmul.mubr.f32.gmra.mrb[0].mxu0 %v4054
    %v4250 = vpop.f32.mrb[0].mxu0
    %v4251 = vadd.f32 %v4182, %v4250
    %v4252 = vpop.f32.mrb[0].mxu0
    %4253 = vmatprep.mubr.f32.mxu0 0.0
    %4254 = vmatmul.mubr.f32.gmra.mrb[0].mxu0 %v4057
    %v4255 = vpop.f32.mrb[0].mxu0
    %v4256 = vadd.f32 %v4182, %v4255
    %v4257 = vpop.f32.mrb[0].mxu0
    %4258 = vdwg.mxu0
    %v4259 = vmax.f32 %v4251, 0.0
    %v4260 = vmax.f32 %v4256, 0.0
    %v4262 = vlaneseq
    %v4263 = vshrl.u32 %v4262, 7
    %v4264 = vsub.s32 0, %v4263
    %v4265 = vrot.slane %v2438, %v4264
    %4267 = vmatprep.subr.mxu0 0.0
    %4268 = vmatpush1.msra.mxu0 %v2421
    %4269 = vmatprep.subr.mxu0 0.0
    %4270 = vmatpush1.msra.mxu0 %v2422
    %4271 = vmatprep.subr.mxu0 0.0
    %4272 = vmatpush1.msra.mxu0 %v2423
    %4273 = vmatprep.subr.mxu0 0.0
    %4274 = vmatpush1.msra.mxu0 %v2424
    %4275 = vmatprep.subr.mxu0 0.0
    %4276 = vmatpush1.msra.mxu0 %v2425
    %4277 = vmatprep.subr.mxu0 0.0
    %4278 = vmatpush1.msra.mxu0 %v2426
    %4279 = vmatprep.subr.mxu0 0.0
    %4280 = vmatpush1.msra.mxu0 %v2427
    %4281 = vmatprep.subr.mxu0 0.0
    %4282 = vmatpush1.msra.mxu0 %v2428
    %4283 = vmatprep.subr.mxu0 0.0
    %4284 = vmatpush1.msra.mxu0 %v2429
    %4285 = vmatprep.subr.mxu0 0.0
    %4286 = vmatpush1.msra.mxu0 %v2430
    %4287 = vmatprep.subr.mxu0 0.0
    %4288 = vmatpush1.msra.mxu0 %v2431
    %4289 = vmatprep.subr.mxu0 0.0
    %4290 = vmatpush1.msra.mxu0 %v2432
    %4291 = vmatprep.subr.mxu0 0.0
    %4292 = vmatpush1.msra.mxu0 %v2433
    %4293 = vmatprep.subr.mxu0 0.0
    %4294 = vmatpush1.msra.mxu0 %v2434
    %4295 = vmatprep.subr.mxu0 0.0
    %4296 = vmatpush1.msra.mxu0 %v2435
    %4297 = vmatprep.subr.mxu0 0.0
    %4298 = vmatpush1.msra.mxu0 %v2436
    %4299 = vmatprep.subr.mxu0 0.0
    %4300 = vmatpush1.msra.mxu0 0.0
    %4301 = vmatprep.subr.mxu0 0.0
    %4302 = vmatpush1.msra.mxu0 0.0
    %4303 = vmatprep.subr.mxu0 0.0
    %4304 = vmatpush1.msra.mxu0 0.0
    %4305 = vmatprep.subr.mxu0 0.0
    %4306 = vmatpush1.msra.mxu0 0.0
    %4307 = vmatprep.subr.mxu0 0.0
    %4308 = vmatpush1.msra.mxu0 0.0
    %4309 = vmatprep.subr.mxu0 0.0
    %4310 = vmatpush1.msra.mxu0 0.0
    %4311 = vmatprep.subr.mxu0 0.0
    %4312 = vmatpush1.msra.mxu0 0.0
    %4313 = vmatprep.subr.mxu0 0.0
    %4314 = vmatpush1.msra.mxu0 0.0
    %4315 = vmatprep.subr.mxu0 0.0
    %4316 = vmatpush1.msra.mxu0 0.0
    %4317 = vmatprep.subr.mxu0 0.0
    %4318 = vmatpush1.msra.mxu0 0.0
    %4319 = vmatprep.subr.mxu0 0.0
    %4320 = vmatpush1.msra.mxu0 0.0
    %4321 = vmatprep.subr.mxu0 0.0
    %4322 = vmatpush1.msra.mxu0 0.0
    %4323 = vmatprep.subr.mxu0 0.0
    %4324 = vmatpush1.msra.mxu0 0.0
    %4325 = vmatprep.subr.mxu0 0.0
    %4326 = vmatpush1.msra.mxu0 0.0
    %4327 = vmatprep.subr.mxu0 0.0
    %4328 = vmatpush1.msra.mxu0 0.0
    %4329 = vmatprep.subr.mxu0 0.0
    %4330 = vmatpush1.msra.mxu0 0.0
    %4331 = vmatprep.mubr.f32.mxu0 0.0
    %4332 = vmatmul.mubr.f32.gmra.mrb[0].mxu0 %v4259
    %v4333 = vpop.f32.mrb[0].mxu0
    %v4334 = vadd.f32 %v4265, %v4333
    %v4335 = vpop.f32.mrb[0].mxu0
    %4336 = vmatprep.mubr.f32.mxu0 0.0
    %4337 = vmatmul.mubr.f32.gmra.mrb[0].mxu0 %v4260
    %v4338 = vpop.f32.mrb[0].mxu0
    %v4339 = vadd.f32 %v4265, %v4338
    %v4340 = vpop.f32.mrb[0].mxu0
    %4341 = vdwg.mxu0
    %4343 = vset.pattern.permute.xlu0 1
    %4344 = vperm.xlu0 %4343, %v4168
    %v4345 = vpop.permute.xlu0 %4344
    %4348 = vset.pattern.permute.xlu0 1
    %4349 = vperm.xlu0 %4348, %v4169
    %v4350 = vpop.permute.xlu0 %4349
    %v4352 = vmul.f32 %v4345, %v4334
    %v4353 = vmul.f32 %v4350, %v4339
    %v4354 = vsub.f32 1.0, %v4168
    %v4355 = vsub.f32 1.0, %v4169
    %4357 = vset.pattern.permute.xlu0 1
    %4358 = vperm.xlu0 %4357, %v4354
    %v4359 = vpop.permute.xlu0 %4358
    %4362 = vset.pattern.permute.xlu0 1
    %4363 = vperm.xlu0 %4362, %v4355
    %v4364 = vpop.permute.xlu0 %4363
    %v4366 = vmul.f32 %v4359, %v4334
    %v4367 = vmul.f32 %v4364, %v4339
    %4370 = vrot.lane.b32.xlu0 %v4366, 32
    %v4371 = vpop.permute.xlu0 %4370
    %4372 = vrot.lane.b32.xlu0 %v4367, 32
    %v4373 = vpop.permute.xlu0 %4372
    %v4376 = vadd.f32 %v4352, %v4371
    %v4377 = vadd.f32 %v4353, %v4373
    %4378 = vrot.lane.b32.xlu0 %v4354, 127
    %v4379 = vpop.permute.xlu0 %4378
    %4380 = vrot.lane.b32.xlu0 %v4355, 127
    %v4381 = vpop.permute.xlu0 %4380
    %v4384 = vsel %vm2241, %v4379, %v4168
    %v4385 = vsel %vm2241, %v4381, %v4169
    %4386 = vmatprep.subr.mxu0 0.0
    %4387 = vmatpush1.msra.mxu0 %v4384
    %4388 = vmatprep.subr.mxu0 0.0
    %4389 = vmatpush1.msra.mxu0 %v4385
    %4390 = vmatprep.subr.mxu0 0.0
    %4391 = vmatpush1.msra.mxu0 0.0
    %4392 = vmatprep.subr.mxu0 0.0
    %4393 = vmatpush1.msra.mxu0 0.0
    %4394 = vmatprep.subr.mxu0 0.0
    %4395 = vmatpush1.msra.mxu0 0.0
    %4396 = vmatprep.subr.mxu0 0.0
    %4397 = vmatpush1.msra.mxu0 0.0
    %4398 = vmatprep.subr.mxu0 0.0
    %4399 = vmatpush1.msra.mxu0 0.0
    %4400 = vmatprep.subr.mxu0 0.0
    %4401 = vmatpush1.msra.mxu0 0.0
    %4402 = vmatprep.subr.mxu0 0.0
    %4403 = vmatpush1.msra.mxu0 0.0
    %4404 = vmatprep.subr.mxu0 0.0
    %4405 = vmatpush1.msra.mxu0 0.0
    %4406 = vmatprep.subr.mxu0 0.0
    %4407 = vmatpush1.msra.mxu0 0.0
    %4408 = vmatprep.subr.mxu0 0.0
    %4409 = vmatpush1.msra.mxu0 0.0
    %4410 = vmatprep.subr.mxu0 0.0
    %4411 = vmatpush1.msra.mxu0 0.0
    %4412 = vmatprep.subr.mxu0 0.0
    %4413 = vmatpush1.msra.mxu0 0.0
    %4414 = vmatprep.subr.mxu0 0.0
    %4415 = vmatpush1.msra.mxu0 0.0
    %4416 = vmatprep.subr.mxu0 0.0
    %4417 = vmatpush1.msra.mxu0 0.0
    %4418 = vmatprep.subr.mxu0 0.0
    %4419 = vmatpush1.msra.mxu0 0.0
    %4420 = vmatprep.subr.mxu0 0.0
    %4421 = vmatpush1.msra.mxu0 0.0
    %4422 = vmatprep.subr.mxu0 0.0
    %4423 = vmatpush1.msra.mxu0 0.0
    %4424 = vmatprep.subr.mxu0 0.0
    %4425 = vmatpush1.msra.mxu0 0.0
    %4426 = vmatprep.subr.mxu0 0.0
    %4427 = vmatpush1.msra.mxu0 0.0
    %4428 = vmatprep.subr.mxu0 0.0
    %4429 = vmatpush1.msra.mxu0 0.0
    %4430 = vmatprep.subr.mxu0 0.0
    %4431 = vmatpush1.msra.mxu0 0.0
    %4432 = vmatprep.subr.mxu0 0.0
    %4433 = vmatpush1.msra.mxu0 0.0
    %4434 = vmatprep.subr.mxu0 0.0
    %4435 = vmatpush1.msra.mxu0 0.0
    %4436 = vmatprep.subr.mxu0 0.0
    %4437 = vmatpush1.msra.mxu0 0.0
    %4438 = vmatprep.subr.mxu0 0.0
    %4439 = vmatpush1.msra.mxu0 0.0
    %4440 = vmatprep.subr.mxu0 0.0
    %4441 = vmatpush1.msra.mxu0 0.0
    %4442 = vmatprep.subr.mxu0 0.0
    %4443 = vmatpush1.msra.mxu0 0.0
    %4444 = vmatprep.subr.mxu0 0.0
    %4445 = vmatpush1.msra.mxu0 0.0
    %4446 = vmatprep.subr.mxu0 0.0
    %4447 = vmatpush1.msra.mxu0 0.0
    %4448 = vmatprep.subr.mxu0 0.0
    %4449 = vmatpush1.msra.mxu0 0.0
    %4450 = vmatprep.mubr.f32.mxu0 0.0
    %4451 = vmatmul.mubr.f32.gmra.mrb[0].mxu0 %v2256
    %v4452 = vpop.f32.mrb[0].mxu0
    %v4453 = vadd.f32 0.0, %v4452
    %v4454 = vpop.f32.mrb[0].mxu0
    %4455 = vmatprep.mubr.f32.mxu0 0.0
    %4456 = vmatmul.mubr.f32.gmra.mrb[0].mxu0 %v2259
    %v4457 = vpop.f32.mrb[0].mxu0
    %v4458 = vadd.f32 0.0, %v4457
    %v4459 = vpop.f32.mrb[0].mxu0
    %4460 = vdwg.mxu0
    %v4461 = vmul.f32 %v4453, %v4384
    %v4462 = vmul.f32 %v4458, %v4385
    %v4463 = vsel %vm1990, %v4461, 0.0
    %4464 = vadd.xlane.f32.xlu0 %v4463
    %v4465 = vpop.xlane.xlu0 %4464
    %v4466 = vsel %vm1990, %v4462, 0.0
    %4467 = vadd.xlane.f32.xlu0 %v4466
    %v4468 = vpop.xlane.xlu0 %4467
    %vm4469 = vcmp.le.f32.partialorder %v4465, 8.0
    %vm4470 = vcmp.le.f32.partialorder %v4468, 8.0
    %v4471 = vsel %vm4469, 1, 0
    %v4472 = vsel %vm4470, 1, 0
    %v4473 = vcvt.s32.f32 %v4471
    %v4474 = vcvt.s32.f32 %v4472
    %v4475 = vmul.f32 %v4473, %v4376
    %v4476 = vmul.f32 %v4474, %v4377
    %v4477 = vsub.f32 1.0, %v4473
    %v4478 = vsub.f32 1.0, %v4474
    %v4479 = vmul.f32 %v4477, %v4045
    %v4480 = vmul.f32 %v4478, %v4046
    %4483 = vrot.lane.b32.xlu0 %v4479, 32
    %v4484 = vpop.permute.xlu0 %4483
    %4485 = vrot.lane.b32.xlu0 %v4480, 32
    %v4486 = vpop.permute.xlu0 %4485
    %v4489 = vadd.f32 %v4475, %v4484
    %v4490 = vadd.f32 %v4476, %v4486
    %4492 = vset.pattern.permute.xlu0 0
    %4493 = vperm.xlu0 %4492, %v4176
    %v4494 = vpop.permute.xlu0 %4493
    %4497 = vset.pattern.permute.xlu0 0
    %4498 = vperm.xlu0 %4497, %v4177
    %v4499 = vpop.permute.xlu0 %4498
    %v4501 = vmul.f32 %v4489, %v4494
    %v4502 = vmul.f32 %v4490, %v4499
    %4505 = vrot.lane.b32.xlu0 %v4501, 96
    %v4506 = vpop.permute.xlu0 %4505
    %4507 = vrot.lane.b32.xlu0 %v4502, 96
    %v4508 = vpop.permute.xlu0 %4507
    %v4511 = vadd.f32 %v4007, %v4506
    %v4512 = vadd.f32 %v4008, %v4508
    %v4513 = vld [vmem:[%s33] sm:$0x3]
    %v4514 = vld [vmem:[%s35] sm:$0x7]
    %v4515 = vld [vmem:[%s37] sm:$0x7]
    %v4516 = vld [vmem:[%s39] sm:$0xff]
    %v4517 = vld [vmem:[%s39 + $0x8] sm:$0xff]
    %v4518 = vld [vmem:[%s39 + $0x10] sm:$0xff]
    %v4519 = vld [vmem:[%s39 + $0x18] sm:$0xff]
    %v4520 = vld [vmem:[%s41] sm:$0x1]
    %v4521 = vld [vmem:[%s43] sm:$0xff]
    %v4522 = vld [vmem:[%s43 + $0x8] sm:$0xff]
    %v4523 = vld [vmem:[%s43 + $0x10] sm:$0xff]
    %v4524 = vld [vmem:[%s43 + $0x18] sm:$0xff]
    %v4525 = vld [vmem:[%s45] sm:$0x1]
    %v4526 = vld [vmem:[%s47] sm:$0xff]
    %v4527 = vld [vmem:[%s47 + $0x8] sm:$0xff]
    %v4528 = vld [vmem:[%s47 + $0x10] sm:$0xff]
    %v4529 = vld [vmem:[%s47 + $0x18] sm:$0xff]
    %v4530 = vld [vmem:[%s49] sm:$0x1]
    %v4531 = vld [vmem:[%s51] sm:$0xff]
    %v4532 = vld [vmem:[%s51 + $0x8] sm:$0xff]
    %v4533 = vld [vmem:[%s51 + $0x10] sm:$0xff]
    %v4534 = vld [vmem:[%s51 + $0x18] sm:$0xff]
    %v4535 = vld [vmem:[%s53] sm:$0x1]
    %v4536 = vld [vmem:[%s55] sm:$0xff]
    %v4537 = vld [vmem:[%s55 + $0x8] sm:$0xff]
    %v4538 = vld [vmem:[%s55 + $0x10] sm:$0xff]
    %v4539 = vld [vmem:[%s55 + $0x18] sm:$0xff]
    %v4540 = vld [vmem:[%s57] sm:$0x1]
    %v4541 = vld [vmem:[%s59] sm:$0xff]
    %v4542 = vld [vmem:[%s59 + $0x8] sm:$0xff]
    %v4543 = vld [vmem:[%s59 + $0x10] sm:$0xff]
    %v4544 = vld [vmem:[%s59 + $0x18] sm:$0xff]
    %v4545 = vld [vmem:[%s61] sm:$0x1]
    %v4546 = vld [vmem:[%s63] sm:$0xff]
    %v4547 = vld [vmem:[%s63 + $0x8] sm:$0xff]
    %v4548 = vld [vmem:[%s63 + $0x10] sm:$0xff]
    %v4549 = vld [vmem:[%s63 + $0x18] sm:$0xff]
    %v4550 = vld [vmem:[%s65] sm:$0x1]
    %v4551 = vld [vmem:[%s67] sm:$0xff]
    %v4552 = vld [vmem:[%s67 + $0x8] sm:$0xff]
    %v4553 = vld [vmem:[%s67 + $0x10] sm:$0xff]
    %v4554 = vld [vmem:[%s67 + $0x18] sm:$0xff]
    %v4555 = vld [vmem:[%s67 + $0x20] sm:$0xff]
    %v4556 = vld [vmem:[%s67 + $0x28] sm:$0xff]
    %v4557 = vld [vmem:[%s67 + $0x30] sm:$0xff]
    %v4558 = vld [vmem:[%s67 + $0x38] sm:$0xff]
    %v4559 = vld [vmem:[%s67 + $0x40] sm:$0xff]
    %v4560 = vld [vmem:[%s67 + $0x48] sm:$0xff]
    %v4561 = vld [vmem:[%s67 + $0x50] sm:$0xff]
    %v4562 = vld [vmem:[%s67 + $0x58] sm:$0xff]
    %v4563 = vld [vmem:[%s67 + $0x60] sm:$0xff]
    %v4564 = vld [vmem:[%s67 + $0x68] sm:$0xff]
    %v4565 = vld [vmem:[%s67 + $0x70] sm:$0xff]
    %v4566 = vld [vmem:[%s67 + $0x78] sm:$0xff]
    %v4567 = vld [vmem:[%s69] sm:$0x1]
    %vm4568 = vcmask 254976
    %v4569 = vsel %vm4568, %v4513, 0.0
    %4570 = vadd.xlane.f32.xlu0 %v4569
    %v4571 = vpop.xlane.xlu0 %4570
    %v4572 = vmul.f32 %v4571, %v298
    %v4573 = vsub.f32 %v4513, %v4572
    %v4574 = vmul.f32 %v4573, %v4573
    %v4575 = vsel %vm4568, %v4574, 0.0
    %4576 = vadd.xlane.f32.xlu0 %v4575
    %v4577 = vpop.xlane.xlu0 %4576
    %v4578 = vmul.f32 %v4577, %v298
    %v4579 = vadd.f32 %v4578, 1e-05
    %v4580 = vrsqrt.pop %v4579
    %v4581 = vmul.f32 %v4573, %v4580
    %v4582 = vlaneseq
    %v4583 = vshrl.u32 %v4582, 7
    %v4584 = vsub.s32 0, %v4583
    %v4585 = vrot.slane %v4514, %v4584
    %v4586 = vmul.f32 %v4581, %v4585
    %v4587 = vlaneseq
    %v4588 = vshrl.u32 %v4587, 7
    %v4589 = vsub.s32 0, %v4588
    %v4590 = vrot.slane %v4515, %v4589
    %v4591 = vadd.f32 %v4586, %v4590
    %v4593 = vlaneseq
    %v4594 = vshrl.u32 %v4593, 7
    %v4595 = vsub.s32 0, %v4594
    %v4596 = vrot.slane %v4520, %v4595
    %v4599 = vsel %vm291, %v4591, 0
    %4601 = vmatprep.subr.mxu0 0.0
    %4602 = vmatpush1.msra.mxu0 %v4516
    %4603 = vmatprep.subr.mxu0 0.0
    %4604 = vmatpush1.msra.mxu0 %v4517
    %4605 = vmatprep.subr.mxu0 0.0
    %4606 = vmatpush1.msra.mxu0 %v4518
    %4607 = vmatprep.subr.mxu0 0.0
    %4608 = vmatpush1.msra.mxu0 %v4519
    %4609 = vmatprep.subr.mxu0 0.0
    %4610 = vmatpush1.msra.mxu0 0.0
    %4611 = vmatprep.subr.mxu0 0.0
    %4612 = vmatpush1.msra.mxu0 0.0
    %4613 = vmatprep.subr.mxu0 0.0
    %4614 = vmatpush1.msra.mxu0 0.0
    %4615 = vmatprep.subr.mxu0 0.0
    %4616 = vmatpush1.msra.mxu0 0.0
    %4617 = vmatprep.subr.mxu0 0.0
    %4618 = vmatpush1.msra.mxu0 0.0
    %4619 = vmatprep.subr.mxu0 0.0
    %4620 = vmatpush1.msra.mxu0 0.0
    %4621 = vmatprep.subr.mxu0 0.0
    %4622 = vmatpush1.msra.mxu0 0.0
    %4623 = vmatprep.subr.mxu0 0.0
    %4624 = vmatpush1.msra.mxu0 0.0
    %4625 = vmatprep.subr.mxu0 0.0
    %4626 = vmatpush1.msra.mxu0 0.0
    %4627 = vmatprep.subr.mxu0 0.0
    %4628 = vmatpush1.msra.mxu0 0.0
    %4629 = vmatprep.subr.mxu0 0.0
    %4630 = vmatpush1.msra.mxu0 0.0
    %4631 = vmatprep.subr.mxu0 0.0
    %4632 = vmatpush1.msra.mxu0 0.0
    %4633 = vmatprep.subr.mxu0 0.0
    %4634 = vmatpush1.msra.mxu0 0.0
    %4635 = vmatprep.subr.mxu0 0.0
    %4636 = vmatpush1.msra.mxu0 0.0
    %4637 = vmatprep.subr.mxu0 0.0
    %4638 = vmatpush1.msra.mxu0 0.0
    %4639 = vmatprep.subr.mxu0 0.0
    %4640 = vmatpush1.msra.mxu0 0.0
    %4641 = vmatprep.subr.mxu0 0.0
    %4642 = vmatpush1.msra.mxu0 0.0
    %4643 = vmatprep.subr.mxu0 0.0
    %4644 = vmatpush1.msra.mxu0 0.0
    %4645 = vmatprep.subr.mxu0 0.0
    %4646 = vmatpush1.msra.mxu0 0.0
    %4647 = vmatprep.subr.mxu0 0.0
    %4648 = vmatpush1.msra.mxu0 0.0
    %4649 = vmatprep.subr.mxu0 0.0
    %4650 = vmatpush1.msra.mxu0 0.0
    %4651 = vmatprep.subr.mxu0 0.0
    %4652 = vmatpush1.msra.mxu0 0.0
    %4653 = vmatprep.subr.mxu0 0.0
    %4654 = vmatpush1.msra.mxu0 0.0
    %4655 = vmatprep.subr.mxu0 0.0
    %4656 = vmatpush1.msra.mxu0 0.0
    %4657 = vmatprep.subr.mxu0 0.0
    %4658 = vmatpush1.msra.mxu0 0.0
    %4659 = vmatprep.subr.mxu0 0.0
    %4660 = vmatpush1.msra.mxu0 0.0
    %4661 = vmatprep.subr.mxu0 0.0
    %4662 = vmatpush1.msra.mxu0 0.0
    %4663 = vmatprep.subr.mxu0 0.0
    %4664 = vmatpush1.msra.mxu0 0.0
    %4665 = vmatprep.mubr.f32.mxu0 0.0
    %4666 = vmatmul.mubr.f32.gmra.mrb[0].mxu0 %v4599
    %v4667 = vpop.f32.mrb[0].mxu0
    %v4668 = vadd.f32 %v4596, %v4667
    %v4669 = vpop.f32.mrb[0].mxu0
    %4670 = vdwg.mxu0
    %v4672 = vlaneseq
    %v4673 = vshrl.u32 %v4672, 7
    %v4674 = vsub.s32 0, %v4673
    %v4675 = vrot.slane %v4525, %v4674
    %4678 = vrot.lane.b32.xlu0 %v4668, 64
    %v4679 = vpop.permute.xlu0 %4678
    %v4680 = vsel %vm291, %v4679, 0
    %4682 = vmatprep.subr.mxu0 0.0
    %4683 = vmatpush1.msra.mxu0 %v4521
    %4684 = vmatprep.subr.mxu0 0.0
    %4685 = vmatpush1.msra.mxu0 %v4522
    %4686 = vmatprep.subr.mxu0 0.0
    %4687 = vmatpush1.msra.mxu0 %v4523
    %4688 = vmatprep.subr.mxu0 0.0
    %4689 = vmatpush1.msra.mxu0 %v4524
    %4690 = vmatprep.subr.mxu0 0.0
    %4691 = vmatpush1.msra.mxu0 0.0
    %4692 = vmatprep.subr.mxu0 0.0
    %4693 = vmatpush1.msra.mxu0 0.0
    %4694 = vmatprep.subr.mxu0 0.0
    %4695 = vmatpush1.msra.mxu0 0.0
    %4696 = vmatprep.subr.mxu0 0.0
    %4697 = vmatpush1.msra.mxu0 0.0
    %4698 = vmatprep.subr.mxu0 0.0
    %4699 = vmatpush1.msra.mxu0 0.0
    %4700 = vmatprep.subr.mxu0 0.0
    %4701 = vmatpush1.msra.mxu0 0.0
    %4702 = vmatprep.subr.mxu0 0.0
    %4703 = vmatpush1.msra.mxu0 0.0
    %4704 = vmatprep.subr.mxu0 0.0
    %4705 = vmatpush1.msra.mxu0 0.0
    %4706 = vmatprep.subr.mxu0 0.0
    %4707 = vmatpush1.msra.mxu0 0.0
    %4708 = vmatprep.subr.mxu0 0.0
    %4709 = vmatpush1.msra.mxu0 0.0
    %4710 = vmatprep.subr.mxu0 0.0
    %4711 = vmatpush1.msra.mxu0 0.0
    %4712 = vmatprep.subr.mxu0 0.0
    %4713 = vmatpush1.msra.mxu0 0.0
    %4714 = vmatprep.subr.mxu0 0.0
    %4715 = vmatpush1.msra.mxu0 0.0
    %4716 = vmatprep.subr.mxu0 0.0
    %4717 = vmatpush1.msra.mxu0 0.0
    %4718 = vmatprep.subr.mxu0 0.0
    %4719 = vmatpush1.msra.mxu0 0.0
    %4720 = vmatprep.subr.mxu0 0.0
    %4721 = vmatpush1.msra.mxu0 0.0
    %4722 = vmatprep.subr.mxu0 0.0
    %4723 = vmatpush1.msra.mxu0 0.0
    %4724 = vmatprep.subr.mxu0 0.0
    %4725 = vmatpush1.msra.mxu0 0.0
    %4726 = vmatprep.subr.mxu0 0.0
    %4727 = vmatpush1.msra.mxu0 0.0
    %4728 = vmatprep.subr.mxu0 0.0
    %4729 = vmatpush1.msra.mxu0 0.0
    %4730 = vmatprep.subr.mxu0 0.0
    %4731 = vmatpush1.msra.mxu0 0.0
    %4732 = vmatprep.subr.mxu0 0.0
    %4733 = vmatpush1.msra.mxu0 0.0
    %4734 = vmatprep.subr.mxu0 0.0
    %4735 = vmatpush1.msra.mxu0 0.0
    %4736 = vmatprep.subr.mxu0 0.0
    %4737 = vmatpush1.msra.mxu0 0.0
    %4738 = vmatprep.subr.mxu0 0.0
    %4739 = vmatpush1.msra.mxu0 0.0
    %4740 = vmatprep.subr.mxu0 0.0
    %4741 = vmatpush1.msra.mxu0 0.0
    %4742 = vmatprep.subr.mxu0 0.0
    %4743 = vmatpush1.msra.mxu0 0.0
    %4744 = vmatprep.subr.mxu0 0.0
    %4745 = vmatpush1.msra.mxu0 0.0
    %4746 = vmatprep.mubr.f32.mxu0 0.0
    %4747 = vmatmul.mubr.f32.gmra.mrb[0].mxu0 %v4680
    %v4748 = vpop.f32.mrb[0].mxu0
    %v4749 = vadd.f32 %v4675, %v4748
    %v4750 = vpop.f32.mrb[0].mxu0
    %4751 = vdwg.mxu0
    %v4752 = vadd.f32 %v4513, %v4749
    %v4753 = vsel %vm4568, %v4752, 0.0
    %4754 = vadd.xlane.f32.xlu0 %v4753
    %v4755 = vpop.xlane.xlu0 %4754
    %v4756 = vmul.f32 %v4755, %v298
    %v4757 = vsub.f32 %v4752, %v4756
    %v4758 = vmul.f32 %v4757, %v4757
    %v4759 = vsel %vm4568, %v4758, 0.0
    %4760 = vadd.xlane.f32.xlu0 %v4759
    %v4761 = vpop.xlane.xlu0 %4760
    %v4762 = vmul.f32 %v4761, %v298
    %v4763 = vadd.f32 %v4762, 1e-05
    %v4764 = vrsqrt.pop %v4763
    %v4765 = vmul.f32 %v4757, %v4764
    %v4766 = vlaneseq
    %v4767 = vshrl.u32 %v4766, 7
    %v4768 = vsub.s32 1, %v4767
    %v4769 = vrot.slane %v4514, %v4768
    %v4770 = vmul.f32 %v4765, %v4769
    %v4771 = vlaneseq
    %v4772 = vshrl.u32 %v4771, 7
    %v4773 = vsub.s32 1, %v4772
    %v4774 = vrot.slane %v4515, %v4773
    %v4775 = vadd.f32 %v4770, %v4774
    %v4777 = vlaneseq
    %v4778 = vshrl.u32 %v4777, 7
    %v4779 = vsub.s32 0, %v4778
    %v4780 = vrot.slane %v4530, %v4779
    %v4783 = vsel %vm291, %v4775, 0
    %4785 = vmatprep.subr.mxu0 0.0
    %4786 = vmatpush1.msra.mxu0 %v4526
    %4787 = vmatprep.subr.mxu0 0.0
    %4788 = vmatpush1.msra.mxu0 %v4527
    %4789 = vmatprep.subr.mxu0 0.0
    %4790 = vmatpush1.msra.mxu0 %v4528
    %4791 = vmatprep.subr.mxu0 0.0
    %4792 = vmatpush1.msra.mxu0 %v4529
    %4793 = vmatprep.subr.mxu0 0.0
    %4794 = vmatpush1.msra.mxu0 0.0
    %4795 = vmatprep.subr.mxu0 0.0
    %4796 = vmatpush1.msra.mxu0 0.0
    %4797 = vmatprep.subr.mxu0 0.0
    %4798 = vmatpush1.msra.mxu0 0.0
    %4799 = vmatprep.subr.mxu0 0.0
    %4800 = vmatpush1.msra.mxu0 0.0
    %4801 = vmatprep.subr.mxu0 0.0
    %4802 = vmatpush1.msra.mxu0 0.0
    %4803 = vmatprep.subr.mxu0 0.0
    %4804 = vmatpush1.msra.mxu0 0.0
    %4805 = vmatprep.subr.mxu0 0.0
    %4806 = vmatpush1.msra.mxu0 0.0
    %4807 = vmatprep.subr.mxu0 0.0
    %4808 = vmatpush1.msra.mxu0 0.0
    %4809 = vmatprep.subr.mxu0 0.0
    %4810 = vmatpush1.msra.mxu0 0.0
    %4811 = vmatprep.subr.mxu0 0.0
    %4812 = vmatpush1.msra.mxu0 0.0
    %4813 = vmatprep.subr.mxu0 0.0
    %4814 = vmatpush1.msra.mxu0 0.0
    %4815 = vmatprep.subr.mxu0 0.0
    %4816 = vmatpush1.msra.mxu0 0.0
    %4817 = vmatprep.subr.mxu0 0.0
    %4818 = vmatpush1.msra.mxu0 0.0
    %4819 = vmatprep.subr.mxu0 0.0
    %4820 = vmatpush1.msra.mxu0 0.0
    %4821 = vmatprep.subr.mxu0 0.0
    %4822 = vmatpush1.msra.mxu0 0.0
    %4823 = vmatprep.subr.mxu0 0.0
    %4824 = vmatpush1.msra.mxu0 0.0
    %4825 = vmatprep.subr.mxu0 0.0
    %4826 = vmatpush1.msra.mxu0 0.0
    %4827 = vmatprep.subr.mxu0 0.0
    %4828 = vmatpush1.msra.mxu0 0.0
    %4829 = vmatprep.subr.mxu0 0.0
    %4830 = vmatpush1.msra.mxu0 0.0
    %4831 = vmatprep.subr.mxu0 0.0
    %4832 = vmatpush1.msra.mxu0 0.0
    %4833 = vmatprep.subr.mxu0 0.0
    %4834 = vmatpush1.msra.mxu0 0.0
    %4835 = vmatprep.subr.mxu0 0.0
    %4836 = vmatpush1.msra.mxu0 0.0
    %4837 = vmatprep.subr.mxu0 0.0
    %4838 = vmatpush1.msra.mxu0 0.0
    %4839 = vmatprep.subr.mxu0 0.0
    %4840 = vmatpush1.msra.mxu0 0.0
    %4841 = vmatprep.subr.mxu0 0.0
    %4842 = vmatpush1.msra.mxu0 0.0
    %4843 = vmatprep.subr.mxu0 0.0
    %4844 = vmatpush1.msra.mxu0 0.0
    %4845 = vmatprep.subr.mxu0 0.0
    %4846 = vmatpush1.msra.mxu0 0.0
    %4847 = vmatprep.subr.mxu0 0.0
    %4848 = vmatpush1.msra.mxu0 0.0
    %4849 = vmatprep.mubr.f32.mxu0 0.0
    %4850 = vmatmul.mubr.f32.gmra.mrb[0].mxu0 %v4783
    %v4851 = vpop.f32.mrb[0].mxu0
    %v4852 = vadd.f32 %v4780, %v4851
    %v4853 = vpop.f32.mrb[0].mxu0
    %4854 = vdwg.mxu0
    %v4856 = vlaneseq
    %v4857 = vshrl.u32 %v4856, 7
    %v4858 = vsub.s32 0, %v4857
    %v4859 = vrot.slane %v4535, %v4858
    %v4862 = vsel %vm291, %v2386, 0
    %v4865 = vsel %vm291, %v2387, 0
    %4867 = vmatprep.subr.mxu0 0.0
    %4868 = vmatpush1.msra.mxu0 %v4531
    %4869 = vmatprep.subr.mxu0 0.0
    %4870 = vmatpush1.msra.mxu0 %v4532
    %4871 = vmatprep.subr.mxu0 0.0
    %4872 = vmatpush1.msra.mxu0 %v4533
    %4873 = vmatprep.subr.mxu0 0.0
    %4874 = vmatpush1.msra.mxu0 %v4534
    %4875 = vmatprep.subr.mxu0 0.0
    %4876 = vmatpush1.msra.mxu0 0.0
    %4877 = vmatprep.subr.mxu0 0.0
    %4878 = vmatpush1.msra.mxu0 0.0
    %4879 = vmatprep.subr.mxu0 0.0
    %4880 = vmatpush1.msra.mxu0 0.0
    %4881 = vmatprep.subr.mxu0 0.0
    %4882 = vmatpush1.msra.mxu0 0.0
    %4883 = vmatprep.subr.mxu0 0.0
    %4884 = vmatpush1.msra.mxu0 0.0
    %4885 = vmatprep.subr.mxu0 0.0
    %4886 = vmatpush1.msra.mxu0 0.0
    %4887 = vmatprep.subr.mxu0 0.0
    %4888 = vmatpush1.msra.mxu0 0.0
    %4889 = vmatprep.subr.mxu0 0.0
    %4890 = vmatpush1.msra.mxu0 0.0
    %4891 = vmatprep.subr.mxu0 0.0
    %4892 = vmatpush1.msra.mxu0 0.0
    %4893 = vmatprep.subr.mxu0 0.0
    %4894 = vmatpush1.msra.mxu0 0.0
    %4895 = vmatprep.subr.mxu0 0.0
    %4896 = vmatpush1.msra.mxu0 0.0
    %4897 = vmatprep.subr.mxu0 0.0
    %4898 = vmatpush1.msra.mxu0 0.0
    %4899 = vmatprep.subr.mxu0 0.0
    %4900 = vmatpush1.msra.mxu0 0.0
    %4901 = vmatprep.subr.mxu0 0.0
    %4902 = vmatpush1.msra.mxu0 0.0
    %4903 = vmatprep.subr.mxu0 0.0
    %4904 = vmatpush1.msra.mxu0 0.0
    %4905 = vmatprep.subr.mxu0 0.0
    %4906 = vmatpush1.msra.mxu0 0.0
    %4907 = vmatprep.subr.mxu0 0.0
    %4908 = vmatpush1.msra.mxu0 0.0
    %4909 = vmatprep.subr.mxu0 0.0
    %4910 = vmatpush1.msra.mxu0 0.0
    %4911 = vmatprep.subr.mxu0 0.0
    %4912 = vmatpush1.msra.mxu0 0.0
    %4913 = vmatprep.subr.mxu0 0.0
    %4914 = vmatpush1.msra.mxu0 0.0
    %4915 = vmatprep.subr.mxu0 0.0
    %4916 = vmatpush1.msra.mxu0 0.0
    %4917 = vmatprep.subr.mxu0 0.0
    %4918 = vmatpush1.msra.mxu0 0.0
    %4919 = vmatprep.subr.mxu0 0.0
    %4920 = vmatpush1.msra.mxu0 0.0
    %4921 = vmatprep.subr.mxu0 0.0
    %4922 = vmatpush1.msra.mxu0 0.0
    %4923 = vmatprep.subr.mxu0 0.0
    %4924 = vmatpush1.msra.mxu0 0.0
    %4925 = vmatprep.subr.mxu0 0.0
    %4926 = vmatpush1.msra.mxu0 0.0
    %4927 = vmatprep.subr.mxu0 0.0
    %4928 = vmatpush1.msra.mxu0 0.0
    %4929 = vmatprep.subr.mxu0 0.0
    %4930 = vmatpush1.msra.mxu0 0.0
    %4931 = vmatprep.mubr.f32.mxu0 0.0
    %4932 = vmatmul.mubr.f32.gmra.mrb[0].mxu0 %v4862
    %v4933 = vpop.f32.mrb[0].mxu0
    %v4934 = vadd.f32 %v4859, %v4933
    %v4935 = vpop.f32.mrb[0].mxu0
    %4936 = vmatprep.mubr.f32.mxu0 0.0
    %4937 = vmatmul.mubr.f32.gmra.mrb[0].mxu0 %v4865
    %v4938 = vpop.f32.mrb[0].mxu0
    %v4939 = vadd.f32 %v4859, %v4938
    %v4940 = vpop.f32.mrb[0].mxu0
    %4941 = vdwg.mxu0
    %v4943 = vsel %vm421, %v4852, 0
    %v4946 = vsel %vm421, %v4934, 0
    %4948 = vmatprep.subr.mxu0 0.0
    %4949 = vmatpush1.xpose.msra.mxu0 %v4946
    %4950 = vmatprep.subr.mxu0 0.0
    %4951 = vmatpush1.xpose.msra.mxu0 0.0
    %4952 = vmatprep.subr.mxu0 0.0
    %4953 = vmatpush1.xpose.msra.mxu0 0.0
    %4954 = vmatprep.subr.mxu0 0.0
    %4955 = vmatpush1.xpose.msra.mxu0 0.0
    %4956 = vmatprep.subr.mxu0 0.0
    %4957 = vmatpush1.xpose.msra.mxu0 0.0
    %4958 = vmatprep.subr.mxu0 0.0
    %4959 = vmatpush1.xpose.msra.mxu0 0.0
    %4960 = vmatprep.subr.mxu0 0.0
    %4961 = vmatpush1.xpose.msra.mxu0 0.0
    %4962 = vmatprep.subr.mxu0 0.0
    %4963 = vmatpush1.xpose.msra.mxu0 0.0
    %4964 = vmatprep.subr.mxu0 0.0
    %4965 = vmatpush1.xpose.msra.mxu0 0.0
    %4966 = vmatprep.subr.mxu0 0.0
    %4967 = vmatpush1.xpose.msra.mxu0 0.0
    %4968 = vmatprep.subr.mxu0 0.0
    %4969 = vmatpush1.xpose.msra.mxu0 0.0
    %4970 = vmatprep.subr.mxu0 0.0
    %4971 = vmatpush1.xpose.msra.mxu0 0.0
    %4972 = vmatprep.subr.mxu0 0.0
    %4973 = vmatpush1.xpose.msra.mxu0 0.0
    %4974 = vmatprep.subr.mxu0 0.0
    %4975 = vmatpush1.xpose.msra.mxu0 0.0
    %4976 = vmatprep.subr.mxu0 0.0
    %4977 = vmatpush1.xpose.msra.mxu0 0.0
    %4978 = vmatprep.subr.mxu0 0.0
    %4979 = vmatpush1.xpose.msra.mxu0 0.0
    %4980 = vmatprep.subr.mxu0 0.0
    %4981 = vmatpush1.xpose.msra.mxu0 0.0
    %4982 = vmatprep.subr.mxu0 0.0
    %4983 = vmatpush1.xpose.msra.mxu0 0.0
    %4984 = vmatprep.subr.mxu0 0.0
    %4985 = vmatpush1.xpose.msra.mxu0 0.0
    %4986 = vmatprep.subr.mxu0 0.0
    %4987 = vmatpush1.xpose.msra.mxu0 0.0
    %4988 = vmatprep.subr.mxu0 0.0
    %4989 = vmatpush1.xpose.msra.mxu0 0.0
    %4990 = vmatprep.subr.mxu0 0.0
    %4991 = vmatpush1.xpose.msra.mxu0 0.0
    %4992 = vmatprep.subr.mxu0 0.0
    %4993 = vmatpush1.xpose.msra.mxu0 0.0
    %4994 = vmatprep.subr.mxu0 0.0
    %4995 = vmatpush1.xpose.msra.mxu0 0.0
    %4996 = vmatprep.subr.mxu0 0.0
    %4997 = vmatpush1.xpose.msra.mxu0 0.0
    %4998 = vmatprep.subr.mxu0 0.0
    %4999 = vmatpush1.xpose.msra.mxu0 0.0
    %5000 = vmatprep.subr.mxu0 0.0
    %5001 = vmatpush1.xpose.msra.mxu0 0.0
    %5002 = vmatprep.subr.mxu0 0.0
    %5003 = vmatpush1.xpose.msra.mxu0 0.0
    %5004 = vmatprep.subr.mxu0 0.0
    %5005 = vmatpush1.xpose.msra.mxu0 0.0
    %5006 = vmatprep.subr.mxu0 0.0
    %5007 = vmatpush1.xpose.msra.mxu0 0.0
    %5008 = vmatprep.subr.mxu0 0.0
    %5009 = vmatpush1.xpose.msra.mxu0 0.0
    %5010 = vmatprep.subr.mxu0 0.0
    %5011 = vmatpush1.xpose.msra.mxu0 0.0
    %5012 = vmatprep.mubr.f32.mxu0 0.0
    %5013 = vmatmul.mubr.f32.gmra.mrb[0].mxu0 %v4943
    %v5014 = vpop.f32.mrb[0].mxu0
    %v5015 = vadd.f32 0.0, %v5014
    %v5016 = vpop.f32.mrb[0].mxu0
    %5017 = vdwg.mxu0
    %v5018 = vmul.f32 %v5015, 0.35355338
    %vm5019 = vcmask 57344
    %v5020 = vsel %vm5019, %v5018, -inf
    %5021 = vmax.xlane.f32.xlu0 %v5020
    %v5022 = vpop.xlane.xlu0 %5021
    %v5023 = vsub.f32 %v5018, %v5022
    %v5024 = vmul.f32 %v5023, 1.442695
    %v5025 = vpow.pop %v5024
    %v5026 = vsel %vm5019, %v5025, 0.0
    %5027 = vadd.xlane.f32.xlu0 %v5026
    %v5028 = vpop.xlane.xlu0 %5027
    %v5029 = vrcp.pop %v5028
    %v5030 = vmul.f32 %v5025, %v5029
    %5031 = vrot.lane.b32.xlu0 %v4934, 96
    %v5032 = vpop.permute.xlu0 %5031
    %v5035 = vsel %vm421, %v5030, 0
    %5037 = vmatprep.subr.mxu0 0.0
    %5038 = vmatpush1.msra.mxu0 %v5032
    %5039 = vmatprep.subr.mxu0 0.0
    %5040 = vmatpush1.msra.mxu0 0.0
    %5041 = vmatprep.subr.mxu0 0.0
    %5042 = vmatpush1.msra.mxu0 0.0
    %5043 = vmatprep.subr.mxu0 0.0
    %5044 = vmatpush1.msra.mxu0 0.0
    %5045 = vmatprep.subr.mxu0 0.0
    %5046 = vmatpush1.msra.mxu0 0.0
    %5047 = vmatprep.subr.mxu0 0.0
    %5048 = vmatpush1.msra.mxu0 0.0
    %5049 = vmatprep.subr.mxu0 0.0
    %5050 = vmatpush1.msra.mxu0 0.0
    %5051 = vmatprep.subr.mxu0 0.0
    %5052 = vmatpush1.msra.mxu0 0.0
    %5053 = vmatprep.subr.mxu0 0.0
    %5054 = vmatpush1.msra.mxu0 0.0
    %5055 = vmatprep.subr.mxu0 0.0
    %5056 = vmatpush1.msra.mxu0 0.0
    %5057 = vmatprep.subr.mxu0 0.0
    %5058 = vmatpush1.msra.mxu0 0.0
    %5059 = vmatprep.subr.mxu0 0.0
    %5060 = vmatpush1.msra.mxu0 0.0
    %5061 = vmatprep.subr.mxu0 0.0
    %5062 = vmatpush1.msra.mxu0 0.0
    %5063 = vmatprep.subr.mxu0 0.0
    %5064 = vmatpush1.msra.mxu0 0.0
    %5065 = vmatprep.subr.mxu0 0.0
    %5066 = vmatpush1.msra.mxu0 0.0
    %5067 = vmatprep.subr.mxu0 0.0
    %5068 = vmatpush1.msra.mxu0 0.0
    %5069 = vmatprep.subr.mxu0 0.0
    %5070 = vmatpush1.msra.mxu0 0.0
    %5071 = vmatprep.subr.mxu0 0.0
    %5072 = vmatpush1.msra.mxu0 0.0
    %5073 = vmatprep.subr.mxu0 0.0
    %5074 = vmatpush1.msra.mxu0 0.0
    %5075 = vmatprep.subr.mxu0 0.0
    %5076 = vmatpush1.msra.mxu0 0.0
    %5077 = vmatprep.subr.mxu0 0.0
    %5078 = vmatpush1.msra.mxu0 0.0
    %5079 = vmatprep.subr.mxu0 0.0
    %5080 = vmatpush1.msra.mxu0 0.0
    %5081 = vmatprep.subr.mxu0 0.0
    %5082 = vmatpush1.msra.mxu0 0.0
    %5083 = vmatprep.subr.mxu0 0.0
    %5084 = vmatpush1.msra.mxu0 0.0
    %5085 = vmatprep.subr.mxu0 0.0
    %5086 = vmatpush1.msra.mxu0 0.0
    %5087 = vmatprep.subr.mxu0 0.0
    %5088 = vmatpush1.msra.mxu0 0.0
    %5089 = vmatprep.subr.mxu0 0.0
    %5090 = vmatpush1.msra.mxu0 0.0
    %5091 = vmatprep.subr.mxu0 0.0
    %5092 = vmatpush1.msra.mxu0 0.0
    %5093 = vmatprep.subr.mxu0 0.0
    %5094 = vmatpush1.msra.mxu0 0.0
    %5095 = vmatprep.subr.mxu0 0.0
    %5096 = vmatpush1.msra.mxu0 0.0
    %5097 = vmatprep.subr.mxu0 0.0
    %5098 = vmatpush1.msra.mxu0 0.0
    %5099 = vmatprep.subr.mxu0 0.0
    %5100 = vmatpush1.msra.mxu0 0.0
    %5101 = vmatprep.mubr.f32.mxu0 0.0
    %5102 = vmatmul.mubr.f32.gmra.mrb[0].mxu0 %v5035
    %v5103 = vpop.f32.mrb[0].mxu0
    %v5104 = vadd.f32 0.0, %v5103
    %v5105 = vpop.f32.mrb[0].mxu0
    %5106 = vdwg.mxu0
    %5107 = vrot.lane.b32.xlu0 %v4852, 120
    %v5108 = vpop.permute.xlu0 %5107
    %5109 = vrot.lane.b32.xlu0 %v4934, 120
    %v5110 = vpop.permute.xlu0 %5109
    %v5111 = vsel %vm421, %v5108, 0
    %v5113 = vsel %vm421, %v5110, 0
    %5115 = vmatprep.subr.mxu0 0.0
    %5116 = vmatpush1.xpose.msra.mxu0 %v5113
    %5117 = vmatprep.subr.mxu0 0.0
    %5118 = vmatpush1.xpose.msra.mxu0 0.0
    %5119 = vmatprep.subr.mxu0 0.0
    %5120 = vmatpush1.xpose.msra.mxu0 0.0
    %5121 = vmatprep.subr.mxu0 0.0
    %5122 = vmatpush1.xpose.msra.mxu0 0.0
    %5123 = vmatprep.subr.mxu0 0.0
    %5124 = vmatpush1.xpose.msra.mxu0 0.0
    %5125 = vmatprep.subr.mxu0 0.0
    %5126 = vmatpush1.xpose.msra.mxu0 0.0
    %5127 = vmatprep.subr.mxu0 0.0
    %5128 = vmatpush1.xpose.msra.mxu0 0.0
    %5129 = vmatprep.subr.mxu0 0.0
    %5130 = vmatpush1.xpose.msra.mxu0 0.0
    %5131 = vmatprep.subr.mxu0 0.0
    %5132 = vmatpush1.xpose.msra.mxu0 0.0
    %5133 = vmatprep.subr.mxu0 0.0
    %5134 = vmatpush1.xpose.msra.mxu0 0.0
    %5135 = vmatprep.subr.mxu0 0.0
    %5136 = vmatpush1.xpose.msra.mxu0 0.0
    %5137 = vmatprep.subr.mxu0 0.0
    %5138 = vmatpush1.xpose.msra.mxu0 0.0
    %5139 = vmatprep.subr.mxu0 0.0
    %5140 = vmatpush1.xpose.msra.mxu0 0.0
    %5141 = vmatprep.subr.mxu0 0.0
    %5142 = vmatpush1.xpose.msra.mxu0 0.0
    %5143 = vmatprep.subr.mxu0 0.0
    %5144 = vmatpush1.xpose.msra.mxu0 0.0
    %5145 = vmatprep.subr.mxu0 0.0
    %5146 = vmatpush1.xpose.msra.mxu0 0.0
    %5147 = vmatprep.subr.mxu0 0.0
    %5148 = vmatpush1.xpose.msra.mxu0 0.0
    %5149 = vmatprep.subr.mxu0 0.0
    %5150 = vmatpush1.xpose.msra.mxu0 0.0
    %5151 = vmatprep.subr.mxu0 0.0
    %5152 = vmatpush1.xpose.msra.mxu0 0.0
    %5153 = vmatprep.subr.mxu0 0.0
    %5154 = vmatpush1.xpose.msra.mxu0 0.0
    %5155 = vmatprep.subr.mxu0 0.0
    %5156 = vmatpush1.xpose.msra.mxu0 0.0
    %5157 = vmatprep.subr.mxu0 0.0
    %5158 = vmatpush1.xpose.msra.mxu0 0.0
    %5159 = vmatprep.subr.mxu0 0.0
    %5160 = vmatpush1.xpose.msra.mxu0 0.0
    %5161 = vmatprep.subr.mxu0 0.0
    %5162 = vmatpush1.xpose.msra.mxu0 0.0
    %5163 = vmatprep.subr.mxu0 0.0
    %5164 = vmatpush1.xpose.msra.mxu0 0.0
    %5165 = vmatprep.subr.mxu0 0.0
    %5166 = vmatpush1.xpose.msra.mxu0 0.0
    %5167 = vmatprep.subr.mxu0 0.0
    %5168 = vmatpush1.xpose.msra.mxu0 0.0
    %5169 = vmatprep.subr.mxu0 0.0
    %5170 = vmatpush1.xpose.msra.mxu0 0.0
    %5171 = vmatprep.subr.mxu0 0.0
    %5172 = vmatpush1.xpose.msra.mxu0 0.0
    %5173 = vmatprep.subr.mxu0 0.0
    %5174 = vmatpush1.xpose.msra.mxu0 0.0
    %5175 = vmatprep.subr.mxu0 0.0
    %5176 = vmatpush1.xpose.msra.mxu0 0.0
    %5177 = vmatprep.subr.mxu0 0.0
    %5178 = vmatpush1.xpose.msra.mxu0 0.0
    %5179 = vmatprep.mubr.f32.mxu0 0.0
    %5180 = vmatmul.mubr.f32.gmra.mrb[0].mxu0 %v5111
    %v5181 = vpop.f32.mrb[0].mxu0
    %v5182 = vadd.f32 0.0, %v5181
    %v5183 = vpop.f32.mrb[0].mxu0
    %5184 = vdwg.mxu0
    %v5185 = vmul.f32 %v5182, 0.35355338
    %v5186 = vsel %vm5019, %v5185, -inf
    %5187 = vmax.xlane.f32.xlu0 %v5186
    %v5188 = vpop.xlane.xlu0 %5187
    %v5189 = vsub.f32 %v5185, %v5188
    %v5190 = vmul.f32 %v5189, 1.442695
    %v5191 = vpow.pop %v5190
    %v5192 = vsel %vm5019, %v5191, 0.0
    %5193 = vadd.xlane.f32.xlu0 %v5192
    %v5194 = vpop.xlane.xlu0 %5193
    %v5195 = vrcp.pop %v5194
    %v5196 = vmul.f32 %v5191, %v5195
    %5197 = vrot.lane.b32.xlu0 %v4934, 88
    %v5198 = vpop.permute.xlu0 %5197
    %v5201 = vsel %vm421, %v5196, 0
    %5203 = vmatprep.subr.mxu0 0.0
    %5204 = vmatpush1.msra.mxu0 %v5198
    %5205 = vmatprep.subr.mxu0 0.0
    %5206 = vmatpush1.msra.mxu0 0.0
    %5207 = vmatprep.subr.mxu0 0.0
    %5208 = vmatpush1.msra.mxu0 0.0
    %5209 = vmatprep.subr.mxu0 0.0
    %5210 = vmatpush1.msra.mxu0 0.0
    %5211 = vmatprep.subr.mxu0 0.0
    %5212 = vmatpush1.msra.mxu0 0.0
    %5213 = vmatprep.subr.mxu0 0.0
    %5214 = vmatpush1.msra.mxu0 0.0
    %5215 = vmatprep.subr.mxu0 0.0
    %5216 = vmatpush1.msra.mxu0 0.0
    %5217 = vmatprep.subr.mxu0 0.0
    %5218 = vmatpush1.msra.mxu0 0.0
    %5219 = vmatprep.subr.mxu0 0.0
    %5220 = vmatpush1.msra.mxu0 0.0
    %5221 = vmatprep.subr.mxu0 0.0
    %5222 = vmatpush1.msra.mxu0 0.0
    %5223 = vmatprep.subr.mxu0 0.0
    %5224 = vmatpush1.msra.mxu0 0.0
    %5225 = vmatprep.subr.mxu0 0.0
    %5226 = vmatpush1.msra.mxu0 0.0
    %5227 = vmatprep.subr.mxu0 0.0
    %5228 = vmatpush1.msra.mxu0 0.0
    %5229 = vmatprep.subr.mxu0 0.0
    %5230 = vmatpush1.msra.mxu0 0.0
    %5231 = vmatprep.subr.mxu0 0.0
    %5232 = vmatpush1.msra.mxu0 0.0
    %5233 = vmatprep.subr.mxu0 0.0
    %5234 = vmatpush1.msra.mxu0 0.0
    %5235 = vmatprep.subr.mxu0 0.0
    %5236 = vmatpush1.msra.mxu0 0.0
    %5237 = vmatprep.subr.mxu0 0.0
    %5238 = vmatpush1.msra.mxu0 0.0
    %5239 = vmatprep.subr.mxu0 0.0
    %5240 = vmatpush1.msra.mxu0 0.0
    %5241 = vmatprep.subr.mxu0 0.0
    %5242 = vmatpush1.msra.mxu0 0.0
    %5243 = vmatprep.subr.mxu0 0.0
    %5244 = vmatpush1.msra.mxu0 0.0
    %5245 = vmatprep.subr.mxu0 0.0
    %5246 = vmatpush1.msra.mxu0 0.0
    %5247 = vmatprep.subr.mxu0 0.0
    %5248 = vmatpush1.msra.mxu0 0.0
    %5249 = vmatprep.subr.mxu0 0.0
    %5250 = vmatpush1.msra.mxu0 0.0
    %5251 = vmatprep.subr.mxu0 0.0
    %5252 = vmatpush1.msra.mxu0 0.0
    %5253 = vmatprep.subr.mxu0 0.0
    %5254 = vmatpush1.msra.mxu0 0.0
    %5255 = vmatprep.subr.mxu0 0.0
    %5256 = vmatpush1.msra.mxu0 0.0
    %5257 = vmatprep.subr.mxu0 0.0
    %5258 = vmatpush1.msra.mxu0 0.0
    %5259 = vmatprep.subr.mxu0 0.0
    %5260 = vmatpush1.msra.mxu0 0.0
    %5261 = vmatprep.subr.mxu0 0.0
    %5262 = vmatpush1.msra.mxu0 0.0
    %5263 = vmatprep.subr.mxu0 0.0
    %5264 = vmatpush1.msra.mxu0 0.0
    %5265 = vmatprep.subr.mxu0 0.0
    %5266 = vmatpush1.msra.mxu0 0.0
    %5267 = vmatprep.mubr.f32.mxu0 0.0
    %5268 = vmatmul.mubr.f32.gmra.mrb[0].mxu0 %v5201
    %v5269 = vpop.f32.mrb[0].mxu0
    %v5270 = vadd.f32 0.0, %v5269
    %v5271 = vpop.f32.mrb[0].mxu0
    %5272 = vdwg.mxu0
    %5273 = vrot.lane.b32.xlu0 %v4852, 112
    %v5274 = vpop.permute.xlu0 %5273
    %5275 = vrot.lane.b32.xlu0 %v4934, 112
    %v5276 = vpop.permute.xlu0 %5275
    %v5277 = vsel %vm421, %v5274, 0
    %v5279 = vsel %vm421, %v5276, 0
    %5281 = vmatprep.subr.mxu0 0.0
    %5282 = vmatpush1.xpose.msra.mxu0 %v5279
    %5283 = vmatprep.subr.mxu0 0.0
    %5284 = vmatpush1.xpose.msra.mxu0 0.0
    %5285 = vmatprep.subr.mxu0 0.0
    %5286 = vmatpush1.xpose.msra.mxu0 0.0
    %5287 = vmatprep.subr.mxu0 0.0
    %5288 = vmatpush1.xpose.msra.mxu0 0.0
    %5289 = vmatprep.subr.mxu0 0.0
    %5290 = vmatpush1.xpose.msra.mxu0 0.0
    %5291 = vmatprep.subr.mxu0 0.0
    %5292 = vmatpush1.xpose.msra.mxu0 0.0
    %5293 = vmatprep.subr.mxu0 0.0
    %5294 = vmatpush1.xpose.msra.mxu0 0.0
    %5295 = vmatprep.subr.mxu0 0.0
    %5296 = vmatpush1.xpose.msra.mxu0 0.0
    %5297 = vmatprep.subr.mxu0 0.0
    %5298 = vmatpush1.xpose.msra.mxu0 0.0
    %5299 = vmatprep.subr.mxu0 0.0
    %5300 = vmatpush1.xpose.msra.mxu0 0.0
    %5301 = vmatprep.subr.mxu0 0.0
    %5302 = vmatpush1.xpose.msra.mxu0 0.0
    %5303 = vmatprep.subr.mxu0 0.0
    %5304 = vmatpush1.xpose.msra.mxu0 0.0
    %5305 = vmatprep.subr.mxu0 0.0
    %5306 = vmatpush1.xpose.msra.mxu0 0.0
    %5307 = vmatprep.subr.mxu0 0.0
    %5308 = vmatpush1.xpose.msra.mxu0 0.0
    %5309 = vmatprep.subr.mxu0 0.0
    %5310 = vmatpush1.xpose.msra.mxu0 0.0
    %5311 = vmatprep.subr.mxu0 0.0
    %5312 = vmatpush1.xpose.msra.mxu0 0.0
    %5313 = vmatprep.subr.mxu0 0.0
    %5314 = vmatpush1.xpose.msra.mxu0 0.0
    %5315 = vmatprep.subr.mxu0 0.0
    %5316 = vmatpush1.xpose.msra.mxu0 0.0
    %5317 = vmatprep.subr.mxu0 0.0
    %5318 = vmatpush1.xpose.msra.mxu0 0.0
    %5319 = vmatprep.subr.mxu0 0.0
    %5320 = vmatpush1.xpose.msra.mxu0 0.0
    %5321 = vmatprep.subr.mxu0 0.0
    %5322 = vmatpush1.xpose.msra.mxu0 0.0
    %5323 = vmatprep.subr.mxu0 0.0
    %5324 = vmatpush1.xpose.msra.mxu0 0.0
    %5325 = vmatprep.subr.mxu0 0.0
    %5326 = vmatpush1.xpose.msra.mxu0 0.0
    %5327 = vmatprep.subr.mxu0 0.0
    %5328 = vmatpush1.xpose.msra.mxu0 0.0
    %5329 = vmatprep.subr.mxu0 0.0
    %5330 = vmatpush1.xpose.msra.mxu0 0.0
    %5331 = vmatprep.subr.mxu0 0.0
    %5332 = vmatpush1.xpose.msra.mxu0 0.0
    %5333 = vmatprep.subr.mxu0 0.0
    %5334 = vmatpush1.xpose.msra.mxu0 0.0
    %5335 = vmatprep.subr.mxu0 0.0
    %5336 = vmatpush1.xpose.msra.mxu0 0.0
    %5337 = vmatprep.subr.mxu0 0.0
    %5338 = vmatpush1.xpose.msra.mxu0 0.0
    %5339 = vmatprep.subr.mxu0 0.0
    %5340 = vmatpush1.xpose.msra.mxu0 0.0
    %5341 = vmatprep.subr.mxu0 0.0
    %5342 = vmatpush1.xpose.msra.mxu0 0.0
    %5343 = vmatprep.subr.mxu0 0.0
    %5344 = vmatpush1.xpose.msra.mxu0 0.0
    %5345 = vmatprep.mubr.f32.mxu0 0.0
    %5346 = vmatmul.mubr.f32.gmra.mrb[0].mxu0 %v5277
    %v5347 = vpop.f32.mrb[0].mxu0
    %v5348 = vadd.f32 0.0, %v5347
    %v5349 = vpop.f32.mrb[0].mxu0
    %5350 = vdwg.mxu0
    %v5351 = vmul.f32 %v5348, 0.35355338
    %v5352 = vsel %vm5019, %v5351, -inf
    %5353 = vmax.xlane.f32.xlu0 %v5352
    %v5354 = vpop.xlane.xlu0 %5353
    %v5355 = vsub.f32 %v5351, %v5354
    %v5356 = vmul.f32 %v5355, 1.442695
    %v5357 = vpow.pop %v5356
    %v5358 = vsel %vm5019, %v5357, 0.0
    %5359 = vadd.xlane.f32.xlu0 %v5358
    %v5360 = vpop.xlane.xlu0 %5359
    %v5361 = vrcp.pop %v5360
    %v5362 = vmul.f32 %v5357, %v5361
    %5363 = vrot.lane.b32.xlu0 %v4934, 80
    %v5364 = vpop.permute.xlu0 %5363
    %v5367 = vsel %vm421, %v5362, 0
    %5369 = vmatprep.subr.mxu0 0.0
    %5370 = vmatpush1.msra.mxu0 %v5364
    %5371 = vmatprep.subr.mxu0 0.0
    %5372 = vmatpush1.msra.mxu0 0.0
    %5373 = vmatprep.subr.mxu0 0.0
    %5374 = vmatpush1.msra.mxu0 0.0
    %5375 = vmatprep.subr.mxu0 0.0
    %5376 = vmatpush1.msra.mxu0 0.0
    %5377 = vmatprep.subr.mxu0 0.0
    %5378 = vmatpush1.msra.mxu0 0.0
    %5379 = vmatprep.subr.mxu0 0.0
    %5380 = vmatpush1.msra.mxu0 0.0
    %5381 = vmatprep.subr.mxu0 0.0
    %5382 = vmatpush1.msra.mxu0 0.0
    %5383 = vmatprep.subr.mxu0 0.0
    %5384 = vmatpush1.msra.mxu0 0.0
    %5385 = vmatprep.subr.mxu0 0.0
    %5386 = vmatpush1.msra.mxu0 0.0
    %5387 = vmatprep.subr.mxu0 0.0
    %5388 = vmatpush1.msra.mxu0 0.0
    %5389 = vmatprep.subr.mxu0 0.0
    %5390 = vmatpush1.msra.mxu0 0.0
    %5391 = vmatprep.subr.mxu0 0.0
    %5392 = vmatpush1.msra.mxu0 0.0
    %5393 = vmatprep.subr.mxu0 0.0
    %5394 = vmatpush1.msra.mxu0 0.0
    %5395 = vmatprep.subr.mxu0 0.0
    %5396 = vmatpush1.msra.mxu0 0.0
    %5397 = vmatprep.subr.mxu0 0.0
    %5398 = vmatpush1.msra.mxu0 0.0
    %5399 = vmatprep.subr.mxu0 0.0
    %5400 = vmatpush1.msra.mxu0 0.0
    %5401 = vmatprep.subr.mxu0 0.0
    %5402 = vmatpush1.msra.mxu0 0.0
    %5403 = vmatprep.subr.mxu0 0.0
    %5404 = vmatpush1.msra.mxu0 0.0
    %5405 = vmatprep.subr.mxu0 0.0
    %5406 = vmatpush1.msra.mxu0 0.0
    %5407 = vmatprep.subr.mxu0 0.0
    %5408 = vmatpush1.msra.mxu0 0.0
    %5409 = vmatprep.subr.mxu0 0.0
    %5410 = vmatpush1.msra.mxu0 0.0
    %5411 = vmatprep.subr.mxu0 0.0
    %5412 = vmatpush1.msra.mxu0 0.0
    %5413 = vmatprep.subr.mxu0 0.0
    %5414 = vmatpush1.msra.mxu0 0.0
    %5415 = vmatprep.subr.mxu0 0.0
    %5416 = vmatpush1.msra.mxu0 0.0
    %5417 = vmatprep.subr.mxu0 0.0
    %5418 = vmatpush1.msra.mxu0 0.0
    %5419 = vmatprep.subr.mxu0 0.0
    %5420 = vmatpush1.msra.mxu0 0.0
    %5421 = vmatprep.subr.mxu0 0.0
    %5422 = vmatpush1.msra.mxu0 0.0
    %5423 = vmatprep.subr.mxu0 0.0
    %5424 = vmatpush1.msra.mxu0 0.0
    %5425 = vmatprep.subr.mxu0 0.0
    %5426 = vmatpush1.msra.mxu0 0.0
    %5427 = vmatprep.subr.mxu0 0.0
    %5428 = vmatpush1.msra.mxu0 0.0
    %5429 = vmatprep.subr.mxu0 0.0
    %5430 = vmatpush1.msra.mxu0 0.0
    %5431 = vmatprep.subr.mxu0 0.0
    %5432 = vmatpush1.msra.mxu0 0.0
    %5433 = vmatprep.mubr.f32.mxu0 0.0
    %5434 = vmatmul.mubr.f32.gmra.mrb[0].mxu0 %v5367
    %v5435 = vpop.f32.mrb[0].mxu0
    %v5436 = vadd.f32 0.0, %v5435
    %v5437 = vpop.f32.mrb[0].mxu0
    %5438 = vdwg.mxu0
    %5439 = vrot.lane.b32.xlu0 %v4852, 104
    %v5440 = vpop.permute.xlu0 %5439
    %5441 = vrot.lane.b32.xlu0 %v4934, 104
    %v5442 = vpop.permute.xlu0 %5441
    %v5443 = vsel %vm421, %v5440, 0
    %v5445 = vsel %vm421, %v5442, 0
    %5447 = vmatprep.subr.mxu0 0.0
    %5448 = vmatpush1.xpose.msra.mxu0 %v5445
    %5449 = vmatprep.subr.mxu0 0.0
    %5450 = vmatpush1.xpose.msra.mxu0 0.0
    %5451 = vmatprep.subr.mxu0 0.0
    %5452 = vmatpush1.xpose.msra.mxu0 0.0
    %5453 = vmatprep.subr.mxu0 0.0
    %5454 = vmatpush1.xpose.msra.mxu0 0.0
    %5455 = vmatprep.subr.mxu0 0.0
    %5456 = vmatpush1.xpose.msra.mxu0 0.0
    %5457 = vmatprep.subr.mxu0 0.0
    %5458 = vmatpush1.xpose.msra.mxu0 0.0
    %5459 = vmatprep.subr.mxu0 0.0
    %5460 = vmatpush1.xpose.msra.mxu0 0.0
    %5461 = vmatprep.subr.mxu0 0.0
    %5462 = vmatpush1.xpose.msra.mxu0 0.0
    %5463 = vmatprep.subr.mxu0 0.0
    %5464 = vmatpush1.xpose.msra.mxu0 0.0
    %5465 = vmatprep.subr.mxu0 0.0
    %5466 = vmatpush1.xpose.msra.mxu0 0.0
    %5467 = vmatprep.subr.mxu0 0.0
    %5468 = vmatpush1.xpose.msra.mxu0 0.0
    %5469 = vmatprep.subr.mxu0 0.0
    %5470 = vmatpush1.xpose.msra.mxu0 0.0
    %5471 = vmatprep.subr.mxu0 0.0
    %5472 = vmatpush1.xpose.msra.mxu0 0.0
    %5473 = vmatprep.subr.mxu0 0.0
    %5474 = vmatpush1.xpose.msra.mxu0 0.0
    %5475 = vmatprep.subr.mxu0 0.0
    %5476 = vmatpush1.xpose.msra.mxu0 0.0
    %5477 = vmatprep.subr.mxu0 0.0
    %5478 = vmatpush1.xpose.msra.mxu0 0.0
    %5479 = vmatprep.subr.mxu0 0.0
    %5480 = vmatpush1.xpose.msra.mxu0 0.0
    %5481 = vmatprep.subr.mxu0 0.0
    %5482 = vmatpush1.xpose.msra.mxu0 0.0
    %5483 = vmatprep.subr.mxu0 0.0
    %5484 = vmatpush1.xpose.msra.mxu0 0.0
    %5485 = vmatprep.subr.mxu0 0.0
    %5486 = vmatpush1.xpose.msra.mxu0 0.0
    %5487 = vmatprep.subr.mxu0 0.0
    %5488 = vmatpush1.xpose.msra.mxu0 0.0
    %5489 = vmatprep.subr.mxu0 0.0
    %5490 = vmatpush1.xpose.msra.mxu0 0.0
    %5491 = vmatprep.subr.mxu0 0.0
    %5492 = vmatpush1.xpose.msra.mxu0 0.0
    %5493 = vmatprep.subr.mxu0 0.0
    %5494 = vmatpush1.xpose.msra.mxu0 0.0
    %5495 = vmatprep.subr.mxu0 0.0
    %5496 = vmatpush1.xpose.msra.mxu0 0.0
    %5497 = vmatprep.subr.mxu0 0.0
    %5498 = vmatpush1.xpose.msra.mxu0 0.0
    %5499 = vmatprep.subr.mxu0 0.0
    %5500 = vmatpush1.xpose.msra.mxu0 0.0
    %5501 = vmatprep.subr.mxu0 0.0
    %5502 = vmatpush1.xpose.msra.mxu0 0.0
    %5503 = vmatprep.subr.mxu0 0.0
    %5504 = vmatpush1.xpose.msra.mxu0 0.0
    %5505 = vmatprep.subr.mxu0 0.0
    %5506 = vmatpush1.xpose.msra.mxu0 0.0
    %5507 = vmatprep.subr.mxu0 0.0
    %5508 = vmatpush1.xpose.msra.mxu0 0.0
    %5509 = vmatprep.subr.mxu0 0.0
    %5510 = vmatpush1.xpose.msra.mxu0 0.0
    %5511 = vmatprep.mubr.f32.mxu0 0.0
    %5512 = vmatmul.mubr.f32.gmra.mrb[0].mxu0 %v5443
    %v5513 = vpop.f32.mrb[0].mxu0
    %v5514 = vadd.f32 0.0, %v5513
    %v5515 = vpop.f32.mrb[0].mxu0
    %5516 = vdwg.mxu0
    %v5517 = vmul.f32 %v5514, 0.35355338
    %v5518 = vsel %vm5019, %v5517, -inf
    %5519 = vmax.xlane.f32.xlu0 %v5518
    %v5520 = vpop.xlane.xlu0 %5519
    %v5521 = vsub.f32 %v5517, %v5520
    %v5522 = vmul.f32 %v5521, 1.442695
    %v5523 = vpow.pop %v5522
    %v5524 = vsel %vm5019, %v5523, 0.0
    %5525 = vadd.xlane.f32.xlu0 %v5524
    %v5526 = vpop.xlane.xlu0 %5525
    %v5527 = vrcp.pop %v5526
    %v5528 = vmul.f32 %v5523, %v5527
    %5529 = vrot.lane.b32.xlu0 %v4934, 72
    %v5530 = vpop.permute.xlu0 %5529
    %v5533 = vsel %vm421, %v5528, 0
    %5535 = vmatprep.subr.mxu0 0.0
    %5536 = vmatpush1.msra.mxu0 %v5530
    %5537 = vmatprep.subr.mxu0 0.0
    %5538 = vmatpush1.msra.mxu0 0.0
    %5539 = vmatprep.subr.mxu0 0.0
    %5540 = vmatpush1.msra.mxu0 0.0
    %5541 = vmatprep.subr.mxu0 0.0
    %5542 = vmatpush1.msra.mxu0 0.0
    %5543 = vmatprep.subr.mxu0 0.0
    %5544 = vmatpush1.msra.mxu0 0.0
    %5545 = vmatprep.subr.mxu0 0.0
    %5546 = vmatpush1.msra.mxu0 0.0
    %5547 = vmatprep.subr.mxu0 0.0
    %5548 = vmatpush1.msra.mxu0 0.0
    %5549 = vmatprep.subr.mxu0 0.0
    %5550 = vmatpush1.msra.mxu0 0.0
    %5551 = vmatprep.subr.mxu0 0.0
    %5552 = vmatpush1.msra.mxu0 0.0
    %5553 = vmatprep.subr.mxu0 0.0
    %5554 = vmatpush1.msra.mxu0 0.0
    %5555 = vmatprep.subr.mxu0 0.0
    %5556 = vmatpush1.msra.mxu0 0.0
    %5557 = vmatprep.subr.mxu0 0.0
    %5558 = vmatpush1.msra.mxu0 0.0
    %5559 = vmatprep.subr.mxu0 0.0
    %5560 = vmatpush1.msra.mxu0 0.0
    %5561 = vmatprep.subr.mxu0 0.0
    %5562 = vmatpush1.msra.mxu0 0.0
    %5563 = vmatprep.subr.mxu0 0.0
    %5564 = vmatpush1.msra.mxu0 0.0
    %5565 = vmatprep.subr.mxu0 0.0
    %5566 = vmatpush1.msra.mxu0 0.0
    %5567 = vmatprep.subr.mxu0 0.0
    %5568 = vmatpush1.msra.mxu0 0.0
    %5569 = vmatprep.subr.mxu0 0.0
    %5570 = vmatpush1.msra.mxu0 0.0
    %5571 = vmatprep.subr.mxu0 0.0
    %5572 = vmatpush1.msra.mxu0 0.0
    %5573 = vmatprep.subr.mxu0 0.0
    %5574 = vmatpush1.msra.mxu0 0.0
    %5575 = vmatprep.subr.mxu0 0.0
    %5576 = vmatpush1.msra.mxu0 0.0
    %5577 = vmatprep.subr.mxu0 0.0
    %5578 = vmatpush1.msra.mxu0 0.0
    %5579 = vmatprep.subr.mxu0 0.0
    %5580 = vmatpush1.msra.mxu0 0.0
    %5581 = vmatprep.subr.mxu0 0.0
    %5582 = vmatpush1.msra.mxu0 0.0
    %5583 = vmatprep.subr.mxu0 0.0
    %5584 = vmatpush1.msra.mxu0 0.0
    %5585 = vmatprep.subr.mxu0 0.0
    %5586 = vmatpush1.msra.mxu0 0.0
    %5587 = vmatprep.subr.mxu0 0.0
    %5588 = vmatpush1.msra.mxu0 0.0
    %5589 = vmatprep.subr.mxu0 0.0
    %5590 = vmatpush1.msra.mxu0 0.0
    %5591 = vmatprep.subr.mxu0 0.0
    %5592 = vmatpush1.msra.mxu0 0.0
    %5593 = vmatprep.subr.mxu0 0.0
    %5594 = vmatpush1.msra.mxu0 0.0
    %5595 = vmatprep.subr.mxu0 0.0
    %5596 = vmatpush1.msra.mxu0 0.0
    %5597 = vmatprep.subr.mxu0 0.0
    %5598 = vmatpush1.msra.mxu0 0.0
    %5599 = vmatprep.mubr.f32.mxu0 0.0
    %5600 = vmatmul.mubr.f32.gmra.mrb[0].mxu0 %v5533
    %v5601 = vpop.f32.mrb[0].mxu0
    %v5602 = vadd.f32 0.0, %v5601
    %v5603 = vpop.f32.mrb[0].mxu0
    %5604 = vdwg.mxu0
    %5606 = vrot.lane.b32.xlu0 %v5270, 8
    %v5607 = vpop.permute.xlu0 %5606
    %5610 = vrot.lane.b32.xlu0 %v5436, 16
    %v5611 = vpop.permute.xlu0 %5610
    %5614 = vrot.lane.b32.xlu0 %v5602, 24
    %v5615 = vpop.permute.xlu0 %5614
    %v5617 = vsel %vm421, %v5104, %v5607
    %v5618 = vsel %vm166, %v5617, %v5611
    %v5619 = vsel %vm1096, %v5618, %v5615
    %v5620 = vrot.slane %v4852, 1
    %v5621 = vsel %vm421, %v5620, 0
    %v5624 = vsel %vm421, %v4939, 0
    %5626 = vmatprep.subr.mxu0 0.0
    %5627 = vmatpush1.xpose.msra.mxu0 %v5624
    %5628 = vmatprep.subr.mxu0 0.0
    %5629 = vmatpush1.xpose.msra.mxu0 0.0
    %5630 = vmatprep.subr.mxu0 0.0
    %5631 = vmatpush1.xpose.msra.mxu0 0.0
    %5632 = vmatprep.subr.mxu0 0.0
    %5633 = vmatpush1.xpose.msra.mxu0 0.0
    %5634 = vmatprep.subr.mxu0 0.0
    %5635 = vmatpush1.xpose.msra.mxu0 0.0
    %5636 = vmatprep.subr.mxu0 0.0
    %5637 = vmatpush1.xpose.msra.mxu0 0.0
    %5638 = vmatprep.subr.mxu0 0.0
    %5639 = vmatpush1.xpose.msra.mxu0 0.0
    %5640 = vmatprep.subr.mxu0 0.0
    %5641 = vmatpush1.xpose.msra.mxu0 0.0
    %5642 = vmatprep.subr.mxu0 0.0
    %5643 = vmatpush1.xpose.msra.mxu0 0.0
    %5644 = vmatprep.subr.mxu0 0.0
    %5645 = vmatpush1.xpose.msra.mxu0 0.0
    %5646 = vmatprep.subr.mxu0 0.0
    %5647 = vmatpush1.xpose.msra.mxu0 0.0
    %5648 = vmatprep.subr.mxu0 0.0
    %5649 = vmatpush1.xpose.msra.mxu0 0.0
    %5650 = vmatprep.subr.mxu0 0.0
    %5651 = vmatpush1.xpose.msra.mxu0 0.0
    %5652 = vmatprep.subr.mxu0 0.0
    %5653 = vmatpush1.xpose.msra.mxu0 0.0
    %5654 = vmatprep.subr.mxu0 0.0
    %5655 = vmatpush1.xpose.msra.mxu0 0.0
    %5656 = vmatprep.subr.mxu0 0.0
    %5657 = vmatpush1.xpose.msra.mxu0 0.0
    %5658 = vmatprep.subr.mxu0 0.0
    %5659 = vmatpush1.xpose.msra.mxu0 0.0
    %5660 = vmatprep.subr.mxu0 0.0
    %5661 = vmatpush1.xpose.msra.mxu0 0.0
    %5662 = vmatprep.subr.mxu0 0.0
    %5663 = vmatpush1.xpose.msra.mxu0 0.0
    %5664 = vmatprep.subr.mxu0 0.0
    %5665 = vmatpush1.xpose.msra.mxu0 0.0
    %5666 = vmatprep.subr.mxu0 0.0
    %5667 = vmatpush1.xpose.msra.mxu0 0.0
    %5668 = vmatprep.subr.mxu0 0.0
    %5669 = vmatpush1.xpose.msra.mxu0 0.0
    %5670 = vmatprep.subr.mxu0 0.0
    %5671 = vmatpush1.xpose.msra.mxu0 0.0
    %5672 = vmatprep.subr.mxu0 0.0
    %5673 = vmatpush1.xpose.msra.mxu0 0.0
    %5674 = vmatprep.subr.mxu0 0.0
    %5675 = vmatpush1.xpose.msra.mxu0 0.0
    %5676 = vmatprep.subr.mxu0 0.0
    %5677 = vmatpush1.xpose.msra.mxu0 0.0
    %5678 = vmatprep.subr.mxu0 0.0
    %5679 = vmatpush1.xpose.msra.mxu0 0.0
    %5680 = vmatprep.subr.mxu0 0.0
    %5681 = vmatpush1.xpose.msra.mxu0 0.0
    %5682 = vmatprep.subr.mxu0 0.0
    %5683 = vmatpush1.xpose.msra.mxu0 0.0
    %5684 = vmatprep.subr.mxu0 0.0
    %5685 = vmatpush1.xpose.msra.mxu0 0.0
    %5686 = vmatprep.subr.mxu0 0.0
    %5687 = vmatpush1.xpose.msra.mxu0 0.0
    %5688 = vmatprep.subr.mxu0 0.0
    %5689 = vmatpush1.xpose.msra.mxu0 0.0
    %5690 = vmatprep.mubr.f32.mxu0 0.0
    %5691 = vmatmul.mubr.f32.gmra.mrb[0].mxu0 %v5621
    %v5692 = vpop.f32.mrb[0].mxu0
    %v5693 = vadd.f32 0.0, %v5692
    %v5694 = vpop.f32.mrb[0].mxu0
    %5695 = vdwg.mxu0
    %v5696 = vmul.f32 %v5693, 0.35355338
    %v5697 = vsel %vm5019, %v5696, -inf
    %5698 = vmax.xlane.f32.xlu0 %v5697
    %v5699 = vpop.xlane.xlu0 %5698
    %v5700 = vsub.f32 %v5696, %v5699
    %v5701 = vmul.f32 %v5700, 1.442695
    %v5702 = vpow.pop %v5701
    %v5703 = vsel %vm5019, %v5702, 0.0
    %5704 = vadd.xlane.f32.xlu0 %v5703
    %v5705 = vpop.xlane.xlu0 %5704
    %v5706 = vrcp.pop %v5705
    %v5707 = vmul.f32 %v5702, %v5706
    %5708 = vrot.lane.b32.xlu0 %v4939, 96
    %v5709 = vpop.permute.xlu0 %5708
    %v5712 = vsel %vm421, %v5707, 0
    %5714 = vmatprep.subr.mxu0 0.0
    %5715 = vmatpush1.msra.mxu0 %v5709
    %5716 = vmatprep.subr.mxu0 0.0
    %5717 = vmatpush1.msra.mxu0 0.0
    %5718 = vmatprep.subr.mxu0 0.0
    %5719 = vmatpush1.msra.mxu0 0.0
    %5720 = vmatprep.subr.mxu0 0.0
    %5721 = vmatpush1.msra.mxu0 0.0
    %5722 = vmatprep.subr.mxu0 0.0
    %5723 = vmatpush1.msra.mxu0 0.0
    %5724 = vmatprep.subr.mxu0 0.0
    %5725 = vmatpush1.msra.mxu0 0.0
    %5726 = vmatprep.subr.mxu0 0.0
    %5727 = vmatpush1.msra.mxu0 0.0
    %5728 = vmatprep.subr.mxu0 0.0
    %5729 = vmatpush1.msra.mxu0 0.0
    %5730 = vmatprep.subr.mxu0 0.0
    %5731 = vmatpush1.msra.mxu0 0.0
    %5732 = vmatprep.subr.mxu0 0.0
    %5733 = vmatpush1.msra.mxu0 0.0
    %5734 = vmatprep.subr.mxu0 0.0
    %5735 = vmatpush1.msra.mxu0 0.0
    %5736 = vmatprep.subr.mxu0 0.0
    %5737 = vmatpush1.msra.mxu0 0.0
    %5738 = vmatprep.subr.mxu0 0.0
    %5739 = vmatpush1.msra.mxu0 0.0
    %5740 = vmatprep.subr.mxu0 0.0
    %5741 = vmatpush1.msra.mxu0 0.0
    %5742 = vmatprep.subr.mxu0 0.0
    %5743 = vmatpush1.msra.mxu0 0.0
    %5744 = vmatprep.subr.mxu0 0.0
    %5745 = vmatpush1.msra.mxu0 0.0
    %5746 = vmatprep.subr.mxu0 0.0
    %5747 = vmatpush1.msra.mxu0 0.0
    %5748 = vmatprep.subr.mxu0 0.0
    %5749 = vmatpush1.msra.mxu0 0.0
    %5750 = vmatprep.subr.mxu0 0.0
    %5751 = vmatpush1.msra.mxu0 0.0
    %5752 = vmatprep.subr.mxu0 0.0
    %5753 = vmatpush1.msra.mxu0 0.0
    %5754 = vmatprep.subr.mxu0 0.0
    %5755 = vmatpush1.msra.mxu0 0.0
    %5756 = vmatprep.subr.mxu0 0.0
    %5757 = vmatpush1.msra.mxu0 0.0
    %5758 = vmatprep.subr.mxu0 0.0
    %5759 = vmatpush1.msra.mxu0 0.0
    %5760 = vmatprep.subr.mxu0 0.0
    %5761 = vmatpush1.msra.mxu0 0.0
    %5762 = vmatprep.subr.mxu0 0.0
    %5763 = vmatpush1.msra.mxu0 0.0
    %5764 = vmatprep.subr.mxu0 0.0
    %5765 = vmatpush1.msra.mxu0 0.0
    %5766 = vmatprep.subr.mxu0 0.0
    %5767 = vmatpush1.msra.mxu0 0.0
    %5768 = vmatprep.subr.mxu0 0.0
    %5769 = vmatpush1.msra.mxu0 0.0
    %5770 = vmatprep.subr.mxu0 0.0
    %5771 = vmatpush1.msra.mxu0 0.0
    %5772 = vmatprep.subr.mxu0 0.0
    %5773 = vmatpush1.msra.mxu0 0.0
    %5774 = vmatprep.subr.mxu0 0.0
    %5775 = vmatpush1.msra.mxu0 0.0
    %5776 = vmatprep.subr.mxu0 0.0
    %5777 = vmatpush1.msra.mxu0 0.0
    %5778 = vmatprep.mubr.f32.mxu0 0.0
    %5779 = vmatmul.mubr.f32.gmra.mrb[0].mxu0 %v5712
    %v5780 = vpop.f32.mrb[0].mxu0
    %v5781 = vadd.f32 0.0, %v5780
    %v5782 = vpop.f32.mrb[0].mxu0
    %5783 = vdwg.mxu0
    %5784 = vrot.lane.b32.xlu0 %v5620, 120
    %v5785 = vpop.permute.xlu0 %5784
    %5786 = vrot.lane.b32.xlu0 %v4939, 120
    %v5787 = vpop.permute.xlu0 %5786
    %v5788 = vsel %vm421, %v5785, 0
    %v5790 = vsel %vm421, %v5787, 0
    %5792 = vmatprep.subr.mxu0 0.0
    %5793 = vmatpush1.xpose.msra.mxu0 %v5790
    %5794 = vmatprep.subr.mxu0 0.0
    %5795 = vmatpush1.xpose.msra.mxu0 0.0
    %5796 = vmatprep.subr.mxu0 0.0
    %5797 = vmatpush1.xpose.msra.mxu0 0.0
    %5798 = vmatprep.subr.mxu0 0.0
    %5799 = vmatpush1.xpose.msra.mxu0 0.0
    %5800 = vmatprep.subr.mxu0 0.0
    %5801 = vmatpush1.xpose.msra.mxu0 0.0
    %5802 = vmatprep.subr.mxu0 0.0
    %5803 = vmatpush1.xpose.msra.mxu0 0.0
    %5804 = vmatprep.subr.mxu0 0.0
    %5805 = vmatpush1.xpose.msra.mxu0 0.0
    %5806 = vmatprep.subr.mxu0 0.0
    %5807 = vmatpush1.xpose.msra.mxu0 0.0
    %5808 = vmatprep.subr.mxu0 0.0
    %5809 = vmatpush1.xpose.msra.mxu0 0.0
    %5810 = vmatprep.subr.mxu0 0.0
    %5811 = vmatpush1.xpose.msra.mxu0 0.0
    %5812 = vmatprep.subr.mxu0 0.0
    %5813 = vmatpush1.xpose.msra.mxu0 0.0
    %5814 = vmatprep.subr.mxu0 0.0
    %5815 = vmatpush1.xpose.msra.mxu0 0.0
    %5816 = vmatprep.subr.mxu0 0.0
    %5817 = vmatpush1.xpose.msra.mxu0 0.0
    %5818 = vmatprep.subr.mxu0 0.0
    %5819 = vmatpush1.xpose.msra.mxu0 0.0
    %5820 = vmatprep.subr.mxu0 0.0
    %5821 = vmatpush1.xpose.msra.mxu0 0.0
    %5822 = vmatprep.subr.mxu0 0.0
    %5823 = vmatpush1.xpose.msra.mxu0 0.0
    %5824 = vmatprep.subr.mxu0 0.0
    %5825 = vmatpush1.xpose.msra.mxu0 0.0
    %5826 = vmatprep.subr.mxu0 0.0
    %5827 = vmatpush1.xpose.msra.mxu0 0.0
    %5828 = vmatprep.subr.mxu0 0.0
    %5829 = vmatpush1.xpose.msra.mxu0 0.0
    %5830 = vmatprep.subr.mxu0 0.0
    %5831 = vmatpush1.xpose.msra.mxu0 0.0
    %5832 = vmatprep.subr.mxu0 0.0
    %5833 = vmatpush1.xpose.msra.mxu0 0.0
    %5834 = vmatprep.subr.mxu0 0.0
    %5835 = vmatpush1.xpose.msra.mxu0 0.0
    %5836 = vmatprep.subr.mxu0 0.0
    %5837 = vmatpush1.xpose.msra.mxu0 0.0
    %5838 = vmatprep.subr.mxu0 0.0
    %5839 = vmatpush1.xpose.msra.mxu0 0.0
    %5840 = vmatprep.subr.mxu0 0.0
    %5841 = vmatpush1.xpose.msra.mxu0 0.0
    %5842 = vmatprep.subr.mxu0 0.0
    %5843 = vmatpush1.xpose.msra.mxu0 0.0
    %5844 = vmatprep.subr.mxu0 0.0
    %5845 = vmatpush1.xpose.msra.mxu0 0.0
    %5846 = vmatprep.subr.mxu0 0.0
    %5847 = vmatpush1.xpose.msra.mxu0 0.0
    %5848 = vmatprep.subr.mxu0 0.0
    %5849 = vmatpush1.xpose.msra.mxu0 0.0
    %5850 = vmatprep.subr.mxu0 0.0
    %5851 = vmatpush1.xpose.msra.mxu0 0.0
    %5852 = vmatprep.subr.mxu0 0.0
    %5853 = vmatpush1.xpose.msra.mxu0 0.0
    %5854 = vmatprep.subr.mxu0 0.0
    %5855 = vmatpush1.xpose.msra.mxu0 0.0
    %5856 = vmatprep.mubr.f32.mxu0 0.0
    %5857 = vmatmul.mubr.f32.gmra.mrb[0].mxu0 %v5788
    %v5858 = vpop.f32.mrb[0].mxu0
    %v5859 = vadd.f32 0.0, %v5858
    %v5860 = vpop.f32.mrb[0].mxu0
    %5861 = vdwg.mxu0
    %v5862 = vmul.f32 %v5859, 0.35355338
    %v5863 = vsel %vm5019, %v5862, -inf
    %5864 = vmax.xlane.f32.xlu0 %v5863
    %v5865 = vpop.xlane.xlu0 %5864
    %v5866 = vsub.f32 %v5862, %v5865
    %v5867 = vmul.f32 %v5866, 1.442695
    %v5868 = vpow.pop %v5867
    %v5869 = vsel %vm5019, %v5868, 0.0
    %5870 = vadd.xlane.f32.xlu0 %v5869
    %v5871 = vpop.xlane.xlu0 %5870
    %v5872 = vrcp.pop %v5871
    %v5873 = vmul.f32 %v5868, %v5872
    %5874 = vrot.lane.b32.xlu0 %v4939, 88
    %v5875 = vpop.permute.xlu0 %5874
    %v5878 = vsel %vm421, %v5873, 0
    %5880 = vmatprep.subr.mxu0 0.0
    %5881 = vmatpush1.msra.mxu0 %v5875
    %5882 = vmatprep.subr.mxu0 0.0
    %5883 = vmatpush1.msra.mxu0 0.0
    %5884 = vmatprep.subr.mxu0 0.0
    %5885 = vmatpush1.msra.mxu0 0.0
    %5886 = vmatprep.subr.mxu0 0.0
    %5887 = vmatpush1.msra.mxu0 0.0
    %5888 = vmatprep.subr.mxu0 0.0
    %5889 = vmatpush1.msra.mxu0 0.0
    %5890 = vmatprep.subr.mxu0 0.0
    %5891 = vmatpush1.msra.mxu0 0.0
    %5892 = vmatprep.subr.mxu0 0.0
    %5893 = vmatpush1.msra.mxu0 0.0
    %5894 = vmatprep.subr.mxu0 0.0
    %5895 = vmatpush1.msra.mxu0 0.0
    %5896 = vmatprep.subr.mxu0 0.0
    %5897 = vmatpush1.msra.mxu0 0.0
    %5898 = vmatprep.subr.mxu0 0.0
    %5899 = vmatpush1.msra.mxu0 0.0
    %5900 = vmatprep.subr.mxu0 0.0
    %5901 = vmatpush1.msra.mxu0 0.0
    %5902 = vmatprep.subr.mxu0 0.0
    %5903 = vmatpush1.msra.mxu0 0.0
    %5904 = vmatprep.subr.mxu0 0.0
    %5905 = vmatpush1.msra.mxu0 0.0
    %5906 = vmatprep.subr.mxu0 0.0
    %5907 = vmatpush1.msra.mxu0 0.0
    %5908 = vmatprep.subr.mxu0 0.0
    %5909 = vmatpush1.msra.mxu0 0.0
    %5910 = vmatprep.subr.mxu0 0.0
    %5911 = vmatpush1.msra.mxu0 0.0
    %5912 = vmatprep.subr.mxu0 0.0
    %5913 = vmatpush1.msra.mxu0 0.0
    %5914 = vmatprep.subr.mxu0 0.0
    %5915 = vmatpush1.msra.mxu0 0.0
    %5916 = vmatprep.subr.mxu0 0.0
    %5917 = vmatpush1.msra.mxu0 0.0
    %5918 = vmatprep.subr.mxu0 0.0
    %5919 = vmatpush1.msra.mxu0 0.0
    %5920 = vmatprep.subr.mxu0 0.0
    %5921 = vmatpush1.msra.mxu0 0.0
    %5922 = vmatprep.subr.mxu0 0.0
    %5923 = vmatpush1.msra.mxu0 0.0
    %5924 = vmatprep.subr.mxu0 0.0
    %5925 = vmatpush1.msra.mxu0 0.0
    %5926 = vmatprep.subr.mxu0 0.0
    %5927 = vmatpush1.msra.mxu0 0.0
    %5928 = vmatprep.subr.mxu0 0.0
    %5929 = vmatpush1.msra.mxu0 0.0
    %5930 = vmatprep.subr.mxu0 0.0
    %5931 = vmatpush1.msra.mxu0 0.0
    %5932 = vmatprep.subr.mxu0 0.0
    %5933 = vmatpush1.msra.mxu0 0.0
    %5934 = vmatprep.subr.mxu0 0.0
    %5935 = vmatpush1.msra.mxu0 0.0
    %5936 = vmatprep.subr.mxu0 0.0
    %5937 = vmatpush1.msra.mxu0 0.0
    %5938 = vmatprep.subr.mxu0 0.0
    %5939 = vmatpush1.msra.mxu0 0.0
    %5940 = vmatprep.subr.mxu0 0.0
    %5941 = vmatpush1.msra.mxu0 0.0
    %5942 = vmatprep.subr.mxu0 0.0
    %5943 = vmatpush1.msra.mxu0 0.0
    %5944 = vmatprep.mubr.f32.mxu0 0.0
    %5945 = vmatmul.mubr.f32.gmra.mrb[0].mxu0 %v5878
    %v5946 = vpop.f32.mrb[0].mxu0
    %v5947 = vadd.f32 0.0, %v5946
    %v5948 = vpop.f32.mrb[0].mxu0
    %5949 = vdwg.mxu0
    %5950 = vrot.lane.b32.xlu0 %v5620, 112
    %v5951 = vpop.permute.xlu0 %5950
    %5952 = vrot.lane.b32.xlu0 %v4939, 112
    %v5953 = vpop.permute.xlu0 %5952
    %v5954 = vsel %vm421, %v5951, 0
    %v5956 = vsel %vm421, %v5953, 0
    %5958 = vmatprep.subr.mxu0 0.0
    %5959 = vmatpush1.xpose.msra.mxu0 %v5956
    %5960 = vmatprep.subr.mxu0 0.0
    %5961 = vmatpush1.xpose.msra.mxu0 0.0
    %5962 = vmatprep.subr.mxu0 0.0
    %5963 = vmatpush1.xpose.msra.mxu0 0.0
    %5964 = vmatprep.subr.mxu0 0.0
    %5965 = vmatpush1.xpose.msra.mxu0 0.0
    %5966 = vmatprep.subr.mxu0 0.0
    %5967 = vmatpush1.xpose.msra.mxu0 0.0
    %5968 = vmatprep.subr.mxu0 0.0
    %5969 = vmatpush1.xpose.msra.mxu0 0.0
    %5970 = vmatprep.subr.mxu0 0.0
    %5971 = vmatpush1.xpose.msra.mxu0 0.0
    %5972 = vmatprep.subr.mxu0 0.0
    %5973 = vmatpush1.xpose.msra.mxu0 0.0
    %5974 = vmatprep.subr.mxu0 0.0
    %5975 = vmatpush1.xpose.msra.mxu0 0.0
    %5976 = vmatprep.subr.mxu0 0.0
    %5977 = vmatpush1.xpose.msra.mxu0 0.0
    %5978 = vmatprep.subr.mxu0 0.0
    %5979 = vmatpush1.xpose.msra.mxu0 0.0
    %5980 = vmatprep.subr.mxu0 0.0
    %5981 = vmatpush1.xpose.msra.mxu0 0.0
    %5982 = vmatprep.subr.mxu0 0.0
    %5983 = vmatpush1.xpose.msra.mxu0 0.0
    %5984 = vmatprep.subr.mxu0 0.0
    %5985 = vmatpush1.xpose.msra.mxu0 0.0
    %5986 = vmatprep.subr.mxu0 0.0
    %5987 = vmatpush1.xpose.msra.mxu0 0.0
    %5988 = vmatprep.subr.mxu0 0.0
    %5989 = vmatpush1.xpose.msra.mxu0 0.0
    %5990 = vmatprep.subr.mxu0 0.0
    %5991 = vmatpush1.xpose.msra.mxu0 0.0
    %5992 = vmatprep.subr.mxu0 0.0
    %5993 = vmatpush1.xpose.msra.mxu0 0.0
    %5994 = vmatprep.subr.mxu0 0.0
    %5995 = vmatpush1.xpose.msra.mxu0 0.0
    %5996 = vmatprep.subr.mxu0 0.0
    %5997 = vmatpush1.xpose.msra.mxu0 0.0
    %5998 = vmatprep.subr.mxu0 0.0
    %5999 = vmatpush1.xpose.msra.mxu0 0.0
    %6000 = vmatprep.subr.mxu0 0.0
    %6001 = vmatpush1.xpose.msra.mxu0 0.0
    %6002 = vmatprep.subr.mxu0 0.0
    %6003 = vmatpush1.xpose.msra.mxu0 0.0
    %6004 = vmatprep.subr.mxu0 0.0
    %6005 = vmatpush1.xpose.msra.mxu0 0.0
    %6006 = vmatprep.subr.mxu0 0.0
    %6007 = vmatpush1.xpose.msra.mxu0 0.0
    %6008 = vmatprep.subr.mxu0 0.0
    %6009 = vmatpush1.xpose.msra.mxu0 0.0
    %6010 = vmatprep.subr.mxu0 0.0
    %6011 = vmatpush1.xpose.msra.mxu0 0.0
    %6012 = vmatprep.subr.mxu0 0.0
    %6013 = vmatpush1.xpose.msra.mxu0 0.0
    %6014 = vmatprep.subr.mxu0 0.0
    %6015 = vmatpush1.xpose.msra.mxu0 0.0
    %6016 = vmatprep.subr.mxu0 0.0
    %6017 = vmatpush1.xpose.msra.mxu0 0.0
    %6018 = vmatprep.subr.mxu0 0.0
    %6019 = vmatpush1.xpose.msra.mxu0 0.0
    %6020 = vmatprep.subr.mxu0 0.0
    %6021 = vmatpush1.xpose.msra.mxu0 0.0
    %6022 = vmatprep.mubr.f32.mxu0 0.0
    %6023 = vmatmul.mubr.f32.gmra.mrb[0].mxu0 %v5954
    %v6024 = vpop.f32.mrb[0].mxu0
    %v6025 = vadd.f32 0.0, %v6024
    %v6026 = vpop.f32.mrb[0].mxu0
    %6027 = vdwg.mxu0
    %v6028 = vmul.f32 %v6025, 0.35355338
    %v6029 = vsel %vm5019, %v6028, -inf
    %6030 = vmax.xlane.f32.xlu0 %v6029
    %v6031 = vpop.xlane.xlu0 %6030
    %v6032 = vsub.f32 %v6028, %v6031
    %v6033 = vmul.f32 %v6032, 1.442695
    %v6034 = vpow.pop %v6033
    %v6035 = vsel %vm5019, %v6034, 0.0
    %6036 = vadd.xlane.f32.xlu0 %v6035
    %v6037 = vpop.xlane.xlu0 %6036
    %v6038 = vrcp.pop %v6037
    %v6039 = vmul.f32 %v6034, %v6038
    %6040 = vrot.lane.b32.xlu0 %v4939, 80
    %v6041 = vpop.permute.xlu0 %6040
    %v6044 = vsel %vm421, %v6039, 0
    %6046 = vmatprep.subr.mxu0 0.0
    %6047 = vmatpush1.msra.mxu0 %v6041
    %6048 = vmatprep.subr.mxu0 0.0
    %6049 = vmatpush1.msra.mxu0 0.0
    %6050 = vmatprep.subr.mxu0 0.0
    %6051 = vmatpush1.msra.mxu0 0.0
    %6052 = vmatprep.subr.mxu0 0.0
    %6053 = vmatpush1.msra.mxu0 0.0
    %6054 = vmatprep.subr.mxu0 0.0
    %6055 = vmatpush1.msra.mxu0 0.0
    %6056 = vmatprep.subr.mxu0 0.0
    %6057 = vmatpush1.msra.mxu0 0.0
    %6058 = vmatprep.subr.mxu0 0.0
    %6059 = vmatpush1.msra.mxu0 0.0
    %6060 = vmatprep.subr.mxu0 0.0
    %6061 = vmatpush1.msra.mxu0 0.0
    %6062 = vmatprep.subr.mxu0 0.0
    %6063 = vmatpush1.msra.mxu0 0.0
    %6064 = vmatprep.subr.mxu0 0.0
    %6065 = vmatpush1.msra.mxu0 0.0
    %6066 = vmatprep.subr.mxu0 0.0
    %6067 = vmatpush1.msra.mxu0 0.0
    %6068 = vmatprep.subr.mxu0 0.0
    %6069 = vmatpush1.msra.mxu0 0.0
    %6070 = vmatprep.subr.mxu0 0.0
    %6071 = vmatpush1.msra.mxu0 0.0
    %6072 = vmatprep.subr.mxu0 0.0
    %6073 = vmatpush1.msra.mxu0 0.0
    %6074 = vmatprep.subr.mxu0 0.0
    %6075 = vmatpush1.msra.mxu0 0.0
    %6076 = vmatprep.subr.mxu0 0.0
    %6077 = vmatpush1.msra.mxu0 0.0
    %6078 = vmatprep.subr.mxu0 0.0
    %6079 = vmatpush1.msra.mxu0 0.0
    %6080 = vmatprep.subr.mxu0 0.0
    %6081 = vmatpush1.msra.mxu0 0.0
    %6082 = vmatprep.subr.mxu0 0.0
    %6083 = vmatpush1.msra.mxu0 0.0
    %6084 = vmatprep.subr.mxu0 0.0
    %6085 = vmatpush1.msra.mxu0 0.0
    %6086 = vmatprep.subr.mxu0 0.0
    %6087 = vmatpush1.msra.mxu0 0.0
    %6088 = vmatprep.subr.mxu0 0.0
    %6089 = vmatpush1.msra.mxu0 0.0
    %6090 = vmatprep.subr.mxu0 0.0
    %6091 = vmatpush1.msra.mxu0 0.0
    %6092 = vmatprep.subr.mxu0 0.0
    %6093 = vmatpush1.msra.mxu0 0.0
    %6094 = vmatprep.subr.mxu0 0.0
    %6095 = vmatpush1.msra.mxu0 0.0
    %6096 = vmatprep.subr.mxu0 0.0
    %6097 = vmatpush1.msra.mxu0 0.0
    %6098 = vmatprep.subr.mxu0 0.0
    %6099 = vmatpush1.msra.mxu0 0.0
    %6100 = vmatprep.subr.mxu0 0.0
    %6101 = vmatpush1.msra.mxu0 0.0
    %6102 = vmatprep.subr.mxu0 0.0
    %6103 = vmatpush1.msra.mxu0 0.0
    %6104 = vmatprep.subr.mxu0 0.0
    %6105 = vmatpush1.msra.mxu0 0.0
    %6106 = vmatprep.subr.mxu0 0.0
    %6107 = vmatpush1.msra.mxu0 0.0
    %6108 = vmatprep.subr.mxu0 0.0
    %6109 = vmatpush1.msra.mxu0 0.0
    %6110 = vmatprep.mubr.f32.mxu0 0.0
    %6111 = vmatmul.mubr.f32.gmra.mrb[0].mxu0 %v6044
    %v6112 = vpop.f32.mrb[0].mxu0
    %v6113 = vadd.f32 0.0, %v6112
    %v6114 = vpop.f32.mrb[0].mxu0
    %6115 = vdwg.mxu0
    %6116 = vrot.lane.b32.xlu0 %v5620, 104
    %v6117 = vpop.permute.xlu0 %6116
    %6118 = vrot.lane.b32.xlu0 %v4939, 104
    %v6119 = vpop.permute.xlu0 %6118
    %v6120 = vsel %vm421, %v6117, 0
    %v6122 = vsel %vm421, %v6119, 0
    %6124 = vmatprep.subr.mxu0 0.0
    %6125 = vmatpush1.xpose.msra.mxu0 %v6122
    %6126 = vmatprep.subr.mxu0 0.0
    %6127 = vmatpush1.xpose.msra.mxu0 0.0
    %6128 = vmatprep.subr.mxu0 0.0
    %6129 = vmatpush1.xpose.msra.mxu0 0.0
    %6130 = vmatprep.subr.mxu0 0.0
    %6131 = vmatpush1.xpose.msra.mxu0 0.0
    %6132 = vmatprep.subr.mxu0 0.0
    %6133 = vmatpush1.xpose.msra.mxu0 0.0
    %6134 = vmatprep.subr.mxu0 0.0
    %6135 = vmatpush1.xpose.msra.mxu0 0.0
    %6136 = vmatprep.subr.mxu0 0.0
    %6137 = vmatpush1.xpose.msra.mxu0 0.0
    %6138 = vmatprep.subr.mxu0 0.0
    %6139 = vmatpush1.xpose.msra.mxu0 0.0
    %6140 = vmatprep.subr.mxu0 0.0
    %6141 = vmatpush1.xpose.msra.mxu0 0.0
    %6142 = vmatprep.subr.mxu0 0.0
    %6143 = vmatpush1.xpose.msra.mxu0 0.0
    %6144 = vmatprep.subr.mxu0 0.0
    %6145 = vmatpush1.xpose.msra.mxu0 0.0
    %6146 = vmatprep.subr.mxu0 0.0
    %6147 = vmatpush1.xpose.msra.mxu0 0.0
    %6148 = vmatprep.subr.mxu0 0.0
    %6149 = vmatpush1.xpose.msra.mxu0 0.0
    %6150 = vmatprep.subr.mxu0 0.0
    %6151 = vmatpush1.xpose.msra.mxu0 0.0
    %6152 = vmatprep.subr.mxu0 0.0
    %6153 = vmatpush1.xpose.msra.mxu0 0.0
    %6154 = vmatprep.subr.mxu0 0.0
    %6155 = vmatpush1.xpose.msra.mxu0 0.0
    %6156 = vmatprep.subr.mxu0 0.0
    %6157 = vmatpush1.xpose.msra.mxu0 0.0
    %6158 = vmatprep.subr.mxu0 0.0
    %6159 = vmatpush1.xpose.msra.mxu0 0.0
    %6160 = vmatprep.subr.mxu0 0.0
    %6161 = vmatpush1.xpose.msra.mxu0 0.0
    %6162 = vmatprep.subr.mxu0 0.0
    %6163 = vmatpush1.xpose.msra.mxu0 0.0
    %6164 = vmatprep.subr.mxu0 0.0
    %6165 = vmatpush1.xpose.msra.mxu0 0.0
    %6166 = vmatprep.subr.mxu0 0.0
    %6167 = vmatpush1.xpose.msra.mxu0 0.0
    %6168 = vmatprep.subr.mxu0 0.0
    %6169 = vmatpush1.xpose.msra.mxu0 0.0
    %6170 = vmatprep.subr.mxu0 0.0
    %6171 = vmatpush1.xpose.msra.mxu0 0.0
    %6172 = vmatprep.subr.mxu0 0.0
    %6173 = vmatpush1.xpose.msra.mxu0 0.0
    %6174 = vmatprep.subr.mxu0 0.0
    %6175 = vmatpush1.xpose.msra.mxu0 0.0
    %6176 = vmatprep.subr.mxu0 0.0
    %6177 = vmatpush1.xpose.msra.mxu0 0.0
    %6178 = vmatprep.subr.mxu0 0.0
    %6179 = vmatpush1.xpose.msra.mxu0 0.0
    %6180 = vmatprep.subr.mxu0 0.0
    %6181 = vmatpush1.xpose.msra.mxu0 0.0
    %6182 = vmatprep.subr.mxu0 0.0
    %6183 = vmatpush1.xpose.msra.mxu0 0.0
    %6184 = vmatprep.subr.mxu0 0.0
    %6185 = vmatpush1.xpose.msra.mxu0 0.0
    %6186 = vmatprep.subr.mxu0 0.0
    %6187 = vmatpush1.xpose.msra.mxu0 0.0
    %6188 = vmatprep.mubr.f32.mxu0 0.0
    %6189 = vmatmul.mubr.f32.gmra.mrb[0].mxu0 %v6120
    %v6190 = vpop.f32.mrb[0].mxu0
    %v6191 = vadd.f32 0.0, %v6190
    %v6192 = vpop.f32.mrb[0].mxu0
    %6193 = vdwg.mxu0
    %v6194 = vmul.f32 %v6191, 0.35355338
    %v6195 = vsel %vm5019, %v6194, -inf
    %6196 = vmax.xlane.f32.xlu0 %v6195
    %v6197 = vpop.xlane.xlu0 %6196
    %v6198 = vsub.f32 %v6194, %v6197
    %v6199 = vmul.f32 %v6198, 1.442695
    %v6200 = vpow.pop %v6199
    %v6201 = vsel %vm5019, %v6200, 0.0
    %6202 = vadd.xlane.f32.xlu0 %v6201
    %v6203 = vpop.xlane.xlu0 %6202
    %v6204 = vrcp.pop %v6203
    %v6205 = vmul.f32 %v6200, %v6204
    %6206 = vrot.lane.b32.xlu0 %v4939, 72
    %v6207 = vpop.permute.xlu0 %6206
    %v6210 = vsel %vm421, %v6205, 0
    %6212 = vmatprep.subr.mxu0 0.0
    %6213 = vmatpush1.msra.mxu0 %v6207
    %6214 = vmatprep.subr.mxu0 0.0
    %6215 = vmatpush1.msra.mxu0 0.0
    %6216 = vmatprep.subr.mxu0 0.0
    %6217 = vmatpush1.msra.mxu0 0.0
    %6218 = vmatprep.subr.mxu0 0.0
    %6219 = vmatpush1.msra.mxu0 0.0
    %6220 = vmatprep.subr.mxu0 0.0
    %6221 = vmatpush1.msra.mxu0 0.0
    %6222 = vmatprep.subr.mxu0 0.0
    %6223 = vmatpush1.msra.mxu0 0.0
    %6224 = vmatprep.subr.mxu0 0.0
    %6225 = vmatpush1.msra.mxu0 0.0
    %6226 = vmatprep.subr.mxu0 0.0
    %6227 = vmatpush1.msra.mxu0 0.0
    %6228 = vmatprep.subr.mxu0 0.0
    %6229 = vmatpush1.msra.mxu0 0.0
    %6230 = vmatprep.subr.mxu0 0.0
    %6231 = vmatpush1.msra.mxu0 0.0
    %6232 = vmatprep.subr.mxu0 0.0
    %6233 = vmatpush1.msra.mxu0 0.0
    %6234 = vmatprep.subr.mxu0 0.0
    %6235 = vmatpush1.msra.mxu0 0.0
    %6236 = vmatprep.subr.mxu0 0.0
    %6237 = vmatpush1.msra.mxu0 0.0
    %6238 = vmatprep.subr.mxu0 0.0
    %6239 = vmatpush1.msra.mxu0 0.0
    %6240 = vmatprep.subr.mxu0 0.0
    %6241 = vmatpush1.msra.mxu0 0.0
    %6242 = vmatprep.subr.mxu0 0.0
    %6243 = vmatpush1.msra.mxu0 0.0
    %6244 = vmatprep.subr.mxu0 0.0
    %6245 = vmatpush1.msra.mxu0 0.0
    %6246 = vmatprep.subr.mxu0 0.0
    %6247 = vmatpush1.msra.mxu0 0.0
    %6248 = vmatprep.subr.mxu0 0.0
    %6249 = vmatpush1.msra.mxu0 0.0
    %6250 = vmatprep.subr.mxu0 0.0
    %6251 = vmatpush1.msra.mxu0 0.0
    %6252 = vmatprep.subr.mxu0 0.0
    %6253 = vmatpush1.msra.mxu0 0.0
    %6254 = vmatprep.subr.mxu0 0.0
    %6255 = vmatpush1.msra.mxu0 0.0
    %6256 = vmatprep.subr.mxu0 0.0
    %6257 = vmatpush1.msra.mxu0 0.0
    %6258 = vmatprep.subr.mxu0 0.0
    %6259 = vmatpush1.msra.mxu0 0.0
    %6260 = vmatprep.subr.mxu0 0.0
    %6261 = vmatpush1.msra.mxu0 0.0
    %6262 = vmatprep.subr.mxu0 0.0
    %6263 = vmatpush1.msra.mxu0 0.0
    %6264 = vmatprep.subr.mxu0 0.0
    %6265 = vmatpush1.msra.mxu0 0.0
    %6266 = vmatprep.subr.mxu0 0.0
    %6267 = vmatpush1.msra.mxu0 0.0
    %6268 = vmatprep.subr.mxu0 0.0
    %6269 = vmatpush1.msra.mxu0 0.0
    %6270 = vmatprep.subr.mxu0 0.0
    %6271 = vmatpush1.msra.mxu0 0.0
    %6272 = vmatprep.subr.mxu0 0.0
    %6273 = vmatpush1.msra.mxu0 0.0
    %6274 = vmatprep.subr.mxu0 0.0
    %6275 = vmatpush1.msra.mxu0 0.0
    %6276 = vmatprep.mubr.f32.mxu0 0.0
    %6277 = vmatmul.mubr.f32.gmra.mrb[0].mxu0 %v6210
    %v6278 = vpop.f32.mrb[0].mxu0
    %v6279 = vadd.f32 0.0, %v6278
    %v6280 = vpop.f32.mrb[0].mxu0
    %6281 = vdwg.mxu0
    %6283 = vrot.lane.b32.xlu0 %v5947, 8
    %v6284 = vpop.permute.xlu0 %6283
    %6287 = vrot.lane.b32.xlu0 %v6113, 16
    %v6288 = vpop.permute.xlu0 %6287
    %6291 = vrot.lane.b32.xlu0 %v6279, 24
    %v6292 = vpop.permute.xlu0 %6291
    %v6294 = vsel %vm421, %v5781, %v6284
    %v6295 = vsel %vm166, %v6294, %v6288
    %v6296 = vsel %vm1096, %v6295, %v6292
    %v6298 = vrot.slane %v6296, 7
    %vm6300 = vcmask 1040384
    %v6301 = vsel %vm6300, %v5619, %v6298
    %v6303 = vlaneseq
    %v6304 = vshrl.u32 %v6303, 7
    %v6305 = vsub.s32 0, %v6304
    %v6306 = vrot.slane %v4540, %v6305
    %v6309 = vsel %vm291, %v6301, 0
    %6311 = vmatprep.subr.mxu0 0.0
    %6312 = vmatpush1.msra.mxu0 %v4536
    %6313 = vmatprep.subr.mxu0 0.0
    %6314 = vmatpush1.msra.mxu0 %v4537
    %6315 = vmatprep.subr.mxu0 0.0
    %6316 = vmatpush1.msra.mxu0 %v4538
    %6317 = vmatprep.subr.mxu0 0.0
    %6318 = vmatpush1.msra.mxu0 %v4539
    %6319 = vmatprep.subr.mxu0 0.0
    %6320 = vmatpush1.msra.mxu0 0.0
    %6321 = vmatprep.subr.mxu0 0.0
    %6322 = vmatpush1.msra.mxu0 0.0
    %6323 = vmatprep.subr.mxu0 0.0
    %6324 = vmatpush1.msra.mxu0 0.0
    %6325 = vmatprep.subr.mxu0 0.0
    %6326 = vmatpush1.msra.mxu0 0.0
    %6327 = vmatprep.subr.mxu0 0.0
    %6328 = vmatpush1.msra.mxu0 0.0
    %6329 = vmatprep.subr.mxu0 0.0
    %6330 = vmatpush1.msra.mxu0 0.0
    %6331 = vmatprep.subr.mxu0 0.0
    %6332 = vmatpush1.msra.mxu0 0.0
    %6333 = vmatprep.subr.mxu0 0.0
    %6334 = vmatpush1.msra.mxu0 0.0
    %6335 = vmatprep.subr.mxu0 0.0
    %6336 = vmatpush1.msra.mxu0 0.0
    %6337 = vmatprep.subr.mxu0 0.0
    %6338 = vmatpush1.msra.mxu0 0.0
    %6339 = vmatprep.subr.mxu0 0.0
    %6340 = vmatpush1.msra.mxu0 0.0
    %6341 = vmatprep.subr.mxu0 0.0
    %6342 = vmatpush1.msra.mxu0 0.0
    %6343 = vmatprep.subr.mxu0 0.0
    %6344 = vmatpush1.msra.mxu0 0.0
    %6345 = vmatprep.subr.mxu0 0.0
    %6346 = vmatpush1.msra.mxu0 0.0
    %6347 = vmatprep.subr.mxu0 0.0
    %6348 = vmatpush1.msra.mxu0 0.0
    %6349 = vmatprep.subr.mxu0 0.0
    %6350 = vmatpush1.msra.mxu0 0.0
    %6351 = vmatprep.subr.mxu0 0.0
    %6352 = vmatpush1.msra.mxu0 0.0
    %6353 = vmatprep.subr.mxu0 0.0
    %6354 = vmatpush1.msra.mxu0 0.0
    %6355 = vmatprep.subr.mxu0 0.0
    %6356 = vmatpush1.msra.mxu0 0.0
    %6357 = vmatprep.subr.mxu0 0.0
    %6358 = vmatpush1.msra.mxu0 0.0
    %6359 = vmatprep.subr.mxu0 0.0
    %6360 = vmatpush1.msra.mxu0 0.0
    %6361 = vmatprep.subr.mxu0 0.0
    %6362 = vmatpush1.msra.mxu0 0.0
    %6363 = vmatprep.subr.mxu0 0.0
    %6364 = vmatpush1.msra.mxu0 0.0
    %6365 = vmatprep.subr.mxu0 0.0
    %6366 = vmatpush1.msra.mxu0 0.0
    %6367 = vmatprep.subr.mxu0 0.0
    %6368 = vmatpush1.msra.mxu0 0.0
    %6369 = vmatprep.subr.mxu0 0.0
    %6370 = vmatpush1.msra.mxu0 0.0
    %6371 = vmatprep.subr.mxu0 0.0
    %6372 = vmatpush1.msra.mxu0 0.0
    %6373 = vmatprep.subr.mxu0 0.0
    %6374 = vmatpush1.msra.mxu0 0.0
    %6375 = vmatprep.mubr.f32.mxu0 0.0
    %6376 = vmatmul.mubr.f32.gmra.mrb[0].mxu0 %v6309
    %v6377 = vpop.f32.mrb[0].mxu0
    %v6378 = vadd.f32 %v6306, %v6377
    %v6379 = vpop.f32.mrb[0].mxu0
    %6380 = vdwg.mxu0
    %v6381 = vadd.f32 %v4752, %v6378
    %v6382 = vsel %vm4568, %v6381, 0.0
    %6383 = vadd.xlane.f32.xlu0 %v6382
    %v6384 = vpop.xlane.xlu0 %6383
    %v6385 = vmul.f32 %v6384, %v298
    %v6386 = vsub.f32 %v6381, %v6385
    %v6387 = vmul.f32 %v6386, %v6386
    %v6388 = vsel %vm4568, %v6387, 0.0
    %6389 = vadd.xlane.f32.xlu0 %v6388
    %v6390 = vpop.xlane.xlu0 %6389
    %v6391 = vmul.f32 %v6390, %v298
    %v6392 = vadd.f32 %v6391, 1e-05
    %v6393 = vrsqrt.pop %v6392
    %v6394 = vmul.f32 %v6386, %v6393
    %v6395 = vlaneseq
    %v6396 = vshrl.u32 %v6395, 7
    %v6397 = vsub.s32 2, %v6396
    %v6398 = vrot.slane %v4514, %v6397
    %v6399 = vmul.f32 %v6394, %v6398
    %v6400 = vlaneseq
    %v6401 = vshrl.u32 %v6400, 7
    %v6402 = vsub.s32 2, %v6401
    %v6403 = vrot.slane %v4515, %v6402
    %v6404 = vadd.f32 %v6399, %v6403
    %v6406 = vlaneseq
    %v6407 = vshrl.u32 %v6406, 7
    %v6408 = vsub.s32 0, %v6407
    %v6409 = vrot.slane %v4545, %v6408
    %v6412 = vsel %vm291, %v6404, 0
    %6414 = vmatprep.subr.mxu0 0.0
    %6415 = vmatpush1.msra.mxu0 %v4541
    %6416 = vmatprep.subr.mxu0 0.0
    %6417 = vmatpush1.msra.mxu0 %v4542
    %6418 = vmatprep.subr.mxu0 0.0
    %6419 = vmatpush1.msra.mxu0 %v4543
    %6420 = vmatprep.subr.mxu0 0.0
    %6421 = vmatpush1.msra.mxu0 %v4544
    %6422 = vmatprep.subr.mxu0 0.0
    %6423 = vmatpush1.msra.mxu0 0.0
    %6424 = vmatprep.subr.mxu0 0.0
    %6425 = vmatpush1.msra.mxu0 0.0
    %6426 = vmatprep.subr.mxu0 0.0
    %6427 = vmatpush1.msra.mxu0 0.0
    %6428 = vmatprep.subr.mxu0 0.0
    %6429 = vmatpush1.msra.mxu0 0.0
    %6430 = vmatprep.subr.mxu0 0.0
    %6431 = vmatpush1.msra.mxu0 0.0
    %6432 = vmatprep.subr.mxu0 0.0
    %6433 = vmatpush1.msra.mxu0 0.0
    %6434 = vmatprep.subr.mxu0 0.0
    %6435 = vmatpush1.msra.mxu0 0.0
    %6436 = vmatprep.subr.mxu0 0.0
    %6437 = vmatpush1.msra.mxu0 0.0
    %6438 = vmatprep.subr.mxu0 0.0
    %6439 = vmatpush1.msra.mxu0 0.0
    %6440 = vmatprep.subr.mxu0 0.0
    %6441 = vmatpush1.msra.mxu0 0.0
    %6442 = vmatprep.subr.mxu0 0.0
    %6443 = vmatpush1.msra.mxu0 0.0
    %6444 = vmatprep.subr.mxu0 0.0
    %6445 = vmatpush1.msra.mxu0 0.0
    %6446 = vmatprep.subr.mxu0 0.0
    %6447 = vmatpush1.msra.mxu0 0.0
    %6448 = vmatprep.subr.mxu0 0.0
    %6449 = vmatpush1.msra.mxu0 0.0
    %6450 = vmatprep.subr.mxu0 0.0
    %6451 = vmatpush1.msra.mxu0 0.0
    %6452 = vmatprep.subr.mxu0 0.0
    %6453 = vmatpush1.msra.mxu0 0.0
    %6454 = vmatprep.subr.mxu0 0.0
    %6455 = vmatpush1.msra.mxu0 0.0
    %6456 = vmatprep.subr.mxu0 0.0
    %6457 = vmatpush1.msra.mxu0 0.0
    %6458 = vmatprep.subr.mxu0 0.0
    %6459 = vmatpush1.msra.mxu0 0.0
    %6460 = vmatprep.subr.mxu0 0.0
    %6461 = vmatpush1.msra.mxu0 0.0
    %6462 = vmatprep.subr.mxu0 0.0
    %6463 = vmatpush1.msra.mxu0 0.0
    %6464 = vmatprep.subr.mxu0 0.0
    %6465 = vmatpush1.msra.mxu0 0.0
    %6466 = vmatprep.subr.mxu0 0.0
    %6467 = vmatpush1.msra.mxu0 0.0
    %6468 = vmatprep.subr.mxu0 0.0
    %6469 = vmatpush1.msra.mxu0 0.0
    %6470 = vmatprep.subr.mxu0 0.0
    %6471 = vmatpush1.msra.mxu0 0.0
    %6472 = vmatprep.subr.mxu0 0.0
    %6473 = vmatpush1.msra.mxu0 0.0
    %6474 = vmatprep.subr.mxu0 0.0
    %6475 = vmatpush1.msra.mxu0 0.0
    %6476 = vmatprep.subr.mxu0 0.0
    %6477 = vmatpush1.msra.mxu0 0.0
    %6478 = vmatprep.mubr.f32.mxu0 0.0
    %6479 = vmatmul.mubr.f32.gmra.mrb[0].mxu0 %v6412
    %v6480 = vpop.f32.mrb[0].mxu0
    %v6481 = vadd.f32 %v6409, %v6480
    %v6482 = vpop.f32.mrb[0].mxu0
    %6483 = vdwg.mxu0
    %vm6484 = vcmask 9216
    %v6485 = vsel %vm6484, %v6481, -inf
    %6486 = vmax.xlane.f32.xlu0 %v6485
    %v6487 = vpop.xlane.xlu0 %6486
    %v6488 = vsub.f32 %v6481, %v6487
    %v6489 = vmul.f32 %v6488, 1.442695
    %v6490 = vpow.pop %v6489
    %v6491 = vsel %vm6484, %v6490, 0.0
    %6492 = vadd.xlane.f32.xlu0 %v6491
    %v6493 = vpop.xlane.xlu0 %6492
    %v6494 = vrcp.pop %v6493
    %v6495 = vmul.f32 %v6490, %v6494
    %6497 = vrot.lane.b32.xlu0 %v6495, 1
    %v6498 = vpop.permute.xlu0 %6497
    %vm6500 = vcmp.gt.f32.partialorder %v6495, %v6498
    %v6501 = vsel %vm6500, 1, 0
    %v6502 = vcvt.s32.f32 %v6501
    %6503 = vrot.lane.b32.xlu0 %v6495, 127
    %v6504 = vpop.permute.xlu0 %6503
    %v6506 = vmax.f32 %v6495, %v6504
    %v6508 = vlaneseq
    %v6509 = vshrl.u32 %v6508, 7
    %v6510 = vsub.s32 0, %v6509
    %v6511 = vrot.slane %v4550, %v6510
    %6513 = vmatprep.subr.mxu0 0.0
    %6514 = vmatpush1.msra.mxu0 %v4546
    %6515 = vmatprep.subr.mxu0 0.0
    %6516 = vmatpush1.msra.mxu0 %v4547
    %6517 = vmatprep.subr.mxu0 0.0
    %6518 = vmatpush1.msra.mxu0 %v4548
    %6519 = vmatprep.subr.mxu0 0.0
    %6520 = vmatpush1.msra.mxu0 %v4549
    %6521 = vmatprep.subr.mxu0 0.0
    %6522 = vmatpush1.msra.mxu0 0.0
    %6523 = vmatprep.subr.mxu0 0.0
    %6524 = vmatpush1.msra.mxu0 0.0
    %6525 = vmatprep.subr.mxu0 0.0
    %6526 = vmatpush1.msra.mxu0 0.0
    %6527 = vmatprep.subr.mxu0 0.0
    %6528 = vmatpush1.msra.mxu0 0.0
    %6529 = vmatprep.subr.mxu0 0.0
    %6530 = vmatpush1.msra.mxu0 0.0
    %6531 = vmatprep.subr.mxu0 0.0
    %6532 = vmatpush1.msra.mxu0 0.0
    %6533 = vmatprep.subr.mxu0 0.0
    %6534 = vmatpush1.msra.mxu0 0.0
    %6535 = vmatprep.subr.mxu0 0.0
    %6536 = vmatpush1.msra.mxu0 0.0
    %6537 = vmatprep.subr.mxu0 0.0
    %6538 = vmatpush1.msra.mxu0 0.0
    %6539 = vmatprep.subr.mxu0 0.0
    %6540 = vmatpush1.msra.mxu0 0.0
    %6541 = vmatprep.subr.mxu0 0.0
    %6542 = vmatpush1.msra.mxu0 0.0
    %6543 = vmatprep.subr.mxu0 0.0
    %6544 = vmatpush1.msra.mxu0 0.0
    %6545 = vmatprep.subr.mxu0 0.0
    %6546 = vmatpush1.msra.mxu0 0.0
    %6547 = vmatprep.subr.mxu0 0.0
    %6548 = vmatpush1.msra.mxu0 0.0
    %6549 = vmatprep.subr.mxu0 0.0
    %6550 = vmatpush1.msra.mxu0 0.0
    %6551 = vmatprep.subr.mxu0 0.0
    %6552 = vmatpush1.msra.mxu0 0.0
    %6553 = vmatprep.subr.mxu0 0.0
    %6554 = vmatpush1.msra.mxu0 0.0
    %6555 = vmatprep.subr.mxu0 0.0
    %6556 = vmatpush1.msra.mxu0 0.0
    %6557 = vmatprep.subr.mxu0 0.0
    %6558 = vmatpush1.msra.mxu0 0.0
    %6559 = vmatprep.subr.mxu0 0.0
    %6560 = vmatpush1.msra.mxu0 0.0
    %6561 = vmatprep.subr.mxu0 0.0
    %6562 = vmatpush1.msra.mxu0 0.0
    %6563 = vmatprep.subr.mxu0 0.0
    %6564 = vmatpush1.msra.mxu0 0.0
    %6565 = vmatprep.subr.mxu0 0.0
    %6566 = vmatpush1.msra.mxu0 0.0
    %6567 = vmatprep.subr.mxu0 0.0
    %6568 = vmatpush1.msra.mxu0 0.0
    %6569 = vmatprep.subr.mxu0 0.0
    %6570 = vmatpush1.msra.mxu0 0.0
    %6571 = vmatprep.subr.mxu0 0.0
    %6572 = vmatpush1.msra.mxu0 0.0
    %6573 = vmatprep.subr.mxu0 0.0
    %6574 = vmatpush1.msra.mxu0 0.0
    %6575 = vmatprep.subr.mxu0 0.0
    %6576 = vmatpush1.msra.mxu0 0.0
    %6577 = vmatprep.mubr.f32.mxu0 0.0
    %6578 = vmatmul.mubr.f32.gmra.mrb[0].mxu0 %v6412
    %v6579 = vpop.f32.mrb[0].mxu0
    %v6580 = vadd.f32 %v6511, %v6579
    %v6581 = vpop.f32.mrb[0].mxu0
    %6582 = vdwg.mxu0
    %v6583 = vmax.f32 %v6580, 0.0
    %v6585 = vlaneseq
    %v6586 = vshrl.u32 %v6585, 7
    %v6587 = vsub.s32 0, %v6586
    %v6588 = vrot.slane %v4567, %v6587
    %6590 = vmatprep.subr.mxu0 0.0
    %6591 = vmatpush1.msra.mxu0 %v4551
    %6592 = vmatprep.subr.mxu0 0.0
    %6593 = vmatpush1.msra.mxu0 %v4552
    %6594 = vmatprep.subr.mxu0 0.0
    %6595 = vmatpush1.msra.mxu0 %v4553
    %6596 = vmatprep.subr.mxu0 0.0
    %6597 = vmatpush1.msra.mxu0 %v4554
    %6598 = vmatprep.subr.mxu0 0.0
    %6599 = vmatpush1.msra.mxu0 %v4555
    %6600 = vmatprep.subr.mxu0 0.0
    %6601 = vmatpush1.msra.mxu0 %v4556
    %6602 = vmatprep.subr.mxu0 0.0
    %6603 = vmatpush1.msra.mxu0 %v4557
    %6604 = vmatprep.subr.mxu0 0.0
    %6605 = vmatpush1.msra.mxu0 %v4558
    %6606 = vmatprep.subr.mxu0 0.0
    %6607 = vmatpush1.msra.mxu0 %v4559
    %6608 = vmatprep.subr.mxu0 0.0
    %6609 = vmatpush1.msra.mxu0 %v4560
    %6610 = vmatprep.subr.mxu0 0.0
    %6611 = vmatpush1.msra.mxu0 %v4561
    %6612 = vmatprep.subr.mxu0 0.0
    %6613 = vmatpush1.msra.mxu0 %v4562
    %6614 = vmatprep.subr.mxu0 0.0
    %6615 = vmatpush1.msra.mxu0 %v4563
    %6616 = vmatprep.subr.mxu0 0.0
    %6617 = vmatpush1.msra.mxu0 %v4564
    %6618 = vmatprep.subr.mxu0 0.0
    %6619 = vmatpush1.msra.mxu0 %v4565
    %6620 = vmatprep.subr.mxu0 0.0
    %6621 = vmatpush1.msra.mxu0 %v4566
    %6622 = vmatprep.subr.mxu0 0.0
    %6623 = vmatpush1.msra.mxu0 0.0
    %6624 = vmatprep.subr.mxu0 0.0
    %6625 = vmatpush1.msra.mxu0 0.0
    %6626 = vmatprep.subr.mxu0 0.0
    %6627 = vmatpush1.msra.mxu0 0.0
    %6628 = vmatprep.subr.mxu0 0.0
    %6629 = vmatpush1.msra.mxu0 0.0
    %6630 = vmatprep.subr.mxu0 0.0
    %6631 = vmatpush1.msra.mxu0 0.0
    %6632 = vmatprep.subr.mxu0 0.0
    %6633 = vmatpush1.msra.mxu0 0.0
    %6634 = vmatprep.subr.mxu0 0.0
    %6635 = vmatpush1.msra.mxu0 0.0
    %6636 = vmatprep.subr.mxu0 0.0
    %6637 = vmatpush1.msra.mxu0 0.0
    %6638 = vmatprep.subr.mxu0 0.0
    %6639 = vmatpush1.msra.mxu0 0.0
    %6640 = vmatprep.subr.mxu0 0.0
    %6641 = vmatpush1.msra.mxu0 0.0
    %6642 = vmatprep.subr.mxu0 0.0
    %6643 = vmatpush1.msra.mxu0 0.0
    %6644 = vmatprep.subr.mxu0 0.0
    %6645 = vmatpush1.msra.mxu0 0.0
    %6646 = vmatprep.subr.mxu0 0.0
    %6647 = vmatpush1.msra.mxu0 0.0
    %6648 = vmatprep.subr.mxu0 0.0
    %6649 = vmatpush1.msra.mxu0 0.0
    %6650 = vmatprep.subr.mxu0 0.0
    %6651 = vmatpush1.msra.mxu0 0.0
    %6652 = vmatprep.subr.mxu0 0.0
    %6653 = vmatpush1.msra.mxu0 0.0
    %6654 = vmatprep.mubr.f32.mxu0 0.0
    %6655 = vmatmul.mubr.f32.gmra.mrb[0].mxu0 %v6583
    %v6656 = vpop.f32.mrb[0].mxu0
    %v6657 = vadd.f32 %v6588, %v6656
    %v6658 = vpop.f32.mrb[0].mxu0
    %6659 = vdwg.mxu0
    %6661 = vset.pattern.permute.xlu0 1
    %6662 = vperm.xlu0 %6661, %v6502
    %v6663 = vpop.permute.xlu0 %6662
    %v6665 = vmul.f32 %v6663, %v6657
    %v6666 = vsub.f32 1.0, %v6502
    %6668 = vset.pattern.permute.xlu0 1
    %6669 = vperm.xlu0 %6668, %v6666
    %v6670 = vpop.permute.xlu0 %6669
    %v6672 = vmul.f32 %v6670, %v6657
    %6674 = vrot.lane.b32.xlu0 %v6672, 32
    %v6675 = vpop.permute.xlu0 %6674
    %v6677 = vadd.f32 %v6665, %v6675
    %6678 = vrot.lane.b32.xlu0 %v6666, 127
    %v6679 = vpop.permute.xlu0 %6678
    %v6681 = vsel %vm2241, %v6679, %v6502
    %v6682 = vsel %vm1990, %v2253, 0
    %vm6684 = vcmask 1041408
    %v6686 = vsel %vm6684, %v6681, 0
    %6688 = vmatprep.subr.mxu0 0.0
    %6689 = vmatpush1.msra.mxu0 %v6686
    %6690 = vmatprep.subr.mxu0 0.0
    %6691 = vmatpush1.msra.mxu0 0.0
    %6692 = vmatprep.subr.mxu0 0.0
    %6693 = vmatpush1.msra.mxu0 0.0
    %6694 = vmatprep.subr.mxu0 0.0
    %6695 = vmatpush1.msra.mxu0 0.0
    %6696 = vmatprep.subr.mxu0 0.0
    %6697 = vmatpush1.msra.mxu0 0.0
    %6698 = vmatprep.subr.mxu0 0.0
    %6699 = vmatpush1.msra.mxu0 0.0
    %6700 = vmatprep.subr.mxu0 0.0
    %6701 = vmatpush1.msra.mxu0 0.0
    %6702 = vmatprep.subr.mxu0 0.0
    %6703 = vmatpush1.msra.mxu0 0.0
    %6704 = vmatprep.subr.mxu0 0.0
    %6705 = vmatpush1.msra.mxu0 0.0
    %6706 = vmatprep.subr.mxu0 0.0
    %6707 = vmatpush1.msra.mxu0 0.0
    %6708 = vmatprep.subr.mxu0 0.0
    %6709 = vmatpush1.msra.mxu0 0.0
    %6710 = vmatprep.subr.mxu0 0.0
    %6711 = vmatpush1.msra.mxu0 0.0
    %6712 = vmatprep.subr.mxu0 0.0
    %6713 = vmatpush1.msra.mxu0 0.0
    %6714 = vmatprep.subr.mxu0 0.0
    %6715 = vmatpush1.msra.mxu0 0.0
    %6716 = vmatprep.subr.mxu0 0.0
    %6717 = vmatpush1.msra.mxu0 0.0
    %6718 = vmatprep.subr.mxu0 0.0
    %6719 = vmatpush1.msra.mxu0 0.0
    %6720 = vmatprep.subr.mxu0 0.0
    %6721 = vmatpush1.msra.mxu0 0.0
    %6722 = vmatprep.subr.mxu0 0.0
    %6723 = vmatpush1.msra.mxu0 0.0
    %6724 = vmatprep.subr.mxu0 0.0
    %6725 = vmatpush1.msra.mxu0 0.0
    %6726 = vmatprep.subr.mxu0 0.0
    %6727 = vmatpush1.msra.mxu0 0.0
    %6728 = vmatprep.subr.mxu0 0.0
    %6729 = vmatpush1.msra.mxu0 0.0
    %6730 = vmatprep.subr.mxu0 0.0
    %6731 = vmatpush1.msra.mxu0 0.0
    %6732 = vmatprep.subr.mxu0 0.0
    %6733 = vmatpush1.msra.mxu0 0.0
    %6734 = vmatprep.subr.mxu0 0.0
    %6735 = vmatpush1.msra.mxu0 0.0
    %6736 = vmatprep.subr.mxu0 0.0
    %6737 = vmatpush1.msra.mxu0 0.0
    %6738 = vmatprep.subr.mxu0 0.0
    %6739 = vmatpush1.msra.mxu0 0.0
    %6740 = vmatprep.subr.mxu0 0.0
    %6741 = vmatpush1.msra.mxu0 0.0
    %6742 = vmatprep.subr.mxu0 0.0
    %6743 = vmatpush1.msra.mxu0 0.0
    %6744 = vmatprep.subr.mxu0 0.0
    %6745 = vmatpush1.msra.mxu0 0.0
    %6746 = vmatprep.subr.mxu0 0.0
    %6747 = vmatpush1.msra.mxu0 0.0
    %6748 = vmatprep.subr.mxu0 0.0
    %6749 = vmatpush1.msra.mxu0 0.0
    %6750 = vmatprep.subr.mxu0 0.0
    %6751 = vmatpush1.msra.mxu0 0.0
    %6752 = vmatprep.mubr.f32.mxu0 0.0
    %6753 = vmatmul.mubr.f32.gmra.mrb[0].mxu0 %v6682
    %v6754 = vpop.f32.mrb[0].mxu0
    %v6755 = vadd.f32 0.0, %v6754
    %v6756 = vpop.f32.mrb[0].mxu0
    %6757 = vdwg.mxu0
    %v6758 = vmul.f32 %v6755, %v6681
    %v6759 = vsel %vm6484, %v6758, 0.0
    %6760 = vadd.xlane.f32.xlu0 %v6759
    %v6761 = vpop.xlane.xlu0 %6760
    %vm6762 = vcmp.le.f32.partialorder %v6761, 1.0
    %v6763 = vsel %vm6762, 1, 0
    %v6764 = vcvt.s32.f32 %v6763
    %v6765 = vmul.f32 %v6764, %v6677
    %v6766 = vsub.f32 1.0, %v6764
    %v6767 = vmul.f32 %v6766, %v6404
    %6769 = vrot.lane.b32.xlu0 %v6767, 32
    %v6770 = vpop.permute.xlu0 %6769
    %v6772 = vadd.f32 %v6765, %v6770
    %6774 = vset.pattern.permute.xlu0 0
    %6775 = vperm.xlu0 %6774, %v6506
    %v6776 = vpop.permute.xlu0 %6775
    %v6778 = vmul.f32 %v6772, %v6776
    %6780 = vrot.lane.b32.xlu0 %v6778, 96
    %v6781 = vpop.permute.xlu0 %6780
    %v6783 = vadd.f32 %v6381, %v6781
    %s6784 = scalar_lea.vmem %s35, 4
    %v6785 = vld [vmem:[%s6784] sm:$0x7]
    %s6786 = scalar_lea.vmem %s37, 4
    %v6787 = vld [vmem:[%s6786] sm:$0x7]
    %s6788 = scalar_lea.vmem %s39, 32
    %v6789 = vld [vmem:[%s6788] sm:$0xff]
    %v6790 = vld [vmem:[%s6788 + $0x8] sm:$0xff]
    %v6791 = vld [vmem:[%s6788 + $0x10] sm:$0xff]
    %v6792 = vld [vmem:[%s6788 + $0x18] sm:$0xff]
    %s6793 = scalar_lea.vmem %s41, 1
    %v6794 = vld [vmem:[%s6793] sm:$0x1]
    %s6795 = scalar_lea.vmem %s43, 32
    %v6796 = vld [vmem:[%s6795] sm:$0xff]
    %v6797 = vld [vmem:[%s6795 + $0x8] sm:$0xff]
    %v6798 = vld [vmem:[%s6795 + $0x10] sm:$0xff]
    %v6799 = vld [vmem:[%s6795 + $0x18] sm:$0xff]
    %s6800 = scalar_lea.vmem %s45, 1
    %v6801 = vld [vmem:[%s6800] sm:$0x1]
    %s6802 = scalar_lea.vmem %s47, 32
    %v6803 = vld [vmem:[%s6802] sm:$0xff]
    %v6804 = vld [vmem:[%s6802 + $0x8] sm:$0xff]
    %v6805 = vld [vmem:[%s6802 + $0x10] sm:$0xff]
    %v6806 = vld [vmem:[%s6802 + $0x18] sm:$0xff]
    %s6807 = scalar_lea.vmem %s49, 1
    %v6808 = vld [vmem:[%s6807] sm:$0x1]
    %s6809 = scalar_lea.vmem %s51, 32
    %v6810 = vld [vmem:[%s6809] sm:$0xff]
    %v6811 = vld [vmem:[%s6809 + $0x8] sm:$0xff]
    %v6812 = vld [vmem:[%s6809 + $0x10] sm:$0xff]
    %v6813 = vld [vmem:[%s6809 + $0x18] sm:$0xff]
    %s6814 = scalar_lea.vmem %s53, 1
    %v6815 = vld [vmem:[%s6814] sm:$0x1]
    %s6816 = scalar_lea.vmem %s55, 32
    %v6817 = vld [vmem:[%s6816] sm:$0xff]
    %v6818 = vld [vmem:[%s6816 + $0x8] sm:$0xff]
    %v6819 = vld [vmem:[%s6816 + $0x10] sm:$0xff]
    %v6820 = vld [vmem:[%s6816 + $0x18] sm:$0xff]
    %s6821 = scalar_lea.vmem %s57, 1
    %v6822 = vld [vmem:[%s6821] sm:$0x1]
    %s6823 = scalar_lea.vmem %s59, 32
    %v6824 = vld [vmem:[%s6823] sm:$0xff]
    %v6825 = vld [vmem:[%s6823 + $0x8] sm:$0xff]
    %v6826 = vld [vmem:[%s6823 + $0x10] sm:$0xff]
    %v6827 = vld [vmem:[%s6823 + $0x18] sm:$0xff]
    %s6828 = scalar_lea.vmem %s61, 1
    %v6829 = vld [vmem:[%s6828] sm:$0x1]
    %s6830 = scalar_lea.vmem %s63, 32
    %v6831 = vld [vmem:[%s6830] sm:$0xff]
    %v6832 = vld [vmem:[%s6830 + $0x8] sm:$0xff]
    %v6833 = vld [vmem:[%s6830 + $0x10] sm:$0xff]
    %v6834 = vld [vmem:[%s6830 + $0x18] sm:$0xff]
    %s6835 = scalar_lea.vmem %s65, 1
    %v6836 = vld [vmem:[%s6835] sm:$0x1]
    %s6837 = scalar_lea.vmem %s67, 128
    %v6838 = vld [vmem:[%s6837] sm:$0xff]
    %v6839 = vld [vmem:[%s6837 + $0x8] sm:$0xff]
    %v6840 = vld [vmem:[%s6837 + $0x10] sm:$0xff]
    %v6841 = vld [vmem:[%s6837 + $0x18] sm:$0xff]
    %v6842 = vld [vmem:[%s6837 + $0x20] sm:$0xff]
    %v6843 = vld [vmem:[%s6837 + $0x28] sm:$0xff]
    %v6844 = vld [vmem:[%s6837 + $0x30] sm:$0xff]
    %v6845 = vld [vmem:[%s6837 + $0x38] sm:$0xff]
    %v6846 = vld [vmem:[%s6837 + $0x40] sm:$0xff]
    %v6847 = vld [vmem:[%s6837 + $0x48] sm:$0xff]
    %v6848 = vld [vmem:[%s6837 + $0x50] sm:$0xff]
    %v6849 = vld [vmem:[%s6837 + $0x58] sm:$0xff]
    %v6850 = vld [vmem:[%s6837 + $0x60] sm:$0xff]
    %v6851 = vld [vmem:[%s6837 + $0x68] sm:$0xff]
    %v6852 = vld [vmem:[%s6837 + $0x70] sm:$0xff]
    %v6853 = vld [vmem:[%s6837 + $0x78] sm:$0xff]
    %s6854 = scalar_lea.vmem %s69, 1
    %v6855 = vld [vmem:[%s6854] sm:$0x1]
    %v6856 = vsel %vm4568, %v6783, 0.0
    %6857 = vadd.xlane.f32.xlu0 %v6856
    %v6858 = vpop.xlane.xlu0 %6857
    %v6859 = vmul.f32 %v6858, %v298
    %v6860 = vsub.f32 %v6783, %v6859
    %v6861 = vmul.f32 %v6860, %v6860
    %v6862 = vsel %vm4568, %v6861, 0.0
    %6863 = vadd.xlane.f32.xlu0 %v6862
    %v6864 = vpop.xlane.xlu0 %6863
    %v6865 = vmul.f32 %v6864, %v298
    %v6866 = vadd.f32 %v6865, 1e-05
    %v6867 = vrsqrt.pop %v6866
    %v6868 = vmul.f32 %v6860, %v6867
    %v6869 = vlaneseq
    %v6870 = vshrl.u32 %v6869, 7
    %v6871 = vsub.s32 0, %v6870
    %v6872 = vrot.slane %v6785, %v6871
    %v6873 = vmul.f32 %v6868, %v6872
    %v6874 = vlaneseq
    %v6875 = vshrl.u32 %v6874, 7
    %v6876 = vsub.s32 0, %v6875
    %v6877 = vrot.slane %v6787, %v6876
    %v6878 = vadd.f32 %v6873, %v6877
    %v6880 = vlaneseq
    %v6881 = vshrl.u32 %v6880, 7
    %v6882 = vsub.s32 0, %v6881
    %v6883 = vrot.slane %v6794, %v6882
    %v6886 = vsel %vm291, %v6878, 0
    %6888 = vmatprep.subr.mxu0 0.0
    %6889 = vmatpush1.msra.mxu0 %v6789
    %6890 = vmatprep.subr.mxu0 0.0
    %6891 = vmatpush1.msra.mxu0 %v6790
    %6892 = vmatprep.subr.mxu0 0.0
    %6893 = vmatpush1.msra.mxu0 %v6791
    %6894 = vmatprep.subr.mxu0 0.0
    %6895 = vmatpush1.msra.mxu0 %v6792
    %6896 = vmatprep.subr.mxu0 0.0
    %6897 = vmatpush1.msra.mxu0 0.0
    %6898 = vmatprep.subr.mxu0 0.0
    %6899 = vmatpush1.msra.mxu0 0.0
    %6900 = vmatprep.subr.mxu0 0.0
    %6901 = vmatpush1.msra.mxu0 0.0
    %6902 = vmatprep.subr.mxu0 0.0
    %6903 = vmatpush1.msra.mxu0 0.0
    %6904 = vmatprep.subr.mxu0 0.0
    %6905 = vmatpush1.msra.mxu0 0.0
    %6906 = vmatprep.subr.mxu0 0.0
    %6907 = vmatpush1.msra.mxu0 0.0
    %6908 = vmatprep.subr.mxu0 0.0
    %6909 = vmatpush1.msra.mxu0 0.0
    %6910 = vmatprep.subr.mxu0 0.0
    %6911 = vmatpush1.msra.mxu0 0.0
    %6912 = vmatprep.subr.mxu0 0.0
    %6913 = vmatpush1.msra.mxu0 0.0
    %6914 = vmatprep.subr.mxu0 0.0
    %6915 = vmatpush1.msra.mxu0 0.0
    %6916 = vmatprep.subr.mxu0 0.0
    %6917 = vmatpush1.msra.mxu0 0.0
    %6918 = vmatprep.subr.mxu0 0.0
    %6919 = vmatpush1.msra.mxu0 0.0
    %6920 = vmatprep.subr.mxu0 0.0
    %6921 = vmatpush1.msra.mxu0 0.0
    %6922 = vmatprep.subr.mxu0 0.0
    %6923 = vmatpush1.msra.mxu0 0.0
    %6924 = vmatprep.subr.mxu0 0.0
    %6925 = vmatpush1.msra.mxu0 0.0
    %6926 = vmatprep.subr.mxu0 0.0
    %6927 = vmatpush1.msra.mxu0 0.0
    %6928 = vmatprep.subr.mxu0 0.0
    %6929 = vmatpush1.msra.mxu0 0.0
    %6930 = vmatprep.subr.mxu0 0.0
    %6931 = vmatpush1.msra.mxu0 0.0
    %6932 = vmatprep.subr.mxu0 0.0
    %6933 = vmatpush1.msra.mxu0 0.0
    %6934 = vmatprep.subr.mxu0 0.0
    %6935 = vmatpush1.msra.mxu0 0.0
    %6936 = vmatprep.subr.mxu0 0.0
    %6937 = vmatpush1.msra.mxu0 0.0
    %6938 = vmatprep.subr.mxu0 0.0
    %6939 = vmatpush1.msra.mxu0 0.0
    %6940 = vmatprep.subr.mxu0 0.0
    %6941 = vmatpush1.msra.mxu0 0.0
    %6942 = vmatprep.subr.mxu0 0.0
    %6943 = vmatpush1.msra.mxu0 0.0
    %6944 = vmatprep.subr.mxu0 0.0
    %6945 = vmatpush1.msra.mxu0 0.0
    %6946 = vmatprep.subr.mxu0 0.0
    %6947 = vmatpush1.msra.mxu0 0.0
    %6948 = vmatprep.subr.mxu0 0.0
    %6949 = vmatpush1.msra.mxu0 0.0
    %6950 = vmatprep.subr.mxu0 0.0
    %6951 = vmatpush1.msra.mxu0 0.0
    %6952 = vmatprep.mubr.f32.mxu0 0.0
    %6953 = vmatmul.mubr.f32.gmra.mrb[0].mxu0 %v6886
    %v6954 = vpop.f32.mrb[0].mxu0
    %v6955 = vadd.f32 %v6883, %v6954
    %v6956 = vpop.f32.mrb[0].mxu0
    %6957 = vdwg.mxu0
    %v6959 = vlaneseq
    %v6960 = vshrl.u32 %v6959, 7
    %v6961 = vsub.s32 0, %v6960
    %v6962 = vrot.slane %v6801, %v6961
    %6965 = vrot.lane.b32.xlu0 %v6955, 64
    %v6966 = vpop.permute.xlu0 %6965
    %v6967 = vsel %vm291, %v6966, 0
    %6969 = vmatprep.subr.mxu0 0.0
    %6970 = vmatpush1.msra.mxu0 %v6796
    %6971 = vmatprep.subr.mxu0 0.0
    %6972 = vmatpush1.msra.mxu0 %v6797
    %6973 = vmatprep.subr.mxu0 0.0
    %6974 = vmatpush1.msra.mxu0 %v6798
    %6975 = vmatprep.subr.mxu0 0.0
    %6976 = vmatpush1.msra.mxu0 %v6799
    %6977 = vmatprep.subr.mxu0 0.0
    %6978 = vmatpush1.msra.mxu0 0.0
    %6979 = vmatprep.subr.mxu0 0.0
    %6980 = vmatpush1.msra.mxu0 0.0
    %6981 = vmatprep.subr.mxu0 0.0
    %6982 = vmatpush1.msra.mxu0 0.0
    %6983 = vmatprep.subr.mxu0 0.0
    %6984 = vmatpush1.msra.mxu0 0.0
    %6985 = vmatprep.subr.mxu0 0.0
    %6986 = vmatpush1.msra.mxu0 0.0
    %6987 = vmatprep.subr.mxu0 0.0
    %6988 = vmatpush1.msra.mxu0 0.0
    %6989 = vmatprep.subr.mxu0 0.0
    %6990 = vmatpush1.msra.mxu0 0.0
    %6991 = vmatprep.subr.mxu0 0.0
    %6992 = vmatpush1.msra.mxu0 0.0
    %6993 = vmatprep.subr.mxu0 0.0
    %6994 = vmatpush1.msra.mxu0 0.0
    %6995 = vmatprep.subr.mxu0 0.0
    %6996 = vmatpush1.msra.mxu0 0.0
    %6997 = vmatprep.subr.mxu0 0.0
    %6998 = vmatpush1.msra.mxu0 0.0
    %6999 = vmatprep.subr.mxu0 0.0
    %7000 = vmatpush1.msra.mxu0 0.0
    %7001 = vmatprep.subr.mxu0 0.0
    %7002 = vmatpush1.msra.mxu0 0.0
    %7003 = vmatprep.subr.mxu0 0.0
    %7004 = vmatpush1.msra.mxu0 0.0
    %7005 = vmatprep.subr.mxu0 0.0
    %7006 = vmatpush1.msra.mxu0 0.0
    %7007 = vmatprep.subr.mxu0 0.0
    %7008 = vmatpush1.msra.mxu0 0.0
    %7009 = vmatprep.subr.mxu0 0.0
    %7010 = vmatpush1.msra.mxu0 0.0
    %7011 = vmatprep.subr.mxu0 0.0
    %7012 = vmatpush1.msra.mxu0 0.0
    %7013 = vmatprep.subr.mxu0 0.0
    %7014 = vmatpush1.msra.mxu0 0.0
    %7015 = vmatprep.subr.mxu0 0.0
    %7016 = vmatpush1.msra.mxu0 0.0
    %7017 = vmatprep.subr.mxu0 0.0
    %7018 = vmatpush1.msra.mxu0 0.0
    %7019 = vmatprep.subr.mxu0 0.0
    %7020 = vmatpush1.msra.mxu0 0.0
    %7021 = vmatprep.subr.mxu0 0.0
    %7022 = vmatpush1.msra.mxu0 0.0
    %7023 = vmatprep.subr.mxu0 0.0
    %7024 = vmatpush1.msra.mxu0 0.0
    %7025 = vmatprep.subr.mxu0 0.0
    %7026 = vmatpush1.msra.mxu0 0.0
    %7027 = vmatprep.subr.mxu0 0.0
    %7028 = vmatpush1.msra.mxu0 0.0
    %7029 = vmatprep.subr.mxu0 0.0
    %7030 = vmatpush1.msra.mxu0 0.0
    %7031 = vmatprep.subr.mxu0 0.0
    %7032 = vmatpush1.msra.mxu0 0.0
    %7033 = vmatprep.mubr.f32.mxu0 0.0
    %7034 = vmatmul.mubr.f32.gmra.mrb[0].mxu0 %v6967
    %v7035 = vpop.f32.mrb[0].mxu0
    %v7036 = vadd.f32 %v6962, %v7035
    %v7037 = vpop.f32.mrb[0].mxu0
    %7038 = vdwg.mxu0
    %v7039 = vadd.f32 %v6783, %v7036
    %v7040 = vsel %vm4568, %v7039, 0.0
    %7041 = vadd.xlane.f32.xlu0 %v7040
    %v7042 = vpop.xlane.xlu0 %7041
    %v7043 = vmul.f32 %v7042, %v298
    %v7044 = vsub.f32 %v7039, %v7043
    %v7045 = vmul.f32 %v7044, %v7044
    %v7046 = vsel %vm4568, %v7045, 0.0
    %7047 = vadd.xlane.f32.xlu0 %v7046
    %v7048 = vpop.xlane.xlu0 %7047
    %v7049 = vmul.f32 %v7048, %v298
    %v7050 = vadd.f32 %v7049, 1e-05
    %v7051 = vrsqrt.pop %v7050
    %v7052 = vmul.f32 %v7044, %v7051
    %v7053 = vlaneseq
    %v7054 = vshrl.u32 %v7053, 7
    %v7055 = vsub.s32 1, %v7054
    %v7056 = vrot.slane %v6785, %v7055
    %v7057 = vmul.f32 %v7052, %v7056
    %v7058 = vlaneseq
    %v7059 = vshrl.u32 %v7058, 7
    %v7060 = vsub.s32 1, %v7059
    %v7061 = vrot.slane %v6787, %v7060
    %v7062 = vadd.f32 %v7057, %v7061
    %v7064 = vlaneseq
    %v7065 = vshrl.u32 %v7064, 7
    %v7066 = vsub.s32 0, %v7065
    %v7067 = vrot.slane %v6808, %v7066
    %v7070 = vsel %vm291, %v7062, 0
    %7072 = vmatprep.subr.mxu0 0.0
    %7073 = vmatpush1.msra.mxu0 %v6803
    %7074 = vmatprep.subr.mxu0 0.0
    %7075 = vmatpush1.msra.mxu0 %v6804
    %7076 = vmatprep.subr.mxu0 0.0
    %7077 = vmatpush1.msra.mxu0 %v6805
    %7078 = vmatprep.subr.mxu0 0.0
    %7079 = vmatpush1.msra.mxu0 %v6806
    %7080 = vmatprep.subr.mxu0 0.0
    %7081 = vmatpush1.msra.mxu0 0.0
    %7082 = vmatprep.subr.mxu0 0.0
    %7083 = vmatpush1.msra.mxu0 0.0
    %7084 = vmatprep.subr.mxu0 0.0
    %7085 = vmatpush1.msra.mxu0 0.0
    %7086 = vmatprep.subr.mxu0 0.0
    %7087 = vmatpush1.msra.mxu0 0.0
    %7088 = vmatprep.subr.mxu0 0.0
    %7089 = vmatpush1.msra.mxu0 0.0
    %7090 = vmatprep.subr.mxu0 0.0
    %7091 = vmatpush1.msra.mxu0 0.0
    %7092 = vmatprep.subr.mxu0 0.0
    %7093 = vmatpush1.msra.mxu0 0.0
    %7094 = vmatprep.subr.mxu0 0.0
    %7095 = vmatpush1.msra.mxu0 0.0
    %7096 = vmatprep.subr.mxu0 0.0
    %7097 = vmatpush1.msra.mxu0 0.0
    %7098 = vmatprep.subr.mxu0 0.0
    %7099 = vmatpush1.msra.mxu0 0.0
    %7100 = vmatprep.subr.mxu0 0.0
    %7101 = vmatpush1.msra.mxu0 0.0
    %7102 = vmatprep.subr.mxu0 0.0
    %7103 = vmatpush1.msra.mxu0 0.0
    %7104 = vmatprep.subr.mxu0 0.0
    %7105 = vmatpush1.msra.mxu0 0.0
    %7106 = vmatprep.subr.mxu0 0.0
    %7107 = vmatpush1.msra.mxu0 0.0
    %7108 = vmatprep.subr.mxu0 0.0
    %7109 = vmatpush1.msra.mxu0 0.0
    %7110 = vmatprep.subr.mxu0 0.0
    %7111 = vmatpush1.msra.mxu0 0.0
    %7112 = vmatprep.subr.mxu0 0.0
    %7113 = vmatpush1.msra.mxu0 0.0
    %7114 = vmatprep.subr.mxu0 0.0
    %7115 = vmatpush1.msra.mxu0 0.0
    %7116 = vmatprep.subr.mxu0 0.0
    %7117 = vmatpush1.msra.mxu0 0.0
    %7118 = vmatprep.subr.mxu0 0.0
    %7119 = vmatpush1.msra.mxu0 0.0
    %7120 = vmatprep.subr.mxu0 0.0
    %7121 = vmatpush1.msra.mxu0 0.0
    %7122 = vmatprep.subr.mxu0 0.0
    %7123 = vmatpush1.msra.mxu0 0.0
    %7124 = vmatprep.subr.mxu0 0.0
    %7125 = vmatpush1.msra.mxu0 0.0
    %7126 = vmatprep.subr.mxu0 0.0
    %7127 = vmatpush1.msra.mxu0 0.0
    %7128 = vmatprep.subr.mxu0 0.0
    %7129 = vmatpush1.msra.mxu0 0.0
    %7130 = vmatprep.subr.mxu0 0.0
    %7131 = vmatpush1.msra.mxu0 0.0
    %7132 = vmatprep.subr.mxu0 0.0
    %7133 = vmatpush1.msra.mxu0 0.0
    %7134 = vmatprep.subr.mxu0 0.0
    %7135 = vmatpush1.msra.mxu0 0.0
    %7136 = vmatprep.mubr.f32.mxu0 0.0
    %7137 = vmatmul.mubr.f32.gmra.mrb[0].mxu0 %v7070
    %v7138 = vpop.f32.mrb[0].mxu0
    %v7139 = vadd.f32 %v7067, %v7138
    %v7140 = vpop.f32.mrb[0].mxu0
    %7141 = vdwg.mxu0
    %v7143 = vlaneseq
    %v7144 = vshrl.u32 %v7143, 7
    %v7145 = vsub.s32 0, %v7144
    %v7146 = vrot.slane %v6815, %v7145
    %v7149 = vsel %vm291, %v4511, 0
    %v7152 = vsel %vm291, %v4512, 0
    %7154 = vmatprep.subr.mxu0 0.0
    %7155 = vmatpush1.msra.mxu0 %v6810
    %7156 = vmatprep.subr.mxu0 0.0
    %7157 = vmatpush1.msra.mxu0 %v6811
    %7158 = vmatprep.subr.mxu0 0.0
    %7159 = vmatpush1.msra.mxu0 %v6812
    %7160 = vmatprep.subr.mxu0 0.0
    %7161 = vmatpush1.msra.mxu0 %v6813
    %7162 = vmatprep.subr.mxu0 0.0
    %7163 = vmatpush1.msra.mxu0 0.0
    %7164 = vmatprep.subr.mxu0 0.0
    %7165 = vmatpush1.msra.mxu0 0.0
    %7166 = vmatprep.subr.mxu0 0.0
    %7167 = vmatpush1.msra.mxu0 0.0
    %7168 = vmatprep.subr.mxu0 0.0
    %7169 = vmatpush1.msra.mxu0 0.0
    %7170 = vmatprep.subr.mxu0 0.0
    %7171 = vmatpush1.msra.mxu0 0.0
    %7172 = vmatprep.subr.mxu0 0.0
    %7173 = vmatpush1.msra.mxu0 0.0
    %7174 = vmatprep.subr.mxu0 0.0
    %7175 = vmatpush1.msra.mxu0 0.0
    %7176 = vmatprep.subr.mxu0 0.0
    %7177 = vmatpush1.msra.mxu0 0.0
    %7178 = vmatprep.subr.mxu0 0.0
    %7179 = vmatpush1.msra.mxu0 0.0
    %7180 = vmatprep.subr.mxu0 0.0
    %7181 = vmatpush1.msra.mxu0 0.0
    %7182 = vmatprep.subr.mxu0 0.0
    %7183 = vmatpush1.msra.mxu0 0.0
    %7184 = vmatprep.subr.mxu0 0.0
    %7185 = vmatpush1.msra.mxu0 0.0
    %7186 = vmatprep.subr.mxu0 0.0
    %7187 = vmatpush1.msra.mxu0 0.0
    %7188 = vmatprep.subr.mxu0 0.0
    %7189 = vmatpush1.msra.mxu0 0.0
    %7190 = vmatprep.subr.mxu0 0.0
    %7191 = vmatpush1.msra.mxu0 0.0
    %7192 = vmatprep.subr.mxu0 0.0
    %7193 = vmatpush1.msra.mxu0 0.0
    %7194 = vmatprep.subr.mxu0 0.0
    %7195 = vmatpush1.msra.mxu0 0.0
    %7196 = vmatprep.subr.mxu0 0.0
    %7197 = vmatpush1.msra.mxu0 0.0
    %7198 = vmatprep.subr.mxu0 0.0
    %7199 = vmatpush1.msra.mxu0 0.0
    %7200 = vmatprep.subr.mxu0 0.0
    %7201 = vmatpush1.msra.mxu0 0.0
    %7202 = vmatprep.subr.mxu0 0.0
    %7203 = vmatpush1.msra.mxu0 0.0
    %7204 = vmatprep.subr.mxu0 0.0
    %7205 = vmatpush1.msra.mxu0 0.0
    %7206 = vmatprep.subr.mxu0 0.0
    %7207 = vmatpush1.msra.mxu0 0.0
    %7208 = vmatprep.subr.mxu0 0.0
    %7209 = vmatpush1.msra.mxu0 0.0
    %7210 = vmatprep.subr.mxu0 0.0
    %7211 = vmatpush1.msra.mxu0 0.0
    %7212 = vmatprep.subr.mxu0 0.0
    %7213 = vmatpush1.msra.mxu0 0.0
    %7214 = vmatprep.subr.mxu0 0.0
    %7215 = vmatpush1.msra.mxu0 0.0
    %7216 = vmatprep.subr.mxu0 0.0
    %7217 = vmatpush1.msra.mxu0 0.0
    %7218 = vmatprep.mubr.f32.mxu0 0.0
    %7219 = vmatmul.mubr.f32.gmra.mrb[0].mxu0 %v7149
    %v7220 = vpop.f32.mrb[0].mxu0
    %v7221 = vadd.f32 %v7146, %v7220
    %v7222 = vpop.f32.mrb[0].mxu0
    %7223 = vmatprep.mubr.f32.mxu0 0.0
    %7224 = vmatmul.mubr.f32.gmra.mrb[0].mxu0 %v7152
    %v7225 = vpop.f32.mrb[0].mxu0
    %v7226 = vadd.f32 %v7146, %v7225
    %v7227 = vpop.f32.mrb[0].mxu0
    %7228 = vdwg.mxu0
    %v7230 = vsel %vm421, %v7139, 0
    %v7233 = vsel %vm421, %v7221, 0
    %7235 = vmatprep.subr.mxu0 0.0
    %7236 = vmatpush1.xpose.msra.mxu0 %v7233
    %7237 = vmatprep.subr.mxu0 0.0
    %7238 = vmatpush1.xpose.msra.mxu0 0.0
    %7239 = vmatprep.subr.mxu0 0.0
    %7240 = vmatpush1.xpose.msra.mxu0 0.0
    %7241 = vmatprep.subr.mxu0 0.0
    %7242 = vmatpush1.xpose.msra.mxu0 0.0
    %7243 = vmatprep.subr.mxu0 0.0
    %7244 = vmatpush1.xpose.msra.mxu0 0.0
    %7245 = vmatprep.subr.mxu0 0.0
    %7246 = vmatpush1.xpose.msra.mxu0 0.0
    %7247 = vmatprep.subr.mxu0 0.0
    %7248 = vmatpush1.xpose.msra.mxu0 0.0
    %7249 = vmatprep.subr.mxu0 0.0
    %7250 = vmatpush1.xpose.msra.mxu0 0.0
    %7251 = vmatprep.subr.mxu0 0.0
    %7252 = vmatpush1.xpose.msra.mxu0 0.0
    %7253 = vmatprep.subr.mxu0 0.0
    %7254 = vmatpush1.xpose.msra.mxu0 0.0
    %7255 = vmatprep.subr.mxu0 0.0
    %7256 = vmatpush1.xpose.msra.mxu0 0.0
    %7257 = vmatprep.subr.mxu0 0.0
    %7258 = vmatpush1.xpose.msra.mxu0 0.0
    %7259 = vmatprep.subr.mxu0 0.0
    %7260 = vmatpush1.xpose.msra.mxu0 0.0
    %7261 = vmatprep.subr.mxu0 0.0
    %7262 = vmatpush1.xpose.msra.mxu0 0.0
    %7263 = vmatprep.subr.mxu0 0.0
    %7264 = vmatpush1.xpose.msra.mxu0 0.0
    %7265 = vmatprep.subr.mxu0 0.0
    %7266 = vmatpush1.xpose.msra.mxu0 0.0
    %7267 = vmatprep.subr.mxu0 0.0
    %7268 = vmatpush1.xpose.msra.mxu0 0.0
    %7269 = vmatprep.subr.mxu0 0.0
    %7270 = vmatpush1.xpose.msra.mxu0 0.0
    %7271 = vmatprep.subr.mxu0 0.0
    %7272 = vmatpush1.xpose.msra.mxu0 0.0
    %7273 = vmatprep.subr.mxu0 0.0
    %7274 = vmatpush1.xpose.msra.mxu0 0.0
    %7275 = vmatprep.subr.mxu0 0.0
    %7276 = vmatpush1.xpose.msra.mxu0 0.0
    %7277 = vmatprep.subr.mxu0 0.0
    %7278 = vmatpush1.xpose.msra.mxu0 0.0
    %7279 = vmatprep.subr.mxu0 0.0
    %7280 = vmatpush1.xpose.msra.mxu0 0.0
    %7281 = vmatprep.subr.mxu0 0.0
    %7282 = vmatpush1.xpose.msra.mxu0 0.0
    %7283 = vmatprep.subr.mxu0 0.0
    %7284 = vmatpush1.xpose.msra.mxu0 0.0
    %7285 = vmatprep.subr.mxu0 0.0
    %7286 = vmatpush1.xpose.msra.mxu0 0.0
    %7287 = vmatprep.subr.mxu0 0.0
    %7288 = vmatpush1.xpose.msra.mxu0 0.0
    %7289 = vmatprep.subr.mxu0 0.0
    %7290 = vmatpush1.xpose.msra.mxu0 0.0
    %7291 = vmatprep.subr.mxu0 0.0
    %7292 = vmatpush1.xpose.msra.mxu0 0.0
    %7293 = vmatprep.subr.mxu0 0.0
    %7294 = vmatpush1.xpose.msra.mxu0 0.0
    %7295 = vmatprep.subr.mxu0 0.0
    %7296 = vmatpush1.xpose.msra.mxu0 0.0
    %7297 = vmatprep.subr.mxu0 0.0
    %7298 = vmatpush1.xpose.msra.mxu0 0.0
    %7299 = vmatprep.mubr.f32.mxu0 0.0
    %7300 = vmatmul.mubr.f32.gmra.mrb[0].mxu0 %v7230
    %v7301 = vpop.f32.mrb[0].mxu0
    %v7302 = vadd.f32 0.0, %v7301
    %v7303 = vpop.f32.mrb[0].mxu0
    %7304 = vdwg.mxu0
    %v7305 = vmul.f32 %v7302, 0.35355338
    %v7306 = vsel %vm5019, %v7305, -inf
    %7307 = vmax.xlane.f32.xlu0 %v7306
    %v7308 = vpop.xlane.xlu0 %7307
    %v7309 = vsub.f32 %v7305, %v7308
    %v7310 = vmul.f32 %v7309, 1.442695
    %v7311 = vpow.pop %v7310
    %v7312 = vsel %vm5019, %v7311, 0.0
    %7313 = vadd.xlane.f32.xlu0 %v7312
    %v7314 = vpop.xlane.xlu0 %7313
    %v7315 = vrcp.pop %v7314
    %v7316 = vmul.f32 %v7311, %v7315
    %7317 = vrot.lane.b32.xlu0 %v7221, 96
    %v7318 = vpop.permute.xlu0 %7317
    %v7321 = vsel %vm421, %v7316, 0
    %7323 = vmatprep.subr.mxu0 0.0
    %7324 = vmatpush1.msra.mxu0 %v7318
    %7325 = vmatprep.subr.mxu0 0.0
    %7326 = vmatpush1.msra.mxu0 0.0
    %7327 = vmatprep.subr.mxu0 0.0
    %7328 = vmatpush1.msra.mxu0 0.0
    %7329 = vmatprep.subr.mxu0 0.0
    %7330 = vmatpush1.msra.mxu0 0.0
    %7331 = vmatprep.subr.mxu0 0.0
    %7332 = vmatpush1.msra.mxu0 0.0
    %7333 = vmatprep.subr.mxu0 0.0
    %7334 = vmatpush1.msra.mxu0 0.0
    %7335 = vmatprep.subr.mxu0 0.0
    %7336 = vmatpush1.msra.mxu0 0.0
    %7337 = vmatprep.subr.mxu0 0.0
    %7338 = vmatpush1.msra.mxu0 0.0
    %7339 = vmatprep.subr.mxu0 0.0
    %7340 = vmatpush1.msra.mxu0 0.0
    %7341 = vmatprep.subr.mxu0 0.0
    %7342 = vmatpush1.msra.mxu0 0.0
    %7343 = vmatprep.subr.mxu0 0.0
    %7344 = vmatpush1.msra.mxu0 0.0
    %7345 = vmatprep.subr.mxu0 0.0
    %7346 = vmatpush1.msra.mxu0 0.0
    %7347 = vmatprep.subr.mxu0 0.0
    %7348 = vmatpush1.msra.mxu0 0.0
    %7349 = vmatprep.subr.mxu0 0.0
    %7350 = vmatpush1.msra.mxu0 0.0
    %7351 = vmatprep.subr.mxu0 0.0
    %7352 = vmatpush1.msra.mxu0 0.0
    %7353 = vmatprep.subr.mxu0 0.0
    %7354 = vmatpush1.msra.mxu0 0.0
    %7355 = vmatprep.subr.mxu0 0.0
    %7356 = vmatpush1.msra.mxu0 0.0
    %7357 = vmatprep.subr.mxu0 0.0
    %7358 = vmatpush1.msra.mxu0 0.0
    %7359 = vmatprep.subr.mxu0 0.0
    %7360 = vmatpush1.msra.mxu0 0.0
    %7361 = vmatprep.subr.mxu0 0.0
    %7362 = vmatpush1.msra.mxu0 0.0
    %7363 = vmatprep.subr.mxu0 0.0
    %7364 = vmatpush1.msra.mxu0 0.0
    %7365 = vmatprep.subr.mxu0 0.0
    %7366 = vmatpush1.msra.mxu0 0.0
    %7367 = vmatprep.subr.mxu0 0.0
    %7368 = vmatpush1.msra.mxu0 0.0
    %7369 = vmatprep.subr.mxu0 0.0
    %7370 = vmatpush1.msra.mxu0 0.0
    %7371 = vmatprep.subr.mxu0 0.0
    %7372 = vmatpush1.msra.mxu0 0.0
    %7373 = vmatprep.subr.mxu0 0.0
    %7374 = vmatpush1.msra.mxu0 0.0
    %7375 = vmatprep.subr.mxu0 0.0
    %7376 = vmatpush1.msra.mxu0 0.0
    %7377 = vmatprep.subr.mxu0 0.0
    %7378 = vmatpush1.msra.mxu0 0.0
    %7379 = vmatprep.subr.mxu0 0.0
    %7380 = vmatpush1.msra.mxu0 0.0
    %7381 = vmatprep.subr.mxu0 0.0
    %7382 = vmatpush1.msra.mxu0 0.0
    %7383 = vmatprep.subr.mxu0 0.0
    %7384 = vmatpush1.msra.mxu0 0.0
    %7385 = vmatprep.subr.mxu0 0.0
    %7386 = vmatpush1.msra.mxu0 0.0
    %7387 = vmatprep.mubr.f32.mxu0 0.0
    %7388 = vmatmul.mubr.f32.gmra.mrb[0].mxu0 %v7321
    %v7389 = vpop.f32.mrb[0].mxu0
    %v7390 = vadd.f32 0.0, %v7389
    %v7391 = vpop.f32.mrb[0].mxu0
    %7392 = vdwg.mxu0
    %7393 = vrot.lane.b32.xlu0 %v7139, 120
    %v7394 = vpop.permute.xlu0 %7393
    %7395 = vrot.lane.b32.xlu0 %v7221, 120
    %v7396 = vpop.permute.xlu0 %7395
    %v7397 = vsel %vm421, %v7394, 0
    %v7399 = vsel %vm421, %v7396, 0
    %7401 = vmatprep.subr.mxu0 0.0
    %7402 = vmatpush1.xpose.msra.mxu0 %v7399
    %7403 = vmatprep.subr.mxu0 0.0
    %7404 = vmatpush1.xpose.msra.mxu0 0.0
    %7405 = vmatprep.subr.mxu0 0.0
    %7406 = vmatpush1.xpose.msra.mxu0 0.0
    %7407 = vmatprep.subr.mxu0 0.0
    %7408 = vmatpush1.xpose.msra.mxu0 0.0
    %7409 = vmatprep.subr.mxu0 0.0
    %7410 = vmatpush1.xpose.msra.mxu0 0.0
    %7411 = vmatprep.subr.mxu0 0.0
    %7412 = vmatpush1.xpose.msra.mxu0 0.0
    %7413 = vmatprep.subr.mxu0 0.0
    %7414 = vmatpush1.xpose.msra.mxu0 0.0
    %7415 = vmatprep.subr.mxu0 0.0
    %7416 = vmatpush1.xpose.msra.mxu0 0.0
    %7417 = vmatprep.subr.mxu0 0.0
    %7418 = vmatpush1.xpose.msra.mxu0 0.0
    %7419 = vmatprep.subr.mxu0 0.0
    %7420 = vmatpush1.xpose.msra.mxu0 0.0
    %7421 = vmatprep.subr.mxu0 0.0
    %7422 = vmatpush1.xpose.msra.mxu0 0.0
    %7423 = vmatprep.subr.mxu0 0.0
    %7424 = vmatpush1.xpose.msra.mxu0 0.0
    %7425 = vmatprep.subr.mxu0 0.0
    %7426 = vmatpush1.xpose.msra.mxu0 0.0
    %7427 = vmatprep.subr.mxu0 0.0
    %7428 = vmatpush1.xpose.msra.mxu0 0.0
    %7429 = vmatprep.subr.mxu0 0.0
    %7430 = vmatpush1.xpose.msra.mxu0 0.0
    %7431 = vmatprep.subr.mxu0 0.0
    %7432 = vmatpush1.xpose.msra.mxu0 0.0
    %7433 = vmatprep.subr.mxu0 0.0
    %7434 = vmatpush1.xpose.msra.mxu0 0.0
    %7435 = vmatprep.subr.mxu0 0.0
    %7436 = vmatpush1.xpose.msra.mxu0 0.0
    %7437 = vmatprep.subr.mxu0 0.0
    %7438 = vmatpush1.xpose.msra.mxu0 0.0
    %7439 = vmatprep.subr.mxu0 0.0
    %7440 = vmatpush1.xpose.msra.mxu0 0.0
    %7441 = vmatprep.subr.mxu0 0.0
    %7442 = vmatpush1.xpose.msra.mxu0 0.0
    %7443 = vmatprep.subr.mxu0 0.0
    %7444 = vmatpush1.xpose.msra.mxu0 0.0
    %7445 = vmatprep.subr.mxu0 0.0
    %7446 = vmatpush1.xpose.msra.mxu0 0.0
    %7447 = vmatprep.subr.mxu0 0.0
    %7448 = vmatpush1.xpose.msra.mxu0 0.0
    %7449 = vmatprep.subr.mxu0 0.0
    %7450 = vmatpush1.xpose.msra.mxu0 0.0
    %7451 = vmatprep.subr.mxu0 0.0
    %7452 = vmatpush1.xpose.msra.mxu0 0.0
    %7453 = vmatprep.subr.mxu0 0.0
    %7454 = vmatpush1.xpose.msra.mxu0 0.0
    %7455 = vmatprep.subr.mxu0 0.0
    %7456 = vmatpush1.xpose.msra.mxu0 0.0
    %7457 = vmatprep.subr.mxu0 0.0
    %7458 = vmatpush1.xpose.msra.mxu0 0.0
    %7459 = vmatprep.subr.mxu0 0.0
    %7460 = vmatpush1.xpose.msra.mxu0 0.0
    %7461 = vmatprep.subr.mxu0 0.0
    %7462 = vmatpush1.xpose.msra.mxu0 0.0
    %7463 = vmatprep.subr.mxu0 0.0
    %7464 = vmatpush1.xpose.msra.mxu0 0.0
    %7465 = vmatprep.mubr.f32.mxu0 0.0
    %7466 = vmatmul.mubr.f32.gmra.mrb[0].mxu0 %v7397
    %v7467 = vpop.f32.mrb[0].mxu0
    %v7468 = vadd.f32 0.0, %v7467
    %v7469 = vpop.f32.mrb[0].mxu0
    %7470 = vdwg.mxu0
    %v7471 = vmul.f32 %v7468, 0.35355338
    %v7472 = vsel %vm5019, %v7471, -inf
    %7473 = vmax.xlane.f32.xlu0 %v7472
    %v7474 = vpop.xlane.xlu0 %7473
    %v7475 = vsub.f32 %v7471, %v7474
    %v7476 = vmul.f32 %v7475, 1.442695
    %v7477 = vpow.pop %v7476
    %v7478 = vsel %vm5019, %v7477, 0.0
    %7479 = vadd.xlane.f32.xlu0 %v7478
    %v7480 = vpop.xlane.xlu0 %7479
    %v7481 = vrcp.pop %v7480
    %v7482 = vmul.f32 %v7477, %v7481
    %7483 = vrot.lane.b32.xlu0 %v7221, 88
    %v7484 = vpop.permute.xlu0 %7483
    %v7487 = vsel %vm421, %v7482, 0
    %7489 = vmatprep.subr.mxu0 0.0
    %7490 = vmatpush1.msra.mxu0 %v7484
    %7491 = vmatprep.subr.mxu0 0.0
    %7492 = vmatpush1.msra.mxu0 0.0
    %7493 = vmatprep.subr.mxu0 0.0
    %7494 = vmatpush1.msra.mxu0 0.0
    %7495 = vmatprep.subr.mxu0 0.0
    %7496 = vmatpush1.msra.mxu0 0.0
    %7497 = vmatprep.subr.mxu0 0.0
    %7498 = vmatpush1.msra.mxu0 0.0
    %7499 = vmatprep.subr.mxu0 0.0
    %7500 = vmatpush1.msra.mxu0 0.0
    %7501 = vmatprep.subr.mxu0 0.0
    %7502 = vmatpush1.msra.mxu0 0.0
    %7503 = vmatprep.subr.mxu0 0.0
    %7504 = vmatpush1.msra.mxu0 0.0
    %7505 = vmatprep.subr.mxu0 0.0
    %7506 = vmatpush1.msra.mxu0 0.0
    %7507 = vmatprep.subr.mxu0 0.0
    %7508 = vmatpush1.msra.mxu0 0.0
    %7509 = vmatprep.subr.mxu0 0.0
    %7510 = vmatpush1.msra.mxu0 0.0
    %7511 = vmatprep.subr.mxu0 0.0
    %7512 = vmatpush1.msra.mxu0 0.0
    %7513 = vmatprep.subr.mxu0 0.0
    %7514 = vmatpush1.msra.mxu0 0.0
    %7515 = vmatprep.subr.mxu0 0.0
    %7516 = vmatpush1.msra.mxu0 0.0
    %7517 = vmatprep.subr.mxu0 0.0
    %7518 = vmatpush1.msra.mxu0 0.0
    %7519 = vmatprep.subr.mxu0 0.0
    %7520 = vmatpush1.msra.mxu0 0.0
    %7521 = vmatprep.subr.mxu0 0.0
    %7522 = vmatpush1.msra.mxu0 0.0
    %7523 = vmatprep.subr.mxu0 0.0
    %7524 = vmatpush1.msra.mxu0 0.0
    %7525 = vmatprep.subr.mxu0 0.0
    %7526 = vmatpush1.msra.mxu0 0.0
    %7527 = vmatprep.subr.mxu0 0.0
    %7528 = vmatpush1.msra.mxu0 0.0
    %7529 = vmatprep.subr.mxu0 0.0
    %7530 = vmatpush1.msra.mxu0 0.0
    %7531 = vmatprep.subr.mxu0 0.0
    %7532 = vmatpush1.msra.mxu0 0.0
    %7533 = vmatprep.subr.mxu0 0.0
    %7534 = vmatpush1.msra.mxu0 0.0
    %7535 = vmatprep.subr.mxu0 0.0
    %7536 = vmatpush1.msra.mxu0 0.0
    %7537 = vmatprep.subr.mxu0 0.0
    %7538 = vmatpush1.msra.mxu0 0.0
    %7539 = vmatprep.subr.mxu0 0.0
    %7540 = vmatpush1.msra.mxu0 0.0
    %7541 = vmatprep.subr.mxu0 0.0
    %7542 = vmatpush1.msra.mxu0 0.0
    %7543 = vmatprep.subr.mxu0 0.0
    %7544 = vmatpush1.msra.mxu0 0.0
    %7545 = vmatprep.subr.mxu0 0.0
    %7546 = vmatpush1.msra.mxu0 0.0
    %7547 = vmatprep.subr.mxu0 0.0
    %7548 = vmatpush1.msra.mxu0 0.0
    %7549 = vmatprep.subr.mxu0 0.0
    %7550 = vmatpush1.msra.mxu0 0.0
    %7551 = vmatprep.subr.mxu0 0.0
    %7552 = vmatpush1.msra.mxu0 0.0
    %7553 = vmatprep.mubr.f32.mxu0 0.0
    %7554 = vmatmul.mubr.f32.gmra.mrb[0].mxu0 %v7487
    %v7555 = vpop.f32.mrb[0].mxu0
    %v7556 = vadd.f32 0.0, %v7555
    %v7557 = vpop.f32.mrb[0].mxu0
    %7558 = vdwg.mxu0
    %7559 = vrot.lane.b32.xlu0 %v7139, 112
    %v7560 = vpop.permute.xlu0 %7559
    %7561 = vrot.lane.b32.xlu0 %v7221, 112
    %v7562 = vpop.permute.xlu0 %7561
    %v7563 = vsel %vm421, %v7560, 0
    %v7565 = vsel %vm421, %v7562, 0
    %7567 = vmatprep.subr.mxu0 0.0
    %7568 = vmatpush1.xpose.msra.mxu0 %v7565
    %7569 = vmatprep.subr.mxu0 0.0
    %7570 = vmatpush1.xpose.msra.mxu0 0.0
    %7571 = vmatprep.subr.mxu0 0.0
    %7572 = vmatpush1.xpose.msra.mxu0 0.0
    %7573 = vmatprep.subr.mxu0 0.0
    %7574 = vmatpush1.xpose.msra.mxu0 0.0
    %7575 = vmatprep.subr.mxu0 0.0
    %7576 = vmatpush1.xpose.msra.mxu0 0.0
    %7577 = vmatprep.subr.mxu0 0.0
    %7578 = vmatpush1.xpose.msra.mxu0 0.0
    %7579 = vmatprep.subr.mxu0 0.0
    %7580 = vmatpush1.xpose.msra.mxu0 0.0
    %7581 = vmatprep.subr.mxu0 0.0
    %7582 = vmatpush1.xpose.msra.mxu0 0.0
    %7583 = vmatprep.subr.mxu0 0.0
    %7584 = vmatpush1.xpose.msra.mxu0 0.0
    %7585 = vmatprep.subr.mxu0 0.0
    %7586 = vmatpush1.xpose.msra.mxu0 0.0
    %7587 = vmatprep.subr.mxu0 0.0
    %7588 = vmatpush1.xpose.msra.mxu0 0.0
    %7589 = vmatprep.subr.mxu0 0.0
    %7590 = vmatpush1.xpose.msra.mxu0 0.0
    %7591 = vmatprep.subr.mxu0 0.0
    %7592 = vmatpush1.xpose.msra.mxu0 0.0
    %7593 = vmatprep.subr.mxu0 0.0
    %7594 = vmatpush1.xpose.msra.mxu0 0.0
    %7595 = vmatprep.subr.mxu0 0.0
    %7596 = vmatpush1.xpose.msra.mxu0 0.0
    %7597 = vmatprep.subr.mxu0 0.0
    %7598 = vmatpush1.xpose.msra.mxu0 0.0
    %7599 = vmatprep.subr.mxu0 0.0
    %7600 = vmatpush1.xpose.msra.mxu0 0.0
    %7601 = vmatprep.subr.mxu0 0.0
    %7602 = vmatpush1.xpose.msra.mxu0 0.0
    %7603 = vmatprep.subr.mxu0 0.0
    %7604 = vmatpush1.xpose.msra.mxu0 0.0
    %7605 = vmatprep.subr.mxu0 0.0
    %7606 = vmatpush1.xpose.msra.mxu0 0.0
    %7607 = vmatprep.subr.mxu0 0.0
    %7608 = vmatpush1.xpose.msra.mxu0 0.0
    %7609 = vmatprep.subr.mxu0 0.0
    %7610 = vmatpush1.xpose.msra.mxu0 0.0
    %7611 = vmatprep.subr.mxu0 0.0
    %7612 = vmatpush1.xpose.msra.mxu0 0.0
    %7613 = vmatprep.subr.mxu0 0.0
    %7614 = vmatpush1.xpose.msra.mxu0 0.0
    %7615 = vmatprep.subr.mxu0 0.0
    %7616 = vmatpush1.xpose.msra.mxu0 0.0
    %7617 = vmatprep.subr.mxu0 0.0
    %7618 = vmatpush1.xpose.msra.mxu0 0.0
    %7619 = vmatprep.subr.mxu0 0.0
    %7620 = vmatpush1.xpose.msra.mxu0 0.0
    %7621 = vmatprep.subr.mxu0 0.0
    %7622 = vmatpush1.xpose.msra.mxu0 0.0
    %7623 = vmatprep.subr.mxu0 0.0
    %7624 = vmatpush1.xpose.msra.mxu0 0.0
    %7625 = vmatprep.subr.mxu0 0.0
    %7626 = vmatpush1.xpose.msra.mxu0 0.0
    %7627 = vmatprep.subr.mxu0 0.0
    %7628 = vmatpush1.xpose.msra.mxu0 0.0
    %7629 = vmatprep.subr.mxu0 0.0
    %7630 = vmatpush1.xpose.msra.mxu0 0.0
    %7631 = vmatprep.mubr.f32.mxu0 0.0
    %7632 = vmatmul.mubr.f32.gmra.mrb[0].mxu0 %v7563
    %v7633 = vpop.f32.mrb[0].mxu0
    %v7634 = vadd.f32 0.0, %v7633
    %v7635 = vpop.f32.mrb[0].mxu0
    %7636 = vdwg.mxu0
    %v7637 = vmul.f32 %v7634, 0.35355338
    %v7638 = vsel %vm5019, %v7637, -inf
    %7639 = vmax.xlane.f32.xlu0 %v7638
    %v7640 = vpop.xlane.xlu0 %7639
    %v7641 = vsub.f32 %v7637, %v7640
    %v7642 = vmul.f32 %v7641, 1.442695
    %v7643 = vpow.pop %v7642
    %v7644 = vsel %vm5019, %v7643, 0.0
    %7645 = vadd.xlane.f32.xlu0 %v7644
    %v7646 = vpop.xlane.xlu0 %7645
    %v7647 = vrcp.pop %v7646
    %v7648 = vmul.f32 %v7643, %v7647
    %7649 = vrot.lane.b32.xlu0 %v7221, 80
    %v7650 = vpop.permute.xlu0 %7649
    %v7653 = vsel %vm421, %v7648, 0
    %7655 = vmatprep.subr.mxu0 0.0
    %7656 = vmatpush1.msra.mxu0 %v7650
    %7657 = vmatprep.subr.mxu0 0.0
    %7658 = vmatpush1.msra.mxu0 0.0
    %7659 = vmatprep.subr.mxu0 0.0
    %7660 = vmatpush1.msra.mxu0 0.0
    %7661 = vmatprep.subr.mxu0 0.0
    %7662 = vmatpush1.msra.mxu0 0.0
    %7663 = vmatprep.subr.mxu0 0.0
    %7664 = vmatpush1.msra.mxu0 0.0
    %7665 = vmatprep.subr.mxu0 0.0
    %7666 = vmatpush1.msra.mxu0 0.0
    %7667 = vmatprep.subr.mxu0 0.0
    %7668 = vmatpush1.msra.mxu0 0.0
    %7669 = vmatprep.subr.mxu0 0.0
    %7670 = vmatpush1.msra.mxu0 0.0
    %7671 = vmatprep.subr.mxu0 0.0
    %7672 = vmatpush1.msra.mxu0 0.0
    %7673 = vmatprep.subr.mxu0 0.0
    %7674 = vmatpush1.msra.mxu0 0.0
    %7675 = vmatprep.subr.mxu0 0.0
    %7676 = vmatpush1.msra.mxu0 0.0
    %7677 = vmatprep.subr.mxu0 0.0
    %7678 = vmatpush1.msra.mxu0 0.0
    %7679 = vmatprep.subr.mxu0 0.0
    %7680 = vmatpush1.msra.mxu0 0.0
    %7681 = vmatprep.subr.mxu0 0.0
    %7682 = vmatpush1.msra.mxu0 0.0
    %7683 = vmatprep.subr.mxu0 0.0
    %7684 = vmatpush1.msra.mxu0 0.0
    %7685 = vmatprep.subr.mxu0 0.0
    %7686 = vmatpush1.msra.mxu0 0.0
    %7687 = vmatprep.subr.mxu0 0.0
    %7688 = vmatpush1.msra.mxu0 0.0
    %7689 = vmatprep.subr.mxu0 0.0
    %7690 = vmatpush1.msra.mxu0 0.0
    %7691 = vmatprep.subr.mxu0 0.0
    %7692 = vmatpush1.msra.mxu0 0.0
    %7693 = vmatprep.subr.mxu0 0.0
    %7694 = vmatpush1.msra.mxu0 0.0
    %7695 = vmatprep.subr.mxu0 0.0
    %7696 = vmatpush1.msra.mxu0 0.0
    %7697 = vmatprep.subr.mxu0 0.0
    %7698 = vmatpush1.msra.mxu0 0.0
    %7699 = vmatprep.subr.mxu0 0.0
    %7700 = vmatpush1.msra.mxu0 0.0
    %7701 = vmatprep.subr.mxu0 0.0
    %7702 = vmatpush1.msra.mxu0 0.0
    %7703 = vmatprep.subr.mxu0 0.0
    %7704 = vmatpush1.msra.mxu0 0.0
    %7705 = vmatprep.subr.mxu0 0.0
    %7706 = vmatpush1.msra.mxu0 0.0
    %7707 = vmatprep.subr.mxu0 0.0
    %7708 = vmatpush1.msra.mxu0 0.0
    %7709 = vmatprep.subr.mxu0 0.0
    %7710 = vmatpush1.msra.mxu0 0.0
    %7711 = vmatprep.subr.mxu0 0.0
    %7712 = vmatpush1.msra.mxu0 0.0
    %7713 = vmatprep.subr.mxu0 0.0
    %7714 = vmatpush1.msra.mxu0 0.0
    %7715 = vmatprep.subr.mxu0 0.0
    %7716 = vmatpush1.msra.mxu0 0.0
    %7717 = vmatprep.subr.mxu0 0.0
    %7718 = vmatpush1.msra.mxu0 0.0
    %7719 = vmatprep.mubr.f32.mxu0 0.0
    %7720 = vmatmul.mubr.f32.gmra.mrb[0].mxu0 %v7653
    %v7721 = vpop.f32.mrb[0].mxu0
    %v7722 = vadd.f32 0.0, %v7721
    %v7723 = vpop.f32.mrb[0].mxu0
    %7724 = vdwg.mxu0
    %7725 = vrot.lane.b32.xlu0 %v7139, 104
    %v7726 = vpop.permute.xlu0 %7725
    %7727 = vrot.lane.b32.xlu0 %v7221, 104
    %v7728 = vpop.permute.xlu0 %7727
    %v7729 = vsel %vm421, %v7726, 0
    %v7731 = vsel %vm421, %v7728, 0
    %7733 = vmatprep.subr.mxu0 0.0
    %7734 = vmatpush1.xpose.msra.mxu0 %v7731
    %7735 = vmatprep.subr.mxu0 0.0
    %7736 = vmatpush1.xpose.msra.mxu0 0.0
    %7737 = vmatprep.subr.mxu0 0.0
    %7738 = vmatpush1.xpose.msra.mxu0 0.0
    %7739 = vmatprep.subr.mxu0 0.0
    %7740 = vmatpush1.xpose.msra.mxu0 0.0
    %7741 = vmatprep.subr.mxu0 0.0
    %7742 = vmatpush1.xpose.msra.mxu0 0.0
    %7743 = vmatprep.subr.mxu0 0.0
    %7744 = vmatpush1.xpose.msra.mxu0 0.0
    %7745 = vmatprep.subr.mxu0 0.0
    %7746 = vmatpush1.xpose.msra.mxu0 0.0
    %7747 = vmatprep.subr.mxu0 0.0
    %7748 = vmatpush1.xpose.msra.mxu0 0.0
    %7749 = vmatprep.subr.mxu0 0.0
    %7750 = vmatpush1.xpose.msra.mxu0 0.0
    %7751 = vmatprep.subr.mxu0 0.0
    %7752 = vmatpush1.xpose.msra.mxu0 0.0
    %7753 = vmatprep.subr.mxu0 0.0
    %7754 = vmatpush1.xpose.msra.mxu0 0.0
    %7755 = vmatprep.subr.mxu0 0.0
    %7756 = vmatpush1.xpose.msra.mxu0 0.0
    %7757 = vmatprep.subr.mxu0 0.0
    %7758 = vmatpush1.xpose.msra.mxu0 0.0
    %7759 = vmatprep.subr.mxu0 0.0
    %7760 = vmatpush1.xpose.msra.mxu0 0.0
    %7761 = vmatprep.subr.mxu0 0.0
    %7762 = vmatpush1.xpose.msra.mxu0 0.0
    %7763 = vmatprep.subr.mxu0 0.0
    %7764 = vmatpush1.xpose.msra.mxu0 0.0
    %7765 = vmatprep.subr.mxu0 0.0
    %7766 = vmatpush1.xpose.msra.mxu0 0.0
    %7767 = vmatprep.subr.mxu0 0.0
    %7768 = vmatpush1.xpose.msra.mxu0 0.0
    %7769 = vmatprep.subr.mxu0 0.0
    %7770 = vmatpush1.xpose.msra.mxu0 0.0
    %7771 = vmatprep.subr.mxu0 0.0
    %7772 = vmatpush1.xpose.msra.mxu0 0.0
    %7773 = vmatprep.subr.mxu0 0.0
    %7774 = vmatpush1.xpose.msra.mxu0 0.0
    %7775 = vmatprep.subr.mxu0 0.0
    %7776 = vmatpush1.xpose.msra.mxu0 0.0
    %7777 = vmatprep.subr.mxu0 0.0
    %7778 = vmatpush1.xpose.msra.mxu0 0.0
    %7779 = vmatprep.subr.mxu0 0.0
    %7780 = vmatpush1.xpose.msra.mxu0 0.0
    %7781 = vmatprep.subr.mxu0 0.0
    %7782 = vmatpush1.xpose.msra.mxu0 0.0
    %7783 = vmatprep.subr.mxu0 0.0
    %7784 = vmatpush1.xpose.msra.mxu0 0.0
    %7785 = vmatprep.subr.mxu0 0.0
    %7786 = vmatpush1.xpose.msra.mxu0 0.0
    %7787 = vmatprep.subr.mxu0 0.0
    %7788 = vmatpush1.xpose.msra.mxu0 0.0
    %7789 = vmatprep.subr.mxu0 0.0
    %7790 = vmatpush1.xpose.msra.mxu0 0.0
    %7791 = vmatprep.subr.mxu0 0.0
    %7792 = vmatpush1.xpose.msra.mxu0 0.0
    %7793 = vmatprep.subr.mxu0 0.0
    %7794 = vmatpush1.xpose.msra.mxu0 0.0
    %7795 = vmatprep.subr.mxu0 0.0
    %7796 = vmatpush1.xpose.msra.mxu0 0.0
    %7797 = vmatprep.mubr.f32.mxu0 0.0
    %7798 = vmatmul.mubr.f32.gmra.mrb[0].mxu0 %v7729
    %v7799 = vpop.f32.mrb[0].mxu0
    %v7800 = vadd.f32 0.0, %v7799
    %v7801 = vpop.f32.mrb[0].mxu0
    %7802 = vdwg.mxu0
    %v7803 = vmul.f32 %v7800, 0.35355338
    %v7804 = vsel %vm5019, %v7803, -inf
    %7805 = vmax.xlane.f32.xlu0 %v7804
    %v7806 = vpop.xlane.xlu0 %7805
    %v7807 = vsub.f32 %v7803, %v7806
    %v7808 = vmul.f32 %v7807, 1.442695
    %v7809 = vpow.pop %v7808
    %v7810 = vsel %vm5019, %v7809, 0.0
    %7811 = vadd.xlane.f32.xlu0 %v7810
    %v7812 = vpop.xlane.xlu0 %7811
    %v7813 = vrcp.pop %v7812
    %v7814 = vmul.f32 %v7809, %v7813
    %7815 = vrot.lane.b32.xlu0 %v7221, 72
    %v7816 = vpop.permute.xlu0 %7815
    %v7819 = vsel %vm421, %v7814, 0
    %7821 = vmatprep.subr.mxu0 0.0
    %7822 = vmatpush1.msra.mxu0 %v7816
    %7823 = vmatprep.subr.mxu0 0.0
    %7824 = vmatpush1.msra.mxu0 0.0
    %7825 = vmatprep.subr.mxu0 0.0
    %7826 = vmatpush1.msra.mxu0 0.0
    %7827 = vmatprep.subr.mxu0 0.0
    %7828 = vmatpush1.msra.mxu0 0.0
    %7829 = vmatprep.subr.mxu0 0.0
    %7830 = vmatpush1.msra.mxu0 0.0
    %7831 = vmatprep.subr.mxu0 0.0
    %7832 = vmatpush1.msra.mxu0 0.0
    %7833 = vmatprep.subr.mxu0 0.0
    %7834 = vmatpush1.msra.mxu0 0.0
    %7835 = vmatprep.subr.mxu0 0.0
    %7836 = vmatpush1.msra.mxu0 0.0
    %7837 = vmatprep.subr.mxu0 0.0
    %7838 = vmatpush1.msra.mxu0 0.0
    %7839 = vmatprep.subr.mxu0 0.0
    %7840 = vmatpush1.msra.mxu0 0.0
    %7841 = vmatprep.subr.mxu0 0.0
    %7842 = vmatpush1.msra.mxu0 0.0
    %7843 = vmatprep.subr.mxu0 0.0
    %7844 = vmatpush1.msra.mxu0 0.0
    %7845 = vmatprep.subr.mxu0 0.0
    %7846 = vmatpush1.msra.mxu0 0.0
    %7847 = vmatprep.subr.mxu0 0.0
    %7848 = vmatpush1.msra.mxu0 0.0
    %7849 = vmatprep.subr.mxu0 0.0
    %7850 = vmatpush1.msra.mxu0 0.0
    %7851 = vmatprep.subr.mxu0 0.0
    %7852 = vmatpush1.msra.mxu0 0.0
    %7853 = vmatprep.subr.mxu0 0.0
    %7854 = vmatpush1.msra.mxu0 0.0
    %7855 = vmatprep.subr.mxu0 0.0
    %7856 = vmatpush1.msra.mxu0 0.0
    %7857 = vmatprep.subr.mxu0 0.0
    %7858 = vmatpush1.msra.mxu0 0.0
    %7859 = vmatprep.subr.mxu0 0.0
    %7860 = vmatpush1.msra.mxu0 0.0
    %7861 = vmatprep.subr.mxu0 0.0
    %7862 = vmatpush1.msra.mxu0 0.0
    %7863 = vmatprep.subr.mxu0 0.0
    %7864 = vmatpush1.msra.mxu0 0.0
    %7865 = vmatprep.subr.mxu0 0.0
    %7866 = vmatpush1.msra.mxu0 0.0
    %7867 = vmatprep.subr.mxu0 0.0
    %7868 = vmatpush1.msra.mxu0 0.0
    %7869 = vmatprep.subr.mxu0 0.0
    %7870 = vmatpush1.msra.mxu0 0.0
    %7871 = vmatprep.subr.mxu0 0.0
    %7872 = vmatpush1.msra.mxu0 0.0
    %7873 = vmatprep.subr.mxu0 0.0
    %7874 = vmatpush1.msra.mxu0 0.0
    %7875 = vmatprep.subr.mxu0 0.0
    %7876 = vmatpush1.msra.mxu0 0.0
    %7877 = vmatprep.subr.mxu0 0.0
    %7878 = vmatpush1.msra.mxu0 0.0
    %7879 = vmatprep.subr.mxu0 0.0
    %7880 = vmatpush1.msra.mxu0 0.0
    %7881 = vmatprep.subr.mxu0 0.0
    %7882 = vmatpush1.msra.mxu0 0.0
    %7883 = vmatprep.subr.mxu0 0.0
    %7884 = vmatpush1.msra.mxu0 0.0
    %7885 = vmatprep.mubr.f32.mxu0 0.0
    %7886 = vmatmul.mubr.f32.gmra.mrb[0].mxu0 %v7819
    %v7887 = vpop.f32.mrb[0].mxu0
    %v7888 = vadd.f32 0.0, %v7887
    %v7889 = vpop.f32.mrb[0].mxu0
    %7890 = vdwg.mxu0
    %7892 = vrot.lane.b32.xlu0 %v7556, 8
    %v7893 = vpop.permute.xlu0 %7892
    %7896 = vrot.lane.b32.xlu0 %v7722, 16
    %v7897 = vpop.permute.xlu0 %7896
    %7900 = vrot.lane.b32.xlu0 %v7888, 24
    %v7901 = vpop.permute.xlu0 %7900
    %v7903 = vsel %vm421, %v7390, %v7893
    %v7904 = vsel %vm166, %v7903, %v7897
    %v7905 = vsel %vm1096, %v7904, %v7901
    %v7906 = vrot.slane %v7139, 1
    %v7907 = vsel %vm421, %v7906, 0
    %v7910 = vsel %vm421, %v7226, 0
    %7912 = vmatprep.subr.mxu0 0.0
    %7913 = vmatpush1.xpose.msra.mxu0 %v7910
    %7914 = vmatprep.subr.mxu0 0.0
    %7915 = vmatpush1.xpose.msra.mxu0 0.0
    %7916 = vmatprep.subr.mxu0 0.0
    %7917 = vmatpush1.xpose.msra.mxu0 0.0
    %7918 = vmatprep.subr.mxu0 0.0
    %7919 = vmatpush1.xpose.msra.mxu0 0.0
    %7920 = vmatprep.subr.mxu0 0.0
    %7921 = vmatpush1.xpose.msra.mxu0 0.0
    %7922 = vmatprep.subr.mxu0 0.0
    %7923 = vmatpush1.xpose.msra.mxu0 0.0
    %7924 = vmatprep.subr.mxu0 0.0
    %7925 = vmatpush1.xpose.msra.mxu0 0.0
    %7926 = vmatprep.subr.mxu0 0.0
    %7927 = vmatpush1.xpose.msra.mxu0 0.0
    %7928 = vmatprep.subr.mxu0 0.0
    %7929 = vmatpush1.xpose.msra.mxu0 0.0
    %7930 = vmatprep.subr.mxu0 0.0
    %7931 = vmatpush1.xpose.msra.mxu0 0.0
    %7932 = vmatprep.subr.mxu0 0.0
    %7933 = vmatpush1.xpose.msra.mxu0 0.0
    %7934 = vmatprep.subr.mxu0 0.0
    %7935 = vmatpush1.xpose.msra.mxu0 0.0
    %7936 = vmatprep.subr.mxu0 0.0
    %7937 = vmatpush1.xpose.msra.mxu0 0.0
    %7938 = vmatprep.subr.mxu0 0.0
    %7939 = vmatpush1.xpose.msra.mxu0 0.0
    %7940 = vmatprep.subr.mxu0 0.0
    %7941 = vmatpush1.xpose.msra.mxu0 0.0
    %7942 = vmatprep.subr.mxu0 0.0
    %7943 = vmatpush1.xpose.msra.mxu0 0.0
    %7944 = vmatprep.subr.mxu0 0.0
    %7945 = vmatpush1.xpose.msra.mxu0 0.0
    %7946 = vmatprep.subr.mxu0 0.0
    %7947 = vmatpush1.xpose.msra.mxu0 0.0
    %7948 = vmatprep.subr.mxu0 0.0
    %7949 = vmatpush1.xpose.msra.mxu0 0.0
    %7950 = vmatprep.subr.mxu0 0.0
    %7951 = vmatpush1.xpose.msra.mxu0 0.0
    %7952 = vmatprep.subr.mxu0 0.0
    %7953 = vmatpush1.xpose.msra.mxu0 0.0
    %7954 = vmatprep.subr.mxu0 0.0
    %7955 = vmatpush1.xpose.msra.mxu0 0.0
    %7956 = vmatprep.subr.mxu0 0.0
    %7957 = vmatpush1.xpose.msra.mxu0 0.0
    %7958 = vmatprep.subr.mxu0 0.0
    %7959 = vmatpush1.xpose.msra.mxu0 0.0
    %7960 = vmatprep.subr.mxu0 0.0
    %7961 = vmatpush1.xpose.msra.mxu0 0.0
    %7962 = vmatprep.subr.mxu0 0.0
    %7963 = vmatpush1.xpose.msra.mxu0 0.0
    %7964 = vmatprep.subr.mxu0 0.0
    %7965 = vmatpush1.xpose.msra.mxu0 0.0
    %7966 = vmatprep.subr.mxu0 0.0
    %7967 = vmatpush1.xpose.msra.mxu0 0.0
    %7968 = vmatprep.subr.mxu0 0.0
    %7969 = vmatpush1.xpose.msra.mxu0 0.0
    %7970 = vmatprep.subr.mxu0 0.0
    %7971 = vmatpush1.xpose.msra.mxu0 0.0
    %7972 = vmatprep.subr.mxu0 0.0
    %7973 = vmatpush1.xpose.msra.mxu0 0.0
    %7974 = vmatprep.subr.mxu0 0.0
    %7975 = vmatpush1.xpose.msra.mxu0 0.0
    %7976 = vmatprep.mubr.f32.mxu0 0.0
    %7977 = vmatmul.mubr.f32.gmra.mrb[0].mxu0 %v7907
    %v7978 = vpop.f32.mrb[0].mxu0
    %v7979 = vadd.f32 0.0, %v7978
    %v7980 = vpop.f32.mrb[0].mxu0
    %7981 = vdwg.mxu0
    %v7982 = vmul.f32 %v7979, 0.35355338
    %v7983 = vsel %vm5019, %v7982, -inf
    %7984 = vmax.xlane.f32.xlu0 %v7983
    %v7985 = vpop.xlane.xlu0 %7984
    %v7986 = vsub.f32 %v7982, %v7985
    %v7987 = vmul.f32 %v7986, 1.442695
    %v7988 = vpow.pop %v7987
    %v7989 = vsel %vm5019, %v7988, 0.0
    %7990 = vadd.xlane.f32.xlu0 %v7989
    %v7991 = vpop.xlane.xlu0 %7990
    %v7992 = vrcp.pop %v7991
    %v7993 = vmul.f32 %v7988, %v7992
    %7994 = vrot.lane.b32.xlu0 %v7226, 96
    %v7995 = vpop.permute.xlu0 %7994
    %v7998 = vsel %vm421, %v7993, 0
    %8000 = vmatprep.subr.mxu0 0.0
    %8001 = vmatpush1.msra.mxu0 %v7995
    %8002 = vmatprep.subr.mxu0 0.0
    %8003 = vmatpush1.msra.mxu0 0.0
    %8004 = vmatprep.subr.mxu0 0.0
    %8005 = vmatpush1.msra.mxu0 0.0
    %8006 = vmatprep.subr.mxu0 0.0
    %8007 = vmatpush1.msra.mxu0 0.0
    %8008 = vmatprep.subr.mxu0 0.0
    %8009 = vmatpush1.msra.mxu0 0.0
    %8010 = vmatprep.subr.mxu0 0.0
    %8011 = vmatpush1.msra.mxu0 0.0
    %8012 = vmatprep.subr.mxu0 0.0
    %8013 = vmatpush1.msra.mxu0 0.0
    %8014 = vmatprep.subr.mxu0 0.0
    %8015 = vmatpush1.msra.mxu0 0.0
    %8016 = vmatprep.subr.mxu0 0.0
    %8017 = vmatpush1.msra.mxu0 0.0
    %8018 = vmatprep.subr.mxu0 0.0
    %8019 = vmatpush1.msra.mxu0 0.0
    %8020 = vmatprep.subr.mxu0 0.0
    %8021 = vmatpush1.msra.mxu0 0.0
    %8022 = vmatprep.subr.mxu0 0.0
    %8023 = vmatpush1.msra.mxu0 0.0
    %8024 = vmatprep.subr.mxu0 0.0
    %8025 = vmatpush1.msra.mxu0 0.0
    %8026 = vmatprep.subr.mxu0 0.0
    %8027 = vmatpush1.msra.mxu0 0.0
    %8028 = vmatprep.subr.mxu0 0.0
    %8029 = vmatpush1.msra.mxu0 0.0
    %8030 = vmatprep.subr.mxu0 0.0
    %8031 = vmatpush1.msra.mxu0 0.0
    %8032 = vmatprep.subr.mxu0 0.0
    %8033 = vmatpush1.msra.mxu0 0.0
    %8034 = vmatprep.subr.mxu0 0.0
    %8035 = vmatpush1.msra.mxu0 0.0
    %8036 = vmatprep.subr.mxu0 0.0
    %8037 = vmatpush1.msra.mxu0 0.0
    %8038 = vmatprep.subr.mxu0 0.0
    %8039 = vmatpush1.msra.mxu0 0.0
    %8040 = vmatprep.subr.mxu0 0.0
    %8041 = vmatpush1.msra.mxu0 0.0
    %8042 = vmatprep.subr.mxu0 0.0
    %8043 = vmatpush1.msra.mxu0 0.0
    %8044 = vmatprep.subr.mxu0 0.0
    %8045 = vmatpush1.msra.mxu0 0.0
    %8046 = vmatprep.subr.mxu0 0.0
    %8047 = vmatpush1.msra.mxu0 0.0
    %8048 = vmatprep.subr.mxu0 0.0
    %8049 = vmatpush1.msra.mxu0 0.0
    %8050 = vmatprep.subr.mxu0 0.0
    %8051 = vmatpush1.msra.mxu0 0.0
    %8052 = vmatprep.subr.mxu0 0.0
    %8053 = vmatpush1.msra.mxu0 0.0
    %8054 = vmatprep.subr.mxu0 0.0
    %8055 = vmatpush1.msra.mxu0 0.0
    %8056 = vmatprep.subr.mxu0 0.0
    %8057 = vmatpush1.msra.mxu0 0.0
    %8058 = vmatprep.subr.mxu0 0.0
    %8059 = vmatpush1.msra.mxu0 0.0
    %8060 = vmatprep.subr.mxu0 0.0
    %8061 = vmatpush1.msra.mxu0 0.0
    %8062 = vmatprep.subr.mxu0 0.0
    %8063 = vmatpush1.msra.mxu0 0.0
    %8064 = vmatprep.mubr.f32.mxu0 0.0
    %8065 = vmatmul.mubr.f32.gmra.mrb[0].mxu0 %v7998
    %v8066 = vpop.f32.mrb[0].mxu0
    %v8067 = vadd.f32 0.0, %v8066
    %v8068 = vpop.f32.mrb[0].mxu0
    %8069 = vdwg.mxu0
    %8070 = vrot.lane.b32.xlu0 %v7906, 120
    %v8071 = vpop.permute.xlu0 %8070
    %8072 = vrot.lane.b32.xlu0 %v7226, 120
    %v8073 = vpop.permute.xlu0 %8072
    %v8074 = vsel %vm421, %v8071, 0
    %v8076 = vsel %vm421, %v8073, 0
    %8078 = vmatprep.subr.mxu0 0.0
    %8079 = vmatpush1.xpose.msra.mxu0 %v8076
    %8080 = vmatprep.subr.mxu0 0.0
    %8081 = vmatpush1.xpose.msra.mxu0 0.0
    %8082 = vmatprep.subr.mxu0 0.0
    %8083 = vmatpush1.xpose.msra.mxu0 0.0
    %8084 = vmatprep.subr.mxu0 0.0
    %8085 = vmatpush1.xpose.msra.mxu0 0.0
    %8086 = vmatprep.subr.mxu0 0.0
    %8087 = vmatpush1.xpose.msra.mxu0 0.0
    %8088 = vmatprep.subr.mxu0 0.0
    %8089 = vmatpush1.xpose.msra.mxu0 0.0
    %8090 = vmatprep.subr.mxu0 0.0
    %8091 = vmatpush1.xpose.msra.mxu0 0.0
    %8092 = vmatprep.subr.mxu0 0.0
    %8093 = vmatpush1.xpose.msra.mxu0 0.0
    %8094 = vmatprep.subr.mxu0 0.0
    %8095 = vmatpush1.xpose.msra.mxu0 0.0
    %8096 = vmatprep.subr.mxu0 0.0
    %8097 = vmatpush1.xpose.msra.mxu0 0.0
    %8098 = vmatprep.subr.mxu0 0.0
    %8099 = vmatpush1.xpose.msra.mxu0 0.0
    %8100 = vmatprep.subr.mxu0 0.0
    %8101 = vmatpush1.xpose.msra.mxu0 0.0
    %8102 = vmatprep.subr.mxu0 0.0
    %8103 = vmatpush1.xpose.msra.mxu0 0.0
    %8104 = vmatprep.subr.mxu0 0.0
    %8105 = vmatpush1.xpose.msra.mxu0 0.0
    %8106 = vmatprep.subr.mxu0 0.0
    %8107 = vmatpush1.xpose.msra.mxu0 0.0
    %8108 = vmatprep.subr.mxu0 0.0
    %8109 = vmatpush1.xpose.msra.mxu0 0.0
    %8110 = vmatprep.subr.mxu0 0.0
    %8111 = vmatpush1.xpose.msra.mxu0 0.0
    %8112 = vmatprep.subr.mxu0 0.0
    %8113 = vmatpush1.xpose.msra.mxu0 0.0
    %8114 = vmatprep.subr.mxu0 0.0
    %8115 = vmatpush1.xpose.msra.mxu0 0.0
    %8116 = vmatprep.subr.mxu0 0.0
    %8117 = vmatpush1.xpose.msra.mxu0 0.0
    %8118 = vmatprep.subr.mxu0 0.0
    %8119 = vmatpush1.xpose.msra.mxu0 0.0
    %8120 = vmatprep.subr.mxu0 0.0
    %8121 = vmatpush1.xpose.msra.mxu0 0.0
    %8122 = vmatprep.subr.mxu0 0.0
    %8123 = vmatpush1.xpose.msra.mxu0 0.0
    %8124 = vmatprep.subr.mxu0 0.0
    %8125 = vmatpush1.xpose.msra.mxu0 0.0
    %8126 = vmatprep.subr.mxu0 0.0
    %8127 = vmatpush1.xpose.msra.mxu0 0.0
    %8128 = vmatprep.subr.mxu0 0.0
    %8129 = vmatpush1.xpose.msra.mxu0 0.0
    %8130 = vmatprep.subr.mxu0 0.0
    %8131 = vmatpush1.xpose.msra.mxu0 0.0
    %8132 = vmatprep.subr.mxu0 0.0
    %8133 = vmatpush1.xpose.msra.mxu0 0.0
    %8134 = vmatprep.subr.mxu0 0.0
    %8135 = vmatpush1.xpose.msra.mxu0 0.0
    %8136 = vmatprep.subr.mxu0 0.0
    %8137 = vmatpush1.xpose.msra.mxu0 0.0
    %8138 = vmatprep.subr.mxu0 0.0
    %8139 = vmatpush1.xpose.msra.mxu0 0.0
    %8140 = vmatprep.subr.mxu0 0.0
    %8141 = vmatpush1.xpose.msra.mxu0 0.0
    %8142 = vmatprep.mubr.f32.mxu0 0.0
    %8143 = vmatmul.mubr.f32.gmra.mrb[0].mxu0 %v8074
    %v8144 = vpop.f32.mrb[0].mxu0
    %v8145 = vadd.f32 0.0, %v8144
    %v8146 = vpop.f32.mrb[0].mxu0
    %8147 = vdwg.mxu0
    %v8148 = vmul.f32 %v8145, 0.35355338
    %v8149 = vsel %vm5019, %v8148, -inf
    %8150 = vmax.xlane.f32.xlu0 %v8149
    %v8151 = vpop.xlane.xlu0 %8150
    %v8152 = vsub.f32 %v8148, %v8151
    %v8153 = vmul.f32 %v8152, 1.442695
    %v8154 = vpow.pop %v8153
    %v8155 = vsel %vm5019, %v8154, 0.0
    %8156 = vadd.xlane.f32.xlu0 %v8155
    %v8157 = vpop.xlane.xlu0 %8156
    %v8158 = vrcp.pop %v8157
    %v8159 = vmul.f32 %v8154, %v8158
    %8160 = vrot.lane.b32.xlu0 %v7226, 88
    %v8161 = vpop.permute.xlu0 %8160
    %v8164 = vsel %vm421, %v8159, 0
    %8166 = vmatprep.subr.mxu0 0.0
    %8167 = vmatpush1.msra.mxu0 %v8161
    %8168 = vmatprep.subr.mxu0 0.0
    %8169 = vmatpush1.msra.mxu0 0.0
    %8170 = vmatprep.subr.mxu0 0.0
    %8171 = vmatpush1.msra.mxu0 0.0
    %8172 = vmatprep.subr.mxu0 0.0
    %8173 = vmatpush1.msra.mxu0 0.0
    %8174 = vmatprep.subr.mxu0 0.0
    %8175 = vmatpush1.msra.mxu0 0.0
    %8176 = vmatprep.subr.mxu0 0.0
    %8177 = vmatpush1.msra.mxu0 0.0
    %8178 = vmatprep.subr.mxu0 0.0
    %8179 = vmatpush1.msra.mxu0 0.0
    %8180 = vmatprep.subr.mxu0 0.0
    %8181 = vmatpush1.msra.mxu0 0.0
    %8182 = vmatprep.subr.mxu0 0.0
    %8183 = vmatpush1.msra.mxu0 0.0
    %8184 = vmatprep.subr.mxu0 0.0
    %8185 = vmatpush1.msra.mxu0 0.0
    %8186 = vmatprep.subr.mxu0 0.0
    %8187 = vmatpush1.msra.mxu0 0.0
    %8188 = vmatprep.subr.mxu0 0.0
    %8189 = vmatpush1.msra.mxu0 0.0
    %8190 = vmatprep.subr.mxu0 0.0
    %8191 = vmatpush1.msra.mxu0 0.0
    %8192 = vmatprep.subr.mxu0 0.0
    %8193 = vmatpush1.msra.mxu0 0.0
    %8194 = vmatprep.subr.mxu0 0.0
    %8195 = vmatpush1.msra.mxu0 0.0
    %8196 = vmatprep.subr.mxu0 0.0
    %8197 = vmatpush1.msra.mxu0 0.0
    %8198 = vmatprep.subr.mxu0 0.0
    %8199 = vmatpush1.msra.mxu0 0.0
    %8200 = vmatprep.subr.mxu0 0.0
    %8201 = vmatpush1.msra.mxu0 0.0
    %8202 = vmatprep.subr.mxu0 0.0
    %8203 = vmatpush1.msra.mxu0 0.0
    %8204 = vmatprep.subr.mxu0 0.0
    %8205 = vmatpush1.msra.mxu0 0.0
    %8206 = vmatprep.subr.mxu0 0.0
    %8207 = vmatpush1.msra.mxu0 0.0
    %8208 = vmatprep.subr.mxu0 0.0
    %8209 = vmatpush1.msra.mxu0 0.0
    %8210 = vmatprep.subr.mxu0 0.0
    %8211 = vmatpush1.msra.mxu0 0.0
    %8212 = vmatprep.subr.mxu0 0.0
    %8213 = vmatpush1.msra.mxu0 0.0
    %8214 = vmatprep.subr.mxu0 0.0
    %8215 = vmatpush1.msra.mxu0 0.0
    %8216 = vmatprep.subr.mxu0 0.0
    %8217 = vmatpush1.msra.mxu0 0.0
    %8218 = vmatprep.subr.mxu0 0.0
    %8219 = vmatpush1.msra.mxu0 0.0
    %8220 = vmatprep.subr.mxu0 0.0
    %8221 = vmatpush1.msra.mxu0 0.0
    %8222 = vmatprep.subr.mxu0 0.0
    %8223 = vmatpush1.msra.mxu0 0.0
    %8224 = vmatprep.subr.mxu0 0.0
    %8225 = vmatpush1.msra.mxu0 0.0
    %8226 = vmatprep.subr.mxu0 0.0
    %8227 = vmatpush1.msra.mxu0 0.0
    %8228 = vmatprep.subr.mxu0 0.0
    %8229 = vmatpush1.msra.mxu0 0.0
    %8230 = vmatprep.mubr.f32.mxu0 0.0
    %8231 = vmatmul.mubr.f32.gmra.mrb[0].mxu0 %v8164
    %v8232 = vpop.f32.mrb[0].mxu0
    %v8233 = vadd.f32 0.0, %v8232
    %v8234 = vpop.f32.mrb[0].mxu0
    %8235 = vdwg.mxu0
    %8236 = vrot.lane.b32.xlu0 %v7906, 112
    %v8237 = vpop.permute.xlu0 %8236
    %8238 = vrot.lane.b32.xlu0 %v7226, 112
    %v8239 = vpop.permute.xlu0 %8238
    %v8240 = vsel %vm421, %v8237, 0
    %v8242 = vsel %vm421, %v8239, 0
    %8244 = vmatprep.subr.mxu0 0.0
    %8245 = vmatpush1.xpose.msra.mxu0 %v8242
    %8246 = vmatprep.subr.mxu0 0.0
    %8247 = vmatpush1.xpose.msra.mxu0 0.0
    %8248 = vmatprep.subr.mxu0 0.0
    %8249 = vmatpush1.xpose.msra.mxu0 0.0
    %8250 = vmatprep.subr.mxu0 0.0
    %8251 = vmatpush1.xpose.msra.mxu0 0.0
    %8252 = vmatprep.subr.mxu0 0.0
    %8253 = vmatpush1.xpose.msra.mxu0 0.0
    %8254 = vmatprep.subr.mxu0 0.0
    %8255 = vmatpush1.xpose.msra.mxu0 0.0
    %8256 = vmatprep.subr.mxu0 0.0
    %8257 = vmatpush1.xpose.msra.mxu0 0.0
    %8258 = vmatprep.subr.mxu0 0.0
    %8259 = vmatpush1.xpose.msra.mxu0 0.0
    %8260 = vmatprep.subr.mxu0 0.0
    %8261 = vmatpush1.xpose.msra.mxu0 0.0
    %8262 = vmatprep.subr.mxu0 0.0
    %8263 = vmatpush1.xpose.msra.mxu0 0.0
    %8264 = vmatprep.subr.mxu0 0.0
    %8265 = vmatpush1.xpose.msra.mxu0 0.0
    %8266 = vmatprep.subr.mxu0 0.0
    %8267 = vmatpush1.xpose.msra.mxu0 0.0
    %8268 = vmatprep.subr.mxu0 0.0
    %8269 = vmatpush1.xpose.msra.mxu0 0.0
    %8270 = vmatprep.subr.mxu0 0.0
    %8271 = vmatpush1.xpose.msra.mxu0 0.0
    %8272 = vmatprep.subr.mxu0 0.0
    %8273 = vmatpush1.xpose.msra.mxu0 0.0
    %8274 = vmatprep.subr.mxu0 0.0
    %8275 = vmatpush1.xpose.msra.mxu0 0.0
    %8276 = vmatprep.subr.mxu0 0.0
    %8277 = vmatpush1.xpose.msra.mxu0 0.0
    %8278 = vmatprep.subr.mxu0 0.0
    %8279 = vmatpush1.xpose.msra.mxu0 0.0
    %8280 = vmatprep.subr.mxu0 0.0
    %8281 = vmatpush1.xpose.msra.mxu0 0.0
    %8282 = vmatprep.subr.mxu0 0.0
    %8283 = vmatpush1.xpose.msra.mxu0 0.0
    %8284 = vmatprep.subr.mxu0 0.0
    %8285 = vmatpush1.xpose.msra.mxu0 0.0
    %8286 = vmatprep.subr.mxu0 0.0
    %8287 = vmatpush1.xpose.msra.mxu0 0.0
    %8288 = vmatprep.subr.mxu0 0.0
    %8289 = vmatpush1.xpose.msra.mxu0 0.0
    %8290 = vmatprep.subr.mxu0 0.0
    %8291 = vmatpush1.xpose.msra.mxu0 0.0
    %8292 = vmatprep.subr.mxu0 0.0
    %8293 = vmatpush1.xpose.msra.mxu0 0.0
    %8294 = vmatprep.subr.mxu0 0.0
    %8295 = vmatpush1.xpose.msra.mxu0 0.0
    %8296 = vmatprep.subr.mxu0 0.0
    %8297 = vmatpush1.xpose.msra.mxu0 0.0
    %8298 = vmatprep.subr.mxu0 0.0
    %8299 = vmatpush1.xpose.msra.mxu0 0.0
    %8300 = vmatprep.subr.mxu0 0.0
    %8301 = vmatpush1.xpose.msra.mxu0 0.0
    %8302 = vmatprep.subr.mxu0 0.0
    %8303 = vmatpush1.xpose.msra.mxu0 0.0
    %8304 = vmatprep.subr.mxu0 0.0
    %8305 = vmatpush1.xpose.msra.mxu0 0.0
    %8306 = vmatprep.subr.mxu0 0.0
    %8307 = vmatpush1.xpose.msra.mxu0 0.0
    %8308 = vmatprep.mubr.f32.mxu0 0.0
    %8309 = vmatmul.mubr.f32.gmra.mrb[0].mxu0 %v8240
    %v8310 = vpop.f32.mrb[0].mxu0
    %v8311 = vadd.f32 0.0, %v8310
    %v8312 = vpop.f32.mrb[0].mxu0
    %8313 = vdwg.mxu0
    %v8314 = vmul.f32 %v8311, 0.35355338
    %v8315 = vsel %vm5019, %v8314, -inf
    %8316 = vmax.xlane.f32.xlu0 %v8315
    %v8317 = vpop.xlane.xlu0 %8316
    %v8318 = vsub.f32 %v8314, %v8317
    %v8319 = vmul.f32 %v8318, 1.442695
    %v8320 = vpow.pop %v8319
    %v8321 = vsel %vm5019, %v8320, 0.0
    %8322 = vadd.xlane.f32.xlu0 %v8321
    %v8323 = vpop.xlane.xlu0 %8322
    %v8324 = vrcp.pop %v8323
    %v8325 = vmul.f32 %v8320, %v8324
    %8326 = vrot.lane.b32.xlu0 %v7226, 80
    %v8327 = vpop.permute.xlu0 %8326
    %v8330 = vsel %vm421, %v8325, 0
    %8332 = vmatprep.subr.mxu0 0.0
    %8333 = vmatpush1.msra.mxu0 %v8327
    %8334 = vmatprep.subr.mxu0 0.0
    %8335 = vmatpush1.msra.mxu0 0.0
    %8336 = vmatprep.subr.mxu0 0.0
    %8337 = vmatpush1.msra.mxu0 0.0
    %8338 = vmatprep.subr.mxu0 0.0
    %8339 = vmatpush1.msra.mxu0 0.0
    %8340 = vmatprep.subr.mxu0 0.0
    %8341 = vmatpush1.msra.mxu0 0.0
    %8342 = vmatprep.subr.mxu0 0.0
    %8343 = vmatpush1.msra.mxu0 0.0
    %8344 = vmatprep.subr.mxu0 0.0
    %8345 = vmatpush1.msra.mxu0 0.0
    %8346 = vmatprep.subr.mxu0 0.0
    %8347 = vmatpush1.msra.mxu0 0.0
    %8348 = vmatprep.subr.mxu0 0.0
    %8349 = vmatpush1.msra.mxu0 0.0
    %8350 = vmatprep.subr.mxu0 0.0
    %8351 = vmatpush1.msra.mxu0 0.0
    %8352 = vmatprep.subr.mxu0 0.0
    %8353 = vmatpush1.msra.mxu0 0.0
    %8354 = vmatprep.subr.mxu0 0.0
    %8355 = vmatpush1.msra.mxu0 0.0
    %8356 = vmatprep.subr.mxu0 0.0
    %8357 = vmatpush1.msra.mxu0 0.0
    %8358 = vmatprep.subr.mxu0 0.0
    %8359 = vmatpush1.msra.mxu0 0.0
    %8360 = vmatprep.subr.mxu0 0.0
    %8361 = vmatpush1.msra.mxu0 0.0
    %8362 = vmatprep.subr.mxu0 0.0
    %8363 = vmatpush1.msra.mxu0 0.0
    %8364 = vmatprep.subr.mxu0 0.0
    %8365 = vmatpush1.msra.mxu0 0.0
    %8366 = vmatprep.subr.mxu0 0.0
    %8367 = vmatpush1.msra.mxu0 0.0
    %8368 = vmatprep.subr.mxu0 0.0
    %8369 = vmatpush1.msra.mxu0 0.0
    %8370 = vmatprep.subr.mxu0 0.0
    %8371 = vmatpush1.msra.mxu0 0.0
    %8372 = vmatprep.subr.mxu0 0.0
    %8373 = vmatpush1.msra.mxu0 0.0
    %8374 = vmatprep.subr.mxu0 0.0
    %8375 = vmatpush1.msra.mxu0 0.0
    %8376 = vmatprep.subr.mxu0 0.0
    %8377 = vmatpush1.msra.mxu0 0.0
    %8378 = vmatprep.subr.mxu0 0.0
    %8379 = vmatpush1.msra.mxu0 0.0
    %8380 = vmatprep.subr.mxu0 0.0
    %8381 = vmatpush1.msra.mxu0 0.0
    %8382 = vmatprep.subr.mxu0 0.0
    %8383 = vmatpush1.msra.mxu0 0.0
    %8384 = vmatprep.subr.mxu0 0.0
    %8385 = vmatpush1.msra.mxu0 0.0
    %8386 = vmatprep.subr.mxu0 0.0
    %8387 = vmatpush1.msra.mxu0 0.0
    %8388 = vmatprep.subr.mxu0 0.0
    %8389 = vmatpush1.msra.mxu0 0.0
    %8390 = vmatprep.subr.mxu0 0.0
    %8391 = vmatpush1.msra.mxu0 0.0
    %8392 = vmatprep.subr.mxu0 0.0
    %8393 = vmatpush1.msra.mxu0 0.0
    %8394 = vmatprep.subr.mxu0 0.0
    %8395 = vmatpush1.msra.mxu0 0.0
    %8396 = vmatprep.mubr.f32.mxu0 0.0
    %8397 = vmatmul.mubr.f32.gmra.mrb[0].mxu0 %v8330
    %v8398 = vpop.f32.mrb[0].mxu0
    %v8399 = vadd.f32 0.0, %v8398
    %v8400 = vpop.f32.mrb[0].mxu0
    %8401 = vdwg.mxu0
    %8402 = vrot.lane.b32.xlu0 %v7906, 104
    %v8403 = vpop.permute.xlu0 %8402
    %8404 = vrot.lane.b32.xlu0 %v7226, 104
    %v8405 = vpop.permute.xlu0 %8404
    %v8406 = vsel %vm421, %v8403, 0
    %v8408 = vsel %vm421, %v8405, 0
    %8410 = vmatprep.subr.mxu0 0.0
    %8411 = vmatpush1.xpose.msra.mxu0 %v8408
    %8412 = vmatprep.subr.mxu0 0.0
    %8413 = vmatpush1.xpose.msra.mxu0 0.0
    %8414 = vmatprep.subr.mxu0 0.0
    %8415 = vmatpush1.xpose.msra.mxu0 0.0
    %8416 = vmatprep.subr.mxu0 0.0
    %8417 = vmatpush1.xpose.msra.mxu0 0.0
    %8418 = vmatprep.subr.mxu0 0.0
    %8419 = vmatpush1.xpose.msra.mxu0 0.0
    %8420 = vmatprep.subr.mxu0 0.0
    %8421 = vmatpush1.xpose.msra.mxu0 0.0
    %8422 = vmatprep.subr.mxu0 0.0
    %8423 = vmatpush1.xpose.msra.mxu0 0.0
    %8424 = vmatprep.subr.mxu0 0.0
    %8425 = vmatpush1.xpose.msra.mxu0 0.0
    %8426 = vmatprep.subr.mxu0 0.0
    %8427 = vmatpush1.xpose.msra.mxu0 0.0
    %8428 = vmatprep.subr.mxu0 0.0
    %8429 = vmatpush1.xpose.msra.mxu0 0.0
    %8430 = vmatprep.subr.mxu0 0.0
    %8431 = vmatpush1.xpose.msra.mxu0 0.0
    %8432 = vmatprep.subr.mxu0 0.0
    %8433 = vmatpush1.xpose.msra.mxu0 0.0
    %8434 = vmatprep.subr.mxu0 0.0
    %8435 = vmatpush1.xpose.msra.mxu0 0.0
    %8436 = vmatprep.subr.mxu0 0.0
    %8437 = vmatpush1.xpose.msra.mxu0 0.0
    %8438 = vmatprep.subr.mxu0 0.0
    %8439 = vmatpush1.xpose.msra.mxu0 0.0
    %8440 = vmatprep.subr.mxu0 0.0
    %8441 = vmatpush1.xpose.msra.mxu0 0.0
    %8442 = vmatprep.subr.mxu0 0.0
    %8443 = vmatpush1.xpose.msra.mxu0 0.0
    %8444 = vmatprep.subr.mxu0 0.0
    %8445 = vmatpush1.xpose.msra.mxu0 0.0
    %8446 = vmatprep.subr.mxu0 0.0
    %8447 = vmatpush1.xpose.msra.mxu0 0.0
    %8448 = vmatprep.subr.mxu0 0.0
    %8449 = vmatpush1.xpose.msra.mxu0 0.0
    %8450 = vmatprep.subr.mxu0 0.0
    %8451 = vmatpush1.xpose.msra.mxu0 0.0
    %8452 = vmatprep.subr.mxu0 0.0
    %8453 = vmatpush1.xpose.msra.mxu0 0.0
    %8454 = vmatprep.subr.mxu0 0.0
    %8455 = vmatpush1.xpose.msra.mxu0 0.0
    %8456 = vmatprep.subr.mxu0 0.0
    %8457 = vmatpush1.xpose.msra.mxu0 0.0
    %8458 = vmatprep.subr.mxu0 0.0
    %8459 = vmatpush1.xpose.msra.mxu0 0.0
    %8460 = vmatprep.subr.mxu0 0.0
    %8461 = vmatpush1.xpose.msra.mxu0 0.0
    %8462 = vmatprep.subr.mxu0 0.0
    %8463 = vmatpush1.xpose.msra.mxu0 0.0
    %8464 = vmatprep.subr.mxu0 0.0
    %8465 = vmatpush1.xpose.msra.mxu0 0.0
    %8466 = vmatprep.subr.mxu0 0.0
    %8467 = vmatpush1.xpose.msra.mxu0 0.0
    %8468 = vmatprep.subr.mxu0 0.0
    %8469 = vmatpush1.xpose.msra.mxu0 0.0
    %8470 = vmatprep.subr.mxu0 0.0
    %8471 = vmatpush1.xpose.msra.mxu0 0.0
    %8472 = vmatprep.subr.mxu0 0.0
    %8473 = vmatpush1.xpose.msra.mxu0 0.0
    %8474 = vmatprep.mubr.f32.mxu0 0.0
    %8475 = vmatmul.mubr.f32.gmra.mrb[0].mxu0 %v8406
    %v8476 = vpop.f32.mrb[0].mxu0
    %v8477 = vadd.f32 0.0, %v8476
    %v8478 = vpop.f32.mrb[0].mxu0
    %8479 = vdwg.mxu0
    %v8480 = vmul.f32 %v8477, 0.35355338
    %v8481 = vsel %vm5019, %v8480, -inf
    %8482 = vmax.xlane.f32.xlu0 %v8481
    %v8483 = vpop.xlane.xlu0 %8482
    %v8484 = vsub.f32 %v8480, %v8483
    %v8485 = vmul.f32 %v8484, 1.442695
    %v8486 = vpow.pop %v8485
    %v8487 = vsel %vm5019, %v8486, 0.0
    %8488 = vadd.xlane.f32.xlu0 %v8487
    %v8489 = vpop.xlane.xlu0 %8488
    %v8490 = vrcp.pop %v8489
    %v8491 = vmul.f32 %v8486, %v8490
    %8492 = vrot.lane.b32.xlu0 %v7226, 72
    %v8493 = vpop.permute.xlu0 %8492
    %v8496 = vsel %vm421, %v8491, 0
    %8498 = vmatprep.subr.mxu0 0.0
    %8499 = vmatpush1.msra.mxu0 %v8493
    %8500 = vmatprep.subr.mxu0 0.0
    %8501 = vmatpush1.msra.mxu0 0.0
    %8502 = vmatprep.subr.mxu0 0.0
    %8503 = vmatpush1.msra.mxu0 0.0
    %8504 = vmatprep.subr.mxu0 0.0
    %8505 = vmatpush1.msra.mxu0 0.0
    %8506 = vmatprep.subr.mxu0 0.0
    %8507 = vmatpush1.msra.mxu0 0.0
    %8508 = vmatprep.subr.mxu0 0.0
    %8509 = vmatpush1.msra.mxu0 0.0
    %8510 = vmatprep.subr.mxu0 0.0
    %8511 = vmatpush1.msra.mxu0 0.0
    %8512 = vmatprep.subr.mxu0 0.0
    %8513 = vmatpush1.msra.mxu0 0.0
    %8514 = vmatprep.subr.mxu0 0.0
    %8515 = vmatpush1.msra.mxu0 0.0
    %8516 = vmatprep.subr.mxu0 0.0
    %8517 = vmatpush1.msra.mxu0 0.0
    %8518 = vmatprep.subr.mxu0 0.0
    %8519 = vmatpush1.msra.mxu0 0.0
    %8520 = vmatprep.subr.mxu0 0.0
    %8521 = vmatpush1.msra.mxu0 0.0
    %8522 = vmatprep.subr.mxu0 0.0
    %8523 = vmatpush1.msra.mxu0 0.0
    %8524 = vmatprep.subr.mxu0 0.0
    %8525 = vmatpush1.msra.mxu0 0.0
    %8526 = vmatprep.subr.mxu0 0.0
    %8527 = vmatpush1.msra.mxu0 0.0
    %8528 = vmatprep.subr.mxu0 0.0
    %8529 = vmatpush1.msra.mxu0 0.0
    %8530 = vmatprep.subr.mxu0 0.0
    %8531 = vmatpush1.msra.mxu0 0.0
    %8532 = vmatprep.subr.mxu0 0.0
    %8533 = vmatpush1.msra.mxu0 0.0
    %8534 = vmatprep.subr.mxu0 0.0
    %8535 = vmatpush1.msra.mxu0 0.0
    %8536 = vmatprep.subr.mxu0 0.0
    %8537 = vmatpush1.msra.mxu0 0.0
    %8538 = vmatprep.subr.mxu0 0.0
    %8539 = vmatpush1.msra.mxu0 0.0
    %8540 = vmatprep.subr.mxu0 0.0
    %8541 = vmatpush1.msra.mxu0 0.0
    %8542 = vmatprep.subr.mxu0 0.0
    %8543 = vmatpush1.msra.mxu0 0.0
    %8544 = vmatprep.subr.mxu0 0.0
    %8545 = vmatpush1.msra.mxu0 0.0
    %8546 = vmatprep.subr.mxu0 0.0
    %8547 = vmatpush1.msra.mxu0 0.0
    %8548 = vmatprep.subr.mxu0 0.0
    %8549 = vmatpush1.msra.mxu0 0.0
    %8550 = vmatprep.subr.mxu0 0.0
    %8551 = vmatpush1.msra.mxu0 0.0
    %8552 = vmatprep.subr.mxu0 0.0
    %8553 = vmatpush1.msra.mxu0 0.0
    %8554 = vmatprep.subr.mxu0 0.0
    %8555 = vmatpush1.msra.mxu0 0.0
    %8556 = vmatprep.subr.mxu0 0.0
    %8557 = vmatpush1.msra.mxu0 0.0
    %8558 = vmatprep.subr.mxu0 0.0
    %8559 = vmatpush1.msra.mxu0 0.0
    %8560 = vmatprep.subr.mxu0 0.0
    %8561 = vmatpush1.msra.mxu0 0.0
    %8562 = vmatprep.mubr.f32.mxu0 0.0
    %8563 = vmatmul.mubr.f32.gmra.mrb[0].mxu0 %v8496
    %v8564 = vpop.f32.mrb[0].mxu0
    %v8565 = vadd.f32 0.0, %v8564
    %v8566 = vpop.f32.mrb[0].mxu0
    %8567 = vdwg.mxu0
    %8569 = vrot.lane.b32.xlu0 %v8233, 8
    %v8570 = vpop.permute.xlu0 %8569
    %8573 = vrot.lane.b32.xlu0 %v8399, 16
    %v8574 = vpop.permute.xlu0 %8573
    %8577 = vrot.lane.b32.xlu0 %v8565, 24
    %v8578 = vpop.permute.xlu0 %8577
    %v8580 = vsel %vm421, %v8067, %v8570
    %v8581 = vsel %vm166, %v8580, %v8574
    %v8582 = vsel %vm1096, %v8581, %v8578
    %v8584 = vrot.slane %v8582, 7
    %v8586 = vsel %vm6300, %v7905, %v8584
    %v8588 = vlaneseq
    %v8589 = vshrl.u32 %v8588, 7
    %v8590 = vsub.s32 0, %v8589
    %v8591 = vrot.slane %v6822, %v8590
    %v8594 = vsel %vm291, %v8586, 0
    %8596 = vmatprep.subr.mxu0 0.0
    %8597 = vmatpush1.msra.mxu0 %v6817
    %8598 = vmatprep.subr.mxu0 0.0
    %8599 = vmatpush1.msra.mxu0 %v6818
    %8600 = vmatprep.subr.mxu0 0.0
    %8601 = vmatpush1.msra.mxu0 %v6819
    %8602 = vmatprep.subr.mxu0 0.0
    %8603 = vmatpush1.msra.mxu0 %v6820
    %8604 = vmatprep.subr.mxu0 0.0
    %8605 = vmatpush1.msra.mxu0 0.0
    %8606 = vmatprep.subr.mxu0 0.0
    %8607 = vmatpush1.msra.mxu0 0.0
    %8608 = vmatprep.subr.mxu0 0.0
    %8609 = vmatpush1.msra.mxu0 0.0
    %8610 = vmatprep.subr.mxu0 0.0
    %8611 = vmatpush1.msra.mxu0 0.0
    %8612 = vmatprep.subr.mxu0 0.0
    %8613 = vmatpush1.msra.mxu0 0.0
    %8614 = vmatprep.subr.mxu0 0.0
    %8615 = vmatpush1.msra.mxu0 0.0
    %8616 = vmatprep.subr.mxu0 0.0
    %8617 = vmatpush1.msra.mxu0 0.0
    %8618 = vmatprep.subr.mxu0 0.0
    %8619 = vmatpush1.msra.mxu0 0.0
    %8620 = vmatprep.subr.mxu0 0.0
    %8621 = vmatpush1.msra.mxu0 0.0
    %8622 = vmatprep.subr.mxu0 0.0
    %8623 = vmatpush1.msra.mxu0 0.0
    %8624 = vmatprep.subr.mxu0 0.0
    %8625 = vmatpush1.msra.mxu0 0.0
    %8626 = vmatprep.subr.mxu0 0.0
    %8627 = vmatpush1.msra.mxu0 0.0
    %8628 = vmatprep.subr.mxu0 0.0
    %8629 = vmatpush1.msra.mxu0 0.0
    %8630 = vmatprep.subr.mxu0 0.0
    %8631 = vmatpush1.msra.mxu0 0.0
    %8632 = vmatprep.subr.mxu0 0.0
    %8633 = vmatpush1.msra.mxu0 0.0
    %8634 = vmatprep.subr.mxu0 0.0
    %8635 = vmatpush1.msra.mxu0 0.0
    %8636 = vmatprep.subr.mxu0 0.0
    %8637 = vmatpush1.msra.mxu0 0.0
    %8638 = vmatprep.subr.mxu0 0.0
    %8639 = vmatpush1.msra.mxu0 0.0
    %8640 = vmatprep.subr.mxu0 0.0
    %8641 = vmatpush1.msra.mxu0 0.0
    %8642 = vmatprep.subr.mxu0 0.0
    %8643 = vmatpush1.msra.mxu0 0.0
    %8644 = vmatprep.subr.mxu0 0.0
    %8645 = vmatpush1.msra.mxu0 0.0
    %8646 = vmatprep.subr.mxu0 0.0
    %8647 = vmatpush1.msra.mxu0 0.0
    %8648 = vmatprep.subr.mxu0 0.0
    %8649 = vmatpush1.msra.mxu0 0.0
    %8650 = vmatprep.subr.mxu0 0.0
    %8651 = vmatpush1.msra.mxu0 0.0
    %8652 = vmatprep.subr.mxu0 0.0
    %8653 = vmatpush1.msra.mxu0 0.0
    %8654 = vmatprep.subr.mxu0 0.0
    %8655 = vmatpush1.msra.mxu0 0.0
    %8656 = vmatprep.subr.mxu0 0.0
    %8657 = vmatpush1.msra.mxu0 0.0
    %8658 = vmatprep.subr.mxu0 0.0
    %8659 = vmatpush1.msra.mxu0 0.0
    %8660 = vmatprep.mubr.f32.mxu0 0.0
    %8661 = vmatmul.mubr.f32.gmra.mrb[0].mxu0 %v8594
    %v8662 = vpop.f32.mrb[0].mxu0
    %v8663 = vadd.f32 %v8591, %v8662
    %v8664 = vpop.f32.mrb[0].mxu0
    %8665 = vdwg.mxu0
    %v8666 = vadd.f32 %v7039, %v8663
    %v8667 = vsel %vm4568, %v8666, 0.0
    %8668 = vadd.xlane.f32.xlu0 %v8667
    %v8669 = vpop.xlane.xlu0 %8668
    %v8670 = vmul.f32 %v8669, %v298
    %v8671 = vsub.f32 %v8666, %v8670
    %v8672 = vmul.f32 %v8671, %v8671
    %v8673 = vsel %vm4568, %v8672, 0.0
    %8674 = vadd.xlane.f32.xlu0 %v8673
    %v8675 = vpop.xlane.xlu0 %8674
    %v8676 = vmul.f32 %v8675, %v298
    %v8677 = vadd.f32 %v8676, 1e-05
    %v8678 = vrsqrt.pop %v8677
    %v8679 = vmul.f32 %v8671, %v8678
    %v8680 = vlaneseq
    %v8681 = vshrl.u32 %v8680, 7
    %v8682 = vsub.s32 2, %v8681
    %v8683 = vrot.slane %v6785, %v8682
    %v8684 = vmul.f32 %v8679, %v8683
    %v8685 = vlaneseq
    %v8686 = vshrl.u32 %v8685, 7
    %v8687 = vsub.s32 2, %v8686
    %v8688 = vrot.slane %v6787, %v8687
    %v8689 = vadd.f32 %v8684, %v8688
    %v8691 = vlaneseq
    %v8692 = vshrl.u32 %v8691, 7
    %v8693 = vsub.s32 0, %v8692
    %v8694 = vrot.slane %v6829, %v8693
    %v8697 = vsel %vm291, %v8689, 0
    %8699 = vmatprep.subr.mxu0 0.0
    %8700 = vmatpush1.msra.mxu0 %v6824
    %8701 = vmatprep.subr.mxu0 0.0
    %8702 = vmatpush1.msra.mxu0 %v6825
    %8703 = vmatprep.subr.mxu0 0.0
    %8704 = vmatpush1.msra.mxu0 %v6826
    %8705 = vmatprep.subr.mxu0 0.0
    %8706 = vmatpush1.msra.mxu0 %v6827
    %8707 = vmatprep.subr.mxu0 0.0
    %8708 = vmatpush1.msra.mxu0 0.0
    %8709 = vmatprep.subr.mxu0 0.0
    %8710 = vmatpush1.msra.mxu0 0.0
    %8711 = vmatprep.subr.mxu0 0.0
    %8712 = vmatpush1.msra.mxu0 0.0
    %8713 = vmatprep.subr.mxu0 0.0
    %8714 = vmatpush1.msra.mxu0 0.0
    %8715 = vmatprep.subr.mxu0 0.0
    %8716 = vmatpush1.msra.mxu0 0.0
    %8717 = vmatprep.subr.mxu0 0.0
    %8718 = vmatpush1.msra.mxu0 0.0
    %8719 = vmatprep.subr.mxu0 0.0
    %8720 = vmatpush1.msra.mxu0 0.0
    %8721 = vmatprep.subr.mxu0 0.0
    %8722 = vmatpush1.msra.mxu0 0.0
    %8723 = vmatprep.subr.mxu0 0.0
    %8724 = vmatpush1.msra.mxu0 0.0
    %8725 = vmatprep.subr.mxu0 0.0
    %8726 = vmatpush1.msra.mxu0 0.0
    %8727 = vmatprep.subr.mxu0 0.0
    %8728 = vmatpush1.msra.mxu0 0.0
    %8729 = vmatprep.subr.mxu0 0.0
    %8730 = vmatpush1.msra.mxu0 0.0
    %8731 = vmatprep.subr.mxu0 0.0
    %8732 = vmatpush1.msra.mxu0 0.0
    %8733 = vmatprep.subr.mxu0 0.0
    %8734 = vmatpush1.msra.mxu0 0.0
    %8735 = vmatprep.subr.mxu0 0.0
    %8736 = vmatpush1.msra.mxu0 0.0
    %8737 = vmatprep.subr.mxu0 0.0
    %8738 = vmatpush1.msra.mxu0 0.0
    %8739 = vmatprep.subr.mxu0 0.0
    %8740 = vmatpush1.msra.mxu0 0.0
    %8741 = vmatprep.subr.mxu0 0.0
    %8742 = vmatpush1.msra.mxu0 0.0
    %8743 = vmatprep.subr.mxu0 0.0
    %8744 = vmatpush1.msra.mxu0 0.0
    %8745 = vmatprep.subr.mxu0 0.0
    %8746 = vmatpush1.msra.mxu0 0.0
    %8747 = vmatprep.subr.mxu0 0.0
    %8748 = vmatpush1.msra.mxu0 0.0
    %8749 = vmatprep.subr.mxu0 0.0
    %8750 = vmatpush1.msra.mxu0 0.0
    %8751 = vmatprep.subr.mxu0 0.0
    %8752 = vmatpush1.msra.mxu0 0.0
    %8753 = vmatprep.subr.mxu0 0.0
    %8754 = vmatpush1.msra.mxu0 0.0
    %8755 = vmatprep.subr.mxu0 0.0
    %8756 = vmatpush1.msra.mxu0 0.0
    %8757 = vmatprep.subr.mxu0 0.0
    %8758 = vmatpush1.msra.mxu0 0.0
    %8759 = vmatprep.subr.mxu0 0.0
    %8760 = vmatpush1.msra.mxu0 0.0
    %8761 = vmatprep.subr.mxu0 0.0
    %8762 = vmatpush1.msra.mxu0 0.0
    %8763 = vmatprep.mubr.f32.mxu0 0.0
    %8764 = vmatmul.mubr.f32.gmra.mrb[0].mxu0 %v8697
    %v8765 = vpop.f32.mrb[0].mxu0
    %v8766 = vadd.f32 %v8694, %v8765
    %v8767 = vpop.f32.mrb[0].mxu0
    %8768 = vdwg.mxu0
    %v8769 = vsel %vm6484, %v8766, -inf
    %8770 = vmax.xlane.f32.xlu0 %v8769
    %v8771 = vpop.xlane.xlu0 %8770
    %v8772 = vsub.f32 %v8766, %v8771
    %v8773 = vmul.f32 %v8772, 1.442695
    %v8774 = vpow.pop %v8773
    %v8775 = vsel %vm6484, %v8774, 0.0
    %8776 = vadd.xlane.f32.xlu0 %v8775
    %v8777 = vpop.xlane.xlu0 %8776
    %v8778 = vrcp.pop %v8777
    %v8779 = vmul.f32 %v8774, %v8778
    %8781 = vrot.lane.b32.xlu0 %v8779, 1
    %v8782 = vpop.permute.xlu0 %8781
    %vm8784 = vcmp.gt.f32.partialorder %v8779, %v8782
    %v8785 = vsel %vm8784, 1, 0
    %v8786 = vcvt.s32.f32 %v8785
    %8787 = vrot.lane.b32.xlu0 %v8779, 127
    %v8788 = vpop.permute.xlu0 %8787
    %v8790 = vmax.f32 %v8779, %v8788
    %v8792 = vlaneseq
    %v8793 = vshrl.u32 %v8792, 7
    %v8794 = vsub.s32 0, %v8793
    %v8795 = vrot.slane %v6836, %v8794
    %8797 = vmatprep.subr.mxu0 0.0
    %8798 = vmatpush1.msra.mxu0 %v6831
    %8799 = vmatprep.subr.mxu0 0.0
    %8800 = vmatpush1.msra.mxu0 %v6832
    %8801 = vmatprep.subr.mxu0 0.0
    %8802 = vmatpush1.msra.mxu0 %v6833
    %8803 = vmatprep.subr.mxu0 0.0
    %8804 = vmatpush1.msra.mxu0 %v6834
    %8805 = vmatprep.subr.mxu0 0.0
    %8806 = vmatpush1.msra.mxu0 0.0
    %8807 = vmatprep.subr.mxu0 0.0
    %8808 = vmatpush1.msra.mxu0 0.0
    %8809 = vmatprep.subr.mxu0 0.0
    %8810 = vmatpush1.msra.mxu0 0.0
    %8811 = vmatprep.subr.mxu0 0.0
    %8812 = vmatpush1.msra.mxu0 0.0
    %8813 = vmatprep.subr.mxu0 0.0
    %8814 = vmatpush1.msra.mxu0 0.0
    %8815 = vmatprep.subr.mxu0 0.0
    %8816 = vmatpush1.msra.mxu0 0.0
    %8817 = vmatprep.subr.mxu0 0.0
    %8818 = vmatpush1.msra.mxu0 0.0
    %8819 = vmatprep.subr.mxu0 0.0
    %8820 = vmatpush1.msra.mxu0 0.0
    %8821 = vmatprep.subr.mxu0 0.0
    %8822 = vmatpush1.msra.mxu0 0.0
    %8823 = vmatprep.subr.mxu0 0.0
    %8824 = vmatpush1.msra.mxu0 0.0
    %8825 = vmatprep.subr.mxu0 0.0
    %8826 = vmatpush1.msra.mxu0 0.0
    %8827 = vmatprep.subr.mxu0 0.0
    %8828 = vmatpush1.msra.mxu0 0.0
    %8829 = vmatprep.subr.mxu0 0.0
    %8830 = vmatpush1.msra.mxu0 0.0
    %8831 = vmatprep.subr.mxu0 0.0
    %8832 = vmatpush1.msra.mxu0 0.0
    %8833 = vmatprep.subr.mxu0 0.0
    %8834 = vmatpush1.msra.mxu0 0.0
    %8835 = vmatprep.subr.mxu0 0.0
    %8836 = vmatpush1.msra.mxu0 0.0
    %8837 = vmatprep.subr.mxu0 0.0
    %8838 = vmatpush1.msra.mxu0 0.0
    %8839 = vmatprep.subr.mxu0 0.0
    %8840 = vmatpush1.msra.mxu0 0.0
    %8841 = vmatprep.subr.mxu0 0.0
    %8842 = vmatpush1.msra.mxu0 0.0
    %8843 = vmatprep.subr.mxu0 0.0
    %8844 = vmatpush1.msra.mxu0 0.0
    %8845 = vmatprep.subr.mxu0 0.0
    %8846 = vmatpush1.msra.mxu0 0.0
    %8847 = vmatprep.subr.mxu0 0.0
    %8848 = vmatpush1.msra.mxu0 0.0
    %8849 = vmatprep.subr.mxu0 0.0
    %8850 = vmatpush1.msra.mxu0 0.0
    %8851 = vmatprep.subr.mxu0 0.0
    %8852 = vmatpush1.msra.mxu0 0.0
    %8853 = vmatprep.subr.mxu0 0.0
    %8854 = vmatpush1.msra.mxu0 0.0
    %8855 = vmatprep.subr.mxu0 0.0
    %8856 = vmatpush1.msra.mxu0 0.0
    %8857 = vmatprep.subr.mxu0 0.0
    %8858 = vmatpush1.msra.mxu0 0.0
    %8859 = vmatprep.subr.mxu0 0.0
    %8860 = vmatpush1.msra.mxu0 0.0
    %8861 = vmatprep.mubr.f32.mxu0 0.0
    %8862 = vmatmul.mubr.f32.gmra.mrb[0].mxu0 %v8697
    %v8863 = vpop.f32.mrb[0].mxu0
    %v8864 = vadd.f32 %v8795, %v8863
    %v8865 = vpop.f32.mrb[0].mxu0
    %8866 = vdwg.mxu0
    %v8867 = vmax.f32 %v8864, 0.0
    %v8869 = vlaneseq
    %v8870 = vshrl.u32 %v8869, 7
    %v8871 = vsub.s32 0, %v8870
    %v8872 = vrot.slane %v6855, %v8871
    %8874 = vmatprep.subr.mxu0 0.0
    %8875 = vmatpush1.msra.mxu0 %v6838
    %8876 = vmatprep.subr.mxu0 0.0
    %8877 = vmatpush1.msra.mxu0 %v6839
    %8878 = vmatprep.subr.mxu0 0.0
    %8879 = vmatpush1.msra.mxu0 %v6840
    %8880 = vmatprep.subr.mxu0 0.0
    %8881 = vmatpush1.msra.mxu0 %v6841
    %8882 = vmatprep.subr.mxu0 0.0
    %8883 = vmatpush1.msra.mxu0 %v6842
    %8884 = vmatprep.subr.mxu0 0.0
    %8885 = vmatpush1.msra.mxu0 %v6843
    %8886 = vmatprep.subr.mxu0 0.0
    %8887 = vmatpush1.msra.mxu0 %v6844
    %8888 = vmatprep.subr.mxu0 0.0
    %8889 = vmatpush1.msra.mxu0 %v6845
    %8890 = vmatprep.subr.mxu0 0.0
    %8891 = vmatpush1.msra.mxu0 %v6846
    %8892 = vmatprep.subr.mxu0 0.0
    %8893 = vmatpush1.msra.mxu0 %v6847
    %8894 = vmatprep.subr.mxu0 0.0
    %8895 = vmatpush1.msra.mxu0 %v6848
    %8896 = vmatprep.subr.mxu0 0.0
    %8897 = vmatpush1.msra.mxu0 %v6849
    %8898 = vmatprep.subr.mxu0 0.0
    %8899 = vmatpush1.msra.mxu0 %v6850
    %8900 = vmatprep.subr.mxu0 0.0
    %8901 = vmatpush1.msra.mxu0 %v6851
    %8902 = vmatprep.subr.mxu0 0.0
    %8903 = vmatpush1.msra.mxu0 %v6852
    %8904 = vmatprep.subr.mxu0 0.0
    %8905 = vmatpush1.msra.mxu0 %v6853
    %8906 = vmatprep.subr.mxu0 0.0
    %8907 = vmatpush1.msra.mxu0 0.0
    %8908 = vmatprep.subr.mxu0 0.0
    %8909 = vmatpush1.msra.mxu0 0.0
    %8910 = vmatprep.subr.mxu0 0.0
    %8911 = vmatpush1.msra.mxu0 0.0
    %8912 = vmatprep.subr.mxu0 0.0
    %8913 = vmatpush1.msra.mxu0 0.0
    %8914 = vmatprep.subr.mxu0 0.0
    %8915 = vmatpush1.msra.mxu0 0.0
    %8916 = vmatprep.subr.mxu0 0.0
    %8917 = vmatpush1.msra.mxu0 0.0
    %8918 = vmatprep.subr.mxu0 0.0
    %8919 = vmatpush1.msra.mxu0 0.0
    %8920 = vmatprep.subr.mxu0 0.0
    %8921 = vmatpush1.msra.mxu0 0.0
    %8922 = vmatprep.subr.mxu0 0.0
    %8923 = vmatpush1.msra.mxu0 0.0
    %8924 = vmatprep.subr.mxu0 0.0
    %8925 = vmatpush1.msra.mxu0 0.0
    %8926 = vmatprep.subr.mxu0 0.0
    %8927 = vmatpush1.msra.mxu0 0.0
    %8928 = vmatprep.subr.mxu0 0.0
    %8929 = vmatpush1.msra.mxu0 0.0
    %8930 = vmatprep.subr.mxu0 0.0
    %8931 = vmatpush1.msra.mxu0 0.0
    %8932 = vmatprep.subr.mxu0 0.0
    %8933 = vmatpush1.msra.mxu0 0.0
    %8934 = vmatprep.subr.mxu0 0.0
    %8935 = vmatpush1.msra.mxu0 0.0
    %8936 = vmatprep.subr.mxu0 0.0
    %8937 = vmatpush1.msra.mxu0 0.0
    %8938 = vmatprep.mubr.f32.mxu0 0.0
    %8939 = vmatmul.mubr.f32.gmra.mrb[0].mxu0 %v8867
    %v8940 = vpop.f32.mrb[0].mxu0
    %v8941 = vadd.f32 %v8872, %v8940
    %v8942 = vpop.f32.mrb[0].mxu0
    %8943 = vdwg.mxu0
    %8945 = vset.pattern.permute.xlu0 1
    %8946 = vperm.xlu0 %8945, %v8786
    %v8947 = vpop.permute.xlu0 %8946
    %v8949 = vmul.f32 %v8947, %v8941
    %v8950 = vsub.f32 1.0, %v8786
    %8952 = vset.pattern.permute.xlu0 1
    %8953 = vperm.xlu0 %8952, %v8950
    %v8954 = vpop.permute.xlu0 %8953
    %v8956 = vmul.f32 %v8954, %v8941
    %8958 = vrot.lane.b32.xlu0 %v8956, 32
    %v8959 = vpop.permute.xlu0 %8958
    %v8961 = vadd.f32 %v8949, %v8959
    %8962 = vrot.lane.b32.xlu0 %v8950, 127
    %v8963 = vpop.permute.xlu0 %8962
    %v8965 = vsel %vm2241, %v8963, %v8786
    %v8967 = vsel %vm6684, %v8965, 0
    %8969 = vmatprep.subr.mxu0 0.0
    %8970 = vmatpush1.msra.mxu0 %v8967
    %8971 = vmatprep.subr.mxu0 0.0
    %8972 = vmatpush1.msra.mxu0 0.0
    %8973 = vmatprep.subr.mxu0 0.0
    %8974 = vmatpush1.msra.mxu0 0.0
    %8975 = vmatprep.subr.mxu0 0.0
    %8976 = vmatpush1.msra.mxu0 0.0
    %8977 = vmatprep.subr.mxu0 0.0
    %8978 = vmatpush1.msra.mxu0 0.0
    %8979 = vmatprep.subr.mxu0 0.0
    %8980 = vmatpush1.msra.mxu0 0.0
    %8981 = vmatprep.subr.mxu0 0.0
    %8982 = vmatpush1.msra.mxu0 0.0
    %8983 = vmatprep.subr.mxu0 0.0
    %8984 = vmatpush1.msra.mxu0 0.0
    %8985 = vmatprep.subr.mxu0 0.0
    %8986 = vmatpush1.msra.mxu0 0.0
    %8987 = vmatprep.subr.mxu0 0.0
    %8988 = vmatpush1.msra.mxu0 0.0
    %8989 = vmatprep.subr.mxu0 0.0
    %8990 = vmatpush1.msra.mxu0 0.0
    %8991 = vmatprep.subr.mxu0 0.0
    %8992 = vmatpush1.msra.mxu0 0.0
    %8993 = vmatprep.subr.mxu0 0.0
    %8994 = vmatpush1.msra.mxu0 0.0
    %8995 = vmatprep.subr.mxu0 0.0
    %8996 = vmatpush1.msra.mxu0 0.0
    %8997 = vmatprep.subr.mxu0 0.0
    %8998 = vmatpush1.msra.mxu0 0.0
    %8999 = vmatprep.subr.mxu0 0.0
    %9000 = vmatpush1.msra.mxu0 0.0
    %9001 = vmatprep.subr.mxu0 0.0
    %9002 = vmatpush1.msra.mxu0 0.0
    %9003 = vmatprep.subr.mxu0 0.0
    %9004 = vmatpush1.msra.mxu0 0.0
    %9005 = vmatprep.subr.mxu0 0.0
    %9006 = vmatpush1.msra.mxu0 0.0
    %9007 = vmatprep.subr.mxu0 0.0
    %9008 = vmatpush1.msra.mxu0 0.0
    %9009 = vmatprep.subr.mxu0 0.0
    %9010 = vmatpush1.msra.mxu0 0.0
    %9011 = vmatprep.subr.mxu0 0.0
    %9012 = vmatpush1.msra.mxu0 0.0
    %9013 = vmatprep.subr.mxu0 0.0
    %9014 = vmatpush1.msra.mxu0 0.0
    %9015 = vmatprep.subr.mxu0 0.0
    %9016 = vmatpush1.msra.mxu0 0.0
    %9017 = vmatprep.subr.mxu0 0.0
    %9018 = vmatpush1.msra.mxu0 0.0
    %9019 = vmatprep.subr.mxu0 0.0
    %9020 = vmatpush1.msra.mxu0 0.0
    %9021 = vmatprep.subr.mxu0 0.0
    %9022 = vmatpush1.msra.mxu0 0.0
    %9023 = vmatprep.subr.mxu0 0.0
    %9024 = vmatpush1.msra.mxu0 0.0
    %9025 = vmatprep.subr.mxu0 0.0
    %9026 = vmatpush1.msra.mxu0 0.0
    %9027 = vmatprep.subr.mxu0 0.0
    %9028 = vmatpush1.msra.mxu0 0.0
    %9029 = vmatprep.subr.mxu0 0.0
    %9030 = vmatpush1.msra.mxu0 0.0
    %9031 = vmatprep.subr.mxu0 0.0
    %9032 = vmatpush1.msra.mxu0 0.0
    %9033 = vmatprep.mubr.f32.mxu0 0.0
    %9034 = vmatmul.mubr.f32.gmra.mrb[0].mxu0 %v6682
    %v9035 = vpop.f32.mrb[0].mxu0
    %v9036 = vadd.f32 0.0, %v9035
    %v9037 = vpop.f32.mrb[0].mxu0
    %9038 = vdwg.mxu0
    %v9039 = vmul.f32 %v9036, %v8965
    %v9040 = vsel %vm6484, %v9039, 0.0
    %9041 = vadd.xlane.f32.xlu0 %v9040
    %v9042 = vpop.xlane.xlu0 %9041
    %vm9043 = vcmp.le.f32.partialorder %v9042, 1.0
    %v9044 = vsel %vm9043, 1, 0
    %v9045 = vcvt.s32.f32 %v9044
    %v9046 = vmul.f32 %v9045, %v8961
    %v9047 = vsub.f32 1.0, %v9045
    %v9048 = vmul.f32 %v9047, %v8689
    %9050 = vrot.lane.b32.xlu0 %v9048, 32
    %v9051 = vpop.permute.xlu0 %9050
    %v9053 = vadd.f32 %v9046, %v9051
    %9055 = vset.pattern.permute.xlu0 0
    %9056 = vperm.xlu0 %9055, %v8790
    %v9057 = vpop.permute.xlu0 %9056
    %v9059 = vmul.f32 %v9053, %v9057
    %9061 = vrot.lane.b32.xlu0 %v9059, 96
    %v9062 = vpop.permute.xlu0 %9061
    %v9064 = vadd.f32 %v8666, %v9062
    %v9065 = vld [vmem:[%s71] sm:$0xff]
    %v9066 = vld [vmem:[%s71 + $0x8] sm:$0xff]
    %v9067 = vld [vmem:[%s71 + $0x10] sm:$0xff]
    %v9068 = vld [vmem:[%s71 + $0x18] sm:$0xff]
    %v9069 = vld [vmem:[%s73] sm:$0x1]
    %v9071 = vlaneseq
    %v9072 = vshrl.u32 %v9071, 7
    %v9073 = vsub.s32 0, %v9072
    %v9074 = vrot.slane %v9069, %v9073
    %v9077 = vsel %vm291, %v9064, 0
    %9079 = vmatprep.subr.mxu0 0.0
    %9080 = vmatpush1.msra.mxu0 %v9065
    %9081 = vmatprep.subr.mxu0 0.0
    %9082 = vmatpush1.msra.mxu0 %v9066
    %9083 = vmatprep.subr.mxu0 0.0
    %9084 = vmatpush1.msra.mxu0 %v9067
    %9085 = vmatprep.subr.mxu0 0.0
    %9086 = vmatpush1.msra.mxu0 %v9068
    %9087 = vmatprep.subr.mxu0 0.0
    %9088 = vmatpush1.msra.mxu0 0.0
    %9089 = vmatprep.subr.mxu0 0.0
    %9090 = vmatpush1.msra.mxu0 0.0
    %9091 = vmatprep.subr.mxu0 0.0
    %9092 = vmatpush1.msra.mxu0 0.0
    %9093 = vmatprep.subr.mxu0 0.0
    %9094 = vmatpush1.msra.mxu0 0.0
    %9095 = vmatprep.subr.mxu0 0.0
    %9096 = vmatpush1.msra.mxu0 0.0
    %9097 = vmatprep.subr.mxu0 0.0
    %9098 = vmatpush1.msra.mxu0 0.0
    %9099 = vmatprep.subr.mxu0 0.0
    %9100 = vmatpush1.msra.mxu0 0.0
    %9101 = vmatprep.subr.mxu0 0.0
    %9102 = vmatpush1.msra.mxu0 0.0
    %9103 = vmatprep.subr.mxu0 0.0
    %9104 = vmatpush1.msra.mxu0 0.0
    %9105 = vmatprep.subr.mxu0 0.0
    %9106 = vmatpush1.msra.mxu0 0.0
    %9107 = vmatprep.subr.mxu0 0.0
    %9108 = vmatpush1.msra.mxu0 0.0
    %9109 = vmatprep.subr.mxu0 0.0
    %9110 = vmatpush1.msra.mxu0 0.0
    %9111 = vmatprep.subr.mxu0 0.0
    %9112 = vmatpush1.msra.mxu0 0.0
    %9113 = vmatprep.subr.mxu0 0.0
    %9114 = vmatpush1.msra.mxu0 0.0
    %9115 = vmatprep.subr.mxu0 0.0
    %9116 = vmatpush1.msra.mxu0 0.0
    %9117 = vmatprep.subr.mxu0 0.0
    %9118 = vmatpush1.msra.mxu0 0.0
    %9119 = vmatprep.subr.mxu0 0.0
    %9120 = vmatpush1.msra.mxu0 0.0
    %9121 = vmatprep.subr.mxu0 0.0
    %9122 = vmatpush1.msra.mxu0 0.0
    %9123 = vmatprep.subr.mxu0 0.0
    %9124 = vmatpush1.msra.mxu0 0.0
    %9125 = vmatprep.subr.mxu0 0.0
    %9126 = vmatpush1.msra.mxu0 0.0
    %9127 = vmatprep.subr.mxu0 0.0
    %9128 = vmatpush1.msra.mxu0 0.0
    %9129 = vmatprep.subr.mxu0 0.0
    %9130 = vmatpush1.msra.mxu0 0.0
    %9131 = vmatprep.subr.mxu0 0.0
    %9132 = vmatpush1.msra.mxu0 0.0
    %9133 = vmatprep.subr.mxu0 0.0
    %9134 = vmatpush1.msra.mxu0 0.0
    %9135 = vmatprep.subr.mxu0 0.0
    %9136 = vmatpush1.msra.mxu0 0.0
    %9137 = vmatprep.subr.mxu0 0.0
    %9138 = vmatpush1.msra.mxu0 0.0
    %9139 = vmatprep.subr.mxu0 0.0
    %9140 = vmatpush1.msra.mxu0 0.0
    %9141 = vmatprep.subr.mxu0 0.0
    %9142 = vmatpush1.msra.mxu0 0.0
    %9143 = vmatprep.mubr.f32.mxu0 0.0
    %9144 = vmatmul.mubr.f32.gmra.mrb[0].mxu0 %v9077
    %v9145 = vpop.f32.mrb[0].mxu0
    %v9146 = vadd.f32 %v9074, %v9145
    %v9147 = vpop.f32.mrb[0].mxu0
    %9148 = vdwg.mxu0
    %vm9149 = vcmask 58368
    %9150 = vst.msk [vmem:[#allocation2] sm:$0x3] %vm9149, %v9146
    // Predicated region
    $region150: #{switch_transformer_forward.1} parent=1 // pred_check
      _
    $region151: #{switch_transformer_forward.1} parent=1 // pred_check_branch
      %9152 = sbr.rel (0) target = $region153
    $region152: #{switch_transformer_forward.1} parent=1 // pred_region
      %s9154 = ssub.s32 32, 32
      %9155 = vsyncadd [#allocation3], %s9154
      %s9157 = sshll.u32 [#allocation2], 4
      %s9158 = int_to_ptr.vmem [resolvable:$true] %s9157
      %9160 = dma.vmem_to_hbm [thread:$0]  %s9158, 32, %s75, [#allocation3]
    $region153: #{switch_transformer_forward.1} parent=1 // pred_fallthru
      _
    // Predicated region
    $region154: #{switch_transformer_forward.1} parent=1 // pred_check
      _
    $region155: #{switch_transformer_forward.1} parent=1 // pred_check_branch
      %9162 = sbr.rel (0) target = $region157
    $region156: #{switch_transformer_forward.1} parent=1 // pred_region
      %9163 = dma.done [#allocation3], 32
    $region157: #{switch_transformer_forward.1} parent=1 // pred_fallthru
      _
    %9164 = vsyncpa [#allocation3], 1

</llo_original>
